<compile_context>
chip_gen: v6e
topology: v6e:2x2x1
jax: 0.10.0
libtpu: 0.0.40
codegen_flags: <defaults>
</compile_context>

<pallas_src>
import functools

import numpy as np
import jax
import jax.numpy as jnp
from jax.experimental import pallas as pl
from jax.experimental.pallas import tpu as pltpu

STRIDE = 4
PAD = 3


def _round_up(x, m):
    return (x + m - 1) // m * m


def _conv_out(size, k):
    return (size + 2 * PAD - k) // STRIDE + 1


def _fused_kernel(p1_ref, w1_ref, b1_ref, s_ref, w2_ref, b2_ref, out_ref,
                  act_ref, *, tm1, t2, m2p, c2p):
    """Both conv layers fused; layer-1 activation stays in VMEM (act_ref)."""
    i = pl.program_id(0)

    # ---- layer 1 tile: (tm1, K1p) @ (K1p, C1p) + b1, ReLU -> VMEM scratch ----
    acc1 = jnp.dot(p1_ref[...], w1_ref[...], preferred_element_type=jnp.float32)
    tile = jnp.maximum(acc1 + b1_ref[...], 0.0)
    off = pl.multiple_of(i * tm1, tm1)
    act_ref[pl.ds(off, tm1), :] = tile.astype(act_ref.dtype)

    # ---- layer 2 on the last grid step: in-VMEM gather + matmul + ReLU ------
    @pl.when(i == pl.num_programs(0) - 1)
    def _layer2():
        a1 = act_ref[...]                                # (M1p, C1p) bf16
        acc2 = jnp.zeros((m2p, c2p), jnp.float32)
        for t in range(t2):                              # static 7*7 unroll
            # MXU row-gather: 0/1 selection matrix picks the activation rows
            # that form this kernel tap's column block of the im2col matrix.
            g = jnp.dot(s_ref[t], a1, preferred_element_type=jnp.float32)
            acc2 = acc2 + jnp.dot(g.astype(jnp.bfloat16), w2_ref[t],
                                  preferred_element_type=jnp.float32)
        out_ref[...] = jnp.maximum(acc2 + b2_ref[...], 0.0)


def _build_l2_selection(n, oh1, ow1, oh2, ow2, kh_sz, kw_sz, m2p, m1p):
    """S[t, m2, r] = 1 iff layer-2 output m2, kernel tap t reads act1 row r."""
    sel = np.zeros((kh_sz * kw_sz, m2p, m1p), np.float32)
    for b in range(n):
        for oh in range(oh2):
            for ow in range(ow2):
                m2 = (b * oh2 + oh) * ow2 + ow
                for kh in range(kh_sz):
                    ih = oh * STRIDE + kh - PAD
                    if not (0 <= ih < oh1):
                        continue
                    for kw in range(kw_sz):
                        iw = ow * STRIDE + kw - PAD
                        if not (0 <= iw < ow1):
                            continue
                        r = (b * oh1 + ih) * ow1 + iw
                        sel[kh * kw_sz + kw, m2, r] = 1.0
    return sel


def large_kernel_downsample_net(x, params):
    """x: (N, Cin, H, W) float32 (NCHW, like the PyTorch module)."""
    N, Cin, H, W = x.shape
    C1, _, KH, KW = params["w1"].shape                   # (64, Cin, 7, 7)
    C2 = params["w2"].shape[0]                           # 128
    OH1, OW1 = _conv_out(H, KH), _conv_out(W, KW)
    OH2, OW2 = _conv_out(OH1, KH), _conv_out(OW1, KW)

    M1, K1, T2, M2 = N * OH1 * OW1, Cin * KH * KW, KH * KW, N * OH2 * OW2
    TM1 = min(_round_up(M1, 8), 256)                     # layer-1 M tile
    M1p, K1p = _round_up(M1, TM1), _round_up(K1, 128)
    C1p, C2p = _round_up(C1, 128), _round_up(C2, 128)    # lane-dense channels
    M2p = _round_up(M2, 8)
    G = M1p // TM1

    # ------------------ glue (tiny tensors / single XLA ops) -----------------
    x_nhwc = jnp.transpose(x, (0, 2, 3, 1)).astype(jnp.bfloat16)
    p1 = jax.lax.conv_general_dilated_patches(
        x_nhwc, (KH, KW), (STRIDE, STRIDE), ((PAD, PAD), (PAD, PAD)),
        dimension_numbers=("NHWC", "HWIO", "NHWC"))
    # feature order is (c, kh, kw) -> matches PyTorch OIHW weight flattening.
    p1 = p1.reshape(M1, K1)
    p1 = jnp.pad(p1, ((0, M1p - M1), (0, K1p - K1)))     # MXU alignment only

    # Weight / bias prep: all small, reshaped & padded once per trace.
    w1m = jnp.pad(params["w1"].reshape(C1, K1).T,
                  ((0, K1p - K1), (0, C1p - C1))).astype(jnp.bfloat16)
    b1v = jnp.pad(params["b1"], (0, C1p - C1)).astype(jnp.float32).reshape(1, C1p)
    w2m = jnp.pad(jnp.transpose(params["w2"], (2, 3, 1, 0)).reshape(T2, C1, C2),
                  ((0, 0), (0, C1p - C1), (0, C2p - C2))).astype(jnp.bfloat16)
    b2v = jnp.pad(params["b2"], (0, C2p - C2)).astype(jnp.float32).reshape(1, C2p)

    sel = jnp.asarray(
        _build_l2_selection(N, OH1, OW1, OH2, OW2, KH, KW, M2p, M1p),
        dtype=jnp.bfloat16)

    kernel = functools.partial(_fused_kernel, tm1=TM1, t2=T2, m2p=M2p, c2p=C2p)
    flops = 2 * (M1p * K1p * C1p
                 + T2 * M2p * M1p * C1p
                 + T2 * M2p * C1p * C2p)
    bytes_accessed = (2 * (p1.size + w1m.size + w2m.size + sel.size)
                      + 4 * (b1v.size + b2v.size + M2p * C2p))

    out2 = pl.pallas_call(
        kernel,
        out_shape=jax.ShapeDtypeStruct((M2p, C2p), jnp.float32),
        grid_spec=pltpu.PrefetchScalarGridSpec(
            num_scalar_prefetch=0,
            grid=(G,),
            in_specs=[
                pl.BlockSpec((TM1, K1p), lambda i: (i, 0)),        # patches (tiled)
                pl.BlockSpec((K1p, C1p), lambda i: (0, 0)),        # w1
                pl.BlockSpec((1, C1p), lambda i: (0, 0)),          # b1
                pl.BlockSpec((T2, M2p, M1p), lambda i: (0, 0, 0)),  # layer-2 gather
                pl.BlockSpec((T2, C1p, C2p), lambda i: (0, 0, 0)),  # w2
                pl.BlockSpec((1, C2p), lambda i: (0, 0)),          # b2
            ],
            out_specs=pl.BlockSpec((M2p, C2p), lambda i: (0, 0)),
            scratch_shapes=[pltpu.VMEM((M1p, C1p), jnp.bfloat16)],  # act1 (VMEM-resident)
        ),
        compiler_params=pltpu.CompilerParams(
            dimension_semantics=("arbitrary",)),
        cost_estimate=pl.CostEstimate(flops=flops, transcendentals=0,
                                      bytes_accessed=bytes_accessed),
    )(p1, w1m, b1v, sel, w2m, b2v)

    out = out2[:M2, :C2].reshape(N, OH2, OW2, C2)
    return jnp.transpose(out, (0, 3, 1, 2))              # back to NCHW


def _reference(x, params):
    def conv(x, w, b):
        y = jax.lax.conv_general_dilated(
            x, w, window_strides=(STRIDE, STRIDE),
            padding=[(PAD, PAD), (PAD, PAD)],
            dimension_numbers=("NCHW", "OIHW", "NCHW"))
        return jnp.maximum(y + b.reshape(1, -1, 1, 1), 0.0)
    return conv(conv(x, params["w1"], params["b1"]), params["w2"], params["b2"])


if __name__ == "__main__":
    key = jax.random.PRNGKey(0)
    k_x, k_w1, k_b1, k_w2, k_b2 = jax.random.split(key, 5)

    N, Cin, H, W = 2, 3, 32, 32
    x = jax.random.normal(k_x, (N, Cin, H, W), dtype=jnp.float32)

    # Deterministic parameter init (shapes from the PyTorch module __init__).
    params = {
        "w1": jax.random.normal(k_w1, (64, Cin, 7, 7), jnp.float32)
              * (1.0 / (Cin * 7 * 7)) ** 0.5,
        "b1": jax.random.normal(k_b1, (64,), jnp.float32) * 0.01,
        "w2": jax.random.normal(k_w2, (128, 64, 7, 7), jnp.float32)
              * (1.0 / (64 * 7 * 7)) ** 0.5,
        "b2": jax.random.normal(k_b2, (128,), jnp.float32) * 0.01,
    }

    out = jax.jit(large_kernel_downsample_net)(x, params)
    out = jax.block_until_ready(out)

    ref = _reference(x, params)
    assert out.shape == (N, 128, 2, 2), out.shape
    # bf16 operands with f32 accumulation -> bf16-level tolerance vs f32 ref.
    max_err = float(jnp.max(jnp.abs(out - ref)))
    assert jnp.allclose(out, ref, atol=2e-2, rtol=2e-2), max_err
    print("KERNEL_OK")
</pallas_src>

<mosaic_0001>
module attributes {stable_mosaic.version = 11 : i64} {
  func.func @_fused_kernel(%arg0: i32, %arg1: memref<128x256xbf16, #tpu.memory_space<vmem>>, %arg2: memref<256x128xbf16, #tpu.memory_space<vmem>>, %arg3: memref<1x128xf32, #tpu.memory_space<vmem>>, %arg4: memref<49x8x128xbf16, #tpu.memory_space<vmem>>, %arg5: memref<49x128x128xbf16, #tpu.memory_space<vmem>>, %arg6: memref<1x128xf32, #tpu.memory_space<vmem>>, %arg7: memref<8x128xf32, #tpu.memory_space<vmem>>, %arg8: memref<128x128xbf16, #tpu.memory_space<vmem>>) attributes {dimension_semantics = [#tpu.dimension_semantics<arbitrary>], iteration_bounds = array<i64: 1>, scalar_prefetch = 0 : i64, scratch_operands = 1 : i64, tpu.core_type = #tpu.core_type<tc>, window_params = [{transform_indices = @transform_0, window_bounds = array<i64: 128, 256>}, {pipeline_mode = #tpu.pipeline_mode<synchronous>, transform_indices = @transform_1, window_bounds = array<i64: 256, 128>}, {pipeline_mode = #tpu.pipeline_mode<synchronous>, transform_indices = @transform_2, window_bounds = array<i64: 1, 128>}, {pipeline_mode = #tpu.pipeline_mode<synchronous>, transform_indices = @transform_3, window_bounds = array<i64: 49, 8, 128>}, {pipeline_mode = #tpu.pipeline_mode<synchronous>, transform_indices = @transform_4, window_bounds = array<i64: 49, 128, 128>}, {pipeline_mode = #tpu.pipeline_mode<synchronous>, transform_indices = @transform_5, window_bounds = array<i64: 1, 128>}, {pipeline_mode = #tpu.pipeline_mode<synchronous>, transform_indices = @transform_6, window_bounds = array<i64: 8, 128>}]} {
    %c0 = arith.constant 0 : index
    %c0_0 = arith.constant 0 : index
    %0 = vector.load %arg1[%c0, %c0_0] : memref<128x256xbf16, #tpu.memory_space<vmem>>, vector<128x256xbf16>
    %c0_1 = arith.constant 0 : index
    %c0_2 = arith.constant 0 : index
    %1 = vector.load %arg2[%c0_1, %c0_2] : memref<256x128xbf16, #tpu.memory_space<vmem>>, vector<256x128xbf16>
    %cst = arith.constant dense<0.000000e+00> : vector<128x128xf32>
    %2 = tpu.matmul %0, %1, %cst {dimension_numbers = #tpu.dot_dimension_numbers<[1], [0], [0], [1], [0, 0, 1, 1], [], []>} : vector<128x256xbf16>, vector<256x128xbf16>, vector<128x128xf32> -> vector<128x128xf32>
    %c0_3 = arith.constant 0 : index
    %c0_4 = arith.constant 0 : index
    %3 = vector.load %arg3[%c0_3, %c0_4] : memref<1x128xf32, #tpu.memory_space<vmem>>, vector<1x128xf32>
    %4 = vector.broadcast %3 : vector<1x128xf32> to vector<128x128xf32>
    %5 = arith.addf %2, %4 : vector<128x128xf32>
    %cst_5 = arith.constant 0.000000e+00 : f32
    %6 = vector.broadcast %cst_5 : f32 to vector<128x128xf32>
    %7 = arith.maximumf %5, %6 : vector<128x128xf32>
    %c128_i32 = arith.constant 128 : i32
    %8 = arith.muli %arg0, %c128_i32 : i32
    %9 = tpu.assume_multiple %8, 128 : i32
    %10 = arith.truncf %7 : vector<128x128xf32> to vector<128x128xbf16>
    %11 = arith.index_cast %9 : i32 to index
    %c0_6 = arith.constant 0 : index
    %12 = vector.load %arg8[%11, %c0_6] : memref<128x128xbf16, #tpu.memory_space<vmem>>, vector<128x128xbf16>
    tpu.vector_store %arg8[%11, %c0_6], %10 {strides = array<i32>} : memref<128x128xbf16, #tpu.memory_space<vmem>>, vector<128x128xbf16>,
    %c0_i32 = arith.constant 0 : i32
    %13 = arith.cmpi eq, %arg0, %c0_i32 : i32
    %14 = arith.extui %13 : i1 to i32
    %c0_i32_7 = arith.constant 0 : i32
    %15 = arith.cmpi ne, %14, %c0_i32_7 : i32
    scf.if %15 {
      %c0_8 = arith.constant 0 : index
      %c0_9 = arith.constant 0 : index
      %16 = vector.load %arg8[%c0_8, %c0_9] : memref<128x128xbf16, #tpu.memory_space<vmem>>, vector<128x128xbf16>
      %cst_10 = arith.constant 0.000000e+00 : f32
      %17 = vector.broadcast %cst_10 : f32 to vector<8x128xf32>
      %c0_11 = arith.constant 0 : index
      %c0_12 = arith.constant 0 : index
      %c0_13 = arith.constant 0 : index
      %18 = vector.load %arg4[%c0_11, %c0_12, %c0_13] : memref<49x8x128xbf16, #tpu.memory_space<vmem>>, vector<1x8x128xbf16>
      %19 = vector.shape_cast %18 : vector<1x8x128xbf16> to vector<8x128xbf16>
      %cst_14 = arith.constant dense<0.000000e+00> : vector<8x128xf32>
      %20 = tpu.matmul %19, %16, %cst_14 {dimension_numbers = #tpu.dot_dimension_numbers<[1], [0], [0], [1], [0, 0, 1, 1], [], []>} : vector<8x128xbf16>, vector<128x128xbf16>, vector<8x128xf32> -> vector<8x128xf32>
      %21 = arith.truncf %20 : vector<8x128xf32> to vector<8x128xbf16>
      %c0_15 = arith.constant 0 : index
      %c0_16 = arith.constant 0 : index
      %c0_17 = arith.constant 0 : index
      %22 = vector.load %arg5[%c0_15, %c0_16, %c0_17] : memref<49x128x128xbf16, #tpu.memory_space<vmem>>, vector<1x128x128xbf16>
      %23 = vector.shape_cast %22 : vector<1x128x128xbf16> to vector<128x128xbf16>
      %cst_18 = arith.constant dense<0.000000e+00> : vector<8x128xf32>
      %24 = tpu.matmul %21, %23, %cst_18 {dimension_numbers = #tpu.dot_dimension_numbers<[1], [0], [0], [1], [0, 0, 1, 1], [], []>} : vector<8x128xbf16>, vector<128x128xbf16>, vector<8x128xf32> -> vector<8x128xf32>
      %25 = arith.addf %17, %24 : vector<8x128xf32>
      %c1 = arith.constant 1 : index
      %c0_19 = arith.constant 0 : index
      %c0_20 = arith.constant 0 : index
      %26 = vector.load %arg4[%c1, %c0_19, %c0_20] : memref<49x8x128xbf16, #tpu.memory_space<vmem>>, vector<1x8x128xbf16>
      %27 = vector.shape_cast %26 : vector<1x8x128xbf16> to vector<8x128xbf16>
      %cst_21 = arith.constant dense<0.000000e+00> : vector<8x128xf32>
      %28 = tpu.matmul %27, %16, %cst_21 {dimension_numbers = #tpu.dot_dimension_numbers<[1], [0], [0], [1], [0, 0, 1, 1], [], []>} : vector<8x128xbf16>, vector<128x128xbf16>, vector<8x128xf32> -> vector<8x128xf32>
      %29 = arith.truncf %28 : vector<8x128xf32> to vector<8x128xbf16>
      %c1_22 = arith.constant 1 : index
      %c0_23 = arith.constant 0 : index
      %c0_24 = arith.constant 0 : index
      %30 = vector.load %arg5[%c1_22, %c0_23, %c0_24] : memref<49x128x128xbf16, #tpu.memory_space<vmem>>, vector<1x128x128xbf16>
      %31 = vector.shape_cast %30 : vector<1x128x128xbf16> to vector<128x128xbf16>
      %cst_25 = arith.constant dense<0.000000e+00> : vector<8x128xf32>
      %32 = tpu.matmul %29, %31, %cst_25 {dimension_numbers = #tpu.dot_dimension_numbers<[1], [0], [0], [1], [0, 0, 1, 1], [], []>} : vector<8x128xbf16>, vector<128x128xbf16>, vector<8x128xf32> -> vector<8x128xf32>
      %33 = arith.addf %25, %32 : vector<8x128xf32>
      %c2 = arith.constant 2 : index
      %c0_26 = arith.constant 0 : index
      %c0_27 = arith.constant 0 : index
      %34 = vector.load %arg4[%c2, %c0_26, %c0_27] : memref<49x8x128xbf16, #tpu.memory_space<vmem>>, vector<1x8x128xbf16>
      %35 = vector.shape_cast %34 : vector<1x8x128xbf16> to vector<8x128xbf16>
      %cst_28 = arith.constant dense<0.000000e+00> : vector<8x128xf32>
      %36 = tpu.matmul %35, %16, %cst_28 {dimension_numbers = #tpu.dot_dimension_numbers<[1], [0], [0], [1], [0, 0, 1, 1], [], []>} : vector<8x128xbf16>, vector<128x128xbf16>, vector<8x128xf32> -> vector<8x128xf32>
      %37 = arith.truncf %36 : vector<8x128xf32> to vector<8x128xbf16>
      %c2_29 = arith.constant 2 : index
      %c0_30 = arith.constant 0 : index
      %c0_31 = arith.constant 0 : index
      %38 = vector.load %arg5[%c2_29, %c0_30, %c0_31] : memref<49x128x128xbf16, #tpu.memory_space<vmem>>, vector<1x128x128xbf16>
      %39 = vector.shape_cast %38 : vector<1x128x128xbf16> to vector<128x128xbf16>
      %cst_32 = arith.constant dense<0.000000e+00> : vector<8x128xf32>
      %40 = tpu.matmul %37, %39, %cst_32 {dimension_numbers = #tpu.dot_dimension_numbers<[1], [0], [0], [1], [0, 0, 1, 1], [], []>} : vector<8x128xbf16>, vector<128x128xbf16>, vector<8x128xf32> -> vector<8x128xf32>
      %41 = arith.addf %33, %40 : vector<8x128xf32>
      %c3 = arith.constant 3 : index
      %c0_33 = arith.constant 0 : index
      %c0_34 = arith.constant 0 : index
      %42 = vector.load %arg4[%c3, %c0_33, %c0_34] : memref<49x8x128xbf16, #tpu.memory_space<vmem>>, vector<1x8x128xbf16>
      %43 = vector.shape_cast %42 : vector<1x8x128xbf16> to vector<8x128xbf16>
      %cst_35 = arith.constant dense<0.000000e+00> : vector<8x128xf32>
      %44 = tpu.matmul %43, %16, %cst_35 {dimension_numbers = #tpu.dot_dimension_numbers<[1], [0], [0], [1], [0, 0, 1, 1], [], []>} : vector<8x128xbf16>, vector<128x128xbf16>, vector<8x128xf32> -> vector<8x128xf32>
      %45 = arith.truncf %44 : vector<8x128xf32> to vector<8x128xbf16>
      %c3_36 = arith.constant 3 : index
      %c0_37 = arith.constant 0 : index
      %c0_38 = arith.constant 0 : index
      %46 = vector.load %arg5[%c3_36, %c0_37, %c0_38] : memref<49x128x128xbf16, #tpu.memory_space<vmem>>, vector<1x128x128xbf16>
      %47 = vector.shape_cast %46 : vector<1x128x128xbf16> to vector<128x128xbf16>
      %cst_39 = arith.constant dense<0.000000e+00> : vector<8x128xf32>
      %48 = tpu.matmul %45, %47, %cst_39 {dimension_numbers = #tpu.dot_dimension_numbers<[1], [0], [0], [1], [0, 0, 1, 1], [], []>} : vector<8x128xbf16>, vector<128x128xbf16>, vector<8x128xf32> -> vector<8x128xf32>
      %49 = arith.addf %41, %48 : vector<8x128xf32>
      %c4 = arith.constant 4 : index
      %c0_40 = arith.constant 0 : index
      %c0_41 = arith.constant 0 : index
      %50 = vector.load %arg4[%c4, %c0_40, %c0_41] : memref<49x8x128xbf16, #tpu.memory_space<vmem>>, vector<1x8x128xbf16>
      %51 = vector.shape_cast %50 : vector<1x8x128xbf16> to vector<8x128xbf16>
      %cst_42 = arith.constant dense<0.000000e+00> : vector<8x128xf32>
      %52 = tpu.matmul %51, %16, %cst_42 {dimension_numbers = #tpu.dot_dimension_numbers<[1], [0], [0], [1], [0, 0, 1, 1], [], []>} : vector<8x128xbf16>, vector<128x128xbf16>, vector<8x128xf32> -> vector<8x128xf32>
      %53 = arith.truncf %52 : vector<8x128xf32> to vector<8x128xbf16>
      %c4_43 = arith.constant 4 : index
      %c0_44 = arith.constant 0 : index
      %c0_45 = arith.constant 0 : index
      %54 = vector.load %arg5[%c4_43, %c0_44, %c0_45] : memref<49x128x128xbf16, #tpu.memory_space<vmem>>, vector<1x128x128xbf16>
      %55 = vector.shape_cast %54 : vector<1x128x128xbf16> to vector<128x128xbf16>
      %cst_46 = arith.constant dense<0.000000e+00> : vector<8x128xf32>
      %56 = tpu.matmul %53, %55, %cst_46 {dimension_numbers = #tpu.dot_dimension_numbers<[1], [0], [0], [1], [0, 0, 1, 1], [], []>} : vector<8x128xbf16>, vector<128x128xbf16>, vector<8x128xf32> -> vector<8x128xf32>
      %57 = arith.addf %49, %56 : vector<8x128xf32>
      %c5 = arith.constant 5 : index
      %c0_47 = arith.constant 0 : index
      %c0_48 = arith.constant 0 : index
      %58 = vector.load %arg4[%c5, %c0_47, %c0_48] : memref<49x8x128xbf16, #tpu.memory_space<vmem>>, vector<1x8x128xbf16>
      %59 = vector.shape_cast %58 : vector<1x8x128xbf16> to vector<8x128xbf16>
      %cst_49 = arith.constant dense<0.000000e+00> : vector<8x128xf32>
      %60 = tpu.matmul %59, %16, %cst_49 {dimension_numbers = #tpu.dot_dimension_numbers<[1], [0], [0], [1], [0, 0, 1, 1], [], []>} : vector<8x128xbf16>, vector<128x128xbf16>, vector<8x128xf32> -> vector<8x128xf32>
      %61 = arith.truncf %60 : vector<8x128xf32> to vector<8x128xbf16>
      %c5_50 = arith.constant 5 : index
      %c0_51 = arith.constant 0 : index
      %c0_52 = arith.constant 0 : index
      %62 = vector.load %arg5[%c5_50, %c0_51, %c0_52] : memref<49x128x128xbf16, #tpu.memory_space<vmem>>, vector<1x128x128xbf16>
      %63 = vector.shape_cast %62 : vector<1x128x128xbf16> to vector<128x128xbf16>
      %cst_53 = arith.constant dense<0.000000e+00> : vector<8x128xf32>
      %64 = tpu.matmul %61, %63, %cst_53 {dimension_numbers = #tpu.dot_dimension_numbers<[1], [0], [0], [1], [0, 0, 1, 1], [], []>} : vector<8x128xbf16>, vector<128x128xbf16>, vector<8x128xf32> -> vector<8x128xf32>
      %65 = arith.addf %57, %64 : vector<8x128xf32>
      %c6 = arith.constant 6 : index
      %c0_54 = arith.constant 0 : index
      %c0_55 = arith.constant 0 : index
      %66 = vector.load %arg4[%c6, %c0_54, %c0_55] : memref<49x8x128xbf16, #tpu.memory_space<vmem>>, vector<1x8x128xbf16>
      %67 = vector.shape_cast %66 : vector<1x8x128xbf16> to vector<8x128xbf16>
      %cst_56 = arith.constant dense<0.000000e+00> : vector<8x128xf32>
      %68 = tpu.matmul %67, %16, %cst_56 {dimension_numbers = #tpu.dot_dimension_numbers<[1], [0], [0], [1], [0, 0, 1, 1], [], []>} : vector<8x128xbf16>, vector<128x128xbf16>, vector<8x128xf32> -> vector<8x128xf32>
      %69 = arith.truncf %68 : vector<8x128xf32> to vector<8x128xbf16>
      %c6_57 = arith.constant 6 : index
      %c0_58 = arith.constant 0 : index
      %c0_59 = arith.constant 0 : index
      %70 = vector.load %arg5[%c6_57, %c0_58, %c0_59] : memref<49x128x128xbf16, #tpu.memory_space<vmem>>, vector<1x128x128xbf16>
      %71 = vector.shape_cast %70 : vector<1x128x128xbf16> to vector<128x128xbf16>
      %cst_60 = arith.constant dense<0.000000e+00> : vector<8x128xf32>
      %72 = tpu.matmul %69, %71, %cst_60 {dimension_numbers = #tpu.dot_dimension_numbers<[1], [0], [0], [1], [0, 0, 1, 1], [], []>} : vector<8x128xbf16>, vector<128x128xbf16>, vector<8x128xf32> -> vector<8x128xf32>
      %73 = arith.addf %65, %72 : vector<8x128xf32>
      %c7 = arith.constant 7 : index
      %c0_61 = arith.constant 0 : index
      %c0_62 = arith.constant 0 : index
      %74 = vector.load %arg4[%c7, %c0_61, %c0_62] : memref<49x8x128xbf16, #tpu.memory_space<vmem>>, vector<1x8x128xbf16>
      %75 = vector.shape_cast %74 : vector<1x8x128xbf16> to vector<8x128xbf16>
      %cst_63 = arith.constant dense<0.000000e+00> : vector<8x128xf32>
      %76 = tpu.matmul %75, %16, %cst_63 {dimension_numbers = #tpu.dot_dimension_numbers<[1], [0], [0], [1], [0, 0, 1, 1], [], []>} : vector<8x128xbf16>, vector<128x128xbf16>, vector<8x128xf32> -> vector<8x128xf32>
      %77 = arith.truncf %76 : vector<8x128xf32> to vector<8x128xbf16>
      %c7_64 = arith.constant 7 : index
      %c0_65 = arith.constant 0 : index
      %c0_66 = arith.constant 0 : index
      %78 = vector.load %arg5[%c7_64, %c0_65, %c0_66] : memref<49x128x128xbf16, #tpu.memory_space<vmem>>, vector<1x128x128xbf16>
      %79 = vector.shape_cast %78 : vector<1x128x128xbf16> to vector<128x128xbf16>
      %cst_67 = arith.constant dense<0.000000e+00> : vector<8x128xf32>
      %80 = tpu.matmul %77, %79, %cst_67 {dimension_numbers = #tpu.dot_dimension_numbers<[1], [0], [0], [1], [0, 0, 1, 1], [], []>} : vector<8x128xbf16>, vector<128x128xbf16>, vector<8x128xf32> -> vector<8x128xf32>
      %81 = arith.addf %73, %80 : vector<8x128xf32>
      %c8 = arith.constant 8 : index
      %c0_68 = arith.constant 0 : index
      %c0_69 = arith.constant 0 : index
      %82 = vector.load %arg4[%c8, %c0_68, %c0_69] : memref<49x8x128xbf16, #tpu.memory_space<vmem>>, vector<1x8x128xbf16>
      %83 = vector.shape_cast %82 : vector<1x8x128xbf16> to vector<8x128xbf16>
      %cst_70 = arith.constant dense<0.000000e+00> : vector<8x128xf32>
      %84 = tpu.matmul %83, %16, %cst_70 {dimension_numbers = #tpu.dot_dimension_numbers<[1], [0], [0], [1], [0, 0, 1, 1], [], []>} : vector<8x128xbf16>, vector<128x128xbf16>, vector<8x128xf32> -> vector<8x128xf32>
      %85 = arith.truncf %84 : vector<8x128xf32> to vector<8x128xbf16>
      %c8_71 = arith.constant 8 : index
      %c0_72 = arith.constant 0 : index
      %c0_73 = arith.constant 0 : index
      %86 = vector.load %arg5[%c8_71, %c0_72, %c0_73] : memref<49x128x128xbf16, #tpu.memory_space<vmem>>, vector<1x128x128xbf16>
      %87 = vector.shape_cast %86 : vector<1x128x128xbf16> to vector<128x128xbf16>
      %cst_74 = arith.constant dense<0.000000e+00> : vector<8x128xf32>
      %88 = tpu.matmul %85, %87, %cst_74 {dimension_numbers = #tpu.dot_dimension_numbers<[1], [0], [0], [1], [0, 0, 1, 1], [], []>} : vector<8x128xbf16>, vector<128x128xbf16>, vector<8x128xf32> -> vector<8x128xf32>
      %89 = arith.addf %81, %88 : vector<8x128xf32>
      %c9 = arith.constant 9 : index
      %c0_75 = arith.constant 0 : index
      %c0_76 = arith.constant 0 : index
      %90 = vector.load %arg4[%c9, %c0_75, %c0_76] : memref<49x8x128xbf16, #tpu.memory_space<vmem>>, vector<1x8x128xbf16>
      %91 = vector.shape_cast %90 : vector<1x8x128xbf16> to vector<8x128xbf16>
      %cst_77 = arith.constant dense<0.000000e+00> : vector<8x128xf32>
      %92 = tpu.matmul %91, %16, %cst_77 {dimension_numbers = #tpu.dot_dimension_numbers<[1], [0], [0], [1], [0, 0, 1, 1], [], []>} : vector<8x128xbf16>, vector<128x128xbf16>, vector<8x128xf32> -> vector<8x128xf32>
      %93 = arith.truncf %92 : vector<8x128xf32> to vector<8x128xbf16>
      %c9_78 = arith.constant 9 : index
      %c0_79 = arith.constant 0 : index
      %c0_80 = arith.constant 0 : index
      %94 = vector.load %arg5[%c9_78, %c0_79, %c0_80] : memref<49x128x128xbf16, #tpu.memory_space<vmem>>, vector<1x128x128xbf16>
      %95 = vector.shape_cast %94 : vector<1x128x128xbf16> to vector<128x128xbf16>
      %cst_81 = arith.constant dense<0.000000e+00> : vector<8x128xf32>
      %96 = tpu.matmul %93, %95, %cst_81 {dimension_numbers = #tpu.dot_dimension_numbers<[1], [0], [0], [1], [0, 0, 1, 1], [], []>} : vector<8x128xbf16>, vector<128x128xbf16>, vector<8x128xf32> -> vector<8x128xf32>
      %97 = arith.addf %89, %96 : vector<8x128xf32>
      %c10 = arith.constant 10 : index
      %c0_82 = arith.constant 0 : index
      %c0_83 = arith.constant 0 : index
      %98 = vector.load %arg4[%c10, %c0_82, %c0_83] : memref<49x8x128xbf16, #tpu.memory_space<vmem>>, vector<1x8x128xbf16>
      %99 = vector.shape_cast %98 : vector<1x8x128xbf16> to vector<8x128xbf16>
      %cst_84 = arith.constant dense<0.000000e+00> : vector<8x128xf32>
      %100 = tpu.matmul %99, %16, %cst_84 {dimension_numbers = #tpu.dot_dimension_numbers<[1], [0], [0], [1], [0, 0, 1, 1], [], []>} : vector<8x128xbf16>, vector<128x128xbf16>, vector<8x128xf32> -> vector<8x128xf32>
      %101 = arith.truncf %100 : vector<8x128xf32> to vector<8x128xbf16>
      %c10_85 = arith.constant 10 : index
      %c0_86 = arith.constant 0 : index
      %c0_87 = arith.constant 0 : index
      %102 = vector.load %arg5[%c10_85, %c0_86, %c0_87] : memref<49x128x128xbf16, #tpu.memory_space<vmem>>, vector<1x128x128xbf16>
      %103 = vector.shape_cast %102 : vector<1x128x128xbf16> to vector<128x128xbf16>
      %cst_88 = arith.constant dense<0.000000e+00> : vector<8x128xf32>
      %104 = tpu.matmul %101, %103, %cst_88 {dimension_numbers = #tpu.dot_dimension_numbers<[1], [0], [0], [1], [0, 0, 1, 1], [], []>} : vector<8x128xbf16>, vector<128x128xbf16>, vector<8x128xf32> -> vector<8x128xf32>
      %105 = arith.addf %97, %104 : vector<8x128xf32>
      %c11 = arith.constant 11 : index
      %c0_89 = arith.constant 0 : index
      %c0_90 = arith.constant 0 : index
      %106 = vector.load %arg4[%c11, %c0_89, %c0_90] : memref<49x8x128xbf16, #tpu.memory_space<vmem>>, vector<1x8x128xbf16>
      %107 = vector.shape_cast %106 : vector<1x8x128xbf16> to vector<8x128xbf16>
      %cst_91 = arith.constant dense<0.000000e+00> : vector<8x128xf32>
      %108 = tpu.matmul %107, %16, %cst_91 {dimension_numbers = #tpu.dot_dimension_numbers<[1], [0], [0], [1], [0, 0, 1, 1], [], []>} : vector<8x128xbf16>, vector<128x128xbf16>, vector<8x128xf32> -> vector<8x128xf32>
      %109 = arith.truncf %108 : vector<8x128xf32> to vector<8x128xbf16>
      %c11_92 = arith.constant 11 : index
      %c0_93 = arith.constant 0 : index
      %c0_94 = arith.constant 0 : index
      %110 = vector.load %arg5[%c11_92, %c0_93, %c0_94] : memref<49x128x128xbf16, #tpu.memory_space<vmem>>, vector<1x128x128xbf16>
      %111 = vector.shape_cast %110 : vector<1x128x128xbf16> to vector<128x128xbf16>
      %cst_95 = arith.constant dense<0.000000e+00> : vector<8x128xf32>
      %112 = tpu.matmul %109, %111, %cst_95 {dimension_numbers = #tpu.dot_dimension_numbers<[1], [0], [0], [1], [0, 0, 1, 1], [], []>} : vector<8x128xbf16>, vector<128x128xbf16>, vector<8x128xf32> -> vector<8x128xf32>
      %113 = arith.addf %105, %112 : vector<8x128xf32>
      %c12 = arith.constant 12 : index
      %c0_96 = arith.constant 0 : index
      %c0_97 = arith.constant 0 : index
      %114 = vector.load %arg4[%c12, %c0_96, %c0_97] : memref<49x8x128xbf16, #tpu.memory_space<vmem>>, vector<1x8x128xbf16>
      %115 = vector.shape_cast %114 : vector<1x8x128xbf16> to vector<8x128xbf16>
      %cst_98 = arith.constant dense<0.000000e+00> : vector<8x128xf32>
      %116 = tpu.matmul %115, %16, %cst_98 {dimension_numbers = #tpu.dot_dimension_numbers<[1], [0], [0], [1], [0, 0, 1, 1], [], []>} : vector<8x128xbf16>, vector<128x128xbf16>, vector<8x128xf32> -> vector<8x128xf32>
      %117 = arith.truncf %116 : vector<8x128xf32> to vector<8x128xbf16>
      %c12_99 = arith.constant 12 : index
      %c0_100 = arith.constant 0 : index
      %c0_101 = arith.constant 0 : index
      %118 = vector.load %arg5[%c12_99, %c0_100, %c0_101] : memref<49x128x128xbf16, #tpu.memory_space<vmem>>, vector<1x128x128xbf16>
      %119 = vector.shape_cast %118 : vector<1x128x128xbf16> to vector<128x128xbf16>
      %cst_102 = arith.constant dense<0.000000e+00> : vector<8x128xf32>
      %120 = tpu.matmul %117, %119, %cst_102 {dimension_numbers = #tpu.dot_dimension_numbers<[1], [0], [0], [1], [0, 0, 1, 1], [], []>} : vector<8x128xbf16>, vector<128x128xbf16>, vector<8x128xf32> -> vector<8x128xf32>
      %121 = arith.addf %113, %120 : vector<8x128xf32>
      %c13 = arith.constant 13 : index
      %c0_103 = arith.constant 0 : index
      %c0_104 = arith.constant 0 : index
      %122 = vector.load %arg4[%c13, %c0_103, %c0_104] : memref<49x8x128xbf16, #tpu.memory_space<vmem>>, vector<1x8x128xbf16>
      %123 = vector.shape_cast %122 : vector<1x8x128xbf16> to vector<8x128xbf16>
      %cst_105 = arith.constant dense<0.000000e+00> : vector<8x128xf32>
      %124 = tpu.matmul %123, %16, %cst_105 {dimension_numbers = #tpu.dot_dimension_numbers<[1], [0], [0], [1], [0, 0, 1, 1], [], []>} : vector<8x128xbf16>, vector<128x128xbf16>, vector<8x128xf32> -> vector<8x128xf32>
      %125 = arith.truncf %124 : vector<8x128xf32> to vector<8x128xbf16>
      %c13_106 = arith.constant 13 : index
      %c0_107 = arith.constant 0 : index
      %c0_108 = arith.constant 0 : index
      %126 = vector.load %arg5[%c13_106, %c0_107, %c0_108] : memref<49x128x128xbf16, #tpu.memory_space<vmem>>, vector<1x128x128xbf16>
      %127 = vector.shape_cast %126 : vector<1x128x128xbf16> to vector<128x128xbf16>
      %cst_109 = arith.constant dense<0.000000e+00> : vector<8x128xf32>
      %128 = tpu.matmul %125, %127, %cst_109 {dimension_numbers = #tpu.dot_dimension_numbers<[1], [0], [0], [1], [0, 0, 1, 1], [], []>} : vector<8x128xbf16>, vector<128x128xbf16>, vector<8x128xf32> -> vector<8x128xf32>
      %129 = arith.addf %121, %128 : vector<8x128xf32>
      %c14 = arith.constant 14 : index
      %c0_110 = arith.constant 0 : index
      %c0_111 = arith.constant 0 : index
      %130 = vector.load %arg4[%c14, %c0_110, %c0_111] : memref<49x8x128xbf16, #tpu.memory_space<vmem>>, vector<1x8x128xbf16>
      %131 = vector.shape_cast %130 : vector<1x8x128xbf16> to vector<8x128xbf16>
      %cst_112 = arith.constant dense<0.000000e+00> : vector<8x128xf32>
      %132 = tpu.matmul %131, %16, %cst_112 {dimension_numbers = #tpu.dot_dimension_numbers<[1], [0], [0], [1], [0, 0, 1, 1], [], []>} : vector<8x128xbf16>, vector<128x128xbf16>, vector<8x128xf32> -> vector<8x128xf32>
      %133 = arith.truncf %132 : vector<8x128xf32> to vector<8x128xbf16>
      %c14_113 = arith.constant 14 : index
      %c0_114 = arith.constant 0 : index
      %c0_115 = arith.constant 0 : index
      %134 = vector.load %arg5[%c14_113, %c0_114, %c0_115] : memref<49x128x128xbf16, #tpu.memory_space<vmem>>, vector<1x128x128xbf16>
      %135 = vector.shape_cast %134 : vector<1x128x128xbf16> to vector<128x128xbf16>
      %cst_116 = arith.constant dense<0.000000e+00> : vector<8x128xf32>
      %136 = tpu.matmul %133, %135, %cst_116 {dimension_numbers = #tpu.dot_dimension_numbers<[1], [0], [0], [1], [0, 0, 1, 1], [], []>} : vector<8x128xbf16>, vector<128x128xbf16>, vector<8x128xf32> -> vector<8x128xf32>
      %137 = arith.addf %129, %136 : vector<8x128xf32>
      %c15 = arith.constant 15 : index
      %c0_117 = arith.constant 0 : index
      %c0_118 = arith.constant 0 : index
      %138 = vector.load %arg4[%c15, %c0_117, %c0_118] : memref<49x8x128xbf16, #tpu.memory_space<vmem>>, vector<1x8x128xbf16>
      %139 = vector.shape_cast %138 : vector<1x8x128xbf16> to vector<8x128xbf16>
      %cst_119 = arith.constant dense<0.000000e+00> : vector<8x128xf32>
      %140 = tpu.matmul %139, %16, %cst_119 {dimension_numbers = #tpu.dot_dimension_numbers<[1], [0], [0], [1], [0, 0, 1, 1], [], []>} : vector<8x128xbf16>, vector<128x128xbf16>, vector<8x128xf32> -> vector<8x128xf32>
      %141 = arith.truncf %140 : vector<8x128xf32> to vector<8x128xbf16>
      %c15_120 = arith.constant 15 : index
      %c0_121 = arith.constant 0 : index
      %c0_122 = arith.constant 0 : index
      %142 = vector.load %arg5[%c15_120, %c0_121, %c0_122] : memref<49x128x128xbf16, #tpu.memory_space<vmem>>, vector<1x128x128xbf16>
      %143 = vector.shape_cast %142 : vector<1x128x128xbf16> to vector<128x128xbf16>
      %cst_123 = arith.constant dense<0.000000e+00> : vector<8x128xf32>
      %144 = tpu.matmul %141, %143, %cst_123 {dimension_numbers = #tpu.dot_dimension_numbers<[1], [0], [0], [1], [0, 0, 1, 1], [], []>} : vector<8x128xbf16>, vector<128x128xbf16>, vector<8x128xf32> -> vector<8x128xf32>
      %145 = arith.addf %137, %144 : vector<8x128xf32>
      %c16 = arith.constant 16 : index
      %c0_124 = arith.constant 0 : index
      %c0_125 = arith.constant 0 : index
      %146 = vector.load %arg4[%c16, %c0_124, %c0_125] : memref<49x8x128xbf16, #tpu.memory_space<vmem>>, vector<1x8x128xbf16>
      %147 = vector.shape_cast %146 : vector<1x8x128xbf16> to vector<8x128xbf16>
      %cst_126 = arith.constant dense<0.000000e+00> : vector<8x128xf32>
      %148 = tpu.matmul %147, %16, %cst_126 {dimension_numbers = #tpu.dot_dimension_numbers<[1], [0], [0], [1], [0, 0, 1, 1], [], []>} : vector<8x128xbf16>, vector<128x128xbf16>, vector<8x128xf32> -> vector<8x128xf32>
      %149 = arith.truncf %148 : vector<8x128xf32> to vector<8x128xbf16>
      %c16_127 = arith.constant 16 : index
      %c0_128 = arith.constant 0 : index
      %c0_129 = arith.constant 0 : index
      %150 = vector.load %arg5[%c16_127, %c0_128, %c0_129] : memref<49x128x128xbf16, #tpu.memory_space<vmem>>, vector<1x128x128xbf16>
      %151 = vector.shape_cast %150 : vector<1x128x128xbf16> to vector<128x128xbf16>
      %cst_130 = arith.constant dense<0.000000e+00> : vector<8x128xf32>
      %152 = tpu.matmul %149, %151, %cst_130 {dimension_numbers = #tpu.dot_dimension_numbers<[1], [0], [0], [1], [0, 0, 1, 1], [], []>} : vector<8x128xbf16>, vector<128x128xbf16>, vector<8x128xf32> -> vector<8x128xf32>
      %153 = arith.addf %145, %152 : vector<8x128xf32>
      %c17 = arith.constant 17 : index
      %c0_131 = arith.constant 0 : index
      %c0_132 = arith.constant 0 : index
      %154 = vector.load %arg4[%c17, %c0_131, %c0_132] : memref<49x8x128xbf16, #tpu.memory_space<vmem>>, vector<1x8x128xbf16>
      %155 = vector.shape_cast %154 : vector<1x8x128xbf16> to vector<8x128xbf16>
      %cst_133 = arith.constant dense<0.000000e+00> : vector<8x128xf32>
      %156 = tpu.matmul %155, %16, %cst_133 {dimension_numbers = #tpu.dot_dimension_numbers<[1], [0], [0], [1], [0, 0, 1, 1], [], []>} : vector<8x128xbf16>, vector<128x128xbf16>, vector<8x128xf32> -> vector<8x128xf32>
      %157 = arith.truncf %156 : vector<8x128xf32> to vector<8x128xbf16>
      %c17_134 = arith.constant 17 : index
      %c0_135 = arith.constant 0 : index
      %c0_136 = arith.constant 0 : index
      %158 = vector.load %arg5[%c17_134, %c0_135, %c0_136] : memref<49x128x128xbf16, #tpu.memory_space<vmem>>, vector<1x128x128xbf16>
      %159 = vector.shape_cast %158 : vector<1x128x128xbf16> to vector<128x128xbf16>
      %cst_137 = arith.constant dense<0.000000e+00> : vector<8x128xf32>
      %160 = tpu.matmul %157, %159, %cst_137 {dimension_numbers = #tpu.dot_dimension_numbers<[1], [0], [0], [1], [0, 0, 1, 1], [], []>} : vector<8x128xbf16>, vector<128x128xbf16>, vector<8x128xf32> -> vector<8x128xf32>
      %161 = arith.addf %153, %160 : vector<8x128xf32>
      %c18 = arith.constant 18 : index
      %c0_138 = arith.constant 0 : index
      %c0_139 = arith.constant 0 : index
      %162 = vector.load %arg4[%c18, %c0_138, %c0_139] : memref<49x8x128xbf16, #tpu.memory_space<vmem>>, vector<1x8x128xbf16>
      %163 = vector.shape_cast %162 : vector<1x8x128xbf16> to vector<8x128xbf16>
      %cst_140 = arith.constant dense<0.000000e+00> : vector<8x128xf32>
      %164 = tpu.matmul %163, %16, %cst_140 {dimension_numbers = #tpu.dot_dimension_numbers<[1], [0], [0], [1], [0, 0, 1, 1], [], []>} : vector<8x128xbf16>, vector<128x128xbf16>, vector<8x128xf32> -> vector<8x128xf32>
      %165 = arith.truncf %164 : vector<8x128xf32> to vector<8x128xbf16>
      %c18_141 = arith.constant 18 : index
      %c0_142 = arith.constant 0 : index
      %c0_143 = arith.constant 0 : index
      %166 = vector.load %arg5[%c18_141, %c0_142, %c0_143] : memref<49x128x128xbf16, #tpu.memory_space<vmem>>, vector<1x128x128xbf16>
      %167 = vector.shape_cast %166 : vector<1x128x128xbf16> to vector<128x128xbf16>
      %cst_144 = arith.constant dense<0.000000e+00> : vector<8x128xf32>
      %168 = tpu.matmul %165, %167, %cst_144 {dimension_numbers = #tpu.dot_dimension_numbers<[1], [0], [0], [1], [0, 0, 1, 1], [], []>} : vector<8x128xbf16>, vector<128x128xbf16>, vector<8x128xf32> -> vector<8x128xf32>
      %169 = arith.addf %161, %168 : vector<8x128xf32>
      %c19 = arith.constant 19 : index
      %c0_145 = arith.constant 0 : index
      %c0_146 = arith.constant 0 : index
      %170 = vector.load %arg4[%c19, %c0_145, %c0_146] : memref<49x8x128xbf16, #tpu.memory_space<vmem>>, vector<1x8x128xbf16>
      %171 = vector.shape_cast %170 : vector<1x8x128xbf16> to vector<8x128xbf16>
      %cst_147 = arith.constant dense<0.000000e+00> : vector<8x128xf32>
      %172 = tpu.matmul %171, %16, %cst_147 {dimension_numbers = #tpu.dot_dimension_numbers<[1], [0], [0], [1], [0, 0, 1, 1], [], []>} : vector<8x128xbf16>, vector<128x128xbf16>, vector<8x128xf32> -> vector<8x128xf32>
      %173 = arith.truncf %172 : vector<8x128xf32> to vector<8x128xbf16>
      %c19_148 = arith.constant 19 : index
      %c0_149 = arith.constant 0 : index
      %c0_150 = arith.constant 0 : index
      %174 = vector.load %arg5[%c19_148, %c0_149, %c0_150] : memref<49x128x128xbf16, #tpu.memory_space<vmem>>, vector<1x128x128xbf16>
      %175 = vector.shape_cast %174 : vector<1x128x128xbf16> to vector<128x128xbf16>
      %cst_151 = arith.constant dense<0.000000e+00> : vector<8x128xf32>
      %176 = tpu.matmul %173, %175, %cst_151 {dimension_numbers = #tpu.dot_dimension_numbers<[1], [0], [0], [1], [0, 0, 1, 1], [], []>} : vector<8x128xbf16>, vector<128x128xbf16>, vector<8x128xf32> -> vector<8x128xf32>
      %177 = arith.addf %169, %176 : vector<8x128xf32>
      %c20 = arith.constant 20 : index
      %c0_152 = arith.constant 0 : index
      %c0_153 = arith.constant 0 : index
      %178 = vector.load %arg4[%c20, %c0_152, %c0_153] : memref<49x8x128xbf16, #tpu.memory_space<vmem>>, vector<1x8x128xbf16>
      %179 = vector.shape_cast %178 : vector<1x8x128xbf16> to vector<8x128xbf16>
      %cst_154 = arith.constant dense<0.000000e+00> : vector<8x128xf32>
      %180 = tpu.matmul %179, %16, %cst_154 {dimension_numbers = #tpu.dot_dimension_numbers<[1], [0], [0], [1], [0, 0, 1, 1], [], []>} : vector<8x128xbf16>, vector<128x128xbf16>, vector<8x128xf32> -> vector<8x128xf32>
      %181 = arith.truncf %180 : vector<8x128xf32> to vector<8x128xbf16>
      %c20_155 = arith.constant 20 : index
      %c0_156 = arith.constant 0 : index
      %c0_157 = arith.constant 0 : index
      %182 = vector.load %arg5[%c20_155, %c0_156, %c0_157] : memref<49x128x128xbf16, #tpu.memory_space<vmem>>, vector<1x128x128xbf16>
      %183 = vector.shape_cast %182 : vector<1x128x128xbf16> to vector<128x128xbf16>
      %cst_158 = arith.constant dense<0.000000e+00> : vector<8x128xf32>
      %184 = tpu.matmul %181, %183, %cst_158 {dimension_numbers = #tpu.dot_dimension_numbers<[1], [0], [0], [1], [0, 0, 1, 1], [], []>} : vector<8x128xbf16>, vector<128x128xbf16>, vector<8x128xf32> -> vector<8x128xf32>
      %185 = arith.addf %177, %184 : vector<8x128xf32>
      %c21 = arith.constant 21 : index
      %c0_159 = arith.constant 0 : index
      %c0_160 = arith.constant 0 : index
      %186 = vector.load %arg4[%c21, %c0_159, %c0_160] : memref<49x8x128xbf16, #tpu.memory_space<vmem>>, vector<1x8x128xbf16>
      %187 = vector.shape_cast %186 : vector<1x8x128xbf16> to vector<8x128xbf16>
      %cst_161 = arith.constant dense<0.000000e+00> : vector<8x128xf32>
      %188 = tpu.matmul %187, %16, %cst_161 {dimension_numbers = #tpu.dot_dimension_numbers<[1], [0], [0], [1], [0, 0, 1, 1], [], []>} : vector<8x128xbf16>, vector<128x128xbf16>, vector<8x128xf32> -> vector<8x128xf32>
      %189 = arith.truncf %188 : vector<8x128xf32> to vector<8x128xbf16>
      %c21_162 = arith.constant 21 : index
      %c0_163 = arith.constant 0 : index
      %c0_164 = arith.constant 0 : index
      %190 = vector.load %arg5[%c21_162, %c0_163, %c0_164] : memref<49x128x128xbf16, #tpu.memory_space<vmem>>, vector<1x128x128xbf16>
      %191 = vector.shape_cast %190 : vector<1x128x128xbf16> to vector<128x128xbf16>
      %cst_165 = arith.constant dense<0.000000e+00> : vector<8x128xf32>
      %192 = tpu.matmul %189, %191, %cst_165 {dimension_numbers = #tpu.dot_dimension_numbers<[1], [0], [0], [1], [0, 0, 1, 1], [], []>} : vector<8x128xbf16>, vector<128x128xbf16>, vector<8x128xf32> -> vector<8x128xf32>
      %193 = arith.addf %185, %192 : vector<8x128xf32>
      %c22 = arith.constant 22 : index
      %c0_166 = arith.constant 0 : index
      %c0_167 = arith.constant 0 : index
      %194 = vector.load %arg4[%c22, %c0_166, %c0_167] : memref<49x8x128xbf16, #tpu.memory_space<vmem>>, vector<1x8x128xbf16>
      %195 = vector.shape_cast %194 : vector<1x8x128xbf16> to vector<8x128xbf16>
      %cst_168 = arith.constant dense<0.000000e+00> : vector<8x128xf32>
      %196 = tpu.matmul %195, %16, %cst_168 {dimension_numbers = #tpu.dot_dimension_numbers<[1], [0], [0], [1], [0, 0, 1, 1], [], []>} : vector<8x128xbf16>, vector<128x128xbf16>, vector<8x128xf32> -> vector<8x128xf32>
      %197 = arith.truncf %196 : vector<8x128xf32> to vector<8x128xbf16>
      %c22_169 = arith.constant 22 : index
      %c0_170 = arith.constant 0 : index
      %c0_171 = arith.constant 0 : index
      %198 = vector.load %arg5[%c22_169, %c0_170, %c0_171] : memref<49x128x128xbf16, #tpu.memory_space<vmem>>, vector<1x128x128xbf16>
      %199 = vector.shape_cast %198 : vector<1x128x128xbf16> to vector<128x128xbf16>
      %cst_172 = arith.constant dense<0.000000e+00> : vector<8x128xf32>
      %200 = tpu.matmul %197, %199, %cst_172 {dimension_numbers = #tpu.dot_dimension_numbers<[1], [0], [0], [1], [0, 0, 1, 1], [], []>} : vector<8x128xbf16>, vector<128x128xbf16>, vector<8x128xf32> -> vector<8x128xf32>
      %201 = arith.addf %193, %200 : vector<8x128xf32>
      %c23 = arith.constant 23 : index
      %c0_173 = arith.constant 0 : index
      %c0_174 = arith.constant 0 : index
      %202 = vector.load %arg4[%c23, %c0_173, %c0_174] : memref<49x8x128xbf16, #tpu.memory_space<vmem>>, vector<1x8x128xbf16>
      %203 = vector.shape_cast %202 : vector<1x8x128xbf16> to vector<8x128xbf16>
      %cst_175 = arith.constant dense<0.000000e+00> : vector<8x128xf32>
      %204 = tpu.matmul %203, %16, %cst_175 {dimension_numbers = #tpu.dot_dimension_numbers<[1], [0], [0], [1], [0, 0, 1, 1], [], []>} : vector<8x128xbf16>, vector<128x128xbf16>, vector<8x128xf32> -> vector<8x128xf32>
      %205 = arith.truncf %204 : vector<8x128xf32> to vector<8x128xbf16>
      %c23_176 = arith.constant 23 : index
      %c0_177 = arith.constant 0 : index
      %c0_178 = arith.constant 0 : index
      %206 = vector.load %arg5[%c23_176, %c0_177, %c0_178] : memref<49x128x128xbf16, #tpu.memory_space<vmem>>, vector<1x128x128xbf16>
      %207 = vector.shape_cast %206 : vector<1x128x128xbf16> to vector<128x128xbf16>
      %cst_179 = arith.constant dense<0.000000e+00> : vector<8x128xf32>
      %208 = tpu.matmul %205, %207, %cst_179 {dimension_numbers = #tpu.dot_dimension_numbers<[1], [0], [0], [1], [0, 0, 1, 1], [], []>} : vector<8x128xbf16>, vector<128x128xbf16>, vector<8x128xf32> -> vector<8x128xf32>
      %209 = arith.addf %201, %208 : vector<8x128xf32>
      %c24 = arith.constant 24 : index
      %c0_180 = arith.constant 0 : index
      %c0_181 = arith.constant 0 : index
      %210 = vector.load %arg4[%c24, %c0_180, %c0_181] : memref<49x8x128xbf16, #tpu.memory_space<vmem>>, vector<1x8x128xbf16>
      %211 = vector.shape_cast %210 : vector<1x8x128xbf16> to vector<8x128xbf16>
      %cst_182 = arith.constant dense<0.000000e+00> : vector<8x128xf32>
      %212 = tpu.matmul %211, %16, %cst_182 {dimension_numbers = #tpu.dot_dimension_numbers<[1], [0], [0], [1], [0, 0, 1, 1], [], []>} : vector<8x128xbf16>, vector<128x128xbf16>, vector<8x128xf32> -> vector<8x128xf32>
      %213 = arith.truncf %212 : vector<8x128xf32> to vector<8x128xbf16>
      %c24_183 = arith.constant 24 : index
      %c0_184 = arith.constant 0 : index
      %c0_185 = arith.constant 0 : index
      %214 = vector.load %arg5[%c24_183, %c0_184, %c0_185] : memref<49x128x128xbf16, #tpu.memory_space<vmem>>, vector<1x128x128xbf16>
      %215 = vector.shape_cast %214 : vector<1x128x128xbf16> to vector<128x128xbf16>
      %cst_186 = arith.constant dense<0.000000e+00> : vector<8x128xf32>
      %216 = tpu.matmul %213, %215, %cst_186 {dimension_numbers = #tpu.dot_dimension_numbers<[1], [0], [0], [1], [0, 0, 1, 1], [], []>} : vector<8x128xbf16>, vector<128x128xbf16>, vector<8x128xf32> -> vector<8x128xf32>
      %217 = arith.addf %209, %216 : vector<8x128xf32>
      %c25 = arith.constant 25 : index
      %c0_187 = arith.constant 0 : index
      %c0_188 = arith.constant 0 : index
      %218 = vector.load %arg4[%c25, %c0_187, %c0_188] : memref<49x8x128xbf16, #tpu.memory_space<vmem>>, vector<1x8x128xbf16>
      %219 = vector.shape_cast %218 : vector<1x8x128xbf16> to vector<8x128xbf16>
      %cst_189 = arith.constant dense<0.000000e+00> : vector<8x128xf32>
      %220 = tpu.matmul %219, %16, %cst_189 {dimension_numbers = #tpu.dot_dimension_numbers<[1], [0], [0], [1], [0, 0, 1, 1], [], []>} : vector<8x128xbf16>, vector<128x128xbf16>, vector<8x128xf32> -> vector<8x128xf32>
      %221 = arith.truncf %220 : vector<8x128xf32> to vector<8x128xbf16>
      %c25_190 = arith.constant 25 : index
      %c0_191 = arith.constant 0 : index
      %c0_192 = arith.constant 0 : index
      %222 = vector.load %arg5[%c25_190, %c0_191, %c0_192] : memref<49x128x128xbf16, #tpu.memory_space<vmem>>, vector<1x128x128xbf16>
      %223 = vector.shape_cast %222 : vector<1x128x128xbf16> to vector<128x128xbf16>
      %cst_193 = arith.constant dense<0.000000e+00> : vector<8x128xf32>
      %224 = tpu.matmul %221, %223, %cst_193 {dimension_numbers = #tpu.dot_dimension_numbers<[1], [0], [0], [1], [0, 0, 1, 1], [], []>} : vector<8x128xbf16>, vector<128x128xbf16>, vector<8x128xf32> -> vector<8x128xf32>
      %225 = arith.addf %217, %224 : vector<8x128xf32>
      %c26 = arith.constant 26 : index
      %c0_194 = arith.constant 0 : index
      %c0_195 = arith.constant 0 : index
      %226 = vector.load %arg4[%c26, %c0_194, %c0_195] : memref<49x8x128xbf16, #tpu.memory_space<vmem>>, vector<1x8x128xbf16>
      %227 = vector.shape_cast %226 : vector<1x8x128xbf16> to vector<8x128xbf16>
      %cst_196 = arith.constant dense<0.000000e+00> : vector<8x128xf32>
      %228 = tpu.matmul %227, %16, %cst_196 {dimension_numbers = #tpu.dot_dimension_numbers<[1], [0], [0], [1], [0, 0, 1, 1], [], []>} : vector<8x128xbf16>, vector<128x128xbf16>, vector<8x128xf32> -> vector<8x128xf32>
      %229 = arith.truncf %228 : vector<8x128xf32> to vector<8x128xbf16>
      %c26_197 = arith.constant 26 : index
      %c0_198 = arith.constant 0 : index
      %c0_199 = arith.constant 0 : index
      %230 = vector.load %arg5[%c26_197, %c0_198, %c0_199] : memref<49x128x128xbf16, #tpu.memory_space<vmem>>, vector<1x128x128xbf16>
      %231 = vector.shape_cast %230 : vector<1x128x128xbf16> to vector<128x128xbf16>
      %cst_200 = arith.constant dense<0.000000e+00> : vector<8x128xf32>
      %232 = tpu.matmul %229, %231, %cst_200 {dimension_numbers = #tpu.dot_dimension_numbers<[1], [0], [0], [1], [0, 0, 1, 1], [], []>} : vector<8x128xbf16>, vector<128x128xbf16>, vector<8x128xf32> -> vector<8x128xf32>
      %233 = arith.addf %225, %232 : vector<8x128xf32>
      %c27 = arith.constant 27 : index
      %c0_201 = arith.constant 0 : index
      %c0_202 = arith.constant 0 : index
      %234 = vector.load %arg4[%c27, %c0_201, %c0_202] : memref<49x8x128xbf16, #tpu.memory_space<vmem>>, vector<1x8x128xbf16>
      %235 = vector.shape_cast %234 : vector<1x8x128xbf16> to vector<8x128xbf16>
      %cst_203 = arith.constant dense<0.000000e+00> : vector<8x128xf32>
      %236 = tpu.matmul %235, %16, %cst_203 {dimension_numbers = #tpu.dot_dimension_numbers<[1], [0], [0], [1], [0, 0, 1, 1], [], []>} : vector<8x128xbf16>, vector<128x128xbf16>, vector<8x128xf32> -> vector<8x128xf32>
      %237 = arith.truncf %236 : vector<8x128xf32> to vector<8x128xbf16>
      %c27_204 = arith.constant 27 : index
      %c0_205 = arith.constant 0 : index
      %c0_206 = arith.constant 0 : index
      %238 = vector.load %arg5[%c27_204, %c0_205, %c0_206] : memref<49x128x128xbf16, #tpu.memory_space<vmem>>, vector<1x128x128xbf16>
      %239 = vector.shape_cast %238 : vector<1x128x128xbf16> to vector<128x128xbf16>
      %cst_207 = arith.constant dense<0.000000e+00> : vector<8x128xf32>
      %240 = tpu.matmul %237, %239, %cst_207 {dimension_numbers = #tpu.dot_dimension_numbers<[1], [0], [0], [1], [0, 0, 1, 1], [], []>} : vector<8x128xbf16>, vector<128x128xbf16>, vector<8x128xf32> -> vector<8x128xf32>
      %241 = arith.addf %233, %240 : vector<8x128xf32>
      %c28 = arith.constant 28 : index
      %c0_208 = arith.constant 0 : index
      %c0_209 = arith.constant 0 : index
      %242 = vector.load %arg4[%c28, %c0_208, %c0_209] : memref<49x8x128xbf16, #tpu.memory_space<vmem>>, vector<1x8x128xbf16>
      %243 = vector.shape_cast %242 : vector<1x8x128xbf16> to vector<8x128xbf16>
      %cst_210 = arith.constant dense<0.000000e+00> : vector<8x128xf32>
      %244 = tpu.matmul %243, %16, %cst_210 {dimension_numbers = #tpu.dot_dimension_numbers<[1], [0], [0], [1], [0, 0, 1, 1], [], []>} : vector<8x128xbf16>, vector<128x128xbf16>, vector<8x128xf32> -> vector<8x128xf32>
      %245 = arith.truncf %244 : vector<8x128xf32> to vector<8x128xbf16>
      %c28_211 = arith.constant 28 : index
      %c0_212 = arith.constant 0 : index
      %c0_213 = arith.constant 0 : index
      %246 = vector.load %arg5[%c28_211, %c0_212, %c0_213] : memref<49x128x128xbf16, #tpu.memory_space<vmem>>, vector<1x128x128xbf16>
      %247 = vector.shape_cast %246 : vector<1x128x128xbf16> to vector<128x128xbf16>
      %cst_214 = arith.constant dense<0.000000e+00> : vector<8x128xf32>
      %248 = tpu.matmul %245, %247, %cst_214 {dimension_numbers = #tpu.dot_dimension_numbers<[1], [0], [0], [1], [0, 0, 1, 1], [], []>} : vector<8x128xbf16>, vector<128x128xbf16>, vector<8x128xf32> -> vector<8x128xf32>
      %249 = arith.addf %241, %248 : vector<8x128xf32>
      %c29 = arith.constant 29 : index
      %c0_215 = arith.constant 0 : index
      %c0_216 = arith.constant 0 : index
      %250 = vector.load %arg4[%c29, %c0_215, %c0_216] : memref<49x8x128xbf16, #tpu.memory_space<vmem>>, vector<1x8x128xbf16>
      %251 = vector.shape_cast %250 : vector<1x8x128xbf16> to vector<8x128xbf16>
      %cst_217 = arith.constant dense<0.000000e+00> : vector<8x128xf32>
      %252 = tpu.matmul %251, %16, %cst_217 {dimension_numbers = #tpu.dot_dimension_numbers<[1], [0], [0], [1], [0, 0, 1, 1], [], []>} : vector<8x128xbf16>, vector<128x128xbf16>, vector<8x128xf32> -> vector<8x128xf32>
      %253 = arith.truncf %252 : vector<8x128xf32> to vector<8x128xbf16>
      %c29_218 = arith.constant 29 : index
      %c0_219 = arith.constant 0 : index
      %c0_220 = arith.constant 0 : index
      %254 = vector.load %arg5[%c29_218, %c0_219, %c0_220] : memref<49x128x128xbf16, #tpu.memory_space<vmem>>, vector<1x128x128xbf16>
      %255 = vector.shape_cast %254 : vector<1x128x128xbf16> to vector<128x128xbf16>
      %cst_221 = arith.constant dense<0.000000e+00> : vector<8x128xf32>
      %256 = tpu.matmul %253, %255, %cst_221 {dimension_numbers = #tpu.dot_dimension_numbers<[1], [0], [0], [1], [0, 0, 1, 1], [], []>} : vector<8x128xbf16>, vector<128x128xbf16>, vector<8x128xf32> -> vector<8x128xf32>
      %257 = arith.addf %249, %256 : vector<8x128xf32>
      %c30 = arith.constant 30 : index
      %c0_222 = arith.constant 0 : index
      %c0_223 = arith.constant 0 : index
      %258 = vector.load %arg4[%c30, %c0_222, %c0_223] : memref<49x8x128xbf16, #tpu.memory_space<vmem>>, vector<1x8x128xbf16>
      %259 = vector.shape_cast %258 : vector<1x8x128xbf16> to vector<8x128xbf16>
      %cst_224 = arith.constant dense<0.000000e+00> : vector<8x128xf32>
      %260 = tpu.matmul %259, %16, %cst_224 {dimension_numbers = #tpu.dot_dimension_numbers<[1], [0], [0], [1], [0, 0, 1, 1], [], []>} : vector<8x128xbf16>, vector<128x128xbf16>, vector<8x128xf32> -> vector<8x128xf32>
      %261 = arith.truncf %260 : vector<8x128xf32> to vector<8x128xbf16>
      %c30_225 = arith.constant 30 : index
      %c0_226 = arith.constant 0 : index
      %c0_227 = arith.constant 0 : index
      %262 = vector.load %arg5[%c30_225, %c0_226, %c0_227] : memref<49x128x128xbf16, #tpu.memory_space<vmem>>, vector<1x128x128xbf16>
      %263 = vector.shape_cast %262 : vector<1x128x128xbf16> to vector<128x128xbf16>
      %cst_228 = arith.constant dense<0.000000e+00> : vector<8x128xf32>
      %264 = tpu.matmul %261, %263, %cst_228 {dimension_numbers = #tpu.dot_dimension_numbers<[1], [0], [0], [1], [0, 0, 1, 1], [], []>} : vector<8x128xbf16>, vector<128x128xbf16>, vector<8x128xf32> -> vector<8x128xf32>
      %265 = arith.addf %257, %264 : vector<8x128xf32>
      %c31 = arith.constant 31 : index
      %c0_229 = arith.constant 0 : index
      %c0_230 = arith.constant 0 : index
      %266 = vector.load %arg4[%c31, %c0_229, %c0_230] : memref<49x8x128xbf16, #tpu.memory_space<vmem>>, vector<1x8x128xbf16>
      %267 = vector.shape_cast %266 : vector<1x8x128xbf16> to vector<8x128xbf16>
      %cst_231 = arith.constant dense<0.000000e+00> : vector<8x128xf32>
      %268 = tpu.matmul %267, %16, %cst_231 {dimension_numbers = #tpu.dot_dimension_numbers<[1], [0], [0], [1], [0, 0, 1, 1], [], []>} : vector<8x128xbf16>, vector<128x128xbf16>, vector<8x128xf32> -> vector<8x128xf32>
      %269 = arith.truncf %268 : vector<8x128xf32> to vector<8x128xbf16>
      %c31_232 = arith.constant 31 : index
      %c0_233 = arith.constant 0 : index
      %c0_234 = arith.constant 0 : index
      %270 = vector.load %arg5[%c31_232, %c0_233, %c0_234] : memref<49x128x128xbf16, #tpu.memory_space<vmem>>, vector<1x128x128xbf16>
      %271 = vector.shape_cast %270 : vector<1x128x128xbf16> to vector<128x128xbf16>
      %cst_235 = arith.constant dense<0.000000e+00> : vector<8x128xf32>
      %272 = tpu.matmul %269, %271, %cst_235 {dimension_numbers = #tpu.dot_dimension_numbers<[1], [0], [0], [1], [0, 0, 1, 1], [], []>} : vector<8x128xbf16>, vector<128x128xbf16>, vector<8x128xf32> -> vector<8x128xf32>
      %273 = arith.addf %265, %272 : vector<8x128xf32>
      %c32 = arith.constant 32 : index
      %c0_236 = arith.constant 0 : index
      %c0_237 = arith.constant 0 : index
      %274 = vector.load %arg4[%c32, %c0_236, %c0_237] : memref<49x8x128xbf16, #tpu.memory_space<vmem>>, vector<1x8x128xbf16>
      %275 = vector.shape_cast %274 : vector<1x8x128xbf16> to vector<8x128xbf16>
      %cst_238 = arith.constant dense<0.000000e+00> : vector<8x128xf32>
      %276 = tpu.matmul %275, %16, %cst_238 {dimension_numbers = #tpu.dot_dimension_numbers<[1], [0], [0], [1], [0, 0, 1, 1], [], []>} : vector<8x128xbf16>, vector<128x128xbf16>, vector<8x128xf32> -> vector<8x128xf32>
      %277 = arith.truncf %276 : vector<8x128xf32> to vector<8x128xbf16>
      %c32_239 = arith.constant 32 : index
      %c0_240 = arith.constant 0 : index
      %c0_241 = arith.constant 0 : index
      %278 = vector.load %arg5[%c32_239, %c0_240, %c0_241] : memref<49x128x128xbf16, #tpu.memory_space<vmem>>, vector<1x128x128xbf16>
      %279 = vector.shape_cast %278 : vector<1x128x128xbf16> to vector<128x128xbf16>
      %cst_242 = arith.constant dense<0.000000e+00> : vector<8x128xf32>
      %280 = tpu.matmul %277, %279, %cst_242 {dimension_numbers = #tpu.dot_dimension_numbers<[1], [0], [0], [1], [0, 0, 1, 1], [], []>} : vector<8x128xbf16>, vector<128x128xbf16>, vector<8x128xf32> -> vector<8x128xf32>
      %281 = arith.addf %273, %280 : vector<8x128xf32>
      %c33 = arith.constant 33 : index
      %c0_243 = arith.constant 0 : index
      %c0_244 = arith.constant 0 : index
      %282 = vector.load %arg4[%c33, %c0_243, %c0_244] : memref<49x8x128xbf16, #tpu.memory_space<vmem>>, vector<1x8x128xbf16>
      %283 = vector.shape_cast %282 : vector<1x8x128xbf16> to vector<8x128xbf16>
      %cst_245 = arith.constant dense<0.000000e+00> : vector<8x128xf32>
      %284 = tpu.matmul %283, %16, %cst_245 {dimension_numbers = #tpu.dot_dimension_numbers<[1], [0], [0], [1], [0, 0, 1, 1], [], []>} : vector<8x128xbf16>, vector<128x128xbf16>, vector<8x128xf32> -> vector<8x128xf32>
      %285 = arith.truncf %284 : vector<8x128xf32> to vector<8x128xbf16>
      %c33_246 = arith.constant 33 : index
      %c0_247 = arith.constant 0 : index
      %c0_248 = arith.constant 0 : index
      %286 = vector.load %arg5[%c33_246, %c0_247, %c0_248] : memref<49x128x128xbf16, #tpu.memory_space<vmem>>, vector<1x128x128xbf16>
      %287 = vector.shape_cast %286 : vector<1x128x128xbf16> to vector<128x128xbf16>
      %cst_249 = arith.constant dense<0.000000e+00> : vector<8x128xf32>
      %288 = tpu.matmul %285, %287, %cst_249 {dimension_numbers = #tpu.dot_dimension_numbers<[1], [0], [0], [1], [0, 0, 1, 1], [], []>} : vector<8x128xbf16>, vector<128x128xbf16>, vector<8x128xf32> -> vector<8x128xf32>
      %289 = arith.addf %281, %288 : vector<8x128xf32>
      %c34 = arith.constant 34 : index
      %c0_250 = arith.constant 0 : index
      %c0_251 = arith.constant 0 : index
      %290 = vector.load %arg4[%c34, %c0_250, %c0_251] : memref<49x8x128xbf16, #tpu.memory_space<vmem>>, vector<1x8x128xbf16>
      %291 = vector.shape_cast %290 : vector<1x8x128xbf16> to vector<8x128xbf16>
      %cst_252 = arith.constant dense<0.000000e+00> : vector<8x128xf32>
      %292 = tpu.matmul %291, %16, %cst_252 {dimension_numbers = #tpu.dot_dimension_numbers<[1], [0], [0], [1], [0, 0, 1, 1], [], []>} : vector<8x128xbf16>, vector<128x128xbf16>, vector<8x128xf32> -> vector<8x128xf32>
      %293 = arith.truncf %292 : vector<8x128xf32> to vector<8x128xbf16>
      %c34_253 = arith.constant 34 : index
      %c0_254 = arith.constant 0 : index
      %c0_255 = arith.constant 0 : index
      %294 = vector.load %arg5[%c34_253, %c0_254, %c0_255] : memref<49x128x128xbf16, #tpu.memory_space<vmem>>, vector<1x128x128xbf16>
      %295 = vector.shape_cast %294 : vector<1x128x128xbf16> to vector<128x128xbf16>
      %cst_256 = arith.constant dense<0.000000e+00> : vector<8x128xf32>
      %296 = tpu.matmul %293, %295, %cst_256 {dimension_numbers = #tpu.dot_dimension_numbers<[1], [0], [0], [1], [0, 0, 1, 1], [], []>} : vector<8x128xbf16>, vector<128x128xbf16>, vector<8x128xf32> -> vector<8x128xf32>
      %297 = arith.addf %289, %296 : vector<8x128xf32>
      %c35 = arith.constant 35 : index
      %c0_257 = arith.constant 0 : index
      %c0_258 = arith.constant 0 : index
      %298 = vector.load %arg4[%c35, %c0_257, %c0_258] : memref<49x8x128xbf16, #tpu.memory_space<vmem>>, vector<1x8x128xbf16>
      %299 = vector.shape_cast %298 : vector<1x8x128xbf16> to vector<8x128xbf16>
      %cst_259 = arith.constant dense<0.000000e+00> : vector<8x128xf32>
      %300 = tpu.matmul %299, %16, %cst_259 {dimension_numbers = #tpu.dot_dimension_numbers<[1], [0], [0], [1], [0, 0, 1, 1], [], []>} : vector<8x128xbf16>, vector<128x128xbf16>, vector<8x128xf32> -> vector<8x128xf32>
      %301 = arith.truncf %300 : vector<8x128xf32> to vector<8x128xbf16>
      %c35_260 = arith.constant 35 : index
      %c0_261 = arith.constant 0 : index
      %c0_262 = arith.constant 0 : index
      %302 = vector.load %arg5[%c35_260, %c0_261, %c0_262] : memref<49x128x128xbf16, #tpu.memory_space<vmem>>, vector<1x128x128xbf16>
      %303 = vector.shape_cast %302 : vector<1x128x128xbf16> to vector<128x128xbf16>
      %cst_263 = arith.constant dense<0.000000e+00> : vector<8x128xf32>
      %304 = tpu.matmul %301, %303, %cst_263 {dimension_numbers = #tpu.dot_dimension_numbers<[1], [0], [0], [1], [0, 0, 1, 1], [], []>} : vector<8x128xbf16>, vector<128x128xbf16>, vector<8x128xf32> -> vector<8x128xf32>
      %305 = arith.addf %297, %304 : vector<8x128xf32>
      %c36 = arith.constant 36 : index
      %c0_264 = arith.constant 0 : index
      %c0_265 = arith.constant 0 : index
      %306 = vector.load %arg4[%c36, %c0_264, %c0_265] : memref<49x8x128xbf16, #tpu.memory_space<vmem>>, vector<1x8x128xbf16>
      %307 = vector.shape_cast %306 : vector<1x8x128xbf16> to vector<8x128xbf16>
      %cst_266 = arith.constant dense<0.000000e+00> : vector<8x128xf32>
      %308 = tpu.matmul %307, %16, %cst_266 {dimension_numbers = #tpu.dot_dimension_numbers<[1], [0], [0], [1], [0, 0, 1, 1], [], []>} : vector<8x128xbf16>, vector<128x128xbf16>, vector<8x128xf32> -> vector<8x128xf32>
      %309 = arith.truncf %308 : vector<8x128xf32> to vector<8x128xbf16>
      %c36_267 = arith.constant 36 : index
      %c0_268 = arith.constant 0 : index
      %c0_269 = arith.constant 0 : index
      %310 = vector.load %arg5[%c36_267, %c0_268, %c0_269] : memref<49x128x128xbf16, #tpu.memory_space<vmem>>, vector<1x128x128xbf16>
      %311 = vector.shape_cast %310 : vector<1x128x128xbf16> to vector<128x128xbf16>
      %cst_270 = arith.constant dense<0.000000e+00> : vector<8x128xf32>
      %312 = tpu.matmul %309, %311, %cst_270 {dimension_numbers = #tpu.dot_dimension_numbers<[1], [0], [0], [1], [0, 0, 1, 1], [], []>} : vector<8x128xbf16>, vector<128x128xbf16>, vector<8x128xf32> -> vector<8x128xf32>
      %313 = arith.addf %305, %312 : vector<8x128xf32>
      %c37 = arith.constant 37 : index
      %c0_271 = arith.constant 0 : index
      %c0_272 = arith.constant 0 : index
      %314 = vector.load %arg4[%c37, %c0_271, %c0_272] : memref<49x8x128xbf16, #tpu.memory_space<vmem>>, vector<1x8x128xbf16>
      %315 = vector.shape_cast %314 : vector<1x8x128xbf16> to vector<8x128xbf16>
      %cst_273 = arith.constant dense<0.000000e+00> : vector<8x128xf32>
      %316 = tpu.matmul %315, %16, %cst_273 {dimension_numbers = #tpu.dot_dimension_numbers<[1], [0], [0], [1], [0, 0, 1, 1], [], []>} : vector<8x128xbf16>, vector<128x128xbf16>, vector<8x128xf32> -> vector<8x128xf32>
      %317 = arith.truncf %316 : vector<8x128xf32> to vector<8x128xbf16>
      %c37_274 = arith.constant 37 : index
      %c0_275 = arith.constant 0 : index
      %c0_276 = arith.constant 0 : index
      %318 = vector.load %arg5[%c37_274, %c0_275, %c0_276] : memref<49x128x128xbf16, #tpu.memory_space<vmem>>, vector<1x128x128xbf16>
      %319 = vector.shape_cast %318 : vector<1x128x128xbf16> to vector<128x128xbf16>
      %cst_277 = arith.constant dense<0.000000e+00> : vector<8x128xf32>
      %320 = tpu.matmul %317, %319, %cst_277 {dimension_numbers = #tpu.dot_dimension_numbers<[1], [0], [0], [1], [0, 0, 1, 1], [], []>} : vector<8x128xbf16>, vector<128x128xbf16>, vector<8x128xf32> -> vector<8x128xf32>
      %321 = arith.addf %313, %320 : vector<8x128xf32>
      %c38 = arith.constant 38 : index
      %c0_278 = arith.constant 0 : index
      %c0_279 = arith.constant 0 : index
      %322 = vector.load %arg4[%c38, %c0_278, %c0_279] : memref<49x8x128xbf16, #tpu.memory_space<vmem>>, vector<1x8x128xbf16>
      %323 = vector.shape_cast %322 : vector<1x8x128xbf16> to vector<8x128xbf16>
      %cst_280 = arith.constant dense<0.000000e+00> : vector<8x128xf32>
      %324 = tpu.matmul %323, %16, %cst_280 {dimension_numbers = #tpu.dot_dimension_numbers<[1], [0], [0], [1], [0, 0, 1, 1], [], []>} : vector<8x128xbf16>, vector<128x128xbf16>, vector<8x128xf32> -> vector<8x128xf32>
      %325 = arith.truncf %324 : vector<8x128xf32> to vector<8x128xbf16>
      %c38_281 = arith.constant 38 : index
      %c0_282 = arith.constant 0 : index
      %c0_283 = arith.constant 0 : index
      %326 = vector.load %arg5[%c38_281, %c0_282, %c0_283] : memref<49x128x128xbf16, #tpu.memory_space<vmem>>, vector<1x128x128xbf16>
      %327 = vector.shape_cast %326 : vector<1x128x128xbf16> to vector<128x128xbf16>
      %cst_284 = arith.constant dense<0.000000e+00> : vector<8x128xf32>
      %328 = tpu.matmul %325, %327, %cst_284 {dimension_numbers = #tpu.dot_dimension_numbers<[1], [0], [0], [1], [0, 0, 1, 1], [], []>} : vector<8x128xbf16>, vector<128x128xbf16>, vector<8x128xf32> -> vector<8x128xf32>
      %329 = arith.addf %321, %328 : vector<8x128xf32>
      %c39 = arith.constant 39 : index
      %c0_285 = arith.constant 0 : index
      %c0_286 = arith.constant 0 : index
      %330 = vector.load %arg4[%c39, %c0_285, %c0_286] : memref<49x8x128xbf16, #tpu.memory_space<vmem>>, vector<1x8x128xbf16>
      %331 = vector.shape_cast %330 : vector<1x8x128xbf16> to vector<8x128xbf16>
      %cst_287 = arith.constant dense<0.000000e+00> : vector<8x128xf32>
      %332 = tpu.matmul %331, %16, %cst_287 {dimension_numbers = #tpu.dot_dimension_numbers<[1], [0], [0], [1], [0, 0, 1, 1], [], []>} : vector<8x128xbf16>, vector<128x128xbf16>, vector<8x128xf32> -> vector<8x128xf32>
      %333 = arith.truncf %332 : vector<8x128xf32> to vector<8x128xbf16>
      %c39_288 = arith.constant 39 : index
      %c0_289 = arith.constant 0 : index
      %c0_290 = arith.constant 0 : index
      %334 = vector.load %arg5[%c39_288, %c0_289, %c0_290] : memref<49x128x128xbf16, #tpu.memory_space<vmem>>, vector<1x128x128xbf16>
      %335 = vector.shape_cast %334 : vector<1x128x128xbf16> to vector<128x128xbf16>
      %cst_291 = arith.constant dense<0.000000e+00> : vector<8x128xf32>
      %336 = tpu.matmul %333, %335, %cst_291 {dimension_numbers = #tpu.dot_dimension_numbers<[1], [0], [0], [1], [0, 0, 1, 1], [], []>} : vector<8x128xbf16>, vector<128x128xbf16>, vector<8x128xf32> -> vector<8x128xf32>
      %337 = arith.addf %329, %336 : vector<8x128xf32>
      %c40 = arith.constant 40 : index
      %c0_292 = arith.constant 0 : index
      %c0_293 = arith.constant 0 : index
      %338 = vector.load %arg4[%c40, %c0_292, %c0_293] : memref<49x8x128xbf16, #tpu.memory_space<vmem>>, vector<1x8x128xbf16>
      %339 = vector.shape_cast %338 : vector<1x8x128xbf16> to vector<8x128xbf16>
      %cst_294 = arith.constant dense<0.000000e+00> : vector<8x128xf32>
      %340 = tpu.matmul %339, %16, %cst_294 {dimension_numbers = #tpu.dot_dimension_numbers<[1], [0], [0], [1], [0, 0, 1, 1], [], []>} : vector<8x128xbf16>, vector<128x128xbf16>, vector<8x128xf32> -> vector<8x128xf32>
      %341 = arith.truncf %340 : vector<8x128xf32> to vector<8x128xbf16>
      %c40_295 = arith.constant 40 : index
      %c0_296 = arith.constant 0 : index
      %c0_297 = arith.constant 0 : index
      %342 = vector.load %arg5[%c40_295, %c0_296, %c0_297] : memref<49x128x128xbf16, #tpu.memory_space<vmem>>, vector<1x128x128xbf16>
      %343 = vector.shape_cast %342 : vector<1x128x128xbf16> to vector<128x128xbf16>
      %cst_298 = arith.constant dense<0.000000e+00> : vector<8x128xf32>
      %344 = tpu.matmul %341, %343, %cst_298 {dimension_numbers = #tpu.dot_dimension_numbers<[1], [0], [0], [1], [0, 0, 1, 1], [], []>} : vector<8x128xbf16>, vector<128x128xbf16>, vector<8x128xf32> -> vector<8x128xf32>
      %345 = arith.addf %337, %344 : vector<8x128xf32>
      %c41 = arith.constant 41 : index
      %c0_299 = arith.constant 0 : index
      %c0_300 = arith.constant 0 : index
      %346 = vector.load %arg4[%c41, %c0_299, %c0_300] : memref<49x8x128xbf16, #tpu.memory_space<vmem>>, vector<1x8x128xbf16>
      %347 = vector.shape_cast %346 : vector<1x8x128xbf16> to vector<8x128xbf16>
      %cst_301 = arith.constant dense<0.000000e+00> : vector<8x128xf32>
      %348 = tpu.matmul %347, %16, %cst_301 {dimension_numbers = #tpu.dot_dimension_numbers<[1], [0], [0], [1], [0, 0, 1, 1], [], []>} : vector<8x128xbf16>, vector<128x128xbf16>, vector<8x128xf32> -> vector<8x128xf32>
      %349 = arith.truncf %348 : vector<8x128xf32> to vector<8x128xbf16>
      %c41_302 = arith.constant 41 : index
      %c0_303 = arith.constant 0 : index
      %c0_304 = arith.constant 0 : index
      %350 = vector.load %arg5[%c41_302, %c0_303, %c0_304] : memref<49x128x128xbf16, #tpu.memory_space<vmem>>, vector<1x128x128xbf16>
      %351 = vector.shape_cast %350 : vector<1x128x128xbf16> to vector<128x128xbf16>
      %cst_305 = arith.constant dense<0.000000e+00> : vector<8x128xf32>
      %352 = tpu.matmul %349, %351, %cst_305 {dimension_numbers = #tpu.dot_dimension_numbers<[1], [0], [0], [1], [0, 0, 1, 1], [], []>} : vector<8x128xbf16>, vector<128x128xbf16>, vector<8x128xf32> -> vector<8x128xf32>
      %353 = arith.addf %345, %352 : vector<8x128xf32>
      %c42 = arith.constant 42 : index
      %c0_306 = arith.constant 0 : index
      %c0_307 = arith.constant 0 : index
      %354 = vector.load %arg4[%c42, %c0_306, %c0_307] : memref<49x8x128xbf16, #tpu.memory_space<vmem>>, vector<1x8x128xbf16>
      %355 = vector.shape_cast %354 : vector<1x8x128xbf16> to vector<8x128xbf16>
      %cst_308 = arith.constant dense<0.000000e+00> : vector<8x128xf32>
      %356 = tpu.matmul %355, %16, %cst_308 {dimension_numbers = #tpu.dot_dimension_numbers<[1], [0], [0], [1], [0, 0, 1, 1], [], []>} : vector<8x128xbf16>, vector<128x128xbf16>, vector<8x128xf32> -> vector<8x128xf32>
      %357 = arith.truncf %356 : vector<8x128xf32> to vector<8x128xbf16>
      %c42_309 = arith.constant 42 : index
      %c0_310 = arith.constant 0 : index
      %c0_311 = arith.constant 0 : index
      %358 = vector.load %arg5[%c42_309, %c0_310, %c0_311] : memref<49x128x128xbf16, #tpu.memory_space<vmem>>, vector<1x128x128xbf16>
      %359 = vector.shape_cast %358 : vector<1x128x128xbf16> to vector<128x128xbf16>
      %cst_312 = arith.constant dense<0.000000e+00> : vector<8x128xf32>
      %360 = tpu.matmul %357, %359, %cst_312 {dimension_numbers = #tpu.dot_dimension_numbers<[1], [0], [0], [1], [0, 0, 1, 1], [], []>} : vector<8x128xbf16>, vector<128x128xbf16>, vector<8x128xf32> -> vector<8x128xf32>
      %361 = arith.addf %353, %360 : vector<8x128xf32>
      %c43 = arith.constant 43 : index
      %c0_313 = arith.constant 0 : index
      %c0_314 = arith.constant 0 : index
      %362 = vector.load %arg4[%c43, %c0_313, %c0_314] : memref<49x8x128xbf16, #tpu.memory_space<vmem>>, vector<1x8x128xbf16>
      %363 = vector.shape_cast %362 : vector<1x8x128xbf16> to vector<8x128xbf16>
      %cst_315 = arith.constant dense<0.000000e+00> : vector<8x128xf32>
      %364 = tpu.matmul %363, %16, %cst_315 {dimension_numbers = #tpu.dot_dimension_numbers<[1], [0], [0], [1], [0, 0, 1, 1], [], []>} : vector<8x128xbf16>, vector<128x128xbf16>, vector<8x128xf32> -> vector<8x128xf32>
      %365 = arith.truncf %364 : vector<8x128xf32> to vector<8x128xbf16>
      %c43_316 = arith.constant 43 : index
      %c0_317 = arith.constant 0 : index
      %c0_318 = arith.constant 0 : index
      %366 = vector.load %arg5[%c43_316, %c0_317, %c0_318] : memref<49x128x128xbf16, #tpu.memory_space<vmem>>, vector<1x128x128xbf16>
      %367 = vector.shape_cast %366 : vector<1x128x128xbf16> to vector<128x128xbf16>
      %cst_319 = arith.constant dense<0.000000e+00> : vector<8x128xf32>
      %368 = tpu.matmul %365, %367, %cst_319 {dimension_numbers = #tpu.dot_dimension_numbers<[1], [0], [0], [1], [0, 0, 1, 1], [], []>} : vector<8x128xbf16>, vector<128x128xbf16>, vector<8x128xf32> -> vector<8x128xf32>
      %369 = arith.addf %361, %368 : vector<8x128xf32>
      %c44 = arith.constant 44 : index
      %c0_320 = arith.constant 0 : index
      %c0_321 = arith.constant 0 : index
      %370 = vector.load %arg4[%c44, %c0_320, %c0_321] : memref<49x8x128xbf16, #tpu.memory_space<vmem>>, vector<1x8x128xbf16>
      %371 = vector.shape_cast %370 : vector<1x8x128xbf16> to vector<8x128xbf16>
      %cst_322 = arith.constant dense<0.000000e+00> : vector<8x128xf32>
      %372 = tpu.matmul %371, %16, %cst_322 {dimension_numbers = #tpu.dot_dimension_numbers<[1], [0], [0], [1], [0, 0, 1, 1], [], []>} : vector<8x128xbf16>, vector<128x128xbf16>, vector<8x128xf32> -> vector<8x128xf32>
      %373 = arith.truncf %372 : vector<8x128xf32> to vector<8x128xbf16>
      %c44_323 = arith.constant 44 : index
      %c0_324 = arith.constant 0 : index
      %c0_325 = arith.constant 0 : index
      %374 = vector.load %arg5[%c44_323, %c0_324, %c0_325] : memref<49x128x128xbf16, #tpu.memory_space<vmem>>, vector<1x128x128xbf16>
      %375 = vector.shape_cast %374 : vector<1x128x128xbf16> to vector<128x128xbf16>
      %cst_326 = arith.constant dense<0.000000e+00> : vector<8x128xf32>
      %376 = tpu.matmul %373, %375, %cst_326 {dimension_numbers = #tpu.dot_dimension_numbers<[1], [0], [0], [1], [0, 0, 1, 1], [], []>} : vector<8x128xbf16>, vector<128x128xbf16>, vector<8x128xf32> -> vector<8x128xf32>
      %377 = arith.addf %369, %376 : vector<8x128xf32>
      %c45 = arith.constant 45 : index
      %c0_327 = arith.constant 0 : index
      %c0_328 = arith.constant 0 : index
      %378 = vector.load %arg4[%c45, %c0_327, %c0_328] : memref<49x8x128xbf16, #tpu.memory_space<vmem>>, vector<1x8x128xbf16>
      %379 = vector.shape_cast %378 : vector<1x8x128xbf16> to vector<8x128xbf16>
      %cst_329 = arith.constant dense<0.000000e+00> : vector<8x128xf32>
      %380 = tpu.matmul %379, %16, %cst_329 {dimension_numbers = #tpu.dot_dimension_numbers<[1], [0], [0], [1], [0, 0, 1, 1], [], []>} : vector<8x128xbf16>, vector<128x128xbf16>, vector<8x128xf32> -> vector<8x128xf32>
      %381 = arith.truncf %380 : vector<8x128xf32> to vector<8x128xbf16>
      %c45_330 = arith.constant 45 : index
      %c0_331 = arith.constant 0 : index
      %c0_332 = arith.constant 0 : index
      %382 = vector.load %arg5[%c45_330, %c0_331, %c0_332] : memref<49x128x128xbf16, #tpu.memory_space<vmem>>, vector<1x128x128xbf16>
      %383 = vector.shape_cast %382 : vector<1x128x128xbf16> to vector<128x128xbf16>
      %cst_333 = arith.constant dense<0.000000e+00> : vector<8x128xf32>
      %384 = tpu.matmul %381, %383, %cst_333 {dimension_numbers = #tpu.dot_dimension_numbers<[1], [0], [0], [1], [0, 0, 1, 1], [], []>} : vector<8x128xbf16>, vector<128x128xbf16>, vector<8x128xf32> -> vector<8x128xf32>
      %385 = arith.addf %377, %384 : vector<8x128xf32>
      %c46 = arith.constant 46 : index
      %c0_334 = arith.constant 0 : index
      %c0_335 = arith.constant 0 : index
      %386 = vector.load %arg4[%c46, %c0_334, %c0_335] : memref<49x8x128xbf16, #tpu.memory_space<vmem>>, vector<1x8x128xbf16>
      %387 = vector.shape_cast %386 : vector<1x8x128xbf16> to vector<8x128xbf16>
      %cst_336 = arith.constant dense<0.000000e+00> : vector<8x128xf32>
      %388 = tpu.matmul %387, %16, %cst_336 {dimension_numbers = #tpu.dot_dimension_numbers<[1], [0], [0], [1], [0, 0, 1, 1], [], []>} : vector<8x128xbf16>, vector<128x128xbf16>, vector<8x128xf32> -> vector<8x128xf32>
      %389 = arith.truncf %388 : vector<8x128xf32> to vector<8x128xbf16>
      %c46_337 = arith.constant 46 : index
      %c0_338 = arith.constant 0 : index
      %c0_339 = arith.constant 0 : index
      %390 = vector.load %arg5[%c46_337, %c0_338, %c0_339] : memref<49x128x128xbf16, #tpu.memory_space<vmem>>, vector<1x128x128xbf16>
      %391 = vector.shape_cast %390 : vector<1x128x128xbf16> to vector<128x128xbf16>
      %cst_340 = arith.constant dense<0.000000e+00> : vector<8x128xf32>
      %392 = tpu.matmul %389, %391, %cst_340 {dimension_numbers = #tpu.dot_dimension_numbers<[1], [0], [0], [1], [0, 0, 1, 1], [], []>} : vector<8x128xbf16>, vector<128x128xbf16>, vector<8x128xf32> -> vector<8x128xf32>
      %393 = arith.addf %385, %392 : vector<8x128xf32>
      %c47 = arith.constant 47 : index
      %c0_341 = arith.constant 0 : index
      %c0_342 = arith.constant 0 : index
      %394 = vector.load %arg4[%c47, %c0_341, %c0_342] : memref<49x8x128xbf16, #tpu.memory_space<vmem>>, vector<1x8x128xbf16>
      %395 = vector.shape_cast %394 : vector<1x8x128xbf16> to vector<8x128xbf16>
      %cst_343 = arith.constant dense<0.000000e+00> : vector<8x128xf32>
      %396 = tpu.matmul %395, %16, %cst_343 {dimension_numbers = #tpu.dot_dimension_numbers<[1], [0], [0], [1], [0, 0, 1, 1], [], []>} : vector<8x128xbf16>, vector<128x128xbf16>, vector<8x128xf32> -> vector<8x128xf32>
      %397 = arith.truncf %396 : vector<8x128xf32> to vector<8x128xbf16>
      %c47_344 = arith.constant 47 : index
      %c0_345 = arith.constant 0 : index
      %c0_346 = arith.constant 0 : index
      %398 = vector.load %arg5[%c47_344, %c0_345, %c0_346] : memref<49x128x128xbf16, #tpu.memory_space<vmem>>, vector<1x128x128xbf16>
      %399 = vector.shape_cast %398 : vector<1x128x128xbf16> to vector<128x128xbf16>
      %cst_347 = arith.constant dense<0.000000e+00> : vector<8x128xf32>
      %400 = tpu.matmul %397, %399, %cst_347 {dimension_numbers = #tpu.dot_dimension_numbers<[1], [0], [0], [1], [0, 0, 1, 1], [], []>} : vector<8x128xbf16>, vector<128x128xbf16>, vector<8x128xf32> -> vector<8x128xf32>
      %401 = arith.addf %393, %400 : vector<8x128xf32>
      %c48 = arith.constant 48 : index
      %c0_348 = arith.constant 0 : index
      %c0_349 = arith.constant 0 : index
      %402 = vector.load %arg4[%c48, %c0_348, %c0_349] : memref<49x8x128xbf16, #tpu.memory_space<vmem>>, vector<1x8x128xbf16>
      %403 = vector.shape_cast %402 : vector<1x8x128xbf16> to vector<8x128xbf16>
      %cst_350 = arith.constant dense<0.000000e+00> : vector<8x128xf32>
      %404 = tpu.matmul %403, %16, %cst_350 {dimension_numbers = #tpu.dot_dimension_numbers<[1], [0], [0], [1], [0, 0, 1, 1], [], []>} : vector<8x128xbf16>, vector<128x128xbf16>, vector<8x128xf32> -> vector<8x128xf32>
      %405 = arith.truncf %404 : vector<8x128xf32> to vector<8x128xbf16>
      %c48_351 = arith.constant 48 : index
      %c0_352 = arith.constant 0 : index
      %c0_353 = arith.constant 0 : index
      %406 = vector.load %arg5[%c48_351, %c0_352, %c0_353] : memref<49x128x128xbf16, #tpu.memory_space<vmem>>, vector<1x128x128xbf16>
      %407 = vector.shape_cast %406 : vector<1x128x128xbf16> to vector<128x128xbf16>
      %cst_354 = arith.constant dense<0.000000e+00> : vector<8x128xf32>
      %408 = tpu.matmul %405, %407, %cst_354 {dimension_numbers = #tpu.dot_dimension_numbers<[1], [0], [0], [1], [0, 0, 1, 1], [], []>} : vector<8x128xbf16>, vector<128x128xbf16>, vector<8x128xf32> -> vector<8x128xf32>
      %409 = arith.addf %401, %408 : vector<8x128xf32>
      %c0_355 = arith.constant 0 : index
      %c0_356 = arith.constant 0 : index
      %410 = vector.load %arg6[%c0_355, %c0_356] : memref<1x128xf32, #tpu.memory_space<vmem>>, vector<1x128xf32>
      %411 = vector.broadcast %410 : vector<1x128xf32> to vector<8x128xf32>
      %412 = arith.addf %409, %411 : vector<8x128xf32>
      %cst_357 = arith.constant 0.000000e+00 : f32
      %413 = vector.broadcast %cst_357 : f32 to vector<8x128xf32>
      %414 = arith.maximumf %412, %413 : vector<8x128xf32>
      %c0_358 = arith.constant 0 : index
      %c0_359 = arith.constant 0 : index
      %415 = vector.load %arg7[%c0_358, %c0_359] : memref<8x128xf32, #tpu.memory_space<vmem>>, vector<8x128xf32>
      tpu.vector_store %arg7[%c0_358, %c0_359], %414 {strides = array<i32>} : memref<8x128xf32, #tpu.memory_space<vmem>>, vector<8x128xf32>,
    } else {
    }
    return
  }
  func.func @transform_0(%arg0: i32) -> (i32, i32) {
    %c0_i32 = arith.constant 0 : i32
    %c0_i32_0 = arith.constant 0 : i32
    return %arg0, %c0_i32 : i32, i32
  }
  func.func @transform_1(%arg0: i32) -> (i32, i32) {
    %c0_i32 = arith.constant 0 : i32
    %c0_i32_0 = arith.constant 0 : i32
    %c0_i32_1 = arith.constant 0 : i32
    return %c0_i32, %c0_i32_0 : i32, i32
  }
  func.func @transform_2(%arg0: i32) -> (i32, i32) {
    %c0_i32 = arith.constant 0 : i32
    %c0_i32_0 = arith.constant 0 : i32
    %c0_i32_1 = arith.constant 0 : i32
    return %c0_i32, %c0_i32_0 : i32, i32
  }
  func.func @transform_3(%arg0: i32) -> (i32, i32, i32) {
    %c0_i32 = arith.constant 0 : i32
    %c0_i32_0 = arith.constant 0 : i32
    %c0_i32_1 = arith.constant 0 : i32
    %c0_i32_2 = arith.constant 0 : i32
    return %c0_i32, %c0_i32_0, %c0_i32_1 : i32, i32, i32
  }
  func.func @transform_4(%arg0: i32) -> (i32, i32, i32) {
    %c0_i32 = arith.constant 0 : i32
    %c0_i32_0 = arith.constant 0 : i32
    %c0_i32_1 = arith.constant 0 : i32
    %c0_i32_2 = arith.constant 0 : i32
    return %c0_i32, %c0_i32_0, %c0_i32_1 : i32, i32, i32
  }
  func.func @transform_5(%arg0: i32) -> (i32, i32) {
    %c0_i32 = arith.constant 0 : i32
    %c0_i32_0 = arith.constant 0 : i32
    %c0_i32_1 = arith.constant 0 : i32
    return %c0_i32, %c0_i32_0 : i32, i32
  }
  func.func @transform_6(%arg0: i32) -> (i32, i32) {
    %c0_i32 = arith.constant 0 : i32
    %c0_i32_0 = arith.constant 0 : i32
    %c0_i32_1 = arith.constant 0 : i32
    return %c0_i32, %c0_i32_0 : i32, i32
  }
}

</mosaic_0001>

<llo_original>
// kernel: large_kernel_downsample_net.1
$region0: #{large_kernel_downsample_net.1}
  #allocation0 [shape = 'u32[]', space=smem, size = 0x4, offset = 0x4, fixed_abs, tag = 'smem constant byte address 0x4 - core index']
  #allocation1 [shape = 'u32[144,128]{1,0:T(1,128)}', space=vmem, size = 0x12000, scoped, tag = 'internal scratch']
  #allocation2 [shape = 'bf16[128,128]{1,0:T(8,128)(2,1)}', space=vmem, size = 0x8000, scoped, tag = 'scratch operand']
  %s0 = inlined_call_operand.vmem [shape: bf16[128,256], index: 0, kind: input, shape index: {}]
  %s1 = inlined_call_operand.vmem [shape: bf16[256,128], index: 1, kind: input, shape index: {}]
  %s2 = inlined_call_operand.vmem [shape: f32[1,128], index: 2, kind: input, shape index: {}]
  %s3 = inlined_call_operand.vmem [shape: bf16[49,8,128], index: 3, kind: input, shape index: {}]
  %s4 = inlined_call_operand.vmem [shape: bf16[49,128,128], index: 4, kind: input, shape index: {}]
  %s5 = inlined_call_operand.vmem [shape: f32[1,128], index: 5, kind: input, shape index: {}]
  %s6 = inlined_call_operand.hbm [shape: f32[8,128], index: 6, kind: output, shape index: {}]
  %s7 = sld [smem:[#allocation0]]
  $region38: #{large_kernel_downsample_net.1} parent=0
    _
  %s9 = ssub.s32 1, %s7
  %s10 = scalar_select 0, %s9, %s7
  $region1: #{large_kernel_downsample_net.1} parent=0
    #allocation3 [shape = 'u8[4096]{0}', space=vmem, size = 0x1000, scoped, tag = 'output window, operand 0, single buffered']
    #allocation4 [shape = 's32[1]{0}', space=sflag, size = 0x4, scoped, tag = 'scoped memory for large_kernel_downsample_net.1']
    %11 = vsyncpa [#allocation4], 0
    // Predicated region
    $region2: #{large_kernel_downsample_net.1} parent=1 // pred_check
      _
    $region3: #{large_kernel_downsample_net.1} parent=1 // pred_check_branch
      %13 = sbr.rel (0) target = $region5
    $region4: #{large_kernel_downsample_net.1} parent=1 // pred_region
      _
    $region5: #{large_kernel_downsample_net.1} parent=1 // pred_fallthru
      _
    // Predicated region
    $region6: #{large_kernel_downsample_net.1} parent=1 // pred_check
      _
    $region7: #{large_kernel_downsample_net.1} parent=1 // pred_check_branch
      %15 = sbr.rel (0) target = $region9
    $region8: #{large_kernel_downsample_net.1} parent=1 // pred_region
      _
    $region9: #{large_kernel_downsample_net.1} parent=1 // pred_fallthru
      _
    // Predicated region
    $region10: #{large_kernel_downsample_net.1} parent=1 // pred_check
      _
    $region11: #{large_kernel_downsample_net.1} parent=1 // pred_check_branch
      %17 = sbr.rel (0) target = $region13
    $region12: #{large_kernel_downsample_net.1} parent=1 // pred_region
      _
    $region13: #{large_kernel_downsample_net.1} parent=1 // pred_fallthru
      _
    // Predicated region
    $region14: #{large_kernel_downsample_net.1} parent=1 // pred_check
      _
    $region15: #{large_kernel_downsample_net.1} parent=1 // pred_check_branch
      %19 = sbr.rel (0) target = $region17
    $region16: #{large_kernel_downsample_net.1} parent=1 // pred_region
      _
    $region17: #{large_kernel_downsample_net.1} parent=1 // pred_fallthru
      _
    // Predicated region
    $region18: #{large_kernel_downsample_net.1} parent=1 // pred_check
      _
    $region19: #{large_kernel_downsample_net.1} parent=1 // pred_check_branch
      %21 = sbr.rel (0) target = $region21
    $region20: #{large_kernel_downsample_net.1} parent=1 // pred_region
      _
    $region21: #{large_kernel_downsample_net.1} parent=1 // pred_fallthru
      _
    // Predicated region
    $region22: #{large_kernel_downsample_net.1} parent=1 // pred_check
      _
    $region23: #{large_kernel_downsample_net.1} parent=1 // pred_check_branch
      %23 = sbr.rel (0) target = $region25
    $region24: #{large_kernel_downsample_net.1} parent=1 // pred_region
      _
    $region25: #{large_kernel_downsample_net.1} parent=1 // pred_fallthru
      _
    %v25 = vld [vmem:[%s0] sm:$0xff]
    %v26 = vld [vmem:[%s0 + $0x8] sm:$0xff]
    %v27 = vld [vmem:[%s0 + $0x10] sm:$0xff]
    %v28 = vld [vmem:[%s0 + $0x18] sm:$0xff]
    %v29 = vld [vmem:[%s0 + $0x20] sm:$0xff]
    %v30 = vld [vmem:[%s0 + $0x28] sm:$0xff]
    %v31 = vld [vmem:[%s0 + $0x30] sm:$0xff]
    %v32 = vld [vmem:[%s0 + $0x38] sm:$0xff]
    %v33 = vld [vmem:[%s0 + $0x40] sm:$0xff]
    %v34 = vld [vmem:[%s0 + $0x48] sm:$0xff]
    %v35 = vld [vmem:[%s0 + $0x50] sm:$0xff]
    %v36 = vld [vmem:[%s0 + $0x58] sm:$0xff]
    %v37 = vld [vmem:[%s0 + $0x60] sm:$0xff]
    %v38 = vld [vmem:[%s0 + $0x68] sm:$0xff]
    %v39 = vld [vmem:[%s0 + $0x70] sm:$0xff]
    %v40 = vld [vmem:[%s0 + $0x78] sm:$0xff]
    %v41 = vld [vmem:[%s1] sm:$0xf]
    %v42 = vld [vmem:[%s1 + $0x4] sm:$0xf]
    %v43 = vld [vmem:[%s1 + $0x8] sm:$0xf]
    %v44 = vld [vmem:[%s1 + $0xc] sm:$0xf]
    %v45 = vld [vmem:[%s1 + $0x10] sm:$0xf]
    %v46 = vld [vmem:[%s1 + $0x14] sm:$0xf]
    %v47 = vld [vmem:[%s1 + $0x18] sm:$0xf]
    %v48 = vld [vmem:[%s1 + $0x1c] sm:$0xf]
    %v49 = vld [vmem:[%s1 + $0x20] sm:$0xf]
    %v50 = vld [vmem:[%s1 + $0x24] sm:$0xf]
    %v51 = vld [vmem:[%s1 + $0x28] sm:$0xf]
    %v52 = vld [vmem:[%s1 + $0x2c] sm:$0xf]
    %v53 = vld [vmem:[%s1 + $0x30] sm:$0xf]
    %v54 = vld [vmem:[%s1 + $0x34] sm:$0xf]
    %v55 = vld [vmem:[%s1 + $0x38] sm:$0xf]
    %v56 = vld [vmem:[%s1 + $0x3c] sm:$0xf]
    %v57 = vld [vmem:[%s1 + $0x40] sm:$0xf]
    %v58 = vld [vmem:[%s1 + $0x44] sm:$0xf]
    %v59 = vld [vmem:[%s1 + $0x48] sm:$0xf]
    %v60 = vld [vmem:[%s1 + $0x4c] sm:$0xf]
    %v61 = vld [vmem:[%s1 + $0x50] sm:$0xf]
    %v62 = vld [vmem:[%s1 + $0x54] sm:$0xf]
    %v63 = vld [vmem:[%s1 + $0x58] sm:$0xf]
    %v64 = vld [vmem:[%s1 + $0x5c] sm:$0xf]
    %v65 = vld [vmem:[%s1 + $0x60] sm:$0xf]
    %v66 = vld [vmem:[%s1 + $0x64] sm:$0xf]
    %v67 = vld [vmem:[%s1 + $0x68] sm:$0xf]
    %v68 = vld [vmem:[%s1 + $0x6c] sm:$0xf]
    %v69 = vld [vmem:[%s1 + $0x70] sm:$0xf]
    %v70 = vld [vmem:[%s1 + $0x74] sm:$0xf]
    %v71 = vld [vmem:[%s1 + $0x78] sm:$0xf]
    %v72 = vld [vmem:[%s1 + $0x7c] sm:$0xf]
    %v73 = vld [vmem:[%s2] sm:$0x1]
    %v75 = vlaneseq
    %v76 = vshrl.u32 %v75, 7
    %v77 = vsub.s32 0, %v76
    %v78 = vrot.slane %v73, %v77
    %v96 = vunpack.c.l.b16 %v25
    %v97 = vunpack.c.h.b16 %v25
    %v98 = vunpack.c.l.b16 %v26
    %v99 = vunpack.c.h.b16 %v26
    %v100 = vunpack.c.l.b16 %v27
    %v101 = vunpack.c.h.b16 %v27
    %v102 = vunpack.c.l.b16 %v28
    %v103 = vunpack.c.h.b16 %v28
    %v104 = vunpack.c.l.b16 %v29
    %v105 = vunpack.c.h.b16 %v29
    %v106 = vunpack.c.l.b16 %v30
    %v107 = vunpack.c.h.b16 %v30
    %v108 = vunpack.c.l.b16 %v31
    %v109 = vunpack.c.h.b16 %v31
    %v110 = vunpack.c.l.b16 %v32
    %v111 = vunpack.c.h.b16 %v32
    %v112 = vunpack.c.l.b16 %v33
    %v113 = vunpack.c.h.b16 %v33
    %v114 = vunpack.c.l.b16 %v34
    %v115 = vunpack.c.h.b16 %v34
    %v116 = vunpack.c.l.b16 %v35
    %v117 = vunpack.c.h.b16 %v35
    %v118 = vunpack.c.l.b16 %v36
    %v119 = vunpack.c.h.b16 %v36
    %v120 = vunpack.c.l.b16 %v37
    %v121 = vunpack.c.h.b16 %v37
    %v122 = vunpack.c.l.b16 %v38
    %v123 = vunpack.c.h.b16 %v38
    %v124 = vunpack.c.l.b16 %v39
    %v125 = vunpack.c.h.b16 %v39
    %v126 = vunpack.c.l.b16 %v40
    %v127 = vunpack.c.h.b16 %v40
    %v128 = vpack.c.b16 %v98, %v96
    %v129 = vpack.c.b16 %v99, %v97
    %v130 = vpack.c.b16 %v102, %v100
    %v131 = vpack.c.b16 %v103, %v101
    %v132 = vpack.c.b16 %v106, %v104
    %v133 = vpack.c.b16 %v107, %v105
    %v134 = vpack.c.b16 %v110, %v108
    %v135 = vpack.c.b16 %v111, %v109
    %v136 = vpack.c.b16 %v114, %v112
    %v137 = vpack.c.b16 %v115, %v113
    %v138 = vpack.c.b16 %v118, %v116
    %v139 = vpack.c.b16 %v119, %v117
    %v140 = vpack.c.b16 %v122, %v120
    %v141 = vpack.c.b16 %v123, %v121
    %v142 = vpack.c.b16 %v126, %v124
    %v143 = vpack.c.b16 %v127, %v125
    %v192 = vunpack.c.l.b16 %v41
    %v193 = vunpack.c.l.b16 %v42
    %v194 = vunpack.c.l.b16 %v43
    %v195 = vunpack.c.l.b16 %v44
    %v196 = vunpack.c.l.b16 %v45
    %v197 = vunpack.c.l.b16 %v46
    %v198 = vunpack.c.l.b16 %v47
    %v199 = vunpack.c.l.b16 %v48
    %v200 = vunpack.c.l.b16 %v49
    %v201 = vunpack.c.l.b16 %v50
    %v202 = vunpack.c.l.b16 %v51
    %v203 = vunpack.c.l.b16 %v52
    %v204 = vunpack.c.l.b16 %v53
    %v205 = vunpack.c.l.b16 %v54
    %v206 = vunpack.c.l.b16 %v55
    %v207 = vunpack.c.l.b16 %v56
    %v208 = vunpack.c.l.b16 %v57
    %v209 = vunpack.c.l.b16 %v58
    %v210 = vunpack.c.l.b16 %v59
    %v211 = vunpack.c.l.b16 %v60
    %v212 = vunpack.c.l.b16 %v61
    %v213 = vunpack.c.l.b16 %v62
    %v214 = vunpack.c.l.b16 %v63
    %v215 = vunpack.c.l.b16 %v64
    %v216 = vunpack.c.l.b16 %v65
    %v217 = vunpack.c.l.b16 %v66
    %v218 = vunpack.c.l.b16 %v67
    %v219 = vunpack.c.l.b16 %v68
    %v220 = vunpack.c.l.b16 %v69
    %v221 = vunpack.c.l.b16 %v70
    %v222 = vunpack.c.l.b16 %v71
    %v223 = vunpack.c.l.b16 %v72
    %v224 = vpack.c.b16 %v193, %v192
    %v225 = vpack.c.b16 %v195, %v194
    %v226 = vpack.c.b16 %v197, %v196
    %v227 = vpack.c.b16 %v199, %v198
    %v228 = vpack.c.b16 %v201, %v200
    %v229 = vpack.c.b16 %v203, %v202
    %v230 = vpack.c.b16 %v205, %v204
    %v231 = vpack.c.b16 %v207, %v206
    %v232 = vpack.c.b16 %v209, %v208
    %v233 = vpack.c.b16 %v211, %v210
    %v234 = vpack.c.b16 %v213, %v212
    %v235 = vpack.c.b16 %v215, %v214
    %v236 = vpack.c.b16 %v217, %v216
    %v237 = vpack.c.b16 %v219, %v218
    %v238 = vpack.c.b16 %v221, %v220
    %v239 = vpack.c.b16 %v223, %v222
    %256 = vmatprep.subr.bf16.mxu0 0
    %257 = vmatpush1.bf16.msra.mxu0 %v231
    %258 = vmatprep.subr.bf16.mxu0 0
    %259 = vmatpush1.bf16.msra.mxu0 %v230
    %260 = vmatprep.subr.bf16.mxu0 0
    %261 = vmatpush1.bf16.msra.mxu0 %v229
    %262 = vmatprep.subr.bf16.mxu0 0
    %263 = vmatpush1.bf16.msra.mxu0 %v228
    %264 = vmatprep.subr.bf16.mxu0 0
    %265 = vmatpush1.bf16.msra.mxu0 %v227
    %266 = vmatprep.subr.bf16.mxu0 0
    %267 = vmatpush1.bf16.msra.mxu0 %v226
    %268 = vmatprep.subr.bf16.mxu0 0
    %269 = vmatpush1.bf16.msra.mxu0 %v225
    %270 = vmatprep.subr.bf16.mxu0 0
    %271 = vmatpush1.bf16.msra.mxu0 %v224
    %272 = vmatprep.subr.bf16.mxu0 0
    %273 = vmatpush2.bf16.msra.mxu0 %v239
    %274 = vmatprep.subr.bf16.mxu0 0
    %275 = vmatpush2.bf16.msra.mxu0 %v238
    %276 = vmatprep.subr.bf16.mxu0 0
    %277 = vmatpush2.bf16.msra.mxu0 %v237
    %278 = vmatprep.subr.bf16.mxu0 0
    %279 = vmatpush2.bf16.msra.mxu0 %v236
    %280 = vmatprep.subr.bf16.mxu0 0
    %281 = vmatpush2.bf16.msra.mxu0 %v235
    %282 = vmatprep.subr.bf16.mxu0 0
    %283 = vmatpush2.bf16.msra.mxu0 %v234
    %284 = vmatprep.subr.bf16.mxu0 0
    %285 = vmatpush2.bf16.msra.mxu0 %v233
    %286 = vmatprep.subr.bf16.mxu0 0
    %287 = vmatpush2.bf16.msra.mxu0 %v232
    %288 = vmatprep.mubr.bf16.mxu0 %v129
    %289 = vmatmul.mubr.bf16.gmra.mxu0 %v128
    %v290 = vpop.f32.mrf.mxu0
    %v291 = vadd.f32 %v78, %v290
    %v292 = vpop.f32.mrf.mxu0
    %v293 = vpop.f32.mrf.mxu0
    %v294 = vadd.f32 %v78, %v293
    %v295 = vpop.f32.mrf.mxu0
    %296 = vmatprep.mubr.bf16.mxu0 %v131
    %297 = vmatmul.mubr.bf16.gmra.mxu0 %v130
    %v298 = vpop.f32.mrf.mxu0
    %v299 = vadd.f32 %v78, %v298
    %v300 = vpop.f32.mrf.mxu0
    %v301 = vpop.f32.mrf.mxu0
    %v302 = vadd.f32 %v78, %v301
    %v303 = vpop.f32.mrf.mxu0
    %304 = vmatprep.mubr.bf16.mxu0 %v133
    %305 = vmatmul.mubr.bf16.gmra.mxu0 %v132
    %v306 = vpop.f32.mrf.mxu0
    %v307 = vadd.f32 %v78, %v306
    %v308 = vpop.f32.mrf.mxu0
    %v309 = vpop.f32.mrf.mxu0
    %v310 = vadd.f32 %v78, %v309
    %v311 = vpop.f32.mrf.mxu0
    %312 = vmatprep.mubr.bf16.mxu0 %v135
    %313 = vmatmul.mubr.bf16.gmra.mxu0 %v134
    %v314 = vpop.f32.mrf.mxu0
    %v315 = vadd.f32 %v78, %v314
    %v316 = vpop.f32.mrf.mxu0
    %v317 = vpop.f32.mrf.mxu0
    %v318 = vadd.f32 %v78, %v317
    %v319 = vpop.f32.mrf.mxu0
    %320 = vmatprep.mubr.bf16.mxu0 %v137
    %321 = vmatmul.mubr.bf16.gmra.mxu0 %v136
    %v322 = vpop.f32.mrf.mxu0
    %v323 = vadd.f32 %v78, %v322
    %v324 = vpop.f32.mrf.mxu0
    %v325 = vpop.f32.mrf.mxu0
    %v326 = vadd.f32 %v78, %v325
    %v327 = vpop.f32.mrf.mxu0
    %328 = vmatprep.mubr.bf16.mxu0 %v139
    %329 = vmatmul.mubr.bf16.gmra.mxu0 %v138
    %v330 = vpop.f32.mrf.mxu0
    %v331 = vadd.f32 %v78, %v330
    %v332 = vpop.f32.mrf.mxu0
    %v333 = vpop.f32.mrf.mxu0
    %v334 = vadd.f32 %v78, %v333
    %v335 = vpop.f32.mrf.mxu0
    %336 = vmatprep.mubr.bf16.mxu0 %v141
    %337 = vmatmul.mubr.bf16.gmra.mxu0 %v140
    %v338 = vpop.f32.mrf.mxu0
    %v339 = vadd.f32 %v78, %v338
    %v340 = vpop.f32.mrf.mxu0
    %v341 = vpop.f32.mrf.mxu0
    %v342 = vadd.f32 %v78, %v341
    %v343 = vpop.f32.mrf.mxu0
    %344 = vmatprep.mubr.bf16.mxu0 %v143
    %345 = vmatmul.mubr.bf16.gmra.mxu0 %v142
    %v346 = vpop.f32.mrf.mxu0
    %v347 = vadd.f32 %v78, %v346
    %v348 = vpop.f32.mrf.mxu0
    %v349 = vpop.f32.mrf.mxu0
    %v350 = vadd.f32 %v78, %v349
    %v351 = vpop.f32.mrf.mxu0
    %352 = vdwg.mxu0
    %v353 = vmax.f32 %v291, 0.0
    %v354 = vmax.f32 %v294, 0.0
    %v355 = vmax.f32 %v299, 0.0
    %v356 = vmax.f32 %v302, 0.0
    %v357 = vmax.f32 %v307, 0.0
    %v358 = vmax.f32 %v310, 0.0
    %v359 = vmax.f32 %v315, 0.0
    %v360 = vmax.f32 %v318, 0.0
    %v361 = vmax.f32 %v323, 0.0
    %v362 = vmax.f32 %v326, 0.0
    %v363 = vmax.f32 %v331, 0.0
    %v364 = vmax.f32 %v334, 0.0
    %v365 = vmax.f32 %v339, 0.0
    %v366 = vmax.f32 %v342, 0.0
    %v367 = vmax.f32 %v347, 0.0
    %v368 = vmax.f32 %v350, 0.0
    %s369 = smul.u32 0, 128
    %v370 = vpack.c.bf16 %v354, %v353
    %v371 = vpack.c.bf16 %v356, %v355
    %v372 = vpack.c.bf16 %v358, %v357
    %v373 = vpack.c.bf16 %v360, %v359
    %v374 = vpack.c.bf16 %v362, %v361
    %v375 = vpack.c.bf16 %v364, %v363
    %v376 = vpack.c.bf16 %v366, %v365
    %v377 = vpack.c.bf16 %v368, %v367
    %v386 = vunpack.c.l.b16 %v370
    %v387 = vunpack.c.h.b16 %v370
    %v388 = vunpack.c.l.b16 %v371
    %v389 = vunpack.c.h.b16 %v371
    %v390 = vunpack.c.l.b16 %v372
    %v391 = vunpack.c.h.b16 %v372
    %v392 = vunpack.c.l.b16 %v373
    %v393 = vunpack.c.h.b16 %v373
    %v394 = vunpack.c.l.b16 %v374
    %v395 = vunpack.c.h.b16 %v374
    %v396 = vunpack.c.l.b16 %v375
    %v397 = vunpack.c.h.b16 %v375
    %v398 = vunpack.c.l.b16 %v376
    %v399 = vunpack.c.h.b16 %v376
    %v400 = vunpack.c.l.b16 %v377
    %v401 = vunpack.c.h.b16 %v377
    %v402 = vpack.c.b16 %v386, %v386
    %v403 = vpack.c.b16 %v387, %v387
    %v404 = vpack.c.b16 %v388, %v388
    %v405 = vpack.c.b16 %v389, %v389
    %v406 = vpack.c.b16 %v390, %v390
    %v407 = vpack.c.b16 %v391, %v391
    %v408 = vpack.c.b16 %v392, %v392
    %v409 = vpack.c.b16 %v393, %v393
    %v410 = vpack.c.b16 %v394, %v394
    %v411 = vpack.c.b16 %v395, %v395
    %v412 = vpack.c.b16 %v396, %v396
    %v413 = vpack.c.b16 %v397, %v397
    %v414 = vpack.c.b16 %v398, %v398
    %v415 = vpack.c.b16 %v399, %v399
    %v416 = vpack.c.b16 %v400, %v400
    %v417 = vpack.c.b16 %v401, %v401
    %s434 = sshra.s32 %s369, 3
    %s435 = sand.u32 %s369, 7
    %s436 = smul.addr %s434, 4
    %s437 = scalar_lea.vmem [#allocation2], %s436
    %438 = vst [vmem:[%s437] sm:$0xf] %v402
    %439 = vst [vmem:[%s437 + $0x4] sm:$0xf] %v403
    %440 = vst [vmem:[%s437 + $0x8] sm:$0xf] %v404
    %441 = vst [vmem:[%s437 + $0xc] sm:$0xf] %v405
    %442 = vst [vmem:[%s437 + $0x10] sm:$0xf] %v406
    %443 = vst [vmem:[%s437 + $0x14] sm:$0xf] %v407
    %444 = vst [vmem:[%s437 + $0x18] sm:$0xf] %v408
    %445 = vst [vmem:[%s437 + $0x1c] sm:$0xf] %v409
    %446 = vst [vmem:[%s437 + $0x20] sm:$0xf] %v410
    %447 = vst [vmem:[%s437 + $0x24] sm:$0xf] %v411
    %448 = vst [vmem:[%s437 + $0x28] sm:$0xf] %v412
    %449 = vst [vmem:[%s437 + $0x2c] sm:$0xf] %v413
    %450 = vst [vmem:[%s437 + $0x30] sm:$0xf] %v414
    %451 = vst [vmem:[%s437 + $0x34] sm:$0xf] %v415
    %452 = vst [vmem:[%s437 + $0x38] sm:$0xf] %v416
    %453 = vst [vmem:[%s437 + $0x3c] sm:$0xf] %v417
    %p454 = scmp.eq.s32.totalorder 0, 0
    // Predicated region
    $region26: #{large_kernel_downsample_net.1} parent=1 // pred_check
      %p455 = pneg %p454
    $region27: #{large_kernel_downsample_net.1} parent=1 // pred_check_branch
      %457 = sbr.rel (%p455) target = $region29
    $region28: #{large_kernel_downsample_net.1} parent=1 // pred_region
      %v458 = vld [vmem:[#allocation2] sm:$0xf]
      %v459 = vld [vmem:[#allocation2 + $0x4] sm:$0xf]
      %v460 = vld [vmem:[#allocation2 + $0x8] sm:$0xf]
      %v461 = vld [vmem:[#allocation2 + $0xc] sm:$0xf]
      %v462 = vld [vmem:[#allocation2 + $0x10] sm:$0xf]
      %v463 = vld [vmem:[#allocation2 + $0x14] sm:$0xf]
      %v464 = vld [vmem:[#allocation2 + $0x18] sm:$0xf]
      %v465 = vld [vmem:[#allocation2 + $0x1c] sm:$0xf]
      %v466 = vld [vmem:[#allocation2 + $0x20] sm:$0xf]
      %v467 = vld [vmem:[#allocation2 + $0x24] sm:$0xf]
      %v468 = vld [vmem:[#allocation2 + $0x28] sm:$0xf]
      %v469 = vld [vmem:[#allocation2 + $0x2c] sm:$0xf]
      %v470 = vld [vmem:[#allocation2 + $0x30] sm:$0xf]
      %v471 = vld [vmem:[#allocation2 + $0x34] sm:$0xf]
      %v472 = vld [vmem:[#allocation2 + $0x38] sm:$0xf]
      %v473 = vld [vmem:[#allocation2 + $0x3c] sm:$0xf]
      %v474 = vld [vmem:[%s3] sm:$0xf]
      %v491 = vunpack.c.l.b16 %v458
      %v492 = vunpack.c.l.b16 %v459
      %v493 = vunpack.c.l.b16 %v460
      %v494 = vunpack.c.l.b16 %v461
      %v495 = vunpack.c.l.b16 %v462
      %v496 = vunpack.c.l.b16 %v463
      %v497 = vunpack.c.l.b16 %v464
      %v498 = vunpack.c.l.b16 %v465
      %v499 = vunpack.c.l.b16 %v466
      %v500 = vunpack.c.l.b16 %v467
      %v501 = vunpack.c.l.b16 %v468
      %v502 = vunpack.c.l.b16 %v469
      %v503 = vunpack.c.l.b16 %v470
      %v504 = vunpack.c.l.b16 %v471
      %v505 = vunpack.c.l.b16 %v472
      %v506 = vunpack.c.l.b16 %v473
      %v507 = vpack.c.b16 %v492, %v491
      %v508 = vpack.c.b16 %v494, %v493
      %v509 = vpack.c.b16 %v496, %v495
      %v510 = vpack.c.b16 %v498, %v497
      %v511 = vpack.c.b16 %v500, %v499
      %v512 = vpack.c.b16 %v502, %v501
      %v513 = vpack.c.b16 %v504, %v503
      %v514 = vpack.c.b16 %v506, %v505
      %523 = vmatprep.subr.bf16.mxu0 0
      %524 = vmatpush1.bf16.msra.mxu0 %v514
      %525 = vmatprep.subr.bf16.mxu0 0
      %526 = vmatpush1.bf16.msra.mxu0 %v513
      %527 = vmatprep.subr.bf16.mxu0 0
      %528 = vmatpush1.bf16.msra.mxu0 %v512
      %529 = vmatprep.subr.bf16.mxu0 0
      %530 = vmatpush1.bf16.msra.mxu0 %v511
      %531 = vmatprep.subr.bf16.mxu0 0
      %532 = vmatpush1.bf16.msra.mxu0 %v510
      %533 = vmatprep.subr.bf16.mxu0 0
      %534 = vmatpush1.bf16.msra.mxu0 %v509
      %535 = vmatprep.subr.bf16.mxu0 0
      %536 = vmatpush1.bf16.msra.mxu0 %v508
      %537 = vmatprep.subr.bf16.mxu0 0
      %538 = vmatpush1.bf16.msra.mxu0 %v507
      %539 = vmatprep.subr.bf16.mxu0 0
      %540 = vmatpush2.bf16.msra.mxu0 0
      %541 = vmatprep.subr.bf16.mxu0 0
      %542 = vmatpush2.bf16.msra.mxu0 0
      %543 = vmatprep.subr.bf16.mxu0 0
      %544 = vmatpush2.bf16.msra.mxu0 0
      %545 = vmatprep.subr.bf16.mxu0 0
      %546 = vmatpush2.bf16.msra.mxu0 0
      %547 = vmatprep.subr.bf16.mxu0 0
      %548 = vmatpush2.bf16.msra.mxu0 0
      %549 = vmatprep.subr.bf16.mxu0 0
      %550 = vmatpush2.bf16.msra.mxu0 0
      %551 = vmatprep.subr.bf16.mxu0 0
      %552 = vmatpush2.bf16.msra.mxu0 0
      %553 = vmatprep.subr.bf16.mxu0 0
      %554 = vmatpush2.bf16.msra.mxu0 0
      %555 = vmatprep.mubr.bf16.mxu0 0
      %556 = vmatmul.mubr.bf16.gmra.mxu0 %v474
      %v557 = vpop.f32.mrf.mxu0
      %v558 = vadd.f32 0.0, %v557
      %v559 = vpop.f32.mrf.mxu0
      %v560 = vpop.f32.mrf.mxu0
      %v561 = vpop.f32.mrf.mxu0
      %562 = vdwg.mxu0
      %v563 = vpack.c.bf16 %v558, %v558
      %v564 = vld [vmem:[%s4] sm:$0xf]
      %v565 = vld [vmem:[%s4 + $0x4] sm:$0xf]
      %v566 = vld [vmem:[%s4 + $0x8] sm:$0xf]
      %v567 = vld [vmem:[%s4 + $0xc] sm:$0xf]
      %v568 = vld [vmem:[%s4 + $0x10] sm:$0xf]
      %v569 = vld [vmem:[%s4 + $0x14] sm:$0xf]
      %v570 = vld [vmem:[%s4 + $0x18] sm:$0xf]
      %v571 = vld [vmem:[%s4 + $0x1c] sm:$0xf]
      %v572 = vld [vmem:[%s4 + $0x20] sm:$0xf]
      %v573 = vld [vmem:[%s4 + $0x24] sm:$0xf]
      %v574 = vld [vmem:[%s4 + $0x28] sm:$0xf]
      %v575 = vld [vmem:[%s4 + $0x2c] sm:$0xf]
      %v576 = vld [vmem:[%s4 + $0x30] sm:$0xf]
      %v577 = vld [vmem:[%s4 + $0x34] sm:$0xf]
      %v578 = vld [vmem:[%s4 + $0x38] sm:$0xf]
      %v579 = vld [vmem:[%s4 + $0x3c] sm:$0xf]
      %s580 = scalar_lea.vmem %s3, 4
      %v581 = vld [vmem:[%s580] sm:$0xf]
      %582 = vmatprep.subr.bf16.mxu0 0
      %583 = vmatpush1.bf16.msra.mxu0 %v514
      %584 = vmatprep.subr.bf16.mxu0 0
      %585 = vmatpush1.bf16.msra.mxu0 %v513
      %586 = vmatprep.subr.bf16.mxu0 0
      %587 = vmatpush1.bf16.msra.mxu0 %v512
      %588 = vmatprep.subr.bf16.mxu0 0
      %589 = vmatpush1.bf16.msra.mxu0 %v511
      %590 = vmatprep.subr.bf16.mxu0 0
      %591 = vmatpush1.bf16.msra.mxu0 %v510
      %592 = vmatprep.subr.bf16.mxu0 0
      %593 = vmatpush1.bf16.msra.mxu0 %v509
      %594 = vmatprep.subr.bf16.mxu0 0
      %595 = vmatpush1.bf16.msra.mxu0 %v508
      %596 = vmatprep.subr.bf16.mxu0 0
      %597 = vmatpush1.bf16.msra.mxu0 %v507
      %598 = vmatprep.subr.bf16.mxu0 0
      %599 = vmatpush2.bf16.msra.mxu0 0
      %600 = vmatprep.subr.bf16.mxu0 0
      %601 = vmatpush2.bf16.msra.mxu0 0
      %602 = vmatprep.subr.bf16.mxu0 0
      %603 = vmatpush2.bf16.msra.mxu0 0
      %604 = vmatprep.subr.bf16.mxu0 0
      %605 = vmatpush2.bf16.msra.mxu0 0
      %606 = vmatprep.subr.bf16.mxu0 0
      %607 = vmatpush2.bf16.msra.mxu0 0
      %608 = vmatprep.subr.bf16.mxu0 0
      %609 = vmatpush2.bf16.msra.mxu0 0
      %610 = vmatprep.subr.bf16.mxu0 0
      %611 = vmatpush2.bf16.msra.mxu0 0
      %612 = vmatprep.subr.bf16.mxu0 0
      %613 = vmatpush2.bf16.msra.mxu0 0
      %614 = vmatprep.mubr.bf16.mxu0 0
      %615 = vmatmul.mubr.bf16.gmra.mxu0 %v581
      %v616 = vpop.f32.mrf.mxu0
      %v617 = vadd.f32 0.0, %v616
      %v618 = vpop.f32.mrf.mxu0
      %v619 = vpop.f32.mrf.mxu0
      %v620 = vpop.f32.mrf.mxu0
      %621 = vdwg.mxu0
      %v622 = vpack.c.bf16 %v617, %v617
      %s623 = scalar_lea.vmem %s4, 64
      %v624 = vld [vmem:[%s623] sm:$0xf]
      %v625 = vld [vmem:[%s623 + $0x4] sm:$0xf]
      %v626 = vld [vmem:[%s623 + $0x8] sm:$0xf]
      %v627 = vld [vmem:[%s623 + $0xc] sm:$0xf]
      %v628 = vld [vmem:[%s623 + $0x10] sm:$0xf]
      %v629 = vld [vmem:[%s623 + $0x14] sm:$0xf]
      %v630 = vld [vmem:[%s623 + $0x18] sm:$0xf]
      %v631 = vld [vmem:[%s623 + $0x1c] sm:$0xf]
      %v632 = vld [vmem:[%s623 + $0x20] sm:$0xf]
      %v633 = vld [vmem:[%s623 + $0x24] sm:$0xf]
      %v634 = vld [vmem:[%s623 + $0x28] sm:$0xf]
      %v635 = vld [vmem:[%s623 + $0x2c] sm:$0xf]
      %v636 = vld [vmem:[%s623 + $0x30] sm:$0xf]
      %v637 = vld [vmem:[%s623 + $0x34] sm:$0xf]
      %v638 = vld [vmem:[%s623 + $0x38] sm:$0xf]
      %v639 = vld [vmem:[%s623 + $0x3c] sm:$0xf]
      %v656 = vunpack.c.l.b16 %v624
      %v657 = vunpack.c.l.b16 %v625
      %v658 = vunpack.c.l.b16 %v626
      %v659 = vunpack.c.l.b16 %v627
      %v660 = vunpack.c.l.b16 %v628
      %v661 = vunpack.c.l.b16 %v629
      %v662 = vunpack.c.l.b16 %v630
      %v663 = vunpack.c.l.b16 %v631
      %v664 = vunpack.c.l.b16 %v632
      %v665 = vunpack.c.l.b16 %v633
      %v666 = vunpack.c.l.b16 %v634
      %v667 = vunpack.c.l.b16 %v635
      %v668 = vunpack.c.l.b16 %v636
      %v669 = vunpack.c.l.b16 %v637
      %v670 = vunpack.c.l.b16 %v638
      %v671 = vunpack.c.l.b16 %v639
      %v672 = vpack.c.b16 %v657, %v656
      %v673 = vpack.c.b16 %v659, %v658
      %v674 = vpack.c.b16 %v661, %v660
      %v675 = vpack.c.b16 %v663, %v662
      %v676 = vpack.c.b16 %v665, %v664
      %v677 = vpack.c.b16 %v667, %v666
      %v678 = vpack.c.b16 %v669, %v668
      %v679 = vpack.c.b16 %v671, %v670
      %688 = vmatprep.subr.bf16.mxu0 0
      %689 = vmatpush1.bf16.msra.mxu0 %v679
      %690 = vmatprep.subr.bf16.mxu0 0
      %691 = vmatpush1.bf16.msra.mxu0 %v678
      %692 = vmatprep.subr.bf16.mxu0 0
      %693 = vmatpush1.bf16.msra.mxu0 %v677
      %694 = vmatprep.subr.bf16.mxu0 0
      %695 = vmatpush1.bf16.msra.mxu0 %v676
      %696 = vmatprep.subr.bf16.mxu0 0
      %697 = vmatpush1.bf16.msra.mxu0 %v675
      %698 = vmatprep.subr.bf16.mxu0 0
      %699 = vmatpush1.bf16.msra.mxu0 %v674
      %700 = vmatprep.subr.bf16.mxu0 0
      %701 = vmatpush1.bf16.msra.mxu0 %v673
      %702 = vmatprep.subr.bf16.mxu0 0
      %703 = vmatpush1.bf16.msra.mxu0 %v672
      %704 = vmatprep.subr.bf16.mxu0 0
      %705 = vmatpush2.bf16.msra.mxu0 0
      %706 = vmatprep.subr.bf16.mxu0 0
      %707 = vmatpush2.bf16.msra.mxu0 0
      %708 = vmatprep.subr.bf16.mxu0 0
      %709 = vmatpush2.bf16.msra.mxu0 0
      %710 = vmatprep.subr.bf16.mxu0 0
      %711 = vmatpush2.bf16.msra.mxu0 0
      %712 = vmatprep.subr.bf16.mxu0 0
      %713 = vmatpush2.bf16.msra.mxu0 0
      %714 = vmatprep.subr.bf16.mxu0 0
      %715 = vmatpush2.bf16.msra.mxu0 0
      %716 = vmatprep.subr.bf16.mxu0 0
      %717 = vmatpush2.bf16.msra.mxu0 0
      %718 = vmatprep.subr.bf16.mxu0 0
      %719 = vmatpush2.bf16.msra.mxu0 0
      %720 = vmatprep.mubr.bf16.mxu0 0
      %721 = vmatmul.mubr.bf16.gmra.mxu0 %v622
      %v722 = vpop.f32.mrf.mxu0
      %v723 = vadd.f32 0.0, %v722
      %v724 = vpop.f32.mrf.mxu0
      %v725 = vpop.f32.mrf.mxu0
      %v726 = vpop.f32.mrf.mxu0
      %727 = vdwg.mxu0
      %v744 = vunpack.c.l.b16 %v564
      %v745 = vunpack.c.l.b16 %v565
      %v746 = vunpack.c.l.b16 %v566
      %v747 = vunpack.c.l.b16 %v567
      %v748 = vunpack.c.l.b16 %v568
      %v749 = vunpack.c.l.b16 %v569
      %v750 = vunpack.c.l.b16 %v570
      %v751 = vunpack.c.l.b16 %v571
      %v752 = vunpack.c.l.b16 %v572
      %v753 = vunpack.c.l.b16 %v573
      %v754 = vunpack.c.l.b16 %v574
      %v755 = vunpack.c.l.b16 %v575
      %v756 = vunpack.c.l.b16 %v576
      %v757 = vunpack.c.l.b16 %v577
      %v758 = vunpack.c.l.b16 %v578
      %v759 = vunpack.c.l.b16 %v579
      %v760 = vpack.c.b16 %v745, %v744
      %v761 = vpack.c.b16 %v747, %v746
      %v762 = vpack.c.b16 %v749, %v748
      %v763 = vpack.c.b16 %v751, %v750
      %v764 = vpack.c.b16 %v753, %v752
      %v765 = vpack.c.b16 %v755, %v754
      %v766 = vpack.c.b16 %v757, %v756
      %v767 = vpack.c.b16 %v759, %v758
      %776 = vmatprep.subr.bf16.mxu0 0
      %777 = vmatpush1.bf16.msra.mxu0 %v767
      %778 = vmatprep.subr.bf16.mxu0 0
      %779 = vmatpush1.bf16.msra.mxu0 %v766
      %780 = vmatprep.subr.bf16.mxu0 0
      %781 = vmatpush1.bf16.msra.mxu0 %v765
      %782 = vmatprep.subr.bf16.mxu0 0
      %783 = vmatpush1.bf16.msra.mxu0 %v764
      %784 = vmatprep.subr.bf16.mxu0 0
      %785 = vmatpush1.bf16.msra.mxu0 %v763
      %786 = vmatprep.subr.bf16.mxu0 0
      %787 = vmatpush1.bf16.msra.mxu0 %v762
      %788 = vmatprep.subr.bf16.mxu0 0
      %789 = vmatpush1.bf16.msra.mxu0 %v761
      %790 = vmatprep.subr.bf16.mxu0 0
      %791 = vmatpush1.bf16.msra.mxu0 %v760
      %792 = vmatprep.subr.bf16.mxu0 0
      %793 = vmatpush2.bf16.msra.mxu0 0
      %794 = vmatprep.subr.bf16.mxu0 0
      %795 = vmatpush2.bf16.msra.mxu0 0
      %796 = vmatprep.subr.bf16.mxu0 0
      %797 = vmatpush2.bf16.msra.mxu0 0
      %798 = vmatprep.subr.bf16.mxu0 0
      %799 = vmatpush2.bf16.msra.mxu0 0
      %800 = vmatprep.subr.bf16.mxu0 0
      %801 = vmatpush2.bf16.msra.mxu0 0
      %802 = vmatprep.subr.bf16.mxu0 0
      %803 = vmatpush2.bf16.msra.mxu0 0
      %804 = vmatprep.subr.bf16.mxu0 0
      %805 = vmatpush2.bf16.msra.mxu0 0
      %806 = vmatprep.subr.bf16.mxu0 0
      %807 = vmatpush2.bf16.msra.mxu0 0
      %808 = vmatprep.mubr.bf16.mxu0 0
      %809 = vmatmul.mubr.bf16.gmra.mxu0 %v563
      %v810 = vpop.f32.mrf.mxu0
      %v811 = vadd.f32 %v723, %v810
      %v812 = vpop.f32.mrf.mxu0
      %v813 = vpop.f32.mrf.mxu0
      %v814 = vpop.f32.mrf.mxu0
      %815 = vdwg.mxu0
      %s816 = scalar_lea.vmem %s3, 8
      %v817 = vld [vmem:[%s816] sm:$0xf]
      %818 = vmatprep.subr.bf16.mxu0 0
      %819 = vmatpush1.bf16.msra.mxu0 %v514
      %820 = vmatprep.subr.bf16.mxu0 0
      %821 = vmatpush1.bf16.msra.mxu0 %v513
      %822 = vmatprep.subr.bf16.mxu0 0
      %823 = vmatpush1.bf16.msra.mxu0 %v512
      %824 = vmatprep.subr.bf16.mxu0 0
      %825 = vmatpush1.bf16.msra.mxu0 %v511
      %826 = vmatprep.subr.bf16.mxu0 0
      %827 = vmatpush1.bf16.msra.mxu0 %v510
      %828 = vmatprep.subr.bf16.mxu0 0
      %829 = vmatpush1.bf16.msra.mxu0 %v509
      %830 = vmatprep.subr.bf16.mxu0 0
      %831 = vmatpush1.bf16.msra.mxu0 %v508
      %832 = vmatprep.subr.bf16.mxu0 0
      %833 = vmatpush1.bf16.msra.mxu0 %v507
      %834 = vmatprep.subr.bf16.mxu0 0
      %835 = vmatpush2.bf16.msra.mxu0 0
      %836 = vmatprep.subr.bf16.mxu0 0
      %837 = vmatpush2.bf16.msra.mxu0 0
      %838 = vmatprep.subr.bf16.mxu0 0
      %839 = vmatpush2.bf16.msra.mxu0 0
      %840 = vmatprep.subr.bf16.mxu0 0
      %841 = vmatpush2.bf16.msra.mxu0 0
      %842 = vmatprep.subr.bf16.mxu0 0
      %843 = vmatpush2.bf16.msra.mxu0 0
      %844 = vmatprep.subr.bf16.mxu0 0
      %845 = vmatpush2.bf16.msra.mxu0 0
      %846 = vmatprep.subr.bf16.mxu0 0
      %847 = vmatpush2.bf16.msra.mxu0 0
      %848 = vmatprep.subr.bf16.mxu0 0
      %849 = vmatpush2.bf16.msra.mxu0 0
      %850 = vmatprep.mubr.bf16.mxu0 0
      %851 = vmatmul.mubr.bf16.gmra.mxu0 %v817
      %v852 = vpop.f32.mrf.mxu0
      %v853 = vadd.f32 0.0, %v852
      %v854 = vpop.f32.mrf.mxu0
      %v855 = vpop.f32.mrf.mxu0
      %v856 = vpop.f32.mrf.mxu0
      %857 = vdwg.mxu0
      %v858 = vpack.c.bf16 %v853, %v853
      %s859 = scalar_lea.vmem %s4, 128
      %v860 = vld [vmem:[%s859] sm:$0xf]
      %v861 = vld [vmem:[%s859 + $0x4] sm:$0xf]
      %v862 = vld [vmem:[%s859 + $0x8] sm:$0xf]
      %v863 = vld [vmem:[%s859 + $0xc] sm:$0xf]
      %v864 = vld [vmem:[%s859 + $0x10] sm:$0xf]
      %v865 = vld [vmem:[%s859 + $0x14] sm:$0xf]
      %v866 = vld [vmem:[%s859 + $0x18] sm:$0xf]
      %v867 = vld [vmem:[%s859 + $0x1c] sm:$0xf]
      %v868 = vld [vmem:[%s859 + $0x20] sm:$0xf]
      %v869 = vld [vmem:[%s859 + $0x24] sm:$0xf]
      %v870 = vld [vmem:[%s859 + $0x28] sm:$0xf]
      %v871 = vld [vmem:[%s859 + $0x2c] sm:$0xf]
      %v872 = vld [vmem:[%s859 + $0x30] sm:$0xf]
      %v873 = vld [vmem:[%s859 + $0x34] sm:$0xf]
      %v874 = vld [vmem:[%s859 + $0x38] sm:$0xf]
      %v875 = vld [vmem:[%s859 + $0x3c] sm:$0xf]
      %v892 = vunpack.c.l.b16 %v860
      %v893 = vunpack.c.l.b16 %v861
      %v894 = vunpack.c.l.b16 %v862
      %v895 = vunpack.c.l.b16 %v863
      %v896 = vunpack.c.l.b16 %v864
      %v897 = vunpack.c.l.b16 %v865
      %v898 = vunpack.c.l.b16 %v866
      %v899 = vunpack.c.l.b16 %v867
      %v900 = vunpack.c.l.b16 %v868
      %v901 = vunpack.c.l.b16 %v869
      %v902 = vunpack.c.l.b16 %v870
      %v903 = vunpack.c.l.b16 %v871
      %v904 = vunpack.c.l.b16 %v872
      %v905 = vunpack.c.l.b16 %v873
      %v906 = vunpack.c.l.b16 %v874
      %v907 = vunpack.c.l.b16 %v875
      %v908 = vpack.c.b16 %v893, %v892
      %v909 = vpack.c.b16 %v895, %v894
      %v910 = vpack.c.b16 %v897, %v896
      %v911 = vpack.c.b16 %v899, %v898
      %v912 = vpack.c.b16 %v901, %v900
      %v913 = vpack.c.b16 %v903, %v902
      %v914 = vpack.c.b16 %v905, %v904
      %v915 = vpack.c.b16 %v907, %v906
      %924 = vmatprep.subr.bf16.mxu0 0
      %925 = vmatpush1.bf16.msra.mxu0 %v915
      %926 = vmatprep.subr.bf16.mxu0 0
      %927 = vmatpush1.bf16.msra.mxu0 %v914
      %928 = vmatprep.subr.bf16.mxu0 0
      %929 = vmatpush1.bf16.msra.mxu0 %v913
      %930 = vmatprep.subr.bf16.mxu0 0
      %931 = vmatpush1.bf16.msra.mxu0 %v912
      %932 = vmatprep.subr.bf16.mxu0 0
      %933 = vmatpush1.bf16.msra.mxu0 %v911
      %934 = vmatprep.subr.bf16.mxu0 0
      %935 = vmatpush1.bf16.msra.mxu0 %v910
      %936 = vmatprep.subr.bf16.mxu0 0
      %937 = vmatpush1.bf16.msra.mxu0 %v909
      %938 = vmatprep.subr.bf16.mxu0 0
      %939 = vmatpush1.bf16.msra.mxu0 %v908
      %940 = vmatprep.subr.bf16.mxu0 0
      %941 = vmatpush2.bf16.msra.mxu0 0
      %942 = vmatprep.subr.bf16.mxu0 0
      %943 = vmatpush2.bf16.msra.mxu0 0
      %944 = vmatprep.subr.bf16.mxu0 0
      %945 = vmatpush2.bf16.msra.mxu0 0
      %946 = vmatprep.subr.bf16.mxu0 0
      %947 = vmatpush2.bf16.msra.mxu0 0
      %948 = vmatprep.subr.bf16.mxu0 0
      %949 = vmatpush2.bf16.msra.mxu0 0
      %950 = vmatprep.subr.bf16.mxu0 0
      %951 = vmatpush2.bf16.msra.mxu0 0
      %952 = vmatprep.subr.bf16.mxu0 0
      %953 = vmatpush2.bf16.msra.mxu0 0
      %954 = vmatprep.subr.bf16.mxu0 0
      %955 = vmatpush2.bf16.msra.mxu0 0
      %956 = vmatprep.mubr.bf16.mxu0 0
      %957 = vmatmul.mubr.bf16.gmra.mxu0 %v858
      %v958 = vpop.f32.mrf.mxu0
      %v959 = vadd.f32 0.0, %v958
      %v960 = vpop.f32.mrf.mxu0
      %v961 = vpop.f32.mrf.mxu0
      %v962 = vpop.f32.mrf.mxu0
      %963 = vdwg.mxu0
      %v964 = vadd.f32 %v811, %v959
      %s965 = scalar_lea.vmem %s3, 12
      %v966 = vld [vmem:[%s965] sm:$0xf]
      %967 = vmatprep.subr.bf16.mxu0 0
      %968 = vmatpush1.bf16.msra.mxu0 %v514
      %969 = vmatprep.subr.bf16.mxu0 0
      %970 = vmatpush1.bf16.msra.mxu0 %v513
      %971 = vmatprep.subr.bf16.mxu0 0
      %972 = vmatpush1.bf16.msra.mxu0 %v512
      %973 = vmatprep.subr.bf16.mxu0 0
      %974 = vmatpush1.bf16.msra.mxu0 %v511
      %975 = vmatprep.subr.bf16.mxu0 0
      %976 = vmatpush1.bf16.msra.mxu0 %v510
      %977 = vmatprep.subr.bf16.mxu0 0
      %978 = vmatpush1.bf16.msra.mxu0 %v509
      %979 = vmatprep.subr.bf16.mxu0 0
      %980 = vmatpush1.bf16.msra.mxu0 %v508
      %981 = vmatprep.subr.bf16.mxu0 0
      %982 = vmatpush1.bf16.msra.mxu0 %v507
      %983 = vmatprep.subr.bf16.mxu0 0
      %984 = vmatpush2.bf16.msra.mxu0 0
      %985 = vmatprep.subr.bf16.mxu0 0
      %986 = vmatpush2.bf16.msra.mxu0 0
      %987 = vmatprep.subr.bf16.mxu0 0
      %988 = vmatpush2.bf16.msra.mxu0 0
      %989 = vmatprep.subr.bf16.mxu0 0
      %990 = vmatpush2.bf16.msra.mxu0 0
      %991 = vmatprep.subr.bf16.mxu0 0
      %992 = vmatpush2.bf16.msra.mxu0 0
      %993 = vmatprep.subr.bf16.mxu0 0
      %994 = vmatpush2.bf16.msra.mxu0 0
      %995 = vmatprep.subr.bf16.mxu0 0
      %996 = vmatpush2.bf16.msra.mxu0 0
      %997 = vmatprep.subr.bf16.mxu0 0
      %998 = vmatpush2.bf16.msra.mxu0 0
      %999 = vmatprep.mubr.bf16.mxu0 0
      %1000 = vmatmul.mubr.bf16.gmra.mxu0 %v966
      %v1001 = vpop.f32.mrf.mxu0
      %v1002 = vadd.f32 0.0, %v1001
      %v1003 = vpop.f32.mrf.mxu0
      %v1004 = vpop.f32.mrf.mxu0
      %v1005 = vpop.f32.mrf.mxu0
      %1006 = vdwg.mxu0
      %v1007 = vpack.c.bf16 %v1002, %v1002
      %s1008 = scalar_lea.vmem %s4, 192
      %v1009 = vld [vmem:[%s1008] sm:$0xf]
      %v1010 = vld [vmem:[%s1008 + $0x4] sm:$0xf]
      %v1011 = vld [vmem:[%s1008 + $0x8] sm:$0xf]
      %v1012 = vld [vmem:[%s1008 + $0xc] sm:$0xf]
      %v1013 = vld [vmem:[%s1008 + $0x10] sm:$0xf]
      %v1014 = vld [vmem:[%s1008 + $0x14] sm:$0xf]
      %v1015 = vld [vmem:[%s1008 + $0x18] sm:$0xf]
      %v1016 = vld [vmem:[%s1008 + $0x1c] sm:$0xf]
      %v1017 = vld [vmem:[%s1008 + $0x20] sm:$0xf]
      %v1018 = vld [vmem:[%s1008 + $0x24] sm:$0xf]
      %v1019 = vld [vmem:[%s1008 + $0x28] sm:$0xf]
      %v1020 = vld [vmem:[%s1008 + $0x2c] sm:$0xf]
      %v1021 = vld [vmem:[%s1008 + $0x30] sm:$0xf]
      %v1022 = vld [vmem:[%s1008 + $0x34] sm:$0xf]
      %v1023 = vld [vmem:[%s1008 + $0x38] sm:$0xf]
      %v1024 = vld [vmem:[%s1008 + $0x3c] sm:$0xf]
      %v1041 = vunpack.c.l.b16 %v1009
      %v1042 = vunpack.c.l.b16 %v1010
      %v1043 = vunpack.c.l.b16 %v1011
      %v1044 = vunpack.c.l.b16 %v1012
      %v1045 = vunpack.c.l.b16 %v1013
      %v1046 = vunpack.c.l.b16 %v1014
      %v1047 = vunpack.c.l.b16 %v1015
      %v1048 = vunpack.c.l.b16 %v1016
      %v1049 = vunpack.c.l.b16 %v1017
      %v1050 = vunpack.c.l.b16 %v1018
      %v1051 = vunpack.c.l.b16 %v1019
      %v1052 = vunpack.c.l.b16 %v1020
      %v1053 = vunpack.c.l.b16 %v1021
      %v1054 = vunpack.c.l.b16 %v1022
      %v1055 = vunpack.c.l.b16 %v1023
      %v1056 = vunpack.c.l.b16 %v1024
      %v1057 = vpack.c.b16 %v1042, %v1041
      %v1058 = vpack.c.b16 %v1044, %v1043
      %v1059 = vpack.c.b16 %v1046, %v1045
      %v1060 = vpack.c.b16 %v1048, %v1047
      %v1061 = vpack.c.b16 %v1050, %v1049
      %v1062 = vpack.c.b16 %v1052, %v1051
      %v1063 = vpack.c.b16 %v1054, %v1053
      %v1064 = vpack.c.b16 %v1056, %v1055
      %1073 = vmatprep.subr.bf16.mxu0 0
      %1074 = vmatpush1.bf16.msra.mxu0 %v1064
      %1075 = vmatprep.subr.bf16.mxu0 0
      %1076 = vmatpush1.bf16.msra.mxu0 %v1063
      %1077 = vmatprep.subr.bf16.mxu0 0
      %1078 = vmatpush1.bf16.msra.mxu0 %v1062
      %1079 = vmatprep.subr.bf16.mxu0 0
      %1080 = vmatpush1.bf16.msra.mxu0 %v1061
      %1081 = vmatprep.subr.bf16.mxu0 0
      %1082 = vmatpush1.bf16.msra.mxu0 %v1060
      %1083 = vmatprep.subr.bf16.mxu0 0
      %1084 = vmatpush1.bf16.msra.mxu0 %v1059
      %1085 = vmatprep.subr.bf16.mxu0 0
      %1086 = vmatpush1.bf16.msra.mxu0 %v1058
      %1087 = vmatprep.subr.bf16.mxu0 0
      %1088 = vmatpush1.bf16.msra.mxu0 %v1057
      %1089 = vmatprep.subr.bf16.mxu0 0
      %1090 = vmatpush2.bf16.msra.mxu0 0
      %1091 = vmatprep.subr.bf16.mxu0 0
      %1092 = vmatpush2.bf16.msra.mxu0 0
      %1093 = vmatprep.subr.bf16.mxu0 0
      %1094 = vmatpush2.bf16.msra.mxu0 0
      %1095 = vmatprep.subr.bf16.mxu0 0
      %1096 = vmatpush2.bf16.msra.mxu0 0
      %1097 = vmatprep.subr.bf16.mxu0 0
      %1098 = vmatpush2.bf16.msra.mxu0 0
      %1099 = vmatprep.subr.bf16.mxu0 0
      %1100 = vmatpush2.bf16.msra.mxu0 0
      %1101 = vmatprep.subr.bf16.mxu0 0
      %1102 = vmatpush2.bf16.msra.mxu0 0
      %1103 = vmatprep.subr.bf16.mxu0 0
      %1104 = vmatpush2.bf16.msra.mxu0 0
      %1105 = vmatprep.mubr.bf16.mxu0 0
      %1106 = vmatmul.mubr.bf16.gmra.mxu0 %v1007
      %v1107 = vpop.f32.mrf.mxu0
      %v1108 = vadd.f32 0.0, %v1107
      %v1109 = vpop.f32.mrf.mxu0
      %v1110 = vpop.f32.mrf.mxu0
      %v1111 = vpop.f32.mrf.mxu0
      %1112 = vdwg.mxu0
      %v1113 = vadd.f32 %v964, %v1108
      %s1114 = scalar_lea.vmem %s3, 16
      %v1115 = vld [vmem:[%s1114] sm:$0xf]
      %1116 = vmatprep.subr.bf16.mxu0 0
      %1117 = vmatpush1.bf16.msra.mxu0 %v514
      %1118 = vmatprep.subr.bf16.mxu0 0
      %1119 = vmatpush1.bf16.msra.mxu0 %v513
      %1120 = vmatprep.subr.bf16.mxu0 0
      %1121 = vmatpush1.bf16.msra.mxu0 %v512
      %1122 = vmatprep.subr.bf16.mxu0 0
      %1123 = vmatpush1.bf16.msra.mxu0 %v511
      %1124 = vmatprep.subr.bf16.mxu0 0
      %1125 = vmatpush1.bf16.msra.mxu0 %v510
      %1126 = vmatprep.subr.bf16.mxu0 0
      %1127 = vmatpush1.bf16.msra.mxu0 %v509
      %1128 = vmatprep.subr.bf16.mxu0 0
      %1129 = vmatpush1.bf16.msra.mxu0 %v508
      %1130 = vmatprep.subr.bf16.mxu0 0
      %1131 = vmatpush1.bf16.msra.mxu0 %v507
      %1132 = vmatprep.subr.bf16.mxu0 0
      %1133 = vmatpush2.bf16.msra.mxu0 0
      %1134 = vmatprep.subr.bf16.mxu0 0
      %1135 = vmatpush2.bf16.msra.mxu0 0
      %1136 = vmatprep.subr.bf16.mxu0 0
      %1137 = vmatpush2.bf16.msra.mxu0 0
      %1138 = vmatprep.subr.bf16.mxu0 0
      %1139 = vmatpush2.bf16.msra.mxu0 0
      %1140 = vmatprep.subr.bf16.mxu0 0
      %1141 = vmatpush2.bf16.msra.mxu0 0
      %1142 = vmatprep.subr.bf16.mxu0 0
      %1143 = vmatpush2.bf16.msra.mxu0 0
      %1144 = vmatprep.subr.bf16.mxu0 0
      %1145 = vmatpush2.bf16.msra.mxu0 0
      %1146 = vmatprep.subr.bf16.mxu0 0
      %1147 = vmatpush2.bf16.msra.mxu0 0
      %1148 = vmatprep.mubr.bf16.mxu0 0
      %1149 = vmatmul.mubr.bf16.gmra.mxu0 %v1115
      %v1150 = vpop.f32.mrf.mxu0
      %v1151 = vadd.f32 0.0, %v1150
      %v1152 = vpop.f32.mrf.mxu0
      %v1153 = vpop.f32.mrf.mxu0
      %v1154 = vpop.f32.mrf.mxu0
      %1155 = vdwg.mxu0
      %v1156 = vpack.c.bf16 %v1151, %v1151
      %s1157 = scalar_lea.vmem %s4, 256
      %v1158 = vld [vmem:[%s1157] sm:$0xf]
      %v1159 = vld [vmem:[%s1157 + $0x4] sm:$0xf]
      %v1160 = vld [vmem:[%s1157 + $0x8] sm:$0xf]
      %v1161 = vld [vmem:[%s1157 + $0xc] sm:$0xf]
      %v1162 = vld [vmem:[%s1157 + $0x10] sm:$0xf]
      %v1163 = vld [vmem:[%s1157 + $0x14] sm:$0xf]
      %v1164 = vld [vmem:[%s1157 + $0x18] sm:$0xf]
      %v1165 = vld [vmem:[%s1157 + $0x1c] sm:$0xf]
      %v1166 = vld [vmem:[%s1157 + $0x20] sm:$0xf]
      %v1167 = vld [vmem:[%s1157 + $0x24] sm:$0xf]
      %v1168 = vld [vmem:[%s1157 + $0x28] sm:$0xf]
      %v1169 = vld [vmem:[%s1157 + $0x2c] sm:$0xf]
      %v1170 = vld [vmem:[%s1157 + $0x30] sm:$0xf]
      %v1171 = vld [vmem:[%s1157 + $0x34] sm:$0xf]
      %v1172 = vld [vmem:[%s1157 + $0x38] sm:$0xf]
      %v1173 = vld [vmem:[%s1157 + $0x3c] sm:$0xf]
      %v1190 = vunpack.c.l.b16 %v1158
      %v1191 = vunpack.c.l.b16 %v1159
      %v1192 = vunpack.c.l.b16 %v1160
      %v1193 = vunpack.c.l.b16 %v1161
      %v1194 = vunpack.c.l.b16 %v1162
      %v1195 = vunpack.c.l.b16 %v1163
      %v1196 = vunpack.c.l.b16 %v1164
      %v1197 = vunpack.c.l.b16 %v1165
      %v1198 = vunpack.c.l.b16 %v1166
      %v1199 = vunpack.c.l.b16 %v1167
      %v1200 = vunpack.c.l.b16 %v1168
      %v1201 = vunpack.c.l.b16 %v1169
      %v1202 = vunpack.c.l.b16 %v1170
      %v1203 = vunpack.c.l.b16 %v1171
      %v1204 = vunpack.c.l.b16 %v1172
      %v1205 = vunpack.c.l.b16 %v1173
      %v1206 = vpack.c.b16 %v1191, %v1190
      %v1207 = vpack.c.b16 %v1193, %v1192
      %v1208 = vpack.c.b16 %v1195, %v1194
      %v1209 = vpack.c.b16 %v1197, %v1196
      %v1210 = vpack.c.b16 %v1199, %v1198
      %v1211 = vpack.c.b16 %v1201, %v1200
      %v1212 = vpack.c.b16 %v1203, %v1202
      %v1213 = vpack.c.b16 %v1205, %v1204
      %1222 = vmatprep.subr.bf16.mxu0 0
      %1223 = vmatpush1.bf16.msra.mxu0 %v1213
      %1224 = vmatprep.subr.bf16.mxu0 0
      %1225 = vmatpush1.bf16.msra.mxu0 %v1212
      %1226 = vmatprep.subr.bf16.mxu0 0
      %1227 = vmatpush1.bf16.msra.mxu0 %v1211
      %1228 = vmatprep.subr.bf16.mxu0 0
      %1229 = vmatpush1.bf16.msra.mxu0 %v1210
      %1230 = vmatprep.subr.bf16.mxu0 0
      %1231 = vmatpush1.bf16.msra.mxu0 %v1209
      %1232 = vmatprep.subr.bf16.mxu0 0
      %1233 = vmatpush1.bf16.msra.mxu0 %v1208
      %1234 = vmatprep.subr.bf16.mxu0 0
      %1235 = vmatpush1.bf16.msra.mxu0 %v1207
      %1236 = vmatprep.subr.bf16.mxu0 0
      %1237 = vmatpush1.bf16.msra.mxu0 %v1206
      %1238 = vmatprep.subr.bf16.mxu0 0
      %1239 = vmatpush2.bf16.msra.mxu0 0
      %1240 = vmatprep.subr.bf16.mxu0 0
      %1241 = vmatpush2.bf16.msra.mxu0 0
      %1242 = vmatprep.subr.bf16.mxu0 0
      %1243 = vmatpush2.bf16.msra.mxu0 0
      %1244 = vmatprep.subr.bf16.mxu0 0
      %1245 = vmatpush2.bf16.msra.mxu0 0
      %1246 = vmatprep.subr.bf16.mxu0 0
      %1247 = vmatpush2.bf16.msra.mxu0 0
      %1248 = vmatprep.subr.bf16.mxu0 0
      %1249 = vmatpush2.bf16.msra.mxu0 0
      %1250 = vmatprep.subr.bf16.mxu0 0
      %1251 = vmatpush2.bf16.msra.mxu0 0
      %1252 = vmatprep.subr.bf16.mxu0 0
      %1253 = vmatpush2.bf16.msra.mxu0 0
      %1254 = vmatprep.mubr.bf16.mxu0 0
      %1255 = vmatmul.mubr.bf16.gmra.mxu0 %v1156
      %v1256 = vpop.f32.mrf.mxu0
      %v1257 = vadd.f32 0.0, %v1256
      %v1258 = vpop.f32.mrf.mxu0
      %v1259 = vpop.f32.mrf.mxu0
      %v1260 = vpop.f32.mrf.mxu0
      %1261 = vdwg.mxu0
      %v1262 = vadd.f32 %v1113, %v1257
      %s1263 = scalar_lea.vmem %s3, 20
      %v1264 = vld [vmem:[%s1263] sm:$0xf]
      %1265 = vmatprep.subr.bf16.mxu0 0
      %1266 = vmatpush1.bf16.msra.mxu0 %v514
      %1267 = vmatprep.subr.bf16.mxu0 0
      %1268 = vmatpush1.bf16.msra.mxu0 %v513
      %1269 = vmatprep.subr.bf16.mxu0 0
      %1270 = vmatpush1.bf16.msra.mxu0 %v512
      %1271 = vmatprep.subr.bf16.mxu0 0
      %1272 = vmatpush1.bf16.msra.mxu0 %v511
      %1273 = vmatprep.subr.bf16.mxu0 0
      %1274 = vmatpush1.bf16.msra.mxu0 %v510
      %1275 = vmatprep.subr.bf16.mxu0 0
      %1276 = vmatpush1.bf16.msra.mxu0 %v509
      %1277 = vmatprep.subr.bf16.mxu0 0
      %1278 = vmatpush1.bf16.msra.mxu0 %v508
      %1279 = vmatprep.subr.bf16.mxu0 0
      %1280 = vmatpush1.bf16.msra.mxu0 %v507
      %1281 = vmatprep.subr.bf16.mxu0 0
      %1282 = vmatpush2.bf16.msra.mxu0 0
      %1283 = vmatprep.subr.bf16.mxu0 0
      %1284 = vmatpush2.bf16.msra.mxu0 0
      %1285 = vmatprep.subr.bf16.mxu0 0
      %1286 = vmatpush2.bf16.msra.mxu0 0
      %1287 = vmatprep.subr.bf16.mxu0 0
      %1288 = vmatpush2.bf16.msra.mxu0 0
      %1289 = vmatprep.subr.bf16.mxu0 0
      %1290 = vmatpush2.bf16.msra.mxu0 0
      %1291 = vmatprep.subr.bf16.mxu0 0
      %1292 = vmatpush2.bf16.msra.mxu0 0
      %1293 = vmatprep.subr.bf16.mxu0 0
      %1294 = vmatpush2.bf16.msra.mxu0 0
      %1295 = vmatprep.subr.bf16.mxu0 0
      %1296 = vmatpush2.bf16.msra.mxu0 0
      %1297 = vmatprep.mubr.bf16.mxu0 0
      %1298 = vmatmul.mubr.bf16.gmra.mxu0 %v1264
      %v1299 = vpop.f32.mrf.mxu0
      %v1300 = vadd.f32 0.0, %v1299
      %v1301 = vpop.f32.mrf.mxu0
      %v1302 = vpop.f32.mrf.mxu0
      %v1303 = vpop.f32.mrf.mxu0
      %1304 = vdwg.mxu0
      %v1305 = vpack.c.bf16 %v1300, %v1300
      %s1306 = scalar_lea.vmem %s4, 320
      %v1307 = vld [vmem:[%s1306] sm:$0xf]
      %v1308 = vld [vmem:[%s1306 + $0x4] sm:$0xf]
      %v1309 = vld [vmem:[%s1306 + $0x8] sm:$0xf]
      %v1310 = vld [vmem:[%s1306 + $0xc] sm:$0xf]
      %v1311 = vld [vmem:[%s1306 + $0x10] sm:$0xf]
      %v1312 = vld [vmem:[%s1306 + $0x14] sm:$0xf]
      %v1313 = vld [vmem:[%s1306 + $0x18] sm:$0xf]
      %v1314 = vld [vmem:[%s1306 + $0x1c] sm:$0xf]
      %v1315 = vld [vmem:[%s1306 + $0x20] sm:$0xf]
      %v1316 = vld [vmem:[%s1306 + $0x24] sm:$0xf]
      %v1317 = vld [vmem:[%s1306 + $0x28] sm:$0xf]
      %v1318 = vld [vmem:[%s1306 + $0x2c] sm:$0xf]
      %v1319 = vld [vmem:[%s1306 + $0x30] sm:$0xf]
      %v1320 = vld [vmem:[%s1306 + $0x34] sm:$0xf]
      %v1321 = vld [vmem:[%s1306 + $0x38] sm:$0xf]
      %v1322 = vld [vmem:[%s1306 + $0x3c] sm:$0xf]
      %v1339 = vunpack.c.l.b16 %v1307
      %v1340 = vunpack.c.l.b16 %v1308
      %v1341 = vunpack.c.l.b16 %v1309
      %v1342 = vunpack.c.l.b16 %v1310
      %v1343 = vunpack.c.l.b16 %v1311
      %v1344 = vunpack.c.l.b16 %v1312
      %v1345 = vunpack.c.l.b16 %v1313
      %v1346 = vunpack.c.l.b16 %v1314
      %v1347 = vunpack.c.l.b16 %v1315
      %v1348 = vunpack.c.l.b16 %v1316
      %v1349 = vunpack.c.l.b16 %v1317
      %v1350 = vunpack.c.l.b16 %v1318
      %v1351 = vunpack.c.l.b16 %v1319
      %v1352 = vunpack.c.l.b16 %v1320
      %v1353 = vunpack.c.l.b16 %v1321
      %v1354 = vunpack.c.l.b16 %v1322
      %v1355 = vpack.c.b16 %v1340, %v1339
      %v1356 = vpack.c.b16 %v1342, %v1341
      %v1357 = vpack.c.b16 %v1344, %v1343
      %v1358 = vpack.c.b16 %v1346, %v1345
      %v1359 = vpack.c.b16 %v1348, %v1347
      %v1360 = vpack.c.b16 %v1350, %v1349
      %v1361 = vpack.c.b16 %v1352, %v1351
      %v1362 = vpack.c.b16 %v1354, %v1353
      %1371 = vmatprep.subr.bf16.mxu0 0
      %1372 = vmatpush1.bf16.msra.mxu0 %v1362
      %1373 = vmatprep.subr.bf16.mxu0 0
      %1374 = vmatpush1.bf16.msra.mxu0 %v1361
      %1375 = vmatprep.subr.bf16.mxu0 0
      %1376 = vmatpush1.bf16.msra.mxu0 %v1360
      %1377 = vmatprep.subr.bf16.mxu0 0
      %1378 = vmatpush1.bf16.msra.mxu0 %v1359
      %1379 = vmatprep.subr.bf16.mxu0 0
      %1380 = vmatpush1.bf16.msra.mxu0 %v1358
      %1381 = vmatprep.subr.bf16.mxu0 0
      %1382 = vmatpush1.bf16.msra.mxu0 %v1357
      %1383 = vmatprep.subr.bf16.mxu0 0
      %1384 = vmatpush1.bf16.msra.mxu0 %v1356
      %1385 = vmatprep.subr.bf16.mxu0 0
      %1386 = vmatpush1.bf16.msra.mxu0 %v1355
      %1387 = vmatprep.subr.bf16.mxu0 0
      %1388 = vmatpush2.bf16.msra.mxu0 0
      %1389 = vmatprep.subr.bf16.mxu0 0
      %1390 = vmatpush2.bf16.msra.mxu0 0
      %1391 = vmatprep.subr.bf16.mxu0 0
      %1392 = vmatpush2.bf16.msra.mxu0 0
      %1393 = vmatprep.subr.bf16.mxu0 0
      %1394 = vmatpush2.bf16.msra.mxu0 0
      %1395 = vmatprep.subr.bf16.mxu0 0
      %1396 = vmatpush2.bf16.msra.mxu0 0
      %1397 = vmatprep.subr.bf16.mxu0 0
      %1398 = vmatpush2.bf16.msra.mxu0 0
      %1399 = vmatprep.subr.bf16.mxu0 0
      %1400 = vmatpush2.bf16.msra.mxu0 0
      %1401 = vmatprep.subr.bf16.mxu0 0
      %1402 = vmatpush2.bf16.msra.mxu0 0
      %1403 = vmatprep.mubr.bf16.mxu0 0
      %1404 = vmatmul.mubr.bf16.gmra.mxu0 %v1305
      %v1405 = vpop.f32.mrf.mxu0
      %v1406 = vadd.f32 0.0, %v1405
      %v1407 = vpop.f32.mrf.mxu0
      %v1408 = vpop.f32.mrf.mxu0
      %v1409 = vpop.f32.mrf.mxu0
      %1410 = vdwg.mxu0
      %v1411 = vadd.f32 %v1262, %v1406
      %s1412 = scalar_lea.vmem %s3, 24
      %v1413 = vld [vmem:[%s1412] sm:$0xf]
      %1414 = vmatprep.subr.bf16.mxu0 0
      %1415 = vmatpush1.bf16.msra.mxu0 %v514
      %1416 = vmatprep.subr.bf16.mxu0 0
      %1417 = vmatpush1.bf16.msra.mxu0 %v513
      %1418 = vmatprep.subr.bf16.mxu0 0
      %1419 = vmatpush1.bf16.msra.mxu0 %v512
      %1420 = vmatprep.subr.bf16.mxu0 0
      %1421 = vmatpush1.bf16.msra.mxu0 %v511
      %1422 = vmatprep.subr.bf16.mxu0 0
      %1423 = vmatpush1.bf16.msra.mxu0 %v510
      %1424 = vmatprep.subr.bf16.mxu0 0
      %1425 = vmatpush1.bf16.msra.mxu0 %v509
      %1426 = vmatprep.subr.bf16.mxu0 0
      %1427 = vmatpush1.bf16.msra.mxu0 %v508
      %1428 = vmatprep.subr.bf16.mxu0 0
      %1429 = vmatpush1.bf16.msra.mxu0 %v507
      %1430 = vmatprep.subr.bf16.mxu0 0
      %1431 = vmatpush2.bf16.msra.mxu0 0
      %1432 = vmatprep.subr.bf16.mxu0 0
      %1433 = vmatpush2.bf16.msra.mxu0 0
      %1434 = vmatprep.subr.bf16.mxu0 0
      %1435 = vmatpush2.bf16.msra.mxu0 0
      %1436 = vmatprep.subr.bf16.mxu0 0
      %1437 = vmatpush2.bf16.msra.mxu0 0
      %1438 = vmatprep.subr.bf16.mxu0 0
      %1439 = vmatpush2.bf16.msra.mxu0 0
      %1440 = vmatprep.subr.bf16.mxu0 0
      %1441 = vmatpush2.bf16.msra.mxu0 0
      %1442 = vmatprep.subr.bf16.mxu0 0
      %1443 = vmatpush2.bf16.msra.mxu0 0
      %1444 = vmatprep.subr.bf16.mxu0 0
      %1445 = vmatpush2.bf16.msra.mxu0 0
      %1446 = vmatprep.mubr.bf16.mxu0 0
      %1447 = vmatmul.mubr.bf16.gmra.mxu0 %v1413
      %v1448 = vpop.f32.mrf.mxu0
      %v1449 = vadd.f32 0.0, %v1448
      %v1450 = vpop.f32.mrf.mxu0
      %v1451 = vpop.f32.mrf.mxu0
      %v1452 = vpop.f32.mrf.mxu0
      %1453 = vdwg.mxu0
      %v1454 = vpack.c.bf16 %v1449, %v1449
      %s1455 = scalar_lea.vmem %s4, 384
      %v1456 = vld [vmem:[%s1455] sm:$0xf]
      %v1457 = vld [vmem:[%s1455 + $0x4] sm:$0xf]
      %v1458 = vld [vmem:[%s1455 + $0x8] sm:$0xf]
      %v1459 = vld [vmem:[%s1455 + $0xc] sm:$0xf]
      %v1460 = vld [vmem:[%s1455 + $0x10] sm:$0xf]
      %v1461 = vld [vmem:[%s1455 + $0x14] sm:$0xf]
      %v1462 = vld [vmem:[%s1455 + $0x18] sm:$0xf]
      %v1463 = vld [vmem:[%s1455 + $0x1c] sm:$0xf]
      %v1464 = vld [vmem:[%s1455 + $0x20] sm:$0xf]
      %v1465 = vld [vmem:[%s1455 + $0x24] sm:$0xf]
      %v1466 = vld [vmem:[%s1455 + $0x28] sm:$0xf]
      %v1467 = vld [vmem:[%s1455 + $0x2c] sm:$0xf]
      %v1468 = vld [vmem:[%s1455 + $0x30] sm:$0xf]
      %v1469 = vld [vmem:[%s1455 + $0x34] sm:$0xf]
      %v1470 = vld [vmem:[%s1455 + $0x38] sm:$0xf]
      %v1471 = vld [vmem:[%s1455 + $0x3c] sm:$0xf]
      %v1488 = vunpack.c.l.b16 %v1456
      %v1489 = vunpack.c.l.b16 %v1457
      %v1490 = vunpack.c.l.b16 %v1458
      %v1491 = vunpack.c.l.b16 %v1459
      %v1492 = vunpack.c.l.b16 %v1460
      %v1493 = vunpack.c.l.b16 %v1461
      %v1494 = vunpack.c.l.b16 %v1462
      %v1495 = vunpack.c.l.b16 %v1463
      %v1496 = vunpack.c.l.b16 %v1464
      %v1497 = vunpack.c.l.b16 %v1465
      %v1498 = vunpack.c.l.b16 %v1466
      %v1499 = vunpack.c.l.b16 %v1467
      %v1500 = vunpack.c.l.b16 %v1468
      %v1501 = vunpack.c.l.b16 %v1469
      %v1502 = vunpack.c.l.b16 %v1470
      %v1503 = vunpack.c.l.b16 %v1471
      %v1504 = vpack.c.b16 %v1489, %v1488
      %v1505 = vpack.c.b16 %v1491, %v1490
      %v1506 = vpack.c.b16 %v1493, %v1492
      %v1507 = vpack.c.b16 %v1495, %v1494
      %v1508 = vpack.c.b16 %v1497, %v1496
      %v1509 = vpack.c.b16 %v1499, %v1498
      %v1510 = vpack.c.b16 %v1501, %v1500
      %v1511 = vpack.c.b16 %v1503, %v1502
      %1520 = vmatprep.subr.bf16.mxu0 0
      %1521 = vmatpush1.bf16.msra.mxu0 %v1511
      %1522 = vmatprep.subr.bf16.mxu0 0
      %1523 = vmatpush1.bf16.msra.mxu0 %v1510
      %1524 = vmatprep.subr.bf16.mxu0 0
      %1525 = vmatpush1.bf16.msra.mxu0 %v1509
      %1526 = vmatprep.subr.bf16.mxu0 0
      %1527 = vmatpush1.bf16.msra.mxu0 %v1508
      %1528 = vmatprep.subr.bf16.mxu0 0
      %1529 = vmatpush1.bf16.msra.mxu0 %v1507
      %1530 = vmatprep.subr.bf16.mxu0 0
      %1531 = vmatpush1.bf16.msra.mxu0 %v1506
      %1532 = vmatprep.subr.bf16.mxu0 0
      %1533 = vmatpush1.bf16.msra.mxu0 %v1505
      %1534 = vmatprep.subr.bf16.mxu0 0
      %1535 = vmatpush1.bf16.msra.mxu0 %v1504
      %1536 = vmatprep.subr.bf16.mxu0 0
      %1537 = vmatpush2.bf16.msra.mxu0 0
      %1538 = vmatprep.subr.bf16.mxu0 0
      %1539 = vmatpush2.bf16.msra.mxu0 0
      %1540 = vmatprep.subr.bf16.mxu0 0
      %1541 = vmatpush2.bf16.msra.mxu0 0
      %1542 = vmatprep.subr.bf16.mxu0 0
      %1543 = vmatpush2.bf16.msra.mxu0 0
      %1544 = vmatprep.subr.bf16.mxu0 0
      %1545 = vmatpush2.bf16.msra.mxu0 0
      %1546 = vmatprep.subr.bf16.mxu0 0
      %1547 = vmatpush2.bf16.msra.mxu0 0
      %1548 = vmatprep.subr.bf16.mxu0 0
      %1549 = vmatpush2.bf16.msra.mxu0 0
      %1550 = vmatprep.subr.bf16.mxu0 0
      %1551 = vmatpush2.bf16.msra.mxu0 0
      %1552 = vmatprep.mubr.bf16.mxu0 0
      %1553 = vmatmul.mubr.bf16.gmra.mxu0 %v1454
      %v1554 = vpop.f32.mrf.mxu0
      %v1555 = vadd.f32 0.0, %v1554
      %v1556 = vpop.f32.mrf.mxu0
      %v1557 = vpop.f32.mrf.mxu0
      %v1558 = vpop.f32.mrf.mxu0
      %1559 = vdwg.mxu0
      %v1560 = vadd.f32 %v1411, %v1555
      %s1561 = scalar_lea.vmem %s3, 28
      %v1562 = vld [vmem:[%s1561] sm:$0xf]
      %1563 = vmatprep.subr.bf16.mxu0 0
      %1564 = vmatpush1.bf16.msra.mxu0 %v514
      %1565 = vmatprep.subr.bf16.mxu0 0
      %1566 = vmatpush1.bf16.msra.mxu0 %v513
      %1567 = vmatprep.subr.bf16.mxu0 0
      %1568 = vmatpush1.bf16.msra.mxu0 %v512
      %1569 = vmatprep.subr.bf16.mxu0 0
      %1570 = vmatpush1.bf16.msra.mxu0 %v511
      %1571 = vmatprep.subr.bf16.mxu0 0
      %1572 = vmatpush1.bf16.msra.mxu0 %v510
      %1573 = vmatprep.subr.bf16.mxu0 0
      %1574 = vmatpush1.bf16.msra.mxu0 %v509
      %1575 = vmatprep.subr.bf16.mxu0 0
      %1576 = vmatpush1.bf16.msra.mxu0 %v508
      %1577 = vmatprep.subr.bf16.mxu0 0
      %1578 = vmatpush1.bf16.msra.mxu0 %v507
      %1579 = vmatprep.subr.bf16.mxu0 0
      %1580 = vmatpush2.bf16.msra.mxu0 0
      %1581 = vmatprep.subr.bf16.mxu0 0
      %1582 = vmatpush2.bf16.msra.mxu0 0
      %1583 = vmatprep.subr.bf16.mxu0 0
      %1584 = vmatpush2.bf16.msra.mxu0 0
      %1585 = vmatprep.subr.bf16.mxu0 0
      %1586 = vmatpush2.bf16.msra.mxu0 0
      %1587 = vmatprep.subr.bf16.mxu0 0
      %1588 = vmatpush2.bf16.msra.mxu0 0
      %1589 = vmatprep.subr.bf16.mxu0 0
      %1590 = vmatpush2.bf16.msra.mxu0 0
      %1591 = vmatprep.subr.bf16.mxu0 0
      %1592 = vmatpush2.bf16.msra.mxu0 0
      %1593 = vmatprep.subr.bf16.mxu0 0
      %1594 = vmatpush2.bf16.msra.mxu0 0
      %1595 = vmatprep.mubr.bf16.mxu0 0
      %1596 = vmatmul.mubr.bf16.gmra.mxu0 %v1562
      %v1597 = vpop.f32.mrf.mxu0
      %v1598 = vadd.f32 0.0, %v1597
      %v1599 = vpop.f32.mrf.mxu0
      %v1600 = vpop.f32.mrf.mxu0
      %v1601 = vpop.f32.mrf.mxu0
      %1602 = vdwg.mxu0
      %v1603 = vpack.c.bf16 %v1598, %v1598
      %s1604 = scalar_lea.vmem %s4, 448
      %v1605 = vld [vmem:[%s1604] sm:$0xf]
      %v1606 = vld [vmem:[%s1604 + $0x4] sm:$0xf]
      %v1607 = vld [vmem:[%s1604 + $0x8] sm:$0xf]
      %v1608 = vld [vmem:[%s1604 + $0xc] sm:$0xf]
      %v1609 = vld [vmem:[%s1604 + $0x10] sm:$0xf]
      %v1610 = vld [vmem:[%s1604 + $0x14] sm:$0xf]
      %v1611 = vld [vmem:[%s1604 + $0x18] sm:$0xf]
      %v1612 = vld [vmem:[%s1604 + $0x1c] sm:$0xf]
      %v1613 = vld [vmem:[%s1604 + $0x20] sm:$0xf]
      %v1614 = vld [vmem:[%s1604 + $0x24] sm:$0xf]
      %v1615 = vld [vmem:[%s1604 + $0x28] sm:$0xf]
      %v1616 = vld [vmem:[%s1604 + $0x2c] sm:$0xf]
      %v1617 = vld [vmem:[%s1604 + $0x30] sm:$0xf]
      %v1618 = vld [vmem:[%s1604 + $0x34] sm:$0xf]
      %v1619 = vld [vmem:[%s1604 + $0x38] sm:$0xf]
      %v1620 = vld [vmem:[%s1604 + $0x3c] sm:$0xf]
      %v1637 = vunpack.c.l.b16 %v1605
      %v1638 = vunpack.c.l.b16 %v1606
      %v1639 = vunpack.c.l.b16 %v1607
      %v1640 = vunpack.c.l.b16 %v1608
      %v1641 = vunpack.c.l.b16 %v1609
      %v1642 = vunpack.c.l.b16 %v1610
      %v1643 = vunpack.c.l.b16 %v1611
      %v1644 = vunpack.c.l.b16 %v1612
      %v1645 = vunpack.c.l.b16 %v1613
      %v1646 = vunpack.c.l.b16 %v1614
      %v1647 = vunpack.c.l.b16 %v1615
      %v1648 = vunpack.c.l.b16 %v1616
      %v1649 = vunpack.c.l.b16 %v1617
      %v1650 = vunpack.c.l.b16 %v1618
      %v1651 = vunpack.c.l.b16 %v1619
      %v1652 = vunpack.c.l.b16 %v1620
      %v1653 = vpack.c.b16 %v1638, %v1637
      %v1654 = vpack.c.b16 %v1640, %v1639
      %v1655 = vpack.c.b16 %v1642, %v1641
      %v1656 = vpack.c.b16 %v1644, %v1643
      %v1657 = vpack.c.b16 %v1646, %v1645
      %v1658 = vpack.c.b16 %v1648, %v1647
      %v1659 = vpack.c.b16 %v1650, %v1649
      %v1660 = vpack.c.b16 %v1652, %v1651
      %1669 = vmatprep.subr.bf16.mxu0 0
      %1670 = vmatpush1.bf16.msra.mxu0 %v1660
      %1671 = vmatprep.subr.bf16.mxu0 0
      %1672 = vmatpush1.bf16.msra.mxu0 %v1659
      %1673 = vmatprep.subr.bf16.mxu0 0
      %1674 = vmatpush1.bf16.msra.mxu0 %v1658
      %1675 = vmatprep.subr.bf16.mxu0 0
      %1676 = vmatpush1.bf16.msra.mxu0 %v1657
      %1677 = vmatprep.subr.bf16.mxu0 0
      %1678 = vmatpush1.bf16.msra.mxu0 %v1656
      %1679 = vmatprep.subr.bf16.mxu0 0
      %1680 = vmatpush1.bf16.msra.mxu0 %v1655
      %1681 = vmatprep.subr.bf16.mxu0 0
      %1682 = vmatpush1.bf16.msra.mxu0 %v1654
      %1683 = vmatprep.subr.bf16.mxu0 0
      %1684 = vmatpush1.bf16.msra.mxu0 %v1653
      %1685 = vmatprep.subr.bf16.mxu0 0
      %1686 = vmatpush2.bf16.msra.mxu0 0
      %1687 = vmatprep.subr.bf16.mxu0 0
      %1688 = vmatpush2.bf16.msra.mxu0 0
      %1689 = vmatprep.subr.bf16.mxu0 0
      %1690 = vmatpush2.bf16.msra.mxu0 0
      %1691 = vmatprep.subr.bf16.mxu0 0
      %1692 = vmatpush2.bf16.msra.mxu0 0
      %1693 = vmatprep.subr.bf16.mxu0 0
      %1694 = vmatpush2.bf16.msra.mxu0 0
      %1695 = vmatprep.subr.bf16.mxu0 0
      %1696 = vmatpush2.bf16.msra.mxu0 0
      %1697 = vmatprep.subr.bf16.mxu0 0
      %1698 = vmatpush2.bf16.msra.mxu0 0
      %1699 = vmatprep.subr.bf16.mxu0 0
      %1700 = vmatpush2.bf16.msra.mxu0 0
      %1701 = vmatprep.mubr.bf16.mxu0 0
      %1702 = vmatmul.mubr.bf16.gmra.mxu0 %v1603
      %v1703 = vpop.f32.mrf.mxu0
      %v1704 = vadd.f32 0.0, %v1703
      %v1705 = vpop.f32.mrf.mxu0
      %v1706 = vpop.f32.mrf.mxu0
      %v1707 = vpop.f32.mrf.mxu0
      %1708 = vdwg.mxu0
      %v1709 = vadd.f32 %v1560, %v1704
      %s1710 = scalar_lea.vmem %s3, 32
      %v1711 = vld [vmem:[%s1710] sm:$0xf]
      %1712 = vmatprep.subr.bf16.mxu0 0
      %1713 = vmatpush1.bf16.msra.mxu0 %v514
      %1714 = vmatprep.subr.bf16.mxu0 0
      %1715 = vmatpush1.bf16.msra.mxu0 %v513
      %1716 = vmatprep.subr.bf16.mxu0 0
      %1717 = vmatpush1.bf16.msra.mxu0 %v512
      %1718 = vmatprep.subr.bf16.mxu0 0
      %1719 = vmatpush1.bf16.msra.mxu0 %v511
      %1720 = vmatprep.subr.bf16.mxu0 0
      %1721 = vmatpush1.bf16.msra.mxu0 %v510
      %1722 = vmatprep.subr.bf16.mxu0 0
      %1723 = vmatpush1.bf16.msra.mxu0 %v509
      %1724 = vmatprep.subr.bf16.mxu0 0
      %1725 = vmatpush1.bf16.msra.mxu0 %v508
      %1726 = vmatprep.subr.bf16.mxu0 0
      %1727 = vmatpush1.bf16.msra.mxu0 %v507
      %1728 = vmatprep.subr.bf16.mxu0 0
      %1729 = vmatpush2.bf16.msra.mxu0 0
      %1730 = vmatprep.subr.bf16.mxu0 0
      %1731 = vmatpush2.bf16.msra.mxu0 0
      %1732 = vmatprep.subr.bf16.mxu0 0
      %1733 = vmatpush2.bf16.msra.mxu0 0
      %1734 = vmatprep.subr.bf16.mxu0 0
      %1735 = vmatpush2.bf16.msra.mxu0 0
      %1736 = vmatprep.subr.bf16.mxu0 0
      %1737 = vmatpush2.bf16.msra.mxu0 0
      %1738 = vmatprep.subr.bf16.mxu0 0
      %1739 = vmatpush2.bf16.msra.mxu0 0
      %1740 = vmatprep.subr.bf16.mxu0 0
      %1741 = vmatpush2.bf16.msra.mxu0 0
      %1742 = vmatprep.subr.bf16.mxu0 0
      %1743 = vmatpush2.bf16.msra.mxu0 0
      %1744 = vmatprep.mubr.bf16.mxu0 0
      %1745 = vmatmul.mubr.bf16.gmra.mxu0 %v1711
      %v1746 = vpop.f32.mrf.mxu0
      %v1747 = vadd.f32 0.0, %v1746
      %v1748 = vpop.f32.mrf.mxu0
      %v1749 = vpop.f32.mrf.mxu0
      %v1750 = vpop.f32.mrf.mxu0
      %1751 = vdwg.mxu0
      %v1752 = vpack.c.bf16 %v1747, %v1747
      %s1753 = scalar_lea.vmem %s4, 512
      %v1754 = vld [vmem:[%s1753] sm:$0xf]
      %v1755 = vld [vmem:[%s1753 + $0x4] sm:$0xf]
      %v1756 = vld [vmem:[%s1753 + $0x8] sm:$0xf]
      %v1757 = vld [vmem:[%s1753 + $0xc] sm:$0xf]
      %v1758 = vld [vmem:[%s1753 + $0x10] sm:$0xf]
      %v1759 = vld [vmem:[%s1753 + $0x14] sm:$0xf]
      %v1760 = vld [vmem:[%s1753 + $0x18] sm:$0xf]
      %v1761 = vld [vmem:[%s1753 + $0x1c] sm:$0xf]
      %v1762 = vld [vmem:[%s1753 + $0x20] sm:$0xf]
      %v1763 = vld [vmem:[%s1753 + $0x24] sm:$0xf]
      %v1764 = vld [vmem:[%s1753 + $0x28] sm:$0xf]
      %v1765 = vld [vmem:[%s1753 + $0x2c] sm:$0xf]
      %v1766 = vld [vmem:[%s1753 + $0x30] sm:$0xf]
      %v1767 = vld [vmem:[%s1753 + $0x34] sm:$0xf]
      %v1768 = vld [vmem:[%s1753 + $0x38] sm:$0xf]
      %v1769 = vld [vmem:[%s1753 + $0x3c] sm:$0xf]
      %v1786 = vunpack.c.l.b16 %v1754
      %v1787 = vunpack.c.l.b16 %v1755
      %v1788 = vunpack.c.l.b16 %v1756
      %v1789 = vunpack.c.l.b16 %v1757
      %v1790 = vunpack.c.l.b16 %v1758
      %v1791 = vunpack.c.l.b16 %v1759
      %v1792 = vunpack.c.l.b16 %v1760
      %v1793 = vunpack.c.l.b16 %v1761
      %v1794 = vunpack.c.l.b16 %v1762
      %v1795 = vunpack.c.l.b16 %v1763
      %v1796 = vunpack.c.l.b16 %v1764
      %v1797 = vunpack.c.l.b16 %v1765
      %v1798 = vunpack.c.l.b16 %v1766
      %v1799 = vunpack.c.l.b16 %v1767
      %v1800 = vunpack.c.l.b16 %v1768
      %v1801 = vunpack.c.l.b16 %v1769
      %v1802 = vpack.c.b16 %v1787, %v1786
      %v1803 = vpack.c.b16 %v1789, %v1788
      %v1804 = vpack.c.b16 %v1791, %v1790
      %v1805 = vpack.c.b16 %v1793, %v1792
      %v1806 = vpack.c.b16 %v1795, %v1794
      %v1807 = vpack.c.b16 %v1797, %v1796
      %v1808 = vpack.c.b16 %v1799, %v1798
      %v1809 = vpack.c.b16 %v1801, %v1800
      %1818 = vmatprep.subr.bf16.mxu0 0
      %1819 = vmatpush1.bf16.msra.mxu0 %v1809
      %1820 = vmatprep.subr.bf16.mxu0 0
      %1821 = vmatpush1.bf16.msra.mxu0 %v1808
      %1822 = vmatprep.subr.bf16.mxu0 0
      %1823 = vmatpush1.bf16.msra.mxu0 %v1807
      %1824 = vmatprep.subr.bf16.mxu0 0
      %1825 = vmatpush1.bf16.msra.mxu0 %v1806
      %1826 = vmatprep.subr.bf16.mxu0 0
      %1827 = vmatpush1.bf16.msra.mxu0 %v1805
      %1828 = vmatprep.subr.bf16.mxu0 0
      %1829 = vmatpush1.bf16.msra.mxu0 %v1804
      %1830 = vmatprep.subr.bf16.mxu0 0
      %1831 = vmatpush1.bf16.msra.mxu0 %v1803
      %1832 = vmatprep.subr.bf16.mxu0 0
      %1833 = vmatpush1.bf16.msra.mxu0 %v1802
      %1834 = vmatprep.subr.bf16.mxu0 0
      %1835 = vmatpush2.bf16.msra.mxu0 0
      %1836 = vmatprep.subr.bf16.mxu0 0
      %1837 = vmatpush2.bf16.msra.mxu0 0
      %1838 = vmatprep.subr.bf16.mxu0 0
      %1839 = vmatpush2.bf16.msra.mxu0 0
      %1840 = vmatprep.subr.bf16.mxu0 0
      %1841 = vmatpush2.bf16.msra.mxu0 0
      %1842 = vmatprep.subr.bf16.mxu0 0
      %1843 = vmatpush2.bf16.msra.mxu0 0
      %1844 = vmatprep.subr.bf16.mxu0 0
      %1845 = vmatpush2.bf16.msra.mxu0 0
      %1846 = vmatprep.subr.bf16.mxu0 0
      %1847 = vmatpush2.bf16.msra.mxu0 0
      %1848 = vmatprep.subr.bf16.mxu0 0
      %1849 = vmatpush2.bf16.msra.mxu0 0
      %1850 = vmatprep.mubr.bf16.mxu0 0
      %1851 = vmatmul.mubr.bf16.gmra.mxu0 %v1752
      %v1852 = vpop.f32.mrf.mxu0
      %v1853 = vadd.f32 0.0, %v1852
      %v1854 = vpop.f32.mrf.mxu0
      %v1855 = vpop.f32.mrf.mxu0
      %v1856 = vpop.f32.mrf.mxu0
      %1857 = vdwg.mxu0
      %v1858 = vadd.f32 %v1709, %v1853
      %s1859 = scalar_lea.vmem %s3, 36
      %v1860 = vld [vmem:[%s1859] sm:$0xf]
      %1861 = vmatprep.subr.bf16.mxu0 0
      %1862 = vmatpush1.bf16.msra.mxu0 %v514
      %1863 = vmatprep.subr.bf16.mxu0 0
      %1864 = vmatpush1.bf16.msra.mxu0 %v513
      %1865 = vmatprep.subr.bf16.mxu0 0
      %1866 = vmatpush1.bf16.msra.mxu0 %v512
      %1867 = vmatprep.subr.bf16.mxu0 0
      %1868 = vmatpush1.bf16.msra.mxu0 %v511
      %1869 = vmatprep.subr.bf16.mxu0 0
      %1870 = vmatpush1.bf16.msra.mxu0 %v510
      %1871 = vmatprep.subr.bf16.mxu0 0
      %1872 = vmatpush1.bf16.msra.mxu0 %v509
      %1873 = vmatprep.subr.bf16.mxu0 0
      %1874 = vmatpush1.bf16.msra.mxu0 %v508
      %1875 = vmatprep.subr.bf16.mxu0 0
      %1876 = vmatpush1.bf16.msra.mxu0 %v507
      %1877 = vmatprep.subr.bf16.mxu0 0
      %1878 = vmatpush2.bf16.msra.mxu0 0
      %1879 = vmatprep.subr.bf16.mxu0 0
      %1880 = vmatpush2.bf16.msra.mxu0 0
      %1881 = vmatprep.subr.bf16.mxu0 0
      %1882 = vmatpush2.bf16.msra.mxu0 0
      %1883 = vmatprep.subr.bf16.mxu0 0
      %1884 = vmatpush2.bf16.msra.mxu0 0
      %1885 = vmatprep.subr.bf16.mxu0 0
      %1886 = vmatpush2.bf16.msra.mxu0 0
      %1887 = vmatprep.subr.bf16.mxu0 0
      %1888 = vmatpush2.bf16.msra.mxu0 0
      %1889 = vmatprep.subr.bf16.mxu0 0
      %1890 = vmatpush2.bf16.msra.mxu0 0
      %1891 = vmatprep.subr.bf16.mxu0 0
      %1892 = vmatpush2.bf16.msra.mxu0 0
      %1893 = vmatprep.mubr.bf16.mxu0 0
      %1894 = vmatmul.mubr.bf16.gmra.mxu0 %v1860
      %v1895 = vpop.f32.mrf.mxu0
      %v1896 = vadd.f32 0.0, %v1895
      %v1897 = vpop.f32.mrf.mxu0
      %v1898 = vpop.f32.mrf.mxu0
      %v1899 = vpop.f32.mrf.mxu0
      %1900 = vdwg.mxu0
      %v1901 = vpack.c.bf16 %v1896, %v1896
      %s1902 = scalar_lea.vmem %s4, 576
      %v1903 = vld [vmem:[%s1902] sm:$0xf]
      %v1904 = vld [vmem:[%s1902 + $0x4] sm:$0xf]
      %v1905 = vld [vmem:[%s1902 + $0x8] sm:$0xf]
      %v1906 = vld [vmem:[%s1902 + $0xc] sm:$0xf]
      %v1907 = vld [vmem:[%s1902 + $0x10] sm:$0xf]
      %v1908 = vld [vmem:[%s1902 + $0x14] sm:$0xf]
      %v1909 = vld [vmem:[%s1902 + $0x18] sm:$0xf]
      %v1910 = vld [vmem:[%s1902 + $0x1c] sm:$0xf]
      %v1911 = vld [vmem:[%s1902 + $0x20] sm:$0xf]
      %v1912 = vld [vmem:[%s1902 + $0x24] sm:$0xf]
      %v1913 = vld [vmem:[%s1902 + $0x28] sm:$0xf]
      %v1914 = vld [vmem:[%s1902 + $0x2c] sm:$0xf]
      %v1915 = vld [vmem:[%s1902 + $0x30] sm:$0xf]
      %v1916 = vld [vmem:[%s1902 + $0x34] sm:$0xf]
      %v1917 = vld [vmem:[%s1902 + $0x38] sm:$0xf]
      %v1918 = vld [vmem:[%s1902 + $0x3c] sm:$0xf]
      %v1935 = vunpack.c.l.b16 %v1903
      %v1936 = vunpack.c.l.b16 %v1904
      %v1937 = vunpack.c.l.b16 %v1905
      %v1938 = vunpack.c.l.b16 %v1906
      %v1939 = vunpack.c.l.b16 %v1907
      %v1940 = vunpack.c.l.b16 %v1908
      %v1941 = vunpack.c.l.b16 %v1909
      %v1942 = vunpack.c.l.b16 %v1910
      %v1943 = vunpack.c.l.b16 %v1911
      %v1944 = vunpack.c.l.b16 %v1912
      %v1945 = vunpack.c.l.b16 %v1913
      %v1946 = vunpack.c.l.b16 %v1914
      %v1947 = vunpack.c.l.b16 %v1915
      %v1948 = vunpack.c.l.b16 %v1916
      %v1949 = vunpack.c.l.b16 %v1917
      %v1950 = vunpack.c.l.b16 %v1918
      %v1951 = vpack.c.b16 %v1936, %v1935
      %v1952 = vpack.c.b16 %v1938, %v1937
      %v1953 = vpack.c.b16 %v1940, %v1939
      %v1954 = vpack.c.b16 %v1942, %v1941
      %v1955 = vpack.c.b16 %v1944, %v1943
      %v1956 = vpack.c.b16 %v1946, %v1945
      %v1957 = vpack.c.b16 %v1948, %v1947
      %v1958 = vpack.c.b16 %v1950, %v1949
      %1967 = vmatprep.subr.bf16.mxu0 0
      %1968 = vmatpush1.bf16.msra.mxu0 %v1958
      %1969 = vmatprep.subr.bf16.mxu0 0
      %1970 = vmatpush1.bf16.msra.mxu0 %v1957
      %1971 = vmatprep.subr.bf16.mxu0 0
      %1972 = vmatpush1.bf16.msra.mxu0 %v1956
      %1973 = vmatprep.subr.bf16.mxu0 0
      %1974 = vmatpush1.bf16.msra.mxu0 %v1955
      %1975 = vmatprep.subr.bf16.mxu0 0
      %1976 = vmatpush1.bf16.msra.mxu0 %v1954
      %1977 = vmatprep.subr.bf16.mxu0 0
      %1978 = vmatpush1.bf16.msra.mxu0 %v1953
      %1979 = vmatprep.subr.bf16.mxu0 0
      %1980 = vmatpush1.bf16.msra.mxu0 %v1952
      %1981 = vmatprep.subr.bf16.mxu0 0
      %1982 = vmatpush1.bf16.msra.mxu0 %v1951
      %1983 = vmatprep.subr.bf16.mxu0 0
      %1984 = vmatpush2.bf16.msra.mxu0 0
      %1985 = vmatprep.subr.bf16.mxu0 0
      %1986 = vmatpush2.bf16.msra.mxu0 0
      %1987 = vmatprep.subr.bf16.mxu0 0
      %1988 = vmatpush2.bf16.msra.mxu0 0
      %1989 = vmatprep.subr.bf16.mxu0 0
      %1990 = vmatpush2.bf16.msra.mxu0 0
      %1991 = vmatprep.subr.bf16.mxu0 0
      %1992 = vmatpush2.bf16.msra.mxu0 0
      %1993 = vmatprep.subr.bf16.mxu0 0
      %1994 = vmatpush2.bf16.msra.mxu0 0
      %1995 = vmatprep.subr.bf16.mxu0 0
      %1996 = vmatpush2.bf16.msra.mxu0 0
      %1997 = vmatprep.subr.bf16.mxu0 0
      %1998 = vmatpush2.bf16.msra.mxu0 0
      %1999 = vmatprep.mubr.bf16.mxu0 0
      %2000 = vmatmul.mubr.bf16.gmra.mxu0 %v1901
      %v2001 = vpop.f32.mrf.mxu0
      %v2002 = vadd.f32 0.0, %v2001
      %v2003 = vpop.f32.mrf.mxu0
      %v2004 = vpop.f32.mrf.mxu0
      %v2005 = vpop.f32.mrf.mxu0
      %2006 = vdwg.mxu0
      %v2007 = vadd.f32 %v1858, %v2002
      %s2008 = scalar_lea.vmem %s3, 40
      %v2009 = vld [vmem:[%s2008] sm:$0xf]
      %2010 = vmatprep.subr.bf16.mxu0 0
      %2011 = vmatpush1.bf16.msra.mxu0 %v514
      %2012 = vmatprep.subr.bf16.mxu0 0
      %2013 = vmatpush1.bf16.msra.mxu0 %v513
      %2014 = vmatprep.subr.bf16.mxu0 0
      %2015 = vmatpush1.bf16.msra.mxu0 %v512
      %2016 = vmatprep.subr.bf16.mxu0 0
      %2017 = vmatpush1.bf16.msra.mxu0 %v511
      %2018 = vmatprep.subr.bf16.mxu0 0
      %2019 = vmatpush1.bf16.msra.mxu0 %v510
      %2020 = vmatprep.subr.bf16.mxu0 0
      %2021 = vmatpush1.bf16.msra.mxu0 %v509
      %2022 = vmatprep.subr.bf16.mxu0 0
      %2023 = vmatpush1.bf16.msra.mxu0 %v508
      %2024 = vmatprep.subr.bf16.mxu0 0
      %2025 = vmatpush1.bf16.msra.mxu0 %v507
      %2026 = vmatprep.subr.bf16.mxu0 0
      %2027 = vmatpush2.bf16.msra.mxu0 0
      %2028 = vmatprep.subr.bf16.mxu0 0
      %2029 = vmatpush2.bf16.msra.mxu0 0
      %2030 = vmatprep.subr.bf16.mxu0 0
      %2031 = vmatpush2.bf16.msra.mxu0 0
      %2032 = vmatprep.subr.bf16.mxu0 0
      %2033 = vmatpush2.bf16.msra.mxu0 0
      %2034 = vmatprep.subr.bf16.mxu0 0
      %2035 = vmatpush2.bf16.msra.mxu0 0
      %2036 = vmatprep.subr.bf16.mxu0 0
      %2037 = vmatpush2.bf16.msra.mxu0 0
      %2038 = vmatprep.subr.bf16.mxu0 0
      %2039 = vmatpush2.bf16.msra.mxu0 0
      %2040 = vmatprep.subr.bf16.mxu0 0
      %2041 = vmatpush2.bf16.msra.mxu0 0
      %2042 = vmatprep.mubr.bf16.mxu0 0
      %2043 = vmatmul.mubr.bf16.gmra.mxu0 %v2009
      %v2044 = vpop.f32.mrf.mxu0
      %v2045 = vadd.f32 0.0, %v2044
      %v2046 = vpop.f32.mrf.mxu0
      %v2047 = vpop.f32.mrf.mxu0
      %v2048 = vpop.f32.mrf.mxu0
      %2049 = vdwg.mxu0
      %v2050 = vpack.c.bf16 %v2045, %v2045
      %s2051 = scalar_lea.vmem %s4, 640
      %v2052 = vld [vmem:[%s2051] sm:$0xf]
      %v2053 = vld [vmem:[%s2051 + $0x4] sm:$0xf]
      %v2054 = vld [vmem:[%s2051 + $0x8] sm:$0xf]
      %v2055 = vld [vmem:[%s2051 + $0xc] sm:$0xf]
      %v2056 = vld [vmem:[%s2051 + $0x10] sm:$0xf]
      %v2057 = vld [vmem:[%s2051 + $0x14] sm:$0xf]
      %v2058 = vld [vmem:[%s2051 + $0x18] sm:$0xf]
      %v2059 = vld [vmem:[%s2051 + $0x1c] sm:$0xf]
      %v2060 = vld [vmem:[%s2051 + $0x20] sm:$0xf]
      %v2061 = vld [vmem:[%s2051 + $0x24] sm:$0xf]
      %v2062 = vld [vmem:[%s2051 + $0x28] sm:$0xf]
      %v2063 = vld [vmem:[%s2051 + $0x2c] sm:$0xf]
      %v2064 = vld [vmem:[%s2051 + $0x30] sm:$0xf]
      %v2065 = vld [vmem:[%s2051 + $0x34] sm:$0xf]
      %v2066 = vld [vmem:[%s2051 + $0x38] sm:$0xf]
      %v2067 = vld [vmem:[%s2051 + $0x3c] sm:$0xf]
      %v2084 = vunpack.c.l.b16 %v2052
      %v2085 = vunpack.c.l.b16 %v2053
      %v2086 = vunpack.c.l.b16 %v2054
      %v2087 = vunpack.c.l.b16 %v2055
      %v2088 = vunpack.c.l.b16 %v2056
      %v2089 = vunpack.c.l.b16 %v2057
      %v2090 = vunpack.c.l.b16 %v2058
      %v2091 = vunpack.c.l.b16 %v2059
      %v2092 = vunpack.c.l.b16 %v2060
      %v2093 = vunpack.c.l.b16 %v2061
      %v2094 = vunpack.c.l.b16 %v2062
      %v2095 = vunpack.c.l.b16 %v2063
      %v2096 = vunpack.c.l.b16 %v2064
      %v2097 = vunpack.c.l.b16 %v2065
      %v2098 = vunpack.c.l.b16 %v2066
      %v2099 = vunpack.c.l.b16 %v2067
      %v2100 = vpack.c.b16 %v2085, %v2084
      %v2101 = vpack.c.b16 %v2087, %v2086
      %v2102 = vpack.c.b16 %v2089, %v2088
      %v2103 = vpack.c.b16 %v2091, %v2090
      %v2104 = vpack.c.b16 %v2093, %v2092
      %v2105 = vpack.c.b16 %v2095, %v2094
      %v2106 = vpack.c.b16 %v2097, %v2096
      %v2107 = vpack.c.b16 %v2099, %v2098
      %2116 = vmatprep.subr.bf16.mxu0 0
      %2117 = vmatpush1.bf16.msra.mxu0 %v2107
      %2118 = vmatprep.subr.bf16.mxu0 0
      %2119 = vmatpush1.bf16.msra.mxu0 %v2106
      %2120 = vmatprep.subr.bf16.mxu0 0
      %2121 = vmatpush1.bf16.msra.mxu0 %v2105
      %2122 = vmatprep.subr.bf16.mxu0 0
      %2123 = vmatpush1.bf16.msra.mxu0 %v2104
      %2124 = vmatprep.subr.bf16.mxu0 0
      %2125 = vmatpush1.bf16.msra.mxu0 %v2103
      %2126 = vmatprep.subr.bf16.mxu0 0
      %2127 = vmatpush1.bf16.msra.mxu0 %v2102
      %2128 = vmatprep.subr.bf16.mxu0 0
      %2129 = vmatpush1.bf16.msra.mxu0 %v2101
      %2130 = vmatprep.subr.bf16.mxu0 0
      %2131 = vmatpush1.bf16.msra.mxu0 %v2100
      %2132 = vmatprep.subr.bf16.mxu0 0
      %2133 = vmatpush2.bf16.msra.mxu0 0
      %2134 = vmatprep.subr.bf16.mxu0 0
      %2135 = vmatpush2.bf16.msra.mxu0 0
      %2136 = vmatprep.subr.bf16.mxu0 0
      %2137 = vmatpush2.bf16.msra.mxu0 0
      %2138 = vmatprep.subr.bf16.mxu0 0
      %2139 = vmatpush2.bf16.msra.mxu0 0
      %2140 = vmatprep.subr.bf16.mxu0 0
      %2141 = vmatpush2.bf16.msra.mxu0 0
      %2142 = vmatprep.subr.bf16.mxu0 0
      %2143 = vmatpush2.bf16.msra.mxu0 0
      %2144 = vmatprep.subr.bf16.mxu0 0
      %2145 = vmatpush2.bf16.msra.mxu0 0
      %2146 = vmatprep.subr.bf16.mxu0 0
      %2147 = vmatpush2.bf16.msra.mxu0 0
      %2148 = vmatprep.mubr.bf16.mxu0 0
      %2149 = vmatmul.mubr.bf16.gmra.mxu0 %v2050
      %v2150 = vpop.f32.mrf.mxu0
      %v2151 = vadd.f32 0.0, %v2150
      %v2152 = vpop.f32.mrf.mxu0
      %v2153 = vpop.f32.mrf.mxu0
      %v2154 = vpop.f32.mrf.mxu0
      %2155 = vdwg.mxu0
      %v2156 = vadd.f32 %v2007, %v2151
      %s2157 = scalar_lea.vmem %s3, 44
      %v2158 = vld [vmem:[%s2157] sm:$0xf]
      %2159 = vmatprep.subr.bf16.mxu0 0
      %2160 = vmatpush1.bf16.msra.mxu0 %v514
      %2161 = vmatprep.subr.bf16.mxu0 0
      %2162 = vmatpush1.bf16.msra.mxu0 %v513
      %2163 = vmatprep.subr.bf16.mxu0 0
      %2164 = vmatpush1.bf16.msra.mxu0 %v512
      %2165 = vmatprep.subr.bf16.mxu0 0
      %2166 = vmatpush1.bf16.msra.mxu0 %v511
      %2167 = vmatprep.subr.bf16.mxu0 0
      %2168 = vmatpush1.bf16.msra.mxu0 %v510
      %2169 = vmatprep.subr.bf16.mxu0 0
      %2170 = vmatpush1.bf16.msra.mxu0 %v509
      %2171 = vmatprep.subr.bf16.mxu0 0
      %2172 = vmatpush1.bf16.msra.mxu0 %v508
      %2173 = vmatprep.subr.bf16.mxu0 0
      %2174 = vmatpush1.bf16.msra.mxu0 %v507
      %2175 = vmatprep.subr.bf16.mxu0 0
      %2176 = vmatpush2.bf16.msra.mxu0 0
      %2177 = vmatprep.subr.bf16.mxu0 0
      %2178 = vmatpush2.bf16.msra.mxu0 0
      %2179 = vmatprep.subr.bf16.mxu0 0
      %2180 = vmatpush2.bf16.msra.mxu0 0
      %2181 = vmatprep.subr.bf16.mxu0 0
      %2182 = vmatpush2.bf16.msra.mxu0 0
      %2183 = vmatprep.subr.bf16.mxu0 0
      %2184 = vmatpush2.bf16.msra.mxu0 0
      %2185 = vmatprep.subr.bf16.mxu0 0
      %2186 = vmatpush2.bf16.msra.mxu0 0
      %2187 = vmatprep.subr.bf16.mxu0 0
      %2188 = vmatpush2.bf16.msra.mxu0 0
      %2189 = vmatprep.subr.bf16.mxu0 0
      %2190 = vmatpush2.bf16.msra.mxu0 0
      %2191 = vmatprep.mubr.bf16.mxu0 0
      %2192 = vmatmul.mubr.bf16.gmra.mxu0 %v2158
      %v2193 = vpop.f32.mrf.mxu0
      %v2194 = vadd.f32 0.0, %v2193
      %v2195 = vpop.f32.mrf.mxu0
      %v2196 = vpop.f32.mrf.mxu0
      %v2197 = vpop.f32.mrf.mxu0
      %2198 = vdwg.mxu0
      %v2199 = vpack.c.bf16 %v2194, %v2194
      %s2200 = scalar_lea.vmem %s4, 704
      %v2201 = vld [vmem:[%s2200] sm:$0xf]
      %v2202 = vld [vmem:[%s2200 + $0x4] sm:$0xf]
      %v2203 = vld [vmem:[%s2200 + $0x8] sm:$0xf]
      %v2204 = vld [vmem:[%s2200 + $0xc] sm:$0xf]
      %v2205 = vld [vmem:[%s2200 + $0x10] sm:$0xf]
      %v2206 = vld [vmem:[%s2200 + $0x14] sm:$0xf]
      %v2207 = vld [vmem:[%s2200 + $0x18] sm:$0xf]
      %v2208 = vld [vmem:[%s2200 + $0x1c] sm:$0xf]
      %v2209 = vld [vmem:[%s2200 + $0x20] sm:$0xf]
      %v2210 = vld [vmem:[%s2200 + $0x24] sm:$0xf]
      %v2211 = vld [vmem:[%s2200 + $0x28] sm:$0xf]
      %v2212 = vld [vmem:[%s2200 + $0x2c] sm:$0xf]
      %v2213 = vld [vmem:[%s2200 + $0x30] sm:$0xf]
      %v2214 = vld [vmem:[%s2200 + $0x34] sm:$0xf]
      %v2215 = vld [vmem:[%s2200 + $0x38] sm:$0xf]
      %v2216 = vld [vmem:[%s2200 + $0x3c] sm:$0xf]
      %v2233 = vunpack.c.l.b16 %v2201
      %v2234 = vunpack.c.l.b16 %v2202
      %v2235 = vunpack.c.l.b16 %v2203
      %v2236 = vunpack.c.l.b16 %v2204
      %v2237 = vunpack.c.l.b16 %v2205
      %v2238 = vunpack.c.l.b16 %v2206
      %v2239 = vunpack.c.l.b16 %v2207
      %v2240 = vunpack.c.l.b16 %v2208
      %v2241 = vunpack.c.l.b16 %v2209
      %v2242 = vunpack.c.l.b16 %v2210
      %v2243 = vunpack.c.l.b16 %v2211
      %v2244 = vunpack.c.l.b16 %v2212
      %v2245 = vunpack.c.l.b16 %v2213
      %v2246 = vunpack.c.l.b16 %v2214
      %v2247 = vunpack.c.l.b16 %v2215
      %v2248 = vunpack.c.l.b16 %v2216
      %v2249 = vpack.c.b16 %v2234, %v2233
      %v2250 = vpack.c.b16 %v2236, %v2235
      %v2251 = vpack.c.b16 %v2238, %v2237
      %v2252 = vpack.c.b16 %v2240, %v2239
      %v2253 = vpack.c.b16 %v2242, %v2241
      %v2254 = vpack.c.b16 %v2244, %v2243
      %v2255 = vpack.c.b16 %v2246, %v2245
      %v2256 = vpack.c.b16 %v2248, %v2247
      %2265 = vmatprep.subr.bf16.mxu0 0
      %2266 = vmatpush1.bf16.msra.mxu0 %v2256
      %2267 = vmatprep.subr.bf16.mxu0 0
      %2268 = vmatpush1.bf16.msra.mxu0 %v2255
      %2269 = vmatprep.subr.bf16.mxu0 0
      %2270 = vmatpush1.bf16.msra.mxu0 %v2254
      %2271 = vmatprep.subr.bf16.mxu0 0
      %2272 = vmatpush1.bf16.msra.mxu0 %v2253
      %2273 = vmatprep.subr.bf16.mxu0 0
      %2274 = vmatpush1.bf16.msra.mxu0 %v2252
      %2275 = vmatprep.subr.bf16.mxu0 0
      %2276 = vmatpush1.bf16.msra.mxu0 %v2251
      %2277 = vmatprep.subr.bf16.mxu0 0
      %2278 = vmatpush1.bf16.msra.mxu0 %v2250
      %2279 = vmatprep.subr.bf16.mxu0 0
      %2280 = vmatpush1.bf16.msra.mxu0 %v2249
      %2281 = vmatprep.subr.bf16.mxu0 0
      %2282 = vmatpush2.bf16.msra.mxu0 0
      %2283 = vmatprep.subr.bf16.mxu0 0
      %2284 = vmatpush2.bf16.msra.mxu0 0
      %2285 = vmatprep.subr.bf16.mxu0 0
      %2286 = vmatpush2.bf16.msra.mxu0 0
      %2287 = vmatprep.subr.bf16.mxu0 0
      %2288 = vmatpush2.bf16.msra.mxu0 0
      %2289 = vmatprep.subr.bf16.mxu0 0
      %2290 = vmatpush2.bf16.msra.mxu0 0
      %2291 = vmatprep.subr.bf16.mxu0 0
      %2292 = vmatpush2.bf16.msra.mxu0 0
      %2293 = vmatprep.subr.bf16.mxu0 0
      %2294 = vmatpush2.bf16.msra.mxu0 0
      %2295 = vmatprep.subr.bf16.mxu0 0
      %2296 = vmatpush2.bf16.msra.mxu0 0
      %2297 = vmatprep.mubr.bf16.mxu0 0
      %2298 = vmatmul.mubr.bf16.gmra.mxu0 %v2199
      %v2299 = vpop.f32.mrf.mxu0
      %v2300 = vadd.f32 0.0, %v2299
      %v2301 = vpop.f32.mrf.mxu0
      %v2302 = vpop.f32.mrf.mxu0
      %v2303 = vpop.f32.mrf.mxu0
      %2304 = vdwg.mxu0
      %v2305 = vadd.f32 %v2156, %v2300
      %s2306 = scalar_lea.vmem %s3, 48
      %v2307 = vld [vmem:[%s2306] sm:$0xf]
      %2308 = vmatprep.subr.bf16.mxu0 0
      %2309 = vmatpush1.bf16.msra.mxu0 %v514
      %2310 = vmatprep.subr.bf16.mxu0 0
      %2311 = vmatpush1.bf16.msra.mxu0 %v513
      %2312 = vmatprep.subr.bf16.mxu0 0
      %2313 = vmatpush1.bf16.msra.mxu0 %v512
      %2314 = vmatprep.subr.bf16.mxu0 0
      %2315 = vmatpush1.bf16.msra.mxu0 %v511
      %2316 = vmatprep.subr.bf16.mxu0 0
      %2317 = vmatpush1.bf16.msra.mxu0 %v510
      %2318 = vmatprep.subr.bf16.mxu0 0
      %2319 = vmatpush1.bf16.msra.mxu0 %v509
      %2320 = vmatprep.subr.bf16.mxu0 0
      %2321 = vmatpush1.bf16.msra.mxu0 %v508
      %2322 = vmatprep.subr.bf16.mxu0 0
      %2323 = vmatpush1.bf16.msra.mxu0 %v507
      %2324 = vmatprep.subr.bf16.mxu0 0
      %2325 = vmatpush2.bf16.msra.mxu0 0
      %2326 = vmatprep.subr.bf16.mxu0 0
      %2327 = vmatpush2.bf16.msra.mxu0 0
      %2328 = vmatprep.subr.bf16.mxu0 0
      %2329 = vmatpush2.bf16.msra.mxu0 0
      %2330 = vmatprep.subr.bf16.mxu0 0
      %2331 = vmatpush2.bf16.msra.mxu0 0
      %2332 = vmatprep.subr.bf16.mxu0 0
      %2333 = vmatpush2.bf16.msra.mxu0 0
      %2334 = vmatprep.subr.bf16.mxu0 0
      %2335 = vmatpush2.bf16.msra.mxu0 0
      %2336 = vmatprep.subr.bf16.mxu0 0
      %2337 = vmatpush2.bf16.msra.mxu0 0
      %2338 = vmatprep.subr.bf16.mxu0 0
      %2339 = vmatpush2.bf16.msra.mxu0 0
      %2340 = vmatprep.mubr.bf16.mxu0 0
      %2341 = vmatmul.mubr.bf16.gmra.mxu0 %v2307
      %v2342 = vpop.f32.mrf.mxu0
      %v2343 = vadd.f32 0.0, %v2342
      %v2344 = vpop.f32.mrf.mxu0
      %v2345 = vpop.f32.mrf.mxu0
      %v2346 = vpop.f32.mrf.mxu0
      %2347 = vdwg.mxu0
      %v2348 = vpack.c.bf16 %v2343, %v2343
      %s2349 = scalar_lea.vmem %s4, 768
      %v2350 = vld [vmem:[%s2349] sm:$0xf]
      %v2351 = vld [vmem:[%s2349 + $0x4] sm:$0xf]
      %v2352 = vld [vmem:[%s2349 + $0x8] sm:$0xf]
      %v2353 = vld [vmem:[%s2349 + $0xc] sm:$0xf]
      %v2354 = vld [vmem:[%s2349 + $0x10] sm:$0xf]
      %v2355 = vld [vmem:[%s2349 + $0x14] sm:$0xf]
      %v2356 = vld [vmem:[%s2349 + $0x18] sm:$0xf]
      %v2357 = vld [vmem:[%s2349 + $0x1c] sm:$0xf]
      %v2358 = vld [vmem:[%s2349 + $0x20] sm:$0xf]
      %v2359 = vld [vmem:[%s2349 + $0x24] sm:$0xf]
      %v2360 = vld [vmem:[%s2349 + $0x28] sm:$0xf]
      %v2361 = vld [vmem:[%s2349 + $0x2c] sm:$0xf]
      %v2362 = vld [vmem:[%s2349 + $0x30] sm:$0xf]
      %v2363 = vld [vmem:[%s2349 + $0x34] sm:$0xf]
      %v2364 = vld [vmem:[%s2349 + $0x38] sm:$0xf]
      %v2365 = vld [vmem:[%s2349 + $0x3c] sm:$0xf]
      %v2382 = vunpack.c.l.b16 %v2350
      %v2383 = vunpack.c.l.b16 %v2351
      %v2384 = vunpack.c.l.b16 %v2352
      %v2385 = vunpack.c.l.b16 %v2353
      %v2386 = vunpack.c.l.b16 %v2354
      %v2387 = vunpack.c.l.b16 %v2355
      %v2388 = vunpack.c.l.b16 %v2356
      %v2389 = vunpack.c.l.b16 %v2357
      %v2390 = vunpack.c.l.b16 %v2358
      %v2391 = vunpack.c.l.b16 %v2359
      %v2392 = vunpack.c.l.b16 %v2360
      %v2393 = vunpack.c.l.b16 %v2361
      %v2394 = vunpack.c.l.b16 %v2362
      %v2395 = vunpack.c.l.b16 %v2363
      %v2396 = vunpack.c.l.b16 %v2364
      %v2397 = vunpack.c.l.b16 %v2365
      %v2398 = vpack.c.b16 %v2383, %v2382
      %v2399 = vpack.c.b16 %v2385, %v2384
      %v2400 = vpack.c.b16 %v2387, %v2386
      %v2401 = vpack.c.b16 %v2389, %v2388
      %v2402 = vpack.c.b16 %v2391, %v2390
      %v2403 = vpack.c.b16 %v2393, %v2392
      %v2404 = vpack.c.b16 %v2395, %v2394
      %v2405 = vpack.c.b16 %v2397, %v2396
      %2414 = vmatprep.subr.bf16.mxu0 0
      %2415 = vmatpush1.bf16.msra.mxu0 %v2405
      %2416 = vmatprep.subr.bf16.mxu0 0
      %2417 = vmatpush1.bf16.msra.mxu0 %v2404
      %2418 = vmatprep.subr.bf16.mxu0 0
      %2419 = vmatpush1.bf16.msra.mxu0 %v2403
      %2420 = vmatprep.subr.bf16.mxu0 0
      %2421 = vmatpush1.bf16.msra.mxu0 %v2402
      %2422 = vmatprep.subr.bf16.mxu0 0
      %2423 = vmatpush1.bf16.msra.mxu0 %v2401
      %2424 = vmatprep.subr.bf16.mxu0 0
      %2425 = vmatpush1.bf16.msra.mxu0 %v2400
      %2426 = vmatprep.subr.bf16.mxu0 0
      %2427 = vmatpush1.bf16.msra.mxu0 %v2399
      %2428 = vmatprep.subr.bf16.mxu0 0
      %2429 = vmatpush1.bf16.msra.mxu0 %v2398
      %2430 = vmatprep.subr.bf16.mxu0 0
      %2431 = vmatpush2.bf16.msra.mxu0 0
      %2432 = vmatprep.subr.bf16.mxu0 0
      %2433 = vmatpush2.bf16.msra.mxu0 0
      %2434 = vmatprep.subr.bf16.mxu0 0
      %2435 = vmatpush2.bf16.msra.mxu0 0
      %2436 = vmatprep.subr.bf16.mxu0 0
      %2437 = vmatpush2.bf16.msra.mxu0 0
      %2438 = vmatprep.subr.bf16.mxu0 0
      %2439 = vmatpush2.bf16.msra.mxu0 0
      %2440 = vmatprep.subr.bf16.mxu0 0
      %2441 = vmatpush2.bf16.msra.mxu0 0
      %2442 = vmatprep.subr.bf16.mxu0 0
      %2443 = vmatpush2.bf16.msra.mxu0 0
      %2444 = vmatprep.subr.bf16.mxu0 0
      %2445 = vmatpush2.bf16.msra.mxu0 0
      %2446 = vmatprep.mubr.bf16.mxu0 0
      %2447 = vmatmul.mubr.bf16.gmra.mxu0 %v2348
      %v2448 = vpop.f32.mrf.mxu0
      %v2449 = vadd.f32 0.0, %v2448
      %v2450 = vpop.f32.mrf.mxu0
      %v2451 = vpop.f32.mrf.mxu0
      %v2452 = vpop.f32.mrf.mxu0
      %2453 = vdwg.mxu0
      %v2454 = vadd.f32 %v2305, %v2449
      %s2455 = scalar_lea.vmem %s3, 52
      %v2456 = vld [vmem:[%s2455] sm:$0xf]
      %2457 = vmatprep.subr.bf16.mxu0 0
      %2458 = vmatpush1.bf16.msra.mxu0 %v514
      %2459 = vmatprep.subr.bf16.mxu0 0
      %2460 = vmatpush1.bf16.msra.mxu0 %v513
      %2461 = vmatprep.subr.bf16.mxu0 0
      %2462 = vmatpush1.bf16.msra.mxu0 %v512
      %2463 = vmatprep.subr.bf16.mxu0 0
      %2464 = vmatpush1.bf16.msra.mxu0 %v511
      %2465 = vmatprep.subr.bf16.mxu0 0
      %2466 = vmatpush1.bf16.msra.mxu0 %v510
      %2467 = vmatprep.subr.bf16.mxu0 0
      %2468 = vmatpush1.bf16.msra.mxu0 %v509
      %2469 = vmatprep.subr.bf16.mxu0 0
      %2470 = vmatpush1.bf16.msra.mxu0 %v508
      %2471 = vmatprep.subr.bf16.mxu0 0
      %2472 = vmatpush1.bf16.msra.mxu0 %v507
      %2473 = vmatprep.subr.bf16.mxu0 0
      %2474 = vmatpush2.bf16.msra.mxu0 0
      %2475 = vmatprep.subr.bf16.mxu0 0
      %2476 = vmatpush2.bf16.msra.mxu0 0
      %2477 = vmatprep.subr.bf16.mxu0 0
      %2478 = vmatpush2.bf16.msra.mxu0 0
      %2479 = vmatprep.subr.bf16.mxu0 0
      %2480 = vmatpush2.bf16.msra.mxu0 0
      %2481 = vmatprep.subr.bf16.mxu0 0
      %2482 = vmatpush2.bf16.msra.mxu0 0
      %2483 = vmatprep.subr.bf16.mxu0 0
      %2484 = vmatpush2.bf16.msra.mxu0 0
      %2485 = vmatprep.subr.bf16.mxu0 0
      %2486 = vmatpush2.bf16.msra.mxu0 0
      %2487 = vmatprep.subr.bf16.mxu0 0
      %2488 = vmatpush2.bf16.msra.mxu0 0
      %2489 = vmatprep.mubr.bf16.mxu0 0
      %2490 = vmatmul.mubr.bf16.gmra.mxu0 %v2456
      %v2491 = vpop.f32.mrf.mxu0
      %v2492 = vadd.f32 0.0, %v2491
      %v2493 = vpop.f32.mrf.mxu0
      %v2494 = vpop.f32.mrf.mxu0
      %v2495 = vpop.f32.mrf.mxu0
      %2496 = vdwg.mxu0
      %v2497 = vpack.c.bf16 %v2492, %v2492
      %s2498 = scalar_lea.vmem %s4, 832
      %v2499 = vld [vmem:[%s2498] sm:$0xf]
      %v2500 = vld [vmem:[%s2498 + $0x4] sm:$0xf]
      %v2501 = vld [vmem:[%s2498 + $0x8] sm:$0xf]
      %v2502 = vld [vmem:[%s2498 + $0xc] sm:$0xf]
      %v2503 = vld [vmem:[%s2498 + $0x10] sm:$0xf]
      %v2504 = vld [vmem:[%s2498 + $0x14] sm:$0xf]
      %v2505 = vld [vmem:[%s2498 + $0x18] sm:$0xf]
      %v2506 = vld [vmem:[%s2498 + $0x1c] sm:$0xf]
      %v2507 = vld [vmem:[%s2498 + $0x20] sm:$0xf]
      %v2508 = vld [vmem:[%s2498 + $0x24] sm:$0xf]
      %v2509 = vld [vmem:[%s2498 + $0x28] sm:$0xf]
      %v2510 = vld [vmem:[%s2498 + $0x2c] sm:$0xf]
      %v2511 = vld [vmem:[%s2498 + $0x30] sm:$0xf]
      %v2512 = vld [vmem:[%s2498 + $0x34] sm:$0xf]
      %v2513 = vld [vmem:[%s2498 + $0x38] sm:$0xf]
      %v2514 = vld [vmem:[%s2498 + $0x3c] sm:$0xf]
      %v2531 = vunpack.c.l.b16 %v2499
      %v2532 = vunpack.c.l.b16 %v2500
      %v2533 = vunpack.c.l.b16 %v2501
      %v2534 = vunpack.c.l.b16 %v2502
      %v2535 = vunpack.c.l.b16 %v2503
      %v2536 = vunpack.c.l.b16 %v2504
      %v2537 = vunpack.c.l.b16 %v2505
      %v2538 = vunpack.c.l.b16 %v2506
      %v2539 = vunpack.c.l.b16 %v2507
      %v2540 = vunpack.c.l.b16 %v2508
      %v2541 = vunpack.c.l.b16 %v2509
      %v2542 = vunpack.c.l.b16 %v2510
      %v2543 = vunpack.c.l.b16 %v2511
      %v2544 = vunpack.c.l.b16 %v2512
      %v2545 = vunpack.c.l.b16 %v2513
      %v2546 = vunpack.c.l.b16 %v2514
      %v2547 = vpack.c.b16 %v2532, %v2531
      %v2548 = vpack.c.b16 %v2534, %v2533
      %v2549 = vpack.c.b16 %v2536, %v2535
      %v2550 = vpack.c.b16 %v2538, %v2537
      %v2551 = vpack.c.b16 %v2540, %v2539
      %v2552 = vpack.c.b16 %v2542, %v2541
      %v2553 = vpack.c.b16 %v2544, %v2543
      %v2554 = vpack.c.b16 %v2546, %v2545
      %2563 = vmatprep.subr.bf16.mxu0 0
      %2564 = vmatpush1.bf16.msra.mxu0 %v2554
      %2565 = vmatprep.subr.bf16.mxu0 0
      %2566 = vmatpush1.bf16.msra.mxu0 %v2553
      %2567 = vmatprep.subr.bf16.mxu0 0
      %2568 = vmatpush1.bf16.msra.mxu0 %v2552
      %2569 = vmatprep.subr.bf16.mxu0 0
      %2570 = vmatpush1.bf16.msra.mxu0 %v2551
      %2571 = vmatprep.subr.bf16.mxu0 0
      %2572 = vmatpush1.bf16.msra.mxu0 %v2550
      %2573 = vmatprep.subr.bf16.mxu0 0
      %2574 = vmatpush1.bf16.msra.mxu0 %v2549
      %2575 = vmatprep.subr.bf16.mxu0 0
      %2576 = vmatpush1.bf16.msra.mxu0 %v2548
      %2577 = vmatprep.subr.bf16.mxu0 0
      %2578 = vmatpush1.bf16.msra.mxu0 %v2547
      %2579 = vmatprep.subr.bf16.mxu0 0
      %2580 = vmatpush2.bf16.msra.mxu0 0
      %2581 = vmatprep.subr.bf16.mxu0 0
      %2582 = vmatpush2.bf16.msra.mxu0 0
      %2583 = vmatprep.subr.bf16.mxu0 0
      %2584 = vmatpush2.bf16.msra.mxu0 0
      %2585 = vmatprep.subr.bf16.mxu0 0
      %2586 = vmatpush2.bf16.msra.mxu0 0
      %2587 = vmatprep.subr.bf16.mxu0 0
      %2588 = vmatpush2.bf16.msra.mxu0 0
      %2589 = vmatprep.subr.bf16.mxu0 0
      %2590 = vmatpush2.bf16.msra.mxu0 0
      %2591 = vmatprep.subr.bf16.mxu0 0
      %2592 = vmatpush2.bf16.msra.mxu0 0
      %2593 = vmatprep.subr.bf16.mxu0 0
      %2594 = vmatpush2.bf16.msra.mxu0 0
      %2595 = vmatprep.mubr.bf16.mxu0 0
      %2596 = vmatmul.mubr.bf16.gmra.mxu0 %v2497
      %v2597 = vpop.f32.mrf.mxu0
      %v2598 = vadd.f32 0.0, %v2597
      %v2599 = vpop.f32.mrf.mxu0
      %v2600 = vpop.f32.mrf.mxu0
      %v2601 = vpop.f32.mrf.mxu0
      %2602 = vdwg.mxu0
      %v2603 = vadd.f32 %v2454, %v2598
      %s2604 = scalar_lea.vmem %s3, 56
      %v2605 = vld [vmem:[%s2604] sm:$0xf]
      %2606 = vmatprep.subr.bf16.mxu0 0
      %2607 = vmatpush1.bf16.msra.mxu0 %v514
      %2608 = vmatprep.subr.bf16.mxu0 0
      %2609 = vmatpush1.bf16.msra.mxu0 %v513
      %2610 = vmatprep.subr.bf16.mxu0 0
      %2611 = vmatpush1.bf16.msra.mxu0 %v512
      %2612 = vmatprep.subr.bf16.mxu0 0
      %2613 = vmatpush1.bf16.msra.mxu0 %v511
      %2614 = vmatprep.subr.bf16.mxu0 0
      %2615 = vmatpush1.bf16.msra.mxu0 %v510
      %2616 = vmatprep.subr.bf16.mxu0 0
      %2617 = vmatpush1.bf16.msra.mxu0 %v509
      %2618 = vmatprep.subr.bf16.mxu0 0
      %2619 = vmatpush1.bf16.msra.mxu0 %v508
      %2620 = vmatprep.subr.bf16.mxu0 0
      %2621 = vmatpush1.bf16.msra.mxu0 %v507
      %2622 = vmatprep.subr.bf16.mxu0 0
      %2623 = vmatpush2.bf16.msra.mxu0 0
      %2624 = vmatprep.subr.bf16.mxu0 0
      %2625 = vmatpush2.bf16.msra.mxu0 0
      %2626 = vmatprep.subr.bf16.mxu0 0
      %2627 = vmatpush2.bf16.msra.mxu0 0
      %2628 = vmatprep.subr.bf16.mxu0 0
      %2629 = vmatpush2.bf16.msra.mxu0 0
      %2630 = vmatprep.subr.bf16.mxu0 0
      %2631 = vmatpush2.bf16.msra.mxu0 0
      %2632 = vmatprep.subr.bf16.mxu0 0
      %2633 = vmatpush2.bf16.msra.mxu0 0
      %2634 = vmatprep.subr.bf16.mxu0 0
      %2635 = vmatpush2.bf16.msra.mxu0 0
      %2636 = vmatprep.subr.bf16.mxu0 0
      %2637 = vmatpush2.bf16.msra.mxu0 0
      %2638 = vmatprep.mubr.bf16.mxu0 0
      %2639 = vmatmul.mubr.bf16.gmra.mxu0 %v2605
      %v2640 = vpop.f32.mrf.mxu0
      %v2641 = vadd.f32 0.0, %v2640
      %v2642 = vpop.f32.mrf.mxu0
      %v2643 = vpop.f32.mrf.mxu0
      %v2644 = vpop.f32.mrf.mxu0
      %2645 = vdwg.mxu0
      %v2646 = vpack.c.bf16 %v2641, %v2641
      %s2647 = scalar_lea.vmem %s4, 896
      %v2648 = vld [vmem:[%s2647] sm:$0xf]
      %v2649 = vld [vmem:[%s2647 + $0x4] sm:$0xf]
      %v2650 = vld [vmem:[%s2647 + $0x8] sm:$0xf]
      %v2651 = vld [vmem:[%s2647 + $0xc] sm:$0xf]
      %v2652 = vld [vmem:[%s2647 + $0x10] sm:$0xf]
      %v2653 = vld [vmem:[%s2647 + $0x14] sm:$0xf]
      %v2654 = vld [vmem:[%s2647 + $0x18] sm:$0xf]
      %v2655 = vld [vmem:[%s2647 + $0x1c] sm:$0xf]
      %v2656 = vld [vmem:[%s2647 + $0x20] sm:$0xf]
      %v2657 = vld [vmem:[%s2647 + $0x24] sm:$0xf]
      %v2658 = vld [vmem:[%s2647 + $0x28] sm:$0xf]
      %v2659 = vld [vmem:[%s2647 + $0x2c] sm:$0xf]
      %v2660 = vld [vmem:[%s2647 + $0x30] sm:$0xf]
      %v2661 = vld [vmem:[%s2647 + $0x34] sm:$0xf]
      %v2662 = vld [vmem:[%s2647 + $0x38] sm:$0xf]
      %v2663 = vld [vmem:[%s2647 + $0x3c] sm:$0xf]
      %v2680 = vunpack.c.l.b16 %v2648
      %v2681 = vunpack.c.l.b16 %v2649
      %v2682 = vunpack.c.l.b16 %v2650
      %v2683 = vunpack.c.l.b16 %v2651
      %v2684 = vunpack.c.l.b16 %v2652
      %v2685 = vunpack.c.l.b16 %v2653
      %v2686 = vunpack.c.l.b16 %v2654
      %v2687 = vunpack.c.l.b16 %v2655
      %v2688 = vunpack.c.l.b16 %v2656
      %v2689 = vunpack.c.l.b16 %v2657
      %v2690 = vunpack.c.l.b16 %v2658
      %v2691 = vunpack.c.l.b16 %v2659
      %v2692 = vunpack.c.l.b16 %v2660
      %v2693 = vunpack.c.l.b16 %v2661
      %v2694 = vunpack.c.l.b16 %v2662
      %v2695 = vunpack.c.l.b16 %v2663
      %v2696 = vpack.c.b16 %v2681, %v2680
      %v2697 = vpack.c.b16 %v2683, %v2682
      %v2698 = vpack.c.b16 %v2685, %v2684
      %v2699 = vpack.c.b16 %v2687, %v2686
      %v2700 = vpack.c.b16 %v2689, %v2688
      %v2701 = vpack.c.b16 %v2691, %v2690
      %v2702 = vpack.c.b16 %v2693, %v2692
      %v2703 = vpack.c.b16 %v2695, %v2694
      %2712 = vmatprep.subr.bf16.mxu0 0
      %2713 = vmatpush1.bf16.msra.mxu0 %v2703
      %2714 = vmatprep.subr.bf16.mxu0 0
      %2715 = vmatpush1.bf16.msra.mxu0 %v2702
      %2716 = vmatprep.subr.bf16.mxu0 0
      %2717 = vmatpush1.bf16.msra.mxu0 %v2701
      %2718 = vmatprep.subr.bf16.mxu0 0
      %2719 = vmatpush1.bf16.msra.mxu0 %v2700
      %2720 = vmatprep.subr.bf16.mxu0 0
      %2721 = vmatpush1.bf16.msra.mxu0 %v2699
      %2722 = vmatprep.subr.bf16.mxu0 0
      %2723 = vmatpush1.bf16.msra.mxu0 %v2698
      %2724 = vmatprep.subr.bf16.mxu0 0
      %2725 = vmatpush1.bf16.msra.mxu0 %v2697
      %2726 = vmatprep.subr.bf16.mxu0 0
      %2727 = vmatpush1.bf16.msra.mxu0 %v2696
      %2728 = vmatprep.subr.bf16.mxu0 0
      %2729 = vmatpush2.bf16.msra.mxu0 0
      %2730 = vmatprep.subr.bf16.mxu0 0
      %2731 = vmatpush2.bf16.msra.mxu0 0
      %2732 = vmatprep.subr.bf16.mxu0 0
      %2733 = vmatpush2.bf16.msra.mxu0 0
      %2734 = vmatprep.subr.bf16.mxu0 0
      %2735 = vmatpush2.bf16.msra.mxu0 0
      %2736 = vmatprep.subr.bf16.mxu0 0
      %2737 = vmatpush2.bf16.msra.mxu0 0
      %2738 = vmatprep.subr.bf16.mxu0 0
      %2739 = vmatpush2.bf16.msra.mxu0 0
      %2740 = vmatprep.subr.bf16.mxu0 0
      %2741 = vmatpush2.bf16.msra.mxu0 0
      %2742 = vmatprep.subr.bf16.mxu0 0
      %2743 = vmatpush2.bf16.msra.mxu0 0
      %2744 = vmatprep.mubr.bf16.mxu0 0
      %2745 = vmatmul.mubr.bf16.gmra.mxu0 %v2646
      %v2746 = vpop.f32.mrf.mxu0
      %v2747 = vadd.f32 0.0, %v2746
      %v2748 = vpop.f32.mrf.mxu0
      %v2749 = vpop.f32.mrf.mxu0
      %v2750 = vpop.f32.mrf.mxu0
      %2751 = vdwg.mxu0
      %v2752 = vadd.f32 %v2603, %v2747
      %s2753 = scalar_lea.vmem %s3, 60
      %v2754 = vld [vmem:[%s2753] sm:$0xf]
      %2755 = vmatprep.subr.bf16.mxu0 0
      %2756 = vmatpush1.bf16.msra.mxu0 %v514
      %2757 = vmatprep.subr.bf16.mxu0 0
      %2758 = vmatpush1.bf16.msra.mxu0 %v513
      %2759 = vmatprep.subr.bf16.mxu0 0
      %2760 = vmatpush1.bf16.msra.mxu0 %v512
      %2761 = vmatprep.subr.bf16.mxu0 0
      %2762 = vmatpush1.bf16.msra.mxu0 %v511
      %2763 = vmatprep.subr.bf16.mxu0 0
      %2764 = vmatpush1.bf16.msra.mxu0 %v510
      %2765 = vmatprep.subr.bf16.mxu0 0
      %2766 = vmatpush1.bf16.msra.mxu0 %v509
      %2767 = vmatprep.subr.bf16.mxu0 0
      %2768 = vmatpush1.bf16.msra.mxu0 %v508
      %2769 = vmatprep.subr.bf16.mxu0 0
      %2770 = vmatpush1.bf16.msra.mxu0 %v507
      %2771 = vmatprep.subr.bf16.mxu0 0
      %2772 = vmatpush2.bf16.msra.mxu0 0
      %2773 = vmatprep.subr.bf16.mxu0 0
      %2774 = vmatpush2.bf16.msra.mxu0 0
      %2775 = vmatprep.subr.bf16.mxu0 0
      %2776 = vmatpush2.bf16.msra.mxu0 0
      %2777 = vmatprep.subr.bf16.mxu0 0
      %2778 = vmatpush2.bf16.msra.mxu0 0
      %2779 = vmatprep.subr.bf16.mxu0 0
      %2780 = vmatpush2.bf16.msra.mxu0 0
      %2781 = vmatprep.subr.bf16.mxu0 0
      %2782 = vmatpush2.bf16.msra.mxu0 0
      %2783 = vmatprep.subr.bf16.mxu0 0
      %2784 = vmatpush2.bf16.msra.mxu0 0
      %2785 = vmatprep.subr.bf16.mxu0 0
      %2786 = vmatpush2.bf16.msra.mxu0 0
      %2787 = vmatprep.mubr.bf16.mxu0 0
      %2788 = vmatmul.mubr.bf16.gmra.mxu0 %v2754
      %v2789 = vpop.f32.mrf.mxu0
      %v2790 = vadd.f32 0.0, %v2789
      %v2791 = vpop.f32.mrf.mxu0
      %v2792 = vpop.f32.mrf.mxu0
      %v2793 = vpop.f32.mrf.mxu0
      %2794 = vdwg.mxu0
      %v2795 = vpack.c.bf16 %v2790, %v2790
      %s2796 = scalar_lea.vmem %s4, 960
      %v2797 = vld [vmem:[%s2796] sm:$0xf]
      %v2798 = vld [vmem:[%s2796 + $0x4] sm:$0xf]
      %v2799 = vld [vmem:[%s2796 + $0x8] sm:$0xf]
      %v2800 = vld [vmem:[%s2796 + $0xc] sm:$0xf]
      %v2801 = vld [vmem:[%s2796 + $0x10] sm:$0xf]
      %v2802 = vld [vmem:[%s2796 + $0x14] sm:$0xf]
      %v2803 = vld [vmem:[%s2796 + $0x18] sm:$0xf]
      %v2804 = vld [vmem:[%s2796 + $0x1c] sm:$0xf]
      %v2805 = vld [vmem:[%s2796 + $0x20] sm:$0xf]
      %v2806 = vld [vmem:[%s2796 + $0x24] sm:$0xf]
      %v2807 = vld [vmem:[%s2796 + $0x28] sm:$0xf]
      %v2808 = vld [vmem:[%s2796 + $0x2c] sm:$0xf]
      %v2809 = vld [vmem:[%s2796 + $0x30] sm:$0xf]
      %v2810 = vld [vmem:[%s2796 + $0x34] sm:$0xf]
      %v2811 = vld [vmem:[%s2796 + $0x38] sm:$0xf]
      %v2812 = vld [vmem:[%s2796 + $0x3c] sm:$0xf]
      %v2829 = vunpack.c.l.b16 %v2797
      %v2830 = vunpack.c.l.b16 %v2798
      %v2831 = vunpack.c.l.b16 %v2799
      %v2832 = vunpack.c.l.b16 %v2800
      %v2833 = vunpack.c.l.b16 %v2801
      %v2834 = vunpack.c.l.b16 %v2802
      %v2835 = vunpack.c.l.b16 %v2803
      %v2836 = vunpack.c.l.b16 %v2804
      %v2837 = vunpack.c.l.b16 %v2805
      %v2838 = vunpack.c.l.b16 %v2806
      %v2839 = vunpack.c.l.b16 %v2807
      %v2840 = vunpack.c.l.b16 %v2808
      %v2841 = vunpack.c.l.b16 %v2809
      %v2842 = vunpack.c.l.b16 %v2810
      %v2843 = vunpack.c.l.b16 %v2811
      %v2844 = vunpack.c.l.b16 %v2812
      %v2845 = vpack.c.b16 %v2830, %v2829
      %v2846 = vpack.c.b16 %v2832, %v2831
      %v2847 = vpack.c.b16 %v2834, %v2833
      %v2848 = vpack.c.b16 %v2836, %v2835
      %v2849 = vpack.c.b16 %v2838, %v2837
      %v2850 = vpack.c.b16 %v2840, %v2839
      %v2851 = vpack.c.b16 %v2842, %v2841
      %v2852 = vpack.c.b16 %v2844, %v2843
      %2861 = vmatprep.subr.bf16.mxu0 0
      %2862 = vmatpush1.bf16.msra.mxu0 %v2852
      %2863 = vmatprep.subr.bf16.mxu0 0
      %2864 = vmatpush1.bf16.msra.mxu0 %v2851
      %2865 = vmatprep.subr.bf16.mxu0 0
      %2866 = vmatpush1.bf16.msra.mxu0 %v2850
      %2867 = vmatprep.subr.bf16.mxu0 0
      %2868 = vmatpush1.bf16.msra.mxu0 %v2849
      %2869 = vmatprep.subr.bf16.mxu0 0
      %2870 = vmatpush1.bf16.msra.mxu0 %v2848
      %2871 = vmatprep.subr.bf16.mxu0 0
      %2872 = vmatpush1.bf16.msra.mxu0 %v2847
      %2873 = vmatprep.subr.bf16.mxu0 0
      %2874 = vmatpush1.bf16.msra.mxu0 %v2846
      %2875 = vmatprep.subr.bf16.mxu0 0
      %2876 = vmatpush1.bf16.msra.mxu0 %v2845
      %2877 = vmatprep.subr.bf16.mxu0 0
      %2878 = vmatpush2.bf16.msra.mxu0 0
      %2879 = vmatprep.subr.bf16.mxu0 0
      %2880 = vmatpush2.bf16.msra.mxu0 0
      %2881 = vmatprep.subr.bf16.mxu0 0
      %2882 = vmatpush2.bf16.msra.mxu0 0
      %2883 = vmatprep.subr.bf16.mxu0 0
      %2884 = vmatpush2.bf16.msra.mxu0 0
      %2885 = vmatprep.subr.bf16.mxu0 0
      %2886 = vmatpush2.bf16.msra.mxu0 0
      %2887 = vmatprep.subr.bf16.mxu0 0
      %2888 = vmatpush2.bf16.msra.mxu0 0
      %2889 = vmatprep.subr.bf16.mxu0 0
      %2890 = vmatpush2.bf16.msra.mxu0 0
      %2891 = vmatprep.subr.bf16.mxu0 0
      %2892 = vmatpush2.bf16.msra.mxu0 0
      %2893 = vmatprep.mubr.bf16.mxu0 0
      %2894 = vmatmul.mubr.bf16.gmra.mxu0 %v2795
      %v2895 = vpop.f32.mrf.mxu0
      %v2896 = vadd.f32 0.0, %v2895
      %v2897 = vpop.f32.mrf.mxu0
      %v2898 = vpop.f32.mrf.mxu0
      %v2899 = vpop.f32.mrf.mxu0
      %2900 = vdwg.mxu0
      %v2901 = vadd.f32 %v2752, %v2896
      %s2902 = scalar_lea.vmem %s3, 64
      %v2903 = vld [vmem:[%s2902] sm:$0xf]
      %2904 = vmatprep.subr.bf16.mxu0 0
      %2905 = vmatpush1.bf16.msra.mxu0 %v514
      %2906 = vmatprep.subr.bf16.mxu0 0
      %2907 = vmatpush1.bf16.msra.mxu0 %v513
      %2908 = vmatprep.subr.bf16.mxu0 0
      %2909 = vmatpush1.bf16.msra.mxu0 %v512
      %2910 = vmatprep.subr.bf16.mxu0 0
      %2911 = vmatpush1.bf16.msra.mxu0 %v511
      %2912 = vmatprep.subr.bf16.mxu0 0
      %2913 = vmatpush1.bf16.msra.mxu0 %v510
      %2914 = vmatprep.subr.bf16.mxu0 0
      %2915 = vmatpush1.bf16.msra.mxu0 %v509
      %2916 = vmatprep.subr.bf16.mxu0 0
      %2917 = vmatpush1.bf16.msra.mxu0 %v508
      %2918 = vmatprep.subr.bf16.mxu0 0
      %2919 = vmatpush1.bf16.msra.mxu0 %v507
      %2920 = vmatprep.subr.bf16.mxu0 0
      %2921 = vmatpush2.bf16.msra.mxu0 0
      %2922 = vmatprep.subr.bf16.mxu0 0
      %2923 = vmatpush2.bf16.msra.mxu0 0
      %2924 = vmatprep.subr.bf16.mxu0 0
      %2925 = vmatpush2.bf16.msra.mxu0 0
      %2926 = vmatprep.subr.bf16.mxu0 0
      %2927 = vmatpush2.bf16.msra.mxu0 0
      %2928 = vmatprep.subr.bf16.mxu0 0
      %2929 = vmatpush2.bf16.msra.mxu0 0
      %2930 = vmatprep.subr.bf16.mxu0 0
      %2931 = vmatpush2.bf16.msra.mxu0 0
      %2932 = vmatprep.subr.bf16.mxu0 0
      %2933 = vmatpush2.bf16.msra.mxu0 0
      %2934 = vmatprep.subr.bf16.mxu0 0
      %2935 = vmatpush2.bf16.msra.mxu0 0
      %2936 = vmatprep.mubr.bf16.mxu0 0
      %2937 = vmatmul.mubr.bf16.gmra.mxu0 %v2903
      %v2938 = vpop.f32.mrf.mxu0
      %v2939 = vadd.f32 0.0, %v2938
      %v2940 = vpop.f32.mrf.mxu0
      %v2941 = vpop.f32.mrf.mxu0
      %v2942 = vpop.f32.mrf.mxu0
      %2943 = vdwg.mxu0
      %v2944 = vpack.c.bf16 %v2939, %v2939
      %s2945 = scalar_lea.vmem %s4, 1024
      %v2946 = vld [vmem:[%s2945] sm:$0xf]
      %v2947 = vld [vmem:[%s2945 + $0x4] sm:$0xf]
      %v2948 = vld [vmem:[%s2945 + $0x8] sm:$0xf]
      %v2949 = vld [vmem:[%s2945 + $0xc] sm:$0xf]
      %v2950 = vld [vmem:[%s2945 + $0x10] sm:$0xf]
      %v2951 = vld [vmem:[%s2945 + $0x14] sm:$0xf]
      %v2952 = vld [vmem:[%s2945 + $0x18] sm:$0xf]
      %v2953 = vld [vmem:[%s2945 + $0x1c] sm:$0xf]
      %v2954 = vld [vmem:[%s2945 + $0x20] sm:$0xf]
      %v2955 = vld [vmem:[%s2945 + $0x24] sm:$0xf]
      %v2956 = vld [vmem:[%s2945 + $0x28] sm:$0xf]
      %v2957 = vld [vmem:[%s2945 + $0x2c] sm:$0xf]
      %v2958 = vld [vmem:[%s2945 + $0x30] sm:$0xf]
      %v2959 = vld [vmem:[%s2945 + $0x34] sm:$0xf]
      %v2960 = vld [vmem:[%s2945 + $0x38] sm:$0xf]
      %v2961 = vld [vmem:[%s2945 + $0x3c] sm:$0xf]
      %v2978 = vunpack.c.l.b16 %v2946
      %v2979 = vunpack.c.l.b16 %v2947
      %v2980 = vunpack.c.l.b16 %v2948
      %v2981 = vunpack.c.l.b16 %v2949
      %v2982 = vunpack.c.l.b16 %v2950
      %v2983 = vunpack.c.l.b16 %v2951
      %v2984 = vunpack.c.l.b16 %v2952
      %v2985 = vunpack.c.l.b16 %v2953
      %v2986 = vunpack.c.l.b16 %v2954
      %v2987 = vunpack.c.l.b16 %v2955
      %v2988 = vunpack.c.l.b16 %v2956
      %v2989 = vunpack.c.l.b16 %v2957
      %v2990 = vunpack.c.l.b16 %v2958
      %v2991 = vunpack.c.l.b16 %v2959
      %v2992 = vunpack.c.l.b16 %v2960
      %v2993 = vunpack.c.l.b16 %v2961
      %v2994 = vpack.c.b16 %v2979, %v2978
      %v2995 = vpack.c.b16 %v2981, %v2980
      %v2996 = vpack.c.b16 %v2983, %v2982
      %v2997 = vpack.c.b16 %v2985, %v2984
      %v2998 = vpack.c.b16 %v2987, %v2986
      %v2999 = vpack.c.b16 %v2989, %v2988
      %v3000 = vpack.c.b16 %v2991, %v2990
      %v3001 = vpack.c.b16 %v2993, %v2992
      %3010 = vmatprep.subr.bf16.mxu0 0
      %3011 = vmatpush1.bf16.msra.mxu0 %v3001
      %3012 = vmatprep.subr.bf16.mxu0 0
      %3013 = vmatpush1.bf16.msra.mxu0 %v3000
      %3014 = vmatprep.subr.bf16.mxu0 0
      %3015 = vmatpush1.bf16.msra.mxu0 %v2999
      %3016 = vmatprep.subr.bf16.mxu0 0
      %3017 = vmatpush1.bf16.msra.mxu0 %v2998
      %3018 = vmatprep.subr.bf16.mxu0 0
      %3019 = vmatpush1.bf16.msra.mxu0 %v2997
      %3020 = vmatprep.subr.bf16.mxu0 0
      %3021 = vmatpush1.bf16.msra.mxu0 %v2996
      %3022 = vmatprep.subr.bf16.mxu0 0
      %3023 = vmatpush1.bf16.msra.mxu0 %v2995
      %3024 = vmatprep.subr.bf16.mxu0 0
      %3025 = vmatpush1.bf16.msra.mxu0 %v2994
      %3026 = vmatprep.subr.bf16.mxu0 0
      %3027 = vmatpush2.bf16.msra.mxu0 0
      %3028 = vmatprep.subr.bf16.mxu0 0
      %3029 = vmatpush2.bf16.msra.mxu0 0
      %3030 = vmatprep.subr.bf16.mxu0 0
      %3031 = vmatpush2.bf16.msra.mxu0 0
      %3032 = vmatprep.subr.bf16.mxu0 0
      %3033 = vmatpush2.bf16.msra.mxu0 0
      %3034 = vmatprep.subr.bf16.mxu0 0
      %3035 = vmatpush2.bf16.msra.mxu0 0
      %3036 = vmatprep.subr.bf16.mxu0 0
      %3037 = vmatpush2.bf16.msra.mxu0 0
      %3038 = vmatprep.subr.bf16.mxu0 0
      %3039 = vmatpush2.bf16.msra.mxu0 0
      %3040 = vmatprep.subr.bf16.mxu0 0
      %3041 = vmatpush2.bf16.msra.mxu0 0
      %3042 = vmatprep.mubr.bf16.mxu0 0
      %3043 = vmatmul.mubr.bf16.gmra.mxu0 %v2944
      %v3044 = vpop.f32.mrf.mxu0
      %v3045 = vadd.f32 0.0, %v3044
      %v3046 = vpop.f32.mrf.mxu0
      %v3047 = vpop.f32.mrf.mxu0
      %v3048 = vpop.f32.mrf.mxu0
      %3049 = vdwg.mxu0
      %v3050 = vadd.f32 %v2901, %v3045
      %s3051 = scalar_lea.vmem %s3, 68
      %v3052 = vld [vmem:[%s3051] sm:$0xf]
      %3053 = vmatprep.subr.bf16.mxu0 0
      %3054 = vmatpush1.bf16.msra.mxu0 %v514
      %3055 = vmatprep.subr.bf16.mxu0 0
      %3056 = vmatpush1.bf16.msra.mxu0 %v513
      %3057 = vmatprep.subr.bf16.mxu0 0
      %3058 = vmatpush1.bf16.msra.mxu0 %v512
      %3059 = vmatprep.subr.bf16.mxu0 0
      %3060 = vmatpush1.bf16.msra.mxu0 %v511
      %3061 = vmatprep.subr.bf16.mxu0 0
      %3062 = vmatpush1.bf16.msra.mxu0 %v510
      %3063 = vmatprep.subr.bf16.mxu0 0
      %3064 = vmatpush1.bf16.msra.mxu0 %v509
      %3065 = vmatprep.subr.bf16.mxu0 0
      %3066 = vmatpush1.bf16.msra.mxu0 %v508
      %3067 = vmatprep.subr.bf16.mxu0 0
      %3068 = vmatpush1.bf16.msra.mxu0 %v507
      %3069 = vmatprep.subr.bf16.mxu0 0
      %3070 = vmatpush2.bf16.msra.mxu0 0
      %3071 = vmatprep.subr.bf16.mxu0 0
      %3072 = vmatpush2.bf16.msra.mxu0 0
      %3073 = vmatprep.subr.bf16.mxu0 0
      %3074 = vmatpush2.bf16.msra.mxu0 0
      %3075 = vmatprep.subr.bf16.mxu0 0
      %3076 = vmatpush2.bf16.msra.mxu0 0
      %3077 = vmatprep.subr.bf16.mxu0 0
      %3078 = vmatpush2.bf16.msra.mxu0 0
      %3079 = vmatprep.subr.bf16.mxu0 0
      %3080 = vmatpush2.bf16.msra.mxu0 0
      %3081 = vmatprep.subr.bf16.mxu0 0
      %3082 = vmatpush2.bf16.msra.mxu0 0
      %3083 = vmatprep.subr.bf16.mxu0 0
      %3084 = vmatpush2.bf16.msra.mxu0 0
      %3085 = vmatprep.mubr.bf16.mxu0 0
      %3086 = vmatmul.mubr.bf16.gmra.mxu0 %v3052
      %v3087 = vpop.f32.mrf.mxu0
      %v3088 = vadd.f32 0.0, %v3087
      %v3089 = vpop.f32.mrf.mxu0
      %v3090 = vpop.f32.mrf.mxu0
      %v3091 = vpop.f32.mrf.mxu0
      %3092 = vdwg.mxu0
      %v3093 = vpack.c.bf16 %v3088, %v3088
      %s3094 = scalar_lea.vmem %s4, 1088
      %v3095 = vld [vmem:[%s3094] sm:$0xf]
      %v3096 = vld [vmem:[%s3094 + $0x4] sm:$0xf]
      %v3097 = vld [vmem:[%s3094 + $0x8] sm:$0xf]
      %v3098 = vld [vmem:[%s3094 + $0xc] sm:$0xf]
      %v3099 = vld [vmem:[%s3094 + $0x10] sm:$0xf]
      %v3100 = vld [vmem:[%s3094 + $0x14] sm:$0xf]
      %v3101 = vld [vmem:[%s3094 + $0x18] sm:$0xf]
      %v3102 = vld [vmem:[%s3094 + $0x1c] sm:$0xf]
      %v3103 = vld [vmem:[%s3094 + $0x20] sm:$0xf]
      %v3104 = vld [vmem:[%s3094 + $0x24] sm:$0xf]
      %v3105 = vld [vmem:[%s3094 + $0x28] sm:$0xf]
      %v3106 = vld [vmem:[%s3094 + $0x2c] sm:$0xf]
      %v3107 = vld [vmem:[%s3094 + $0x30] sm:$0xf]
      %v3108 = vld [vmem:[%s3094 + $0x34] sm:$0xf]
      %v3109 = vld [vmem:[%s3094 + $0x38] sm:$0xf]
      %v3110 = vld [vmem:[%s3094 + $0x3c] sm:$0xf]
      %v3127 = vunpack.c.l.b16 %v3095
      %v3128 = vunpack.c.l.b16 %v3096
      %v3129 = vunpack.c.l.b16 %v3097
      %v3130 = vunpack.c.l.b16 %v3098
      %v3131 = vunpack.c.l.b16 %v3099
      %v3132 = vunpack.c.l.b16 %v3100
      %v3133 = vunpack.c.l.b16 %v3101
      %v3134 = vunpack.c.l.b16 %v3102
      %v3135 = vunpack.c.l.b16 %v3103
      %v3136 = vunpack.c.l.b16 %v3104
      %v3137 = vunpack.c.l.b16 %v3105
      %v3138 = vunpack.c.l.b16 %v3106
      %v3139 = vunpack.c.l.b16 %v3107
      %v3140 = vunpack.c.l.b16 %v3108
      %v3141 = vunpack.c.l.b16 %v3109
      %v3142 = vunpack.c.l.b16 %v3110
      %v3143 = vpack.c.b16 %v3128, %v3127
      %v3144 = vpack.c.b16 %v3130, %v3129
      %v3145 = vpack.c.b16 %v3132, %v3131
      %v3146 = vpack.c.b16 %v3134, %v3133
      %v3147 = vpack.c.b16 %v3136, %v3135
      %v3148 = vpack.c.b16 %v3138, %v3137
      %v3149 = vpack.c.b16 %v3140, %v3139
      %v3150 = vpack.c.b16 %v3142, %v3141
      %3159 = vmatprep.subr.bf16.mxu0 0
      %3160 = vmatpush1.bf16.msra.mxu0 %v3150
      %3161 = vmatprep.subr.bf16.mxu0 0
      %3162 = vmatpush1.bf16.msra.mxu0 %v3149
      %3163 = vmatprep.subr.bf16.mxu0 0
      %3164 = vmatpush1.bf16.msra.mxu0 %v3148
      %3165 = vmatprep.subr.bf16.mxu0 0
      %3166 = vmatpush1.bf16.msra.mxu0 %v3147
      %3167 = vmatprep.subr.bf16.mxu0 0
      %3168 = vmatpush1.bf16.msra.mxu0 %v3146
      %3169 = vmatprep.subr.bf16.mxu0 0
      %3170 = vmatpush1.bf16.msra.mxu0 %v3145
      %3171 = vmatprep.subr.bf16.mxu0 0
      %3172 = vmatpush1.bf16.msra.mxu0 %v3144
      %3173 = vmatprep.subr.bf16.mxu0 0
      %3174 = vmatpush1.bf16.msra.mxu0 %v3143
      %3175 = vmatprep.subr.bf16.mxu0 0
      %3176 = vmatpush2.bf16.msra.mxu0 0
      %3177 = vmatprep.subr.bf16.mxu0 0
      %3178 = vmatpush2.bf16.msra.mxu0 0
      %3179 = vmatprep.subr.bf16.mxu0 0
      %3180 = vmatpush2.bf16.msra.mxu0 0
      %3181 = vmatprep.subr.bf16.mxu0 0
      %3182 = vmatpush2.bf16.msra.mxu0 0
      %3183 = vmatprep.subr.bf16.mxu0 0
      %3184 = vmatpush2.bf16.msra.mxu0 0
      %3185 = vmatprep.subr.bf16.mxu0 0
      %3186 = vmatpush2.bf16.msra.mxu0 0
      %3187 = vmatprep.subr.bf16.mxu0 0
      %3188 = vmatpush2.bf16.msra.mxu0 0
      %3189 = vmatprep.subr.bf16.mxu0 0
      %3190 = vmatpush2.bf16.msra.mxu0 0
      %3191 = vmatprep.mubr.bf16.mxu0 0
      %3192 = vmatmul.mubr.bf16.gmra.mxu0 %v3093
      %v3193 = vpop.f32.mrf.mxu0
      %v3194 = vadd.f32 0.0, %v3193
      %v3195 = vpop.f32.mrf.mxu0
      %v3196 = vpop.f32.mrf.mxu0
      %v3197 = vpop.f32.mrf.mxu0
      %3198 = vdwg.mxu0
      %v3199 = vadd.f32 %v3050, %v3194
      %s3200 = scalar_lea.vmem %s3, 72
      %v3201 = vld [vmem:[%s3200] sm:$0xf]
      %3202 = vmatprep.subr.bf16.mxu0 0
      %3203 = vmatpush1.bf16.msra.mxu0 %v514
      %3204 = vmatprep.subr.bf16.mxu0 0
      %3205 = vmatpush1.bf16.msra.mxu0 %v513
      %3206 = vmatprep.subr.bf16.mxu0 0
      %3207 = vmatpush1.bf16.msra.mxu0 %v512
      %3208 = vmatprep.subr.bf16.mxu0 0
      %3209 = vmatpush1.bf16.msra.mxu0 %v511
      %3210 = vmatprep.subr.bf16.mxu0 0
      %3211 = vmatpush1.bf16.msra.mxu0 %v510
      %3212 = vmatprep.subr.bf16.mxu0 0
      %3213 = vmatpush1.bf16.msra.mxu0 %v509
      %3214 = vmatprep.subr.bf16.mxu0 0
      %3215 = vmatpush1.bf16.msra.mxu0 %v508
      %3216 = vmatprep.subr.bf16.mxu0 0
      %3217 = vmatpush1.bf16.msra.mxu0 %v507
      %3218 = vmatprep.subr.bf16.mxu0 0
      %3219 = vmatpush2.bf16.msra.mxu0 0
      %3220 = vmatprep.subr.bf16.mxu0 0
      %3221 = vmatpush2.bf16.msra.mxu0 0
      %3222 = vmatprep.subr.bf16.mxu0 0
      %3223 = vmatpush2.bf16.msra.mxu0 0
      %3224 = vmatprep.subr.bf16.mxu0 0
      %3225 = vmatpush2.bf16.msra.mxu0 0
      %3226 = vmatprep.subr.bf16.mxu0 0
      %3227 = vmatpush2.bf16.msra.mxu0 0
      %3228 = vmatprep.subr.bf16.mxu0 0
      %3229 = vmatpush2.bf16.msra.mxu0 0
      %3230 = vmatprep.subr.bf16.mxu0 0
      %3231 = vmatpush2.bf16.msra.mxu0 0
      %3232 = vmatprep.subr.bf16.mxu0 0
      %3233 = vmatpush2.bf16.msra.mxu0 0
      %3234 = vmatprep.mubr.bf16.mxu0 0
      %3235 = vmatmul.mubr.bf16.gmra.mxu0 %v3201
      %v3236 = vpop.f32.mrf.mxu0
      %v3237 = vadd.f32 0.0, %v3236
      %v3238 = vpop.f32.mrf.mxu0
      %v3239 = vpop.f32.mrf.mxu0
      %v3240 = vpop.f32.mrf.mxu0
      %3241 = vdwg.mxu0
      %v3242 = vpack.c.bf16 %v3237, %v3237
      %s3243 = scalar_lea.vmem %s4, 1152
      %v3244 = vld [vmem:[%s3243] sm:$0xf]
      %v3245 = vld [vmem:[%s3243 + $0x4] sm:$0xf]
      %v3246 = vld [vmem:[%s3243 + $0x8] sm:$0xf]
      %v3247 = vld [vmem:[%s3243 + $0xc] sm:$0xf]
      %v3248 = vld [vmem:[%s3243 + $0x10] sm:$0xf]
      %v3249 = vld [vmem:[%s3243 + $0x14] sm:$0xf]
      %v3250 = vld [vmem:[%s3243 + $0x18] sm:$0xf]
      %v3251 = vld [vmem:[%s3243 + $0x1c] sm:$0xf]
      %v3252 = vld [vmem:[%s3243 + $0x20] sm:$0xf]
      %v3253 = vld [vmem:[%s3243 + $0x24] sm:$0xf]
      %v3254 = vld [vmem:[%s3243 + $0x28] sm:$0xf]
      %v3255 = vld [vmem:[%s3243 + $0x2c] sm:$0xf]
      %v3256 = vld [vmem:[%s3243 + $0x30] sm:$0xf]
      %v3257 = vld [vmem:[%s3243 + $0x34] sm:$0xf]
      %v3258 = vld [vmem:[%s3243 + $0x38] sm:$0xf]
      %v3259 = vld [vmem:[%s3243 + $0x3c] sm:$0xf]
      %v3276 = vunpack.c.l.b16 %v3244
      %v3277 = vunpack.c.l.b16 %v3245
      %v3278 = vunpack.c.l.b16 %v3246
      %v3279 = vunpack.c.l.b16 %v3247
      %v3280 = vunpack.c.l.b16 %v3248
      %v3281 = vunpack.c.l.b16 %v3249
      %v3282 = vunpack.c.l.b16 %v3250
      %v3283 = vunpack.c.l.b16 %v3251
      %v3284 = vunpack.c.l.b16 %v3252
      %v3285 = vunpack.c.l.b16 %v3253
      %v3286 = vunpack.c.l.b16 %v3254
      %v3287 = vunpack.c.l.b16 %v3255
      %v3288 = vunpack.c.l.b16 %v3256
      %v3289 = vunpack.c.l.b16 %v3257
      %v3290 = vunpack.c.l.b16 %v3258
      %v3291 = vunpack.c.l.b16 %v3259
      %v3292 = vpack.c.b16 %v3277, %v3276
      %v3293 = vpack.c.b16 %v3279, %v3278
      %v3294 = vpack.c.b16 %v3281, %v3280
      %v3295 = vpack.c.b16 %v3283, %v3282
      %v3296 = vpack.c.b16 %v3285, %v3284
      %v3297 = vpack.c.b16 %v3287, %v3286
      %v3298 = vpack.c.b16 %v3289, %v3288
      %v3299 = vpack.c.b16 %v3291, %v3290
      %3308 = vmatprep.subr.bf16.mxu0 0
      %3309 = vmatpush1.bf16.msra.mxu0 %v3299
      %3310 = vmatprep.subr.bf16.mxu0 0
      %3311 = vmatpush1.bf16.msra.mxu0 %v3298
      %3312 = vmatprep.subr.bf16.mxu0 0
      %3313 = vmatpush1.bf16.msra.mxu0 %v3297
      %3314 = vmatprep.subr.bf16.mxu0 0
      %3315 = vmatpush1.bf16.msra.mxu0 %v3296
      %3316 = vmatprep.subr.bf16.mxu0 0
      %3317 = vmatpush1.bf16.msra.mxu0 %v3295
      %3318 = vmatprep.subr.bf16.mxu0 0
      %3319 = vmatpush1.bf16.msra.mxu0 %v3294
      %3320 = vmatprep.subr.bf16.mxu0 0
      %3321 = vmatpush1.bf16.msra.mxu0 %v3293
      %3322 = vmatprep.subr.bf16.mxu0 0
      %3323 = vmatpush1.bf16.msra.mxu0 %v3292
      %3324 = vmatprep.subr.bf16.mxu0 0
      %3325 = vmatpush2.bf16.msra.mxu0 0
      %3326 = vmatprep.subr.bf16.mxu0 0
      %3327 = vmatpush2.bf16.msra.mxu0 0
      %3328 = vmatprep.subr.bf16.mxu0 0
      %3329 = vmatpush2.bf16.msra.mxu0 0
      %3330 = vmatprep.subr.bf16.mxu0 0
      %3331 = vmatpush2.bf16.msra.mxu0 0
      %3332 = vmatprep.subr.bf16.mxu0 0
      %3333 = vmatpush2.bf16.msra.mxu0 0
      %3334 = vmatprep.subr.bf16.mxu0 0
      %3335 = vmatpush2.bf16.msra.mxu0 0
      %3336 = vmatprep.subr.bf16.mxu0 0
      %3337 = vmatpush2.bf16.msra.mxu0 0
      %3338 = vmatprep.subr.bf16.mxu0 0
      %3339 = vmatpush2.bf16.msra.mxu0 0
      %3340 = vmatprep.mubr.bf16.mxu0 0
      %3341 = vmatmul.mubr.bf16.gmra.mxu0 %v3242
      %v3342 = vpop.f32.mrf.mxu0
      %v3343 = vadd.f32 0.0, %v3342
      %v3344 = vpop.f32.mrf.mxu0
      %v3345 = vpop.f32.mrf.mxu0
      %v3346 = vpop.f32.mrf.mxu0
      %3347 = vdwg.mxu0
      %v3348 = vadd.f32 %v3199, %v3343
      %s3349 = scalar_lea.vmem %s3, 76
      %v3350 = vld [vmem:[%s3349] sm:$0xf]
      %3351 = vmatprep.subr.bf16.mxu0 0
      %3352 = vmatpush1.bf16.msra.mxu0 %v514
      %3353 = vmatprep.subr.bf16.mxu0 0
      %3354 = vmatpush1.bf16.msra.mxu0 %v513
      %3355 = vmatprep.subr.bf16.mxu0 0
      %3356 = vmatpush1.bf16.msra.mxu0 %v512
      %3357 = vmatprep.subr.bf16.mxu0 0
      %3358 = vmatpush1.bf16.msra.mxu0 %v511
      %3359 = vmatprep.subr.bf16.mxu0 0
      %3360 = vmatpush1.bf16.msra.mxu0 %v510
      %3361 = vmatprep.subr.bf16.mxu0 0
      %3362 = vmatpush1.bf16.msra.mxu0 %v509
      %3363 = vmatprep.subr.bf16.mxu0 0
      %3364 = vmatpush1.bf16.msra.mxu0 %v508
      %3365 = vmatprep.subr.bf16.mxu0 0
      %3366 = vmatpush1.bf16.msra.mxu0 %v507
      %3367 = vmatprep.subr.bf16.mxu0 0
      %3368 = vmatpush2.bf16.msra.mxu0 0
      %3369 = vmatprep.subr.bf16.mxu0 0
      %3370 = vmatpush2.bf16.msra.mxu0 0
      %3371 = vmatprep.subr.bf16.mxu0 0
      %3372 = vmatpush2.bf16.msra.mxu0 0
      %3373 = vmatprep.subr.bf16.mxu0 0
      %3374 = vmatpush2.bf16.msra.mxu0 0
      %3375 = vmatprep.subr.bf16.mxu0 0
      %3376 = vmatpush2.bf16.msra.mxu0 0
      %3377 = vmatprep.subr.bf16.mxu0 0
      %3378 = vmatpush2.bf16.msra.mxu0 0
      %3379 = vmatprep.subr.bf16.mxu0 0
      %3380 = vmatpush2.bf16.msra.mxu0 0
      %3381 = vmatprep.subr.bf16.mxu0 0
      %3382 = vmatpush2.bf16.msra.mxu0 0
      %3383 = vmatprep.mubr.bf16.mxu0 0
      %3384 = vmatmul.mubr.bf16.gmra.mxu0 %v3350
      %v3385 = vpop.f32.mrf.mxu0
      %v3386 = vadd.f32 0.0, %v3385
      %v3387 = vpop.f32.mrf.mxu0
      %v3388 = vpop.f32.mrf.mxu0
      %v3389 = vpop.f32.mrf.mxu0
      %3390 = vdwg.mxu0
      %v3391 = vpack.c.bf16 %v3386, %v3386
      %s3392 = scalar_lea.vmem %s4, 1216
      %v3393 = vld [vmem:[%s3392] sm:$0xf]
      %v3394 = vld [vmem:[%s3392 + $0x4] sm:$0xf]
      %v3395 = vld [vmem:[%s3392 + $0x8] sm:$0xf]
      %v3396 = vld [vmem:[%s3392 + $0xc] sm:$0xf]
      %v3397 = vld [vmem:[%s3392 + $0x10] sm:$0xf]
      %v3398 = vld [vmem:[%s3392 + $0x14] sm:$0xf]
      %v3399 = vld [vmem:[%s3392 + $0x18] sm:$0xf]
      %v3400 = vld [vmem:[%s3392 + $0x1c] sm:$0xf]
      %v3401 = vld [vmem:[%s3392 + $0x20] sm:$0xf]
      %v3402 = vld [vmem:[%s3392 + $0x24] sm:$0xf]
      %v3403 = vld [vmem:[%s3392 + $0x28] sm:$0xf]
      %v3404 = vld [vmem:[%s3392 + $0x2c] sm:$0xf]
      %v3405 = vld [vmem:[%s3392 + $0x30] sm:$0xf]
      %v3406 = vld [vmem:[%s3392 + $0x34] sm:$0xf]
      %v3407 = vld [vmem:[%s3392 + $0x38] sm:$0xf]
      %v3408 = vld [vmem:[%s3392 + $0x3c] sm:$0xf]
      %v3425 = vunpack.c.l.b16 %v3393
      %v3426 = vunpack.c.l.b16 %v3394
      %v3427 = vunpack.c.l.b16 %v3395
      %v3428 = vunpack.c.l.b16 %v3396
      %v3429 = vunpack.c.l.b16 %v3397
      %v3430 = vunpack.c.l.b16 %v3398
      %v3431 = vunpack.c.l.b16 %v3399
      %v3432 = vunpack.c.l.b16 %v3400
      %v3433 = vunpack.c.l.b16 %v3401
      %v3434 = vunpack.c.l.b16 %v3402
      %v3435 = vunpack.c.l.b16 %v3403
      %v3436 = vunpack.c.l.b16 %v3404
      %v3437 = vunpack.c.l.b16 %v3405
      %v3438 = vunpack.c.l.b16 %v3406
      %v3439 = vunpack.c.l.b16 %v3407
      %v3440 = vunpack.c.l.b16 %v3408
      %v3441 = vpack.c.b16 %v3426, %v3425
      %v3442 = vpack.c.b16 %v3428, %v3427
      %v3443 = vpack.c.b16 %v3430, %v3429
      %v3444 = vpack.c.b16 %v3432, %v3431
      %v3445 = vpack.c.b16 %v3434, %v3433
      %v3446 = vpack.c.b16 %v3436, %v3435
      %v3447 = vpack.c.b16 %v3438, %v3437
      %v3448 = vpack.c.b16 %v3440, %v3439
      %3457 = vmatprep.subr.bf16.mxu0 0
      %3458 = vmatpush1.bf16.msra.mxu0 %v3448
      %3459 = vmatprep.subr.bf16.mxu0 0
      %3460 = vmatpush1.bf16.msra.mxu0 %v3447
      %3461 = vmatprep.subr.bf16.mxu0 0
      %3462 = vmatpush1.bf16.msra.mxu0 %v3446
      %3463 = vmatprep.subr.bf16.mxu0 0
      %3464 = vmatpush1.bf16.msra.mxu0 %v3445
      %3465 = vmatprep.subr.bf16.mxu0 0
      %3466 = vmatpush1.bf16.msra.mxu0 %v3444
      %3467 = vmatprep.subr.bf16.mxu0 0
      %3468 = vmatpush1.bf16.msra.mxu0 %v3443
      %3469 = vmatprep.subr.bf16.mxu0 0
      %3470 = vmatpush1.bf16.msra.mxu0 %v3442
      %3471 = vmatprep.subr.bf16.mxu0 0
      %3472 = vmatpush1.bf16.msra.mxu0 %v3441
      %3473 = vmatprep.subr.bf16.mxu0 0
      %3474 = vmatpush2.bf16.msra.mxu0 0
      %3475 = vmatprep.subr.bf16.mxu0 0
      %3476 = vmatpush2.bf16.msra.mxu0 0
      %3477 = vmatprep.subr.bf16.mxu0 0
      %3478 = vmatpush2.bf16.msra.mxu0 0
      %3479 = vmatprep.subr.bf16.mxu0 0
      %3480 = vmatpush2.bf16.msra.mxu0 0
      %3481 = vmatprep.subr.bf16.mxu0 0
      %3482 = vmatpush2.bf16.msra.mxu0 0
      %3483 = vmatprep.subr.bf16.mxu0 0
      %3484 = vmatpush2.bf16.msra.mxu0 0
      %3485 = vmatprep.subr.bf16.mxu0 0
      %3486 = vmatpush2.bf16.msra.mxu0 0
      %3487 = vmatprep.subr.bf16.mxu0 0
      %3488 = vmatpush2.bf16.msra.mxu0 0
      %3489 = vmatprep.mubr.bf16.mxu0 0
      %3490 = vmatmul.mubr.bf16.gmra.mxu0 %v3391
      %v3491 = vpop.f32.mrf.mxu0
      %v3492 = vadd.f32 0.0, %v3491
      %v3493 = vpop.f32.mrf.mxu0
      %v3494 = vpop.f32.mrf.mxu0
      %v3495 = vpop.f32.mrf.mxu0
      %3496 = vdwg.mxu0
      %v3497 = vadd.f32 %v3348, %v3492
      %s3498 = scalar_lea.vmem %s3, 80
      %v3499 = vld [vmem:[%s3498] sm:$0xf]
      %3500 = vmatprep.subr.bf16.mxu0 0
      %3501 = vmatpush1.bf16.msra.mxu0 %v514
      %3502 = vmatprep.subr.bf16.mxu0 0
      %3503 = vmatpush1.bf16.msra.mxu0 %v513
      %3504 = vmatprep.subr.bf16.mxu0 0
      %3505 = vmatpush1.bf16.msra.mxu0 %v512
      %3506 = vmatprep.subr.bf16.mxu0 0
      %3507 = vmatpush1.bf16.msra.mxu0 %v511
      %3508 = vmatprep.subr.bf16.mxu0 0
      %3509 = vmatpush1.bf16.msra.mxu0 %v510
      %3510 = vmatprep.subr.bf16.mxu0 0
      %3511 = vmatpush1.bf16.msra.mxu0 %v509
      %3512 = vmatprep.subr.bf16.mxu0 0
      %3513 = vmatpush1.bf16.msra.mxu0 %v508
      %3514 = vmatprep.subr.bf16.mxu0 0
      %3515 = vmatpush1.bf16.msra.mxu0 %v507
      %3516 = vmatprep.subr.bf16.mxu0 0
      %3517 = vmatpush2.bf16.msra.mxu0 0
      %3518 = vmatprep.subr.bf16.mxu0 0
      %3519 = vmatpush2.bf16.msra.mxu0 0
      %3520 = vmatprep.subr.bf16.mxu0 0
      %3521 = vmatpush2.bf16.msra.mxu0 0
      %3522 = vmatprep.subr.bf16.mxu0 0
      %3523 = vmatpush2.bf16.msra.mxu0 0
      %3524 = vmatprep.subr.bf16.mxu0 0
      %3525 = vmatpush2.bf16.msra.mxu0 0
      %3526 = vmatprep.subr.bf16.mxu0 0
      %3527 = vmatpush2.bf16.msra.mxu0 0
      %3528 = vmatprep.subr.bf16.mxu0 0
      %3529 = vmatpush2.bf16.msra.mxu0 0
      %3530 = vmatprep.subr.bf16.mxu0 0
      %3531 = vmatpush2.bf16.msra.mxu0 0
      %3532 = vmatprep.mubr.bf16.mxu0 0
      %3533 = vmatmul.mubr.bf16.gmra.mxu0 %v3499
      %v3534 = vpop.f32.mrf.mxu0
      %v3535 = vadd.f32 0.0, %v3534
      %v3536 = vpop.f32.mrf.mxu0
      %v3537 = vpop.f32.mrf.mxu0
      %v3538 = vpop.f32.mrf.mxu0
      %3539 = vdwg.mxu0
      %v3540 = vpack.c.bf16 %v3535, %v3535
      %s3541 = scalar_lea.vmem %s4, 1280
      %v3542 = vld [vmem:[%s3541] sm:$0xf]
      %v3543 = vld [vmem:[%s3541 + $0x4] sm:$0xf]
      %v3544 = vld [vmem:[%s3541 + $0x8] sm:$0xf]
      %v3545 = vld [vmem:[%s3541 + $0xc] sm:$0xf]
      %v3546 = vld [vmem:[%s3541 + $0x10] sm:$0xf]
      %v3547 = vld [vmem:[%s3541 + $0x14] sm:$0xf]
      %v3548 = vld [vmem:[%s3541 + $0x18] sm:$0xf]
      %v3549 = vld [vmem:[%s3541 + $0x1c] sm:$0xf]
      %v3550 = vld [vmem:[%s3541 + $0x20] sm:$0xf]
      %v3551 = vld [vmem:[%s3541 + $0x24] sm:$0xf]
      %v3552 = vld [vmem:[%s3541 + $0x28] sm:$0xf]
      %v3553 = vld [vmem:[%s3541 + $0x2c] sm:$0xf]
      %v3554 = vld [vmem:[%s3541 + $0x30] sm:$0xf]
      %v3555 = vld [vmem:[%s3541 + $0x34] sm:$0xf]
      %v3556 = vld [vmem:[%s3541 + $0x38] sm:$0xf]
      %v3557 = vld [vmem:[%s3541 + $0x3c] sm:$0xf]
      %v3574 = vunpack.c.l.b16 %v3542
      %v3575 = vunpack.c.l.b16 %v3543
      %v3576 = vunpack.c.l.b16 %v3544
      %v3577 = vunpack.c.l.b16 %v3545
      %v3578 = vunpack.c.l.b16 %v3546
      %v3579 = vunpack.c.l.b16 %v3547
      %v3580 = vunpack.c.l.b16 %v3548
      %v3581 = vunpack.c.l.b16 %v3549
      %v3582 = vunpack.c.l.b16 %v3550
      %v3583 = vunpack.c.l.b16 %v3551
      %v3584 = vunpack.c.l.b16 %v3552
      %v3585 = vunpack.c.l.b16 %v3553
      %v3586 = vunpack.c.l.b16 %v3554
      %v3587 = vunpack.c.l.b16 %v3555
      %v3588 = vunpack.c.l.b16 %v3556
      %v3589 = vunpack.c.l.b16 %v3557
      %v3590 = vpack.c.b16 %v3575, %v3574
      %v3591 = vpack.c.b16 %v3577, %v3576
      %v3592 = vpack.c.b16 %v3579, %v3578
      %v3593 = vpack.c.b16 %v3581, %v3580
      %v3594 = vpack.c.b16 %v3583, %v3582
      %v3595 = vpack.c.b16 %v3585, %v3584
      %v3596 = vpack.c.b16 %v3587, %v3586
      %v3597 = vpack.c.b16 %v3589, %v3588
      %3606 = vmatprep.subr.bf16.mxu0 0
      %3607 = vmatpush1.bf16.msra.mxu0 %v3597
      %3608 = vmatprep.subr.bf16.mxu0 0
      %3609 = vmatpush1.bf16.msra.mxu0 %v3596
      %3610 = vmatprep.subr.bf16.mxu0 0
      %3611 = vmatpush1.bf16.msra.mxu0 %v3595
      %3612 = vmatprep.subr.bf16.mxu0 0
      %3613 = vmatpush1.bf16.msra.mxu0 %v3594
      %3614 = vmatprep.subr.bf16.mxu0 0
      %3615 = vmatpush1.bf16.msra.mxu0 %v3593
      %3616 = vmatprep.subr.bf16.mxu0 0
      %3617 = vmatpush1.bf16.msra.mxu0 %v3592
      %3618 = vmatprep.subr.bf16.mxu0 0
      %3619 = vmatpush1.bf16.msra.mxu0 %v3591
      %3620 = vmatprep.subr.bf16.mxu0 0
      %3621 = vmatpush1.bf16.msra.mxu0 %v3590
      %3622 = vmatprep.subr.bf16.mxu0 0
      %3623 = vmatpush2.bf16.msra.mxu0 0
      %3624 = vmatprep.subr.bf16.mxu0 0
      %3625 = vmatpush2.bf16.msra.mxu0 0
      %3626 = vmatprep.subr.bf16.mxu0 0
      %3627 = vmatpush2.bf16.msra.mxu0 0
      %3628 = vmatprep.subr.bf16.mxu0 0
      %3629 = vmatpush2.bf16.msra.mxu0 0
      %3630 = vmatprep.subr.bf16.mxu0 0
      %3631 = vmatpush2.bf16.msra.mxu0 0
      %3632 = vmatprep.subr.bf16.mxu0 0
      %3633 = vmatpush2.bf16.msra.mxu0 0
      %3634 = vmatprep.subr.bf16.mxu0 0
      %3635 = vmatpush2.bf16.msra.mxu0 0
      %3636 = vmatprep.subr.bf16.mxu0 0
      %3637 = vmatpush2.bf16.msra.mxu0 0
      %3638 = vmatprep.mubr.bf16.mxu0 0
      %3639 = vmatmul.mubr.bf16.gmra.mxu0 %v3540
      %v3640 = vpop.f32.mrf.mxu0
      %v3641 = vadd.f32 0.0, %v3640
      %v3642 = vpop.f32.mrf.mxu0
      %v3643 = vpop.f32.mrf.mxu0
      %v3644 = vpop.f32.mrf.mxu0
      %3645 = vdwg.mxu0
      %v3646 = vadd.f32 %v3497, %v3641
      %s3647 = scalar_lea.vmem %s3, 84
      %v3648 = vld [vmem:[%s3647] sm:$0xf]
      %3649 = vmatprep.subr.bf16.mxu0 0
      %3650 = vmatpush1.bf16.msra.mxu0 %v514
      %3651 = vmatprep.subr.bf16.mxu0 0
      %3652 = vmatpush1.bf16.msra.mxu0 %v513
      %3653 = vmatprep.subr.bf16.mxu0 0
      %3654 = vmatpush1.bf16.msra.mxu0 %v512
      %3655 = vmatprep.subr.bf16.mxu0 0
      %3656 = vmatpush1.bf16.msra.mxu0 %v511
      %3657 = vmatprep.subr.bf16.mxu0 0
      %3658 = vmatpush1.bf16.msra.mxu0 %v510
      %3659 = vmatprep.subr.bf16.mxu0 0
      %3660 = vmatpush1.bf16.msra.mxu0 %v509
      %3661 = vmatprep.subr.bf16.mxu0 0
      %3662 = vmatpush1.bf16.msra.mxu0 %v508
      %3663 = vmatprep.subr.bf16.mxu0 0
      %3664 = vmatpush1.bf16.msra.mxu0 %v507
      %3665 = vmatprep.subr.bf16.mxu0 0
      %3666 = vmatpush2.bf16.msra.mxu0 0
      %3667 = vmatprep.subr.bf16.mxu0 0
      %3668 = vmatpush2.bf16.msra.mxu0 0
      %3669 = vmatprep.subr.bf16.mxu0 0
      %3670 = vmatpush2.bf16.msra.mxu0 0
      %3671 = vmatprep.subr.bf16.mxu0 0
      %3672 = vmatpush2.bf16.msra.mxu0 0
      %3673 = vmatprep.subr.bf16.mxu0 0
      %3674 = vmatpush2.bf16.msra.mxu0 0
      %3675 = vmatprep.subr.bf16.mxu0 0
      %3676 = vmatpush2.bf16.msra.mxu0 0
      %3677 = vmatprep.subr.bf16.mxu0 0
      %3678 = vmatpush2.bf16.msra.mxu0 0
      %3679 = vmatprep.subr.bf16.mxu0 0
      %3680 = vmatpush2.bf16.msra.mxu0 0
      %3681 = vmatprep.mubr.bf16.mxu0 0
      %3682 = vmatmul.mubr.bf16.gmra.mxu0 %v3648
      %v3683 = vpop.f32.mrf.mxu0
      %v3684 = vadd.f32 0.0, %v3683
      %v3685 = vpop.f32.mrf.mxu0
      %v3686 = vpop.f32.mrf.mxu0
      %v3687 = vpop.f32.mrf.mxu0
      %3688 = vdwg.mxu0
      %v3689 = vpack.c.bf16 %v3684, %v3684
      %s3690 = scalar_lea.vmem %s4, 1344
      %v3691 = vld [vmem:[%s3690] sm:$0xf]
      %v3692 = vld [vmem:[%s3690 + $0x4] sm:$0xf]
      %v3693 = vld [vmem:[%s3690 + $0x8] sm:$0xf]
      %v3694 = vld [vmem:[%s3690 + $0xc] sm:$0xf]
      %v3695 = vld [vmem:[%s3690 + $0x10] sm:$0xf]
      %v3696 = vld [vmem:[%s3690 + $0x14] sm:$0xf]
      %v3697 = vld [vmem:[%s3690 + $0x18] sm:$0xf]
      %v3698 = vld [vmem:[%s3690 + $0x1c] sm:$0xf]
      %v3699 = vld [vmem:[%s3690 + $0x20] sm:$0xf]
      %v3700 = vld [vmem:[%s3690 + $0x24] sm:$0xf]
      %v3701 = vld [vmem:[%s3690 + $0x28] sm:$0xf]
      %v3702 = vld [vmem:[%s3690 + $0x2c] sm:$0xf]
      %v3703 = vld [vmem:[%s3690 + $0x30] sm:$0xf]
      %v3704 = vld [vmem:[%s3690 + $0x34] sm:$0xf]
      %v3705 = vld [vmem:[%s3690 + $0x38] sm:$0xf]
      %v3706 = vld [vmem:[%s3690 + $0x3c] sm:$0xf]
      %v3723 = vunpack.c.l.b16 %v3691
      %v3724 = vunpack.c.l.b16 %v3692
      %v3725 = vunpack.c.l.b16 %v3693
      %v3726 = vunpack.c.l.b16 %v3694
      %v3727 = vunpack.c.l.b16 %v3695
      %v3728 = vunpack.c.l.b16 %v3696
      %v3729 = vunpack.c.l.b16 %v3697
      %v3730 = vunpack.c.l.b16 %v3698
      %v3731 = vunpack.c.l.b16 %v3699
      %v3732 = vunpack.c.l.b16 %v3700
      %v3733 = vunpack.c.l.b16 %v3701
      %v3734 = vunpack.c.l.b16 %v3702
      %v3735 = vunpack.c.l.b16 %v3703
      %v3736 = vunpack.c.l.b16 %v3704
      %v3737 = vunpack.c.l.b16 %v3705
      %v3738 = vunpack.c.l.b16 %v3706
      %v3739 = vpack.c.b16 %v3724, %v3723
      %v3740 = vpack.c.b16 %v3726, %v3725
      %v3741 = vpack.c.b16 %v3728, %v3727
      %v3742 = vpack.c.b16 %v3730, %v3729
      %v3743 = vpack.c.b16 %v3732, %v3731
      %v3744 = vpack.c.b16 %v3734, %v3733
      %v3745 = vpack.c.b16 %v3736, %v3735
      %v3746 = vpack.c.b16 %v3738, %v3737
      %3755 = vmatprep.subr.bf16.mxu0 0
      %3756 = vmatpush1.bf16.msra.mxu0 %v3746
      %3757 = vmatprep.subr.bf16.mxu0 0
      %3758 = vmatpush1.bf16.msra.mxu0 %v3745
      %3759 = vmatprep.subr.bf16.mxu0 0
      %3760 = vmatpush1.bf16.msra.mxu0 %v3744
      %3761 = vmatprep.subr.bf16.mxu0 0
      %3762 = vmatpush1.bf16.msra.mxu0 %v3743
      %3763 = vmatprep.subr.bf16.mxu0 0
      %3764 = vmatpush1.bf16.msra.mxu0 %v3742
      %3765 = vmatprep.subr.bf16.mxu0 0
      %3766 = vmatpush1.bf16.msra.mxu0 %v3741
      %3767 = vmatprep.subr.bf16.mxu0 0
      %3768 = vmatpush1.bf16.msra.mxu0 %v3740
      %3769 = vmatprep.subr.bf16.mxu0 0
      %3770 = vmatpush1.bf16.msra.mxu0 %v3739
      %3771 = vmatprep.subr.bf16.mxu0 0
      %3772 = vmatpush2.bf16.msra.mxu0 0
      %3773 = vmatprep.subr.bf16.mxu0 0
      %3774 = vmatpush2.bf16.msra.mxu0 0
      %3775 = vmatprep.subr.bf16.mxu0 0
      %3776 = vmatpush2.bf16.msra.mxu0 0
      %3777 = vmatprep.subr.bf16.mxu0 0
      %3778 = vmatpush2.bf16.msra.mxu0 0
      %3779 = vmatprep.subr.bf16.mxu0 0
      %3780 = vmatpush2.bf16.msra.mxu0 0
      %3781 = vmatprep.subr.bf16.mxu0 0
      %3782 = vmatpush2.bf16.msra.mxu0 0
      %3783 = vmatprep.subr.bf16.mxu0 0
      %3784 = vmatpush2.bf16.msra.mxu0 0
      %3785 = vmatprep.subr.bf16.mxu0 0
      %3786 = vmatpush2.bf16.msra.mxu0 0
      %3787 = vmatprep.mubr.bf16.mxu0 0
      %3788 = vmatmul.mubr.bf16.gmra.mxu0 %v3689
      %v3789 = vpop.f32.mrf.mxu0
      %v3790 = vadd.f32 0.0, %v3789
      %v3791 = vpop.f32.mrf.mxu0
      %v3792 = vpop.f32.mrf.mxu0
      %v3793 = vpop.f32.mrf.mxu0
      %3794 = vdwg.mxu0
      %v3795 = vadd.f32 %v3646, %v3790
      %s3796 = scalar_lea.vmem %s3, 88
      %v3797 = vld [vmem:[%s3796] sm:$0xf]
      %3798 = vmatprep.subr.bf16.mxu0 0
      %3799 = vmatpush1.bf16.msra.mxu0 %v514
      %3800 = vmatprep.subr.bf16.mxu0 0
      %3801 = vmatpush1.bf16.msra.mxu0 %v513
      %3802 = vmatprep.subr.bf16.mxu0 0
      %3803 = vmatpush1.bf16.msra.mxu0 %v512
      %3804 = vmatprep.subr.bf16.mxu0 0
      %3805 = vmatpush1.bf16.msra.mxu0 %v511
      %3806 = vmatprep.subr.bf16.mxu0 0
      %3807 = vmatpush1.bf16.msra.mxu0 %v510
      %3808 = vmatprep.subr.bf16.mxu0 0
      %3809 = vmatpush1.bf16.msra.mxu0 %v509
      %3810 = vmatprep.subr.bf16.mxu0 0
      %3811 = vmatpush1.bf16.msra.mxu0 %v508
      %3812 = vmatprep.subr.bf16.mxu0 0
      %3813 = vmatpush1.bf16.msra.mxu0 %v507
      %3814 = vmatprep.subr.bf16.mxu0 0
      %3815 = vmatpush2.bf16.msra.mxu0 0
      %3816 = vmatprep.subr.bf16.mxu0 0
      %3817 = vmatpush2.bf16.msra.mxu0 0
      %3818 = vmatprep.subr.bf16.mxu0 0
      %3819 = vmatpush2.bf16.msra.mxu0 0
      %3820 = vmatprep.subr.bf16.mxu0 0
      %3821 = vmatpush2.bf16.msra.mxu0 0
      %3822 = vmatprep.subr.bf16.mxu0 0
      %3823 = vmatpush2.bf16.msra.mxu0 0
      %3824 = vmatprep.subr.bf16.mxu0 0
      %3825 = vmatpush2.bf16.msra.mxu0 0
      %3826 = vmatprep.subr.bf16.mxu0 0
      %3827 = vmatpush2.bf16.msra.mxu0 0
      %3828 = vmatprep.subr.bf16.mxu0 0
      %3829 = vmatpush2.bf16.msra.mxu0 0
      %3830 = vmatprep.mubr.bf16.mxu0 0
      %3831 = vmatmul.mubr.bf16.gmra.mxu0 %v3797
      %v3832 = vpop.f32.mrf.mxu0
      %v3833 = vadd.f32 0.0, %v3832
      %v3834 = vpop.f32.mrf.mxu0
      %v3835 = vpop.f32.mrf.mxu0
      %v3836 = vpop.f32.mrf.mxu0
      %3837 = vdwg.mxu0
      %v3838 = vpack.c.bf16 %v3833, %v3833
      %s3839 = scalar_lea.vmem %s4, 1408
      %v3840 = vld [vmem:[%s3839] sm:$0xf]
      %v3841 = vld [vmem:[%s3839 + $0x4] sm:$0xf]
      %v3842 = vld [vmem:[%s3839 + $0x8] sm:$0xf]
      %v3843 = vld [vmem:[%s3839 + $0xc] sm:$0xf]
      %v3844 = vld [vmem:[%s3839 + $0x10] sm:$0xf]
      %v3845 = vld [vmem:[%s3839 + $0x14] sm:$0xf]
      %v3846 = vld [vmem:[%s3839 + $0x18] sm:$0xf]
      %v3847 = vld [vmem:[%s3839 + $0x1c] sm:$0xf]
      %v3848 = vld [vmem:[%s3839 + $0x20] sm:$0xf]
      %v3849 = vld [vmem:[%s3839 + $0x24] sm:$0xf]
      %v3850 = vld [vmem:[%s3839 + $0x28] sm:$0xf]
      %v3851 = vld [vmem:[%s3839 + $0x2c] sm:$0xf]
      %v3852 = vld [vmem:[%s3839 + $0x30] sm:$0xf]
      %v3853 = vld [vmem:[%s3839 + $0x34] sm:$0xf]
      %v3854 = vld [vmem:[%s3839 + $0x38] sm:$0xf]
      %v3855 = vld [vmem:[%s3839 + $0x3c] sm:$0xf]
      %v3872 = vunpack.c.l.b16 %v3840
      %v3873 = vunpack.c.l.b16 %v3841
      %v3874 = vunpack.c.l.b16 %v3842
      %v3875 = vunpack.c.l.b16 %v3843
      %v3876 = vunpack.c.l.b16 %v3844
      %v3877 = vunpack.c.l.b16 %v3845
      %v3878 = vunpack.c.l.b16 %v3846
      %v3879 = vunpack.c.l.b16 %v3847
      %v3880 = vunpack.c.l.b16 %v3848
      %v3881 = vunpack.c.l.b16 %v3849
      %v3882 = vunpack.c.l.b16 %v3850
      %v3883 = vunpack.c.l.b16 %v3851
      %v3884 = vunpack.c.l.b16 %v3852
      %v3885 = vunpack.c.l.b16 %v3853
      %v3886 = vunpack.c.l.b16 %v3854
      %v3887 = vunpack.c.l.b16 %v3855
      %v3888 = vpack.c.b16 %v3873, %v3872
      %v3889 = vpack.c.b16 %v3875, %v3874
      %v3890 = vpack.c.b16 %v3877, %v3876
      %v3891 = vpack.c.b16 %v3879, %v3878
      %v3892 = vpack.c.b16 %v3881, %v3880
      %v3893 = vpack.c.b16 %v3883, %v3882
      %v3894 = vpack.c.b16 %v3885, %v3884
      %v3895 = vpack.c.b16 %v3887, %v3886
      %3904 = vmatprep.subr.bf16.mxu0 0
      %3905 = vmatpush1.bf16.msra.mxu0 %v3895
      %3906 = vmatprep.subr.bf16.mxu0 0
      %3907 = vmatpush1.bf16.msra.mxu0 %v3894
      %3908 = vmatprep.subr.bf16.mxu0 0
      %3909 = vmatpush1.bf16.msra.mxu0 %v3893
      %3910 = vmatprep.subr.bf16.mxu0 0
      %3911 = vmatpush1.bf16.msra.mxu0 %v3892
      %3912 = vmatprep.subr.bf16.mxu0 0
      %3913 = vmatpush1.bf16.msra.mxu0 %v3891
      %3914 = vmatprep.subr.bf16.mxu0 0
      %3915 = vmatpush1.bf16.msra.mxu0 %v3890
      %3916 = vmatprep.subr.bf16.mxu0 0
      %3917 = vmatpush1.bf16.msra.mxu0 %v3889
      %3918 = vmatprep.subr.bf16.mxu0 0
      %3919 = vmatpush1.bf16.msra.mxu0 %v3888
      %3920 = vmatprep.subr.bf16.mxu0 0
      %3921 = vmatpush2.bf16.msra.mxu0 0
      %3922 = vmatprep.subr.bf16.mxu0 0
      %3923 = vmatpush2.bf16.msra.mxu0 0
      %3924 = vmatprep.subr.bf16.mxu0 0
      %3925 = vmatpush2.bf16.msra.mxu0 0
      %3926 = vmatprep.subr.bf16.mxu0 0
      %3927 = vmatpush2.bf16.msra.mxu0 0
      %3928 = vmatprep.subr.bf16.mxu0 0
      %3929 = vmatpush2.bf16.msra.mxu0 0
      %3930 = vmatprep.subr.bf16.mxu0 0
      %3931 = vmatpush2.bf16.msra.mxu0 0
      %3932 = vmatprep.subr.bf16.mxu0 0
      %3933 = vmatpush2.bf16.msra.mxu0 0
      %3934 = vmatprep.subr.bf16.mxu0 0
      %3935 = vmatpush2.bf16.msra.mxu0 0
      %3936 = vmatprep.mubr.bf16.mxu0 0
      %3937 = vmatmul.mubr.bf16.gmra.mxu0 %v3838
      %v3938 = vpop.f32.mrf.mxu0
      %v3939 = vadd.f32 0.0, %v3938
      %v3940 = vpop.f32.mrf.mxu0
      %v3941 = vpop.f32.mrf.mxu0
      %v3942 = vpop.f32.mrf.mxu0
      %3943 = vdwg.mxu0
      %v3944 = vadd.f32 %v3795, %v3939
      %s3945 = scalar_lea.vmem %s3, 92
      %v3946 = vld [vmem:[%s3945] sm:$0xf]
      %3947 = vmatprep.subr.bf16.mxu0 0
      %3948 = vmatpush1.bf16.msra.mxu0 %v514
      %3949 = vmatprep.subr.bf16.mxu0 0
      %3950 = vmatpush1.bf16.msra.mxu0 %v513
      %3951 = vmatprep.subr.bf16.mxu0 0
      %3952 = vmatpush1.bf16.msra.mxu0 %v512
      %3953 = vmatprep.subr.bf16.mxu0 0
      %3954 = vmatpush1.bf16.msra.mxu0 %v511
      %3955 = vmatprep.subr.bf16.mxu0 0
      %3956 = vmatpush1.bf16.msra.mxu0 %v510
      %3957 = vmatprep.subr.bf16.mxu0 0
      %3958 = vmatpush1.bf16.msra.mxu0 %v509
      %3959 = vmatprep.subr.bf16.mxu0 0
      %3960 = vmatpush1.bf16.msra.mxu0 %v508
      %3961 = vmatprep.subr.bf16.mxu0 0
      %3962 = vmatpush1.bf16.msra.mxu0 %v507
      %3963 = vmatprep.subr.bf16.mxu0 0
      %3964 = vmatpush2.bf16.msra.mxu0 0
      %3965 = vmatprep.subr.bf16.mxu0 0
      %3966 = vmatpush2.bf16.msra.mxu0 0
      %3967 = vmatprep.subr.bf16.mxu0 0
      %3968 = vmatpush2.bf16.msra.mxu0 0
      %3969 = vmatprep.subr.bf16.mxu0 0
      %3970 = vmatpush2.bf16.msra.mxu0 0
      %3971 = vmatprep.subr.bf16.mxu0 0
      %3972 = vmatpush2.bf16.msra.mxu0 0
      %3973 = vmatprep.subr.bf16.mxu0 0
      %3974 = vmatpush2.bf16.msra.mxu0 0
      %3975 = vmatprep.subr.bf16.mxu0 0
      %3976 = vmatpush2.bf16.msra.mxu0 0
      %3977 = vmatprep.subr.bf16.mxu0 0
      %3978 = vmatpush2.bf16.msra.mxu0 0
      %3979 = vmatprep.mubr.bf16.mxu0 0
      %3980 = vmatmul.mubr.bf16.gmra.mxu0 %v3946
      %v3981 = vpop.f32.mrf.mxu0
      %v3982 = vadd.f32 0.0, %v3981
      %v3983 = vpop.f32.mrf.mxu0
      %v3984 = vpop.f32.mrf.mxu0
      %v3985 = vpop.f32.mrf.mxu0
      %3986 = vdwg.mxu0
      %v3987 = vpack.c.bf16 %v3982, %v3982
      %s3988 = scalar_lea.vmem %s4, 1472
      %v3989 = vld [vmem:[%s3988] sm:$0xf]
      %v3990 = vld [vmem:[%s3988 + $0x4] sm:$0xf]
      %v3991 = vld [vmem:[%s3988 + $0x8] sm:$0xf]
      %v3992 = vld [vmem:[%s3988 + $0xc] sm:$0xf]
      %v3993 = vld [vmem:[%s3988 + $0x10] sm:$0xf]
      %v3994 = vld [vmem:[%s3988 + $0x14] sm:$0xf]
      %v3995 = vld [vmem:[%s3988 + $0x18] sm:$0xf]
      %v3996 = vld [vmem:[%s3988 + $0x1c] sm:$0xf]
      %v3997 = vld [vmem:[%s3988 + $0x20] sm:$0xf]
      %v3998 = vld [vmem:[%s3988 + $0x24] sm:$0xf]
      %v3999 = vld [vmem:[%s3988 + $0x28] sm:$0xf]
      %v4000 = vld [vmem:[%s3988 + $0x2c] sm:$0xf]
      %v4001 = vld [vmem:[%s3988 + $0x30] sm:$0xf]
      %v4002 = vld [vmem:[%s3988 + $0x34] sm:$0xf]
      %v4003 = vld [vmem:[%s3988 + $0x38] sm:$0xf]
      %v4004 = vld [vmem:[%s3988 + $0x3c] sm:$0xf]
      %v4021 = vunpack.c.l.b16 %v3989
      %v4022 = vunpack.c.l.b16 %v3990
      %v4023 = vunpack.c.l.b16 %v3991
      %v4024 = vunpack.c.l.b16 %v3992
      %v4025 = vunpack.c.l.b16 %v3993
      %v4026 = vunpack.c.l.b16 %v3994
      %v4027 = vunpack.c.l.b16 %v3995
      %v4028 = vunpack.c.l.b16 %v3996
      %v4029 = vunpack.c.l.b16 %v3997
      %v4030 = vunpack.c.l.b16 %v3998
      %v4031 = vunpack.c.l.b16 %v3999
      %v4032 = vunpack.c.l.b16 %v4000
      %v4033 = vunpack.c.l.b16 %v4001
      %v4034 = vunpack.c.l.b16 %v4002
      %v4035 = vunpack.c.l.b16 %v4003
      %v4036 = vunpack.c.l.b16 %v4004
      %v4037 = vpack.c.b16 %v4022, %v4021
      %v4038 = vpack.c.b16 %v4024, %v4023
      %v4039 = vpack.c.b16 %v4026, %v4025
      %v4040 = vpack.c.b16 %v4028, %v4027
      %v4041 = vpack.c.b16 %v4030, %v4029
      %v4042 = vpack.c.b16 %v4032, %v4031
      %v4043 = vpack.c.b16 %v4034, %v4033
      %v4044 = vpack.c.b16 %v4036, %v4035
      %4053 = vmatprep.subr.bf16.mxu0 0
      %4054 = vmatpush1.bf16.msra.mxu0 %v4044
      %4055 = vmatprep.subr.bf16.mxu0 0
      %4056 = vmatpush1.bf16.msra.mxu0 %v4043
      %4057 = vmatprep.subr.bf16.mxu0 0
      %4058 = vmatpush1.bf16.msra.mxu0 %v4042
      %4059 = vmatprep.subr.bf16.mxu0 0
      %4060 = vmatpush1.bf16.msra.mxu0 %v4041
      %4061 = vmatprep.subr.bf16.mxu0 0
      %4062 = vmatpush1.bf16.msra.mxu0 %v4040
      %4063 = vmatprep.subr.bf16.mxu0 0
      %4064 = vmatpush1.bf16.msra.mxu0 %v4039
      %4065 = vmatprep.subr.bf16.mxu0 0
      %4066 = vmatpush1.bf16.msra.mxu0 %v4038
      %4067 = vmatprep.subr.bf16.mxu0 0
      %4068 = vmatpush1.bf16.msra.mxu0 %v4037
      %4069 = vmatprep.subr.bf16.mxu0 0
      %4070 = vmatpush2.bf16.msra.mxu0 0
      %4071 = vmatprep.subr.bf16.mxu0 0
      %4072 = vmatpush2.bf16.msra.mxu0 0
      %4073 = vmatprep.subr.bf16.mxu0 0
      %4074 = vmatpush2.bf16.msra.mxu0 0
      %4075 = vmatprep.subr.bf16.mxu0 0
      %4076 = vmatpush2.bf16.msra.mxu0 0
      %4077 = vmatprep.subr.bf16.mxu0 0
      %4078 = vmatpush2.bf16.msra.mxu0 0
      %4079 = vmatprep.subr.bf16.mxu0 0
      %4080 = vmatpush2.bf16.msra.mxu0 0
      %4081 = vmatprep.subr.bf16.mxu0 0
      %4082 = vmatpush2.bf16.msra.mxu0 0
      %4083 = vmatprep.subr.bf16.mxu0 0
      %4084 = vmatpush2.bf16.msra.mxu0 0
      %4085 = vmatprep.mubr.bf16.mxu0 0
      %4086 = vmatmul.mubr.bf16.gmra.mxu0 %v3987
      %v4087 = vpop.f32.mrf.mxu0
      %v4088 = vadd.f32 0.0, %v4087
      %v4089 = vpop.f32.mrf.mxu0
      %v4090 = vpop.f32.mrf.mxu0
      %v4091 = vpop.f32.mrf.mxu0
      %4092 = vdwg.mxu0
      %v4093 = vadd.f32 %v3944, %v4088
      %s4094 = scalar_lea.vmem %s3, 96
      %v4095 = vld [vmem:[%s4094] sm:$0xf]
      %4096 = vmatprep.subr.bf16.mxu0 0
      %4097 = vmatpush1.bf16.msra.mxu0 %v514
      %4098 = vmatprep.subr.bf16.mxu0 0
      %4099 = vmatpush1.bf16.msra.mxu0 %v513
      %4100 = vmatprep.subr.bf16.mxu0 0
      %4101 = vmatpush1.bf16.msra.mxu0 %v512
      %4102 = vmatprep.subr.bf16.mxu0 0
      %4103 = vmatpush1.bf16.msra.mxu0 %v511
      %4104 = vmatprep.subr.bf16.mxu0 0
      %4105 = vmatpush1.bf16.msra.mxu0 %v510
      %4106 = vmatprep.subr.bf16.mxu0 0
      %4107 = vmatpush1.bf16.msra.mxu0 %v509
      %4108 = vmatprep.subr.bf16.mxu0 0
      %4109 = vmatpush1.bf16.msra.mxu0 %v508
      %4110 = vmatprep.subr.bf16.mxu0 0
      %4111 = vmatpush1.bf16.msra.mxu0 %v507
      %4112 = vmatprep.subr.bf16.mxu0 0
      %4113 = vmatpush2.bf16.msra.mxu0 0
      %4114 = vmatprep.subr.bf16.mxu0 0
      %4115 = vmatpush2.bf16.msra.mxu0 0
      %4116 = vmatprep.subr.bf16.mxu0 0
      %4117 = vmatpush2.bf16.msra.mxu0 0
      %4118 = vmatprep.subr.bf16.mxu0 0
      %4119 = vmatpush2.bf16.msra.mxu0 0
      %4120 = vmatprep.subr.bf16.mxu0 0
      %4121 = vmatpush2.bf16.msra.mxu0 0
      %4122 = vmatprep.subr.bf16.mxu0 0
      %4123 = vmatpush2.bf16.msra.mxu0 0
      %4124 = vmatprep.subr.bf16.mxu0 0
      %4125 = vmatpush2.bf16.msra.mxu0 0
      %4126 = vmatprep.subr.bf16.mxu0 0
      %4127 = vmatpush2.bf16.msra.mxu0 0
      %4128 = vmatprep.mubr.bf16.mxu0 0
      %4129 = vmatmul.mubr.bf16.gmra.mxu0 %v4095
      %v4130 = vpop.f32.mrf.mxu0
      %v4131 = vadd.f32 0.0, %v4130
      %v4132 = vpop.f32.mrf.mxu0
      %v4133 = vpop.f32.mrf.mxu0
      %v4134 = vpop.f32.mrf.mxu0
      %4135 = vdwg.mxu0
      %v4136 = vpack.c.bf16 %v4131, %v4131
      %s4137 = scalar_lea.vmem %s4, 1536
      %v4138 = vld [vmem:[%s4137] sm:$0xf]
      %v4139 = vld [vmem:[%s4137 + $0x4] sm:$0xf]
      %v4140 = vld [vmem:[%s4137 + $0x8] sm:$0xf]
      %v4141 = vld [vmem:[%s4137 + $0xc] sm:$0xf]
      %v4142 = vld [vmem:[%s4137 + $0x10] sm:$0xf]
      %v4143 = vld [vmem:[%s4137 + $0x14] sm:$0xf]
      %v4144 = vld [vmem:[%s4137 + $0x18] sm:$0xf]
      %v4145 = vld [vmem:[%s4137 + $0x1c] sm:$0xf]
      %v4146 = vld [vmem:[%s4137 + $0x20] sm:$0xf]
      %v4147 = vld [vmem:[%s4137 + $0x24] sm:$0xf]
      %v4148 = vld [vmem:[%s4137 + $0x28] sm:$0xf]
      %v4149 = vld [vmem:[%s4137 + $0x2c] sm:$0xf]
      %v4150 = vld [vmem:[%s4137 + $0x30] sm:$0xf]
      %v4151 = vld [vmem:[%s4137 + $0x34] sm:$0xf]
      %v4152 = vld [vmem:[%s4137 + $0x38] sm:$0xf]
      %v4153 = vld [vmem:[%s4137 + $0x3c] sm:$0xf]
      %v4170 = vunpack.c.l.b16 %v4138
      %v4171 = vunpack.c.l.b16 %v4139
      %v4172 = vunpack.c.l.b16 %v4140
      %v4173 = vunpack.c.l.b16 %v4141
      %v4174 = vunpack.c.l.b16 %v4142
      %v4175 = vunpack.c.l.b16 %v4143
      %v4176 = vunpack.c.l.b16 %v4144
      %v4177 = vunpack.c.l.b16 %v4145
      %v4178 = vunpack.c.l.b16 %v4146
      %v4179 = vunpack.c.l.b16 %v4147
      %v4180 = vunpack.c.l.b16 %v4148
      %v4181 = vunpack.c.l.b16 %v4149
      %v4182 = vunpack.c.l.b16 %v4150
      %v4183 = vunpack.c.l.b16 %v4151
      %v4184 = vunpack.c.l.b16 %v4152
      %v4185 = vunpack.c.l.b16 %v4153
      %v4186 = vpack.c.b16 %v4171, %v4170
      %v4187 = vpack.c.b16 %v4173, %v4172
      %v4188 = vpack.c.b16 %v4175, %v4174
      %v4189 = vpack.c.b16 %v4177, %v4176
      %v4190 = vpack.c.b16 %v4179, %v4178
      %v4191 = vpack.c.b16 %v4181, %v4180
      %v4192 = vpack.c.b16 %v4183, %v4182
      %v4193 = vpack.c.b16 %v4185, %v4184
      %4202 = vmatprep.subr.bf16.mxu0 0
      %4203 = vmatpush1.bf16.msra.mxu0 %v4193
      %4204 = vmatprep.subr.bf16.mxu0 0
      %4205 = vmatpush1.bf16.msra.mxu0 %v4192
      %4206 = vmatprep.subr.bf16.mxu0 0
      %4207 = vmatpush1.bf16.msra.mxu0 %v4191
      %4208 = vmatprep.subr.bf16.mxu0 0
      %4209 = vmatpush1.bf16.msra.mxu0 %v4190
      %4210 = vmatprep.subr.bf16.mxu0 0
      %4211 = vmatpush1.bf16.msra.mxu0 %v4189
      %4212 = vmatprep.subr.bf16.mxu0 0
      %4213 = vmatpush1.bf16.msra.mxu0 %v4188
      %4214 = vmatprep.subr.bf16.mxu0 0
      %4215 = vmatpush1.bf16.msra.mxu0 %v4187
      %4216 = vmatprep.subr.bf16.mxu0 0
      %4217 = vmatpush1.bf16.msra.mxu0 %v4186
      %4218 = vmatprep.subr.bf16.mxu0 0
      %4219 = vmatpush2.bf16.msra.mxu0 0
      %4220 = vmatprep.subr.bf16.mxu0 0
      %4221 = vmatpush2.bf16.msra.mxu0 0
      %4222 = vmatprep.subr.bf16.mxu0 0
      %4223 = vmatpush2.bf16.msra.mxu0 0
      %4224 = vmatprep.subr.bf16.mxu0 0
      %4225 = vmatpush2.bf16.msra.mxu0 0
      %4226 = vmatprep.subr.bf16.mxu0 0
      %4227 = vmatpush2.bf16.msra.mxu0 0
      %4228 = vmatprep.subr.bf16.mxu0 0
      %4229 = vmatpush2.bf16.msra.mxu0 0
      %4230 = vmatprep.subr.bf16.mxu0 0
      %4231 = vmatpush2.bf16.msra.mxu0 0
      %4232 = vmatprep.subr.bf16.mxu0 0
      %4233 = vmatpush2.bf16.msra.mxu0 0
      %4234 = vmatprep.mubr.bf16.mxu0 0
      %4235 = vmatmul.mubr.bf16.gmra.mxu0 %v4136
      %v4236 = vpop.f32.mrf.mxu0
      %v4237 = vadd.f32 0.0, %v4236
      %v4238 = vpop.f32.mrf.mxu0
      %v4239 = vpop.f32.mrf.mxu0
      %v4240 = vpop.f32.mrf.mxu0
      %4241 = vdwg.mxu0
      %v4242 = vadd.f32 %v4093, %v4237
      %s4243 = scalar_lea.vmem %s3, 100
      %v4244 = vld [vmem:[%s4243] sm:$0xf]
      %4245 = vmatprep.subr.bf16.mxu0 0
      %4246 = vmatpush1.bf16.msra.mxu0 %v514
      %4247 = vmatprep.subr.bf16.mxu0 0
      %4248 = vmatpush1.bf16.msra.mxu0 %v513
      %4249 = vmatprep.subr.bf16.mxu0 0
      %4250 = vmatpush1.bf16.msra.mxu0 %v512
      %4251 = vmatprep.subr.bf16.mxu0 0
      %4252 = vmatpush1.bf16.msra.mxu0 %v511
      %4253 = vmatprep.subr.bf16.mxu0 0
      %4254 = vmatpush1.bf16.msra.mxu0 %v510
      %4255 = vmatprep.subr.bf16.mxu0 0
      %4256 = vmatpush1.bf16.msra.mxu0 %v509
      %4257 = vmatprep.subr.bf16.mxu0 0
      %4258 = vmatpush1.bf16.msra.mxu0 %v508
      %4259 = vmatprep.subr.bf16.mxu0 0
      %4260 = vmatpush1.bf16.msra.mxu0 %v507
      %4261 = vmatprep.subr.bf16.mxu0 0
      %4262 = vmatpush2.bf16.msra.mxu0 0
      %4263 = vmatprep.subr.bf16.mxu0 0
      %4264 = vmatpush2.bf16.msra.mxu0 0
      %4265 = vmatprep.subr.bf16.mxu0 0
      %4266 = vmatpush2.bf16.msra.mxu0 0
      %4267 = vmatprep.subr.bf16.mxu0 0
      %4268 = vmatpush2.bf16.msra.mxu0 0
      %4269 = vmatprep.subr.bf16.mxu0 0
      %4270 = vmatpush2.bf16.msra.mxu0 0
      %4271 = vmatprep.subr.bf16.mxu0 0
      %4272 = vmatpush2.bf16.msra.mxu0 0
      %4273 = vmatprep.subr.bf16.mxu0 0
      %4274 = vmatpush2.bf16.msra.mxu0 0
      %4275 = vmatprep.subr.bf16.mxu0 0
      %4276 = vmatpush2.bf16.msra.mxu0 0
      %4277 = vmatprep.mubr.bf16.mxu0 0
      %4278 = vmatmul.mubr.bf16.gmra.mxu0 %v4244
      %v4279 = vpop.f32.mrf.mxu0
      %v4280 = vadd.f32 0.0, %v4279
      %v4281 = vpop.f32.mrf.mxu0
      %v4282 = vpop.f32.mrf.mxu0
      %v4283 = vpop.f32.mrf.mxu0
      %4284 = vdwg.mxu0
      %v4285 = vpack.c.bf16 %v4280, %v4280
      %s4286 = scalar_lea.vmem %s4, 1600
      %v4287 = vld [vmem:[%s4286] sm:$0xf]
      %v4288 = vld [vmem:[%s4286 + $0x4] sm:$0xf]
      %v4289 = vld [vmem:[%s4286 + $0x8] sm:$0xf]
      %v4290 = vld [vmem:[%s4286 + $0xc] sm:$0xf]
      %v4291 = vld [vmem:[%s4286 + $0x10] sm:$0xf]
      %v4292 = vld [vmem:[%s4286 + $0x14] sm:$0xf]
      %v4293 = vld [vmem:[%s4286 + $0x18] sm:$0xf]
      %v4294 = vld [vmem:[%s4286 + $0x1c] sm:$0xf]
      %v4295 = vld [vmem:[%s4286 + $0x20] sm:$0xf]
      %v4296 = vld [vmem:[%s4286 + $0x24] sm:$0xf]
      %v4297 = vld [vmem:[%s4286 + $0x28] sm:$0xf]
      %v4298 = vld [vmem:[%s4286 + $0x2c] sm:$0xf]
      %v4299 = vld [vmem:[%s4286 + $0x30] sm:$0xf]
      %v4300 = vld [vmem:[%s4286 + $0x34] sm:$0xf]
      %v4301 = vld [vmem:[%s4286 + $0x38] sm:$0xf]
      %v4302 = vld [vmem:[%s4286 + $0x3c] sm:$0xf]
      %v4319 = vunpack.c.l.b16 %v4287
      %v4320 = vunpack.c.l.b16 %v4288
      %v4321 = vunpack.c.l.b16 %v4289
      %v4322 = vunpack.c.l.b16 %v4290
      %v4323 = vunpack.c.l.b16 %v4291
      %v4324 = vunpack.c.l.b16 %v4292
      %v4325 = vunpack.c.l.b16 %v4293
      %v4326 = vunpack.c.l.b16 %v4294
      %v4327 = vunpack.c.l.b16 %v4295
      %v4328 = vunpack.c.l.b16 %v4296
      %v4329 = vunpack.c.l.b16 %v4297
      %v4330 = vunpack.c.l.b16 %v4298
      %v4331 = vunpack.c.l.b16 %v4299
      %v4332 = vunpack.c.l.b16 %v4300
      %v4333 = vunpack.c.l.b16 %v4301
      %v4334 = vunpack.c.l.b16 %v4302
      %v4335 = vpack.c.b16 %v4320, %v4319
      %v4336 = vpack.c.b16 %v4322, %v4321
      %v4337 = vpack.c.b16 %v4324, %v4323
      %v4338 = vpack.c.b16 %v4326, %v4325
      %v4339 = vpack.c.b16 %v4328, %v4327
      %v4340 = vpack.c.b16 %v4330, %v4329
      %v4341 = vpack.c.b16 %v4332, %v4331
      %v4342 = vpack.c.b16 %v4334, %v4333
      %4351 = vmatprep.subr.bf16.mxu0 0
      %4352 = vmatpush1.bf16.msra.mxu0 %v4342
      %4353 = vmatprep.subr.bf16.mxu0 0
      %4354 = vmatpush1.bf16.msra.mxu0 %v4341
      %4355 = vmatprep.subr.bf16.mxu0 0
      %4356 = vmatpush1.bf16.msra.mxu0 %v4340
      %4357 = vmatprep.subr.bf16.mxu0 0
      %4358 = vmatpush1.bf16.msra.mxu0 %v4339
      %4359 = vmatprep.subr.bf16.mxu0 0
      %4360 = vmatpush1.bf16.msra.mxu0 %v4338
      %4361 = vmatprep.subr.bf16.mxu0 0
      %4362 = vmatpush1.bf16.msra.mxu0 %v4337
      %4363 = vmatprep.subr.bf16.mxu0 0
      %4364 = vmatpush1.bf16.msra.mxu0 %v4336
      %4365 = vmatprep.subr.bf16.mxu0 0
      %4366 = vmatpush1.bf16.msra.mxu0 %v4335
      %4367 = vmatprep.subr.bf16.mxu0 0
      %4368 = vmatpush2.bf16.msra.mxu0 0
      %4369 = vmatprep.subr.bf16.mxu0 0
      %4370 = vmatpush2.bf16.msra.mxu0 0
      %4371 = vmatprep.subr.bf16.mxu0 0
      %4372 = vmatpush2.bf16.msra.mxu0 0
      %4373 = vmatprep.subr.bf16.mxu0 0
      %4374 = vmatpush2.bf16.msra.mxu0 0
      %4375 = vmatprep.subr.bf16.mxu0 0
      %4376 = vmatpush2.bf16.msra.mxu0 0
      %4377 = vmatprep.subr.bf16.mxu0 0
      %4378 = vmatpush2.bf16.msra.mxu0 0
      %4379 = vmatprep.subr.bf16.mxu0 0
      %4380 = vmatpush2.bf16.msra.mxu0 0
      %4381 = vmatprep.subr.bf16.mxu0 0
      %4382 = vmatpush2.bf16.msra.mxu0 0
      %4383 = vmatprep.mubr.bf16.mxu0 0
      %4384 = vmatmul.mubr.bf16.gmra.mxu0 %v4285
      %v4385 = vpop.f32.mrf.mxu0
      %v4386 = vadd.f32 0.0, %v4385
      %v4387 = vpop.f32.mrf.mxu0
      %v4388 = vpop.f32.mrf.mxu0
      %v4389 = vpop.f32.mrf.mxu0
      %4390 = vdwg.mxu0
      %v4391 = vadd.f32 %v4242, %v4386
      %s4392 = scalar_lea.vmem %s3, 104
      %v4393 = vld [vmem:[%s4392] sm:$0xf]
      %4394 = vmatprep.subr.bf16.mxu0 0
      %4395 = vmatpush1.bf16.msra.mxu0 %v514
      %4396 = vmatprep.subr.bf16.mxu0 0
      %4397 = vmatpush1.bf16.msra.mxu0 %v513
      %4398 = vmatprep.subr.bf16.mxu0 0
      %4399 = vmatpush1.bf16.msra.mxu0 %v512
      %4400 = vmatprep.subr.bf16.mxu0 0
      %4401 = vmatpush1.bf16.msra.mxu0 %v511
      %4402 = vmatprep.subr.bf16.mxu0 0
      %4403 = vmatpush1.bf16.msra.mxu0 %v510
      %4404 = vmatprep.subr.bf16.mxu0 0
      %4405 = vmatpush1.bf16.msra.mxu0 %v509
      %4406 = vmatprep.subr.bf16.mxu0 0
      %4407 = vmatpush1.bf16.msra.mxu0 %v508
      %4408 = vmatprep.subr.bf16.mxu0 0
      %4409 = vmatpush1.bf16.msra.mxu0 %v507
      %4410 = vmatprep.subr.bf16.mxu0 0
      %4411 = vmatpush2.bf16.msra.mxu0 0
      %4412 = vmatprep.subr.bf16.mxu0 0
      %4413 = vmatpush2.bf16.msra.mxu0 0
      %4414 = vmatprep.subr.bf16.mxu0 0
      %4415 = vmatpush2.bf16.msra.mxu0 0
      %4416 = vmatprep.subr.bf16.mxu0 0
      %4417 = vmatpush2.bf16.msra.mxu0 0
      %4418 = vmatprep.subr.bf16.mxu0 0
      %4419 = vmatpush2.bf16.msra.mxu0 0
      %4420 = vmatprep.subr.bf16.mxu0 0
      %4421 = vmatpush2.bf16.msra.mxu0 0
      %4422 = vmatprep.subr.bf16.mxu0 0
      %4423 = vmatpush2.bf16.msra.mxu0 0
      %4424 = vmatprep.subr.bf16.mxu0 0
      %4425 = vmatpush2.bf16.msra.mxu0 0
      %4426 = vmatprep.mubr.bf16.mxu0 0
      %4427 = vmatmul.mubr.bf16.gmra.mxu0 %v4393
      %v4428 = vpop.f32.mrf.mxu0
      %v4429 = vadd.f32 0.0, %v4428
      %v4430 = vpop.f32.mrf.mxu0
      %v4431 = vpop.f32.mrf.mxu0
      %v4432 = vpop.f32.mrf.mxu0
      %4433 = vdwg.mxu0
      %v4434 = vpack.c.bf16 %v4429, %v4429
      %s4435 = scalar_lea.vmem %s4, 1664
      %v4436 = vld [vmem:[%s4435] sm:$0xf]
      %v4437 = vld [vmem:[%s4435 + $0x4] sm:$0xf]
      %v4438 = vld [vmem:[%s4435 + $0x8] sm:$0xf]
      %v4439 = vld [vmem:[%s4435 + $0xc] sm:$0xf]
      %v4440 = vld [vmem:[%s4435 + $0x10] sm:$0xf]
      %v4441 = vld [vmem:[%s4435 + $0x14] sm:$0xf]
      %v4442 = vld [vmem:[%s4435 + $0x18] sm:$0xf]
      %v4443 = vld [vmem:[%s4435 + $0x1c] sm:$0xf]
      %v4444 = vld [vmem:[%s4435 + $0x20] sm:$0xf]
      %v4445 = vld [vmem:[%s4435 + $0x24] sm:$0xf]
      %v4446 = vld [vmem:[%s4435 + $0x28] sm:$0xf]
      %v4447 = vld [vmem:[%s4435 + $0x2c] sm:$0xf]
      %v4448 = vld [vmem:[%s4435 + $0x30] sm:$0xf]
      %v4449 = vld [vmem:[%s4435 + $0x34] sm:$0xf]
      %v4450 = vld [vmem:[%s4435 + $0x38] sm:$0xf]
      %v4451 = vld [vmem:[%s4435 + $0x3c] sm:$0xf]
      %v4468 = vunpack.c.l.b16 %v4436
      %v4469 = vunpack.c.l.b16 %v4437
      %v4470 = vunpack.c.l.b16 %v4438
      %v4471 = vunpack.c.l.b16 %v4439
      %v4472 = vunpack.c.l.b16 %v4440
      %v4473 = vunpack.c.l.b16 %v4441
      %v4474 = vunpack.c.l.b16 %v4442
      %v4475 = vunpack.c.l.b16 %v4443
      %v4476 = vunpack.c.l.b16 %v4444
      %v4477 = vunpack.c.l.b16 %v4445
      %v4478 = vunpack.c.l.b16 %v4446
      %v4479 = vunpack.c.l.b16 %v4447
      %v4480 = vunpack.c.l.b16 %v4448
      %v4481 = vunpack.c.l.b16 %v4449
      %v4482 = vunpack.c.l.b16 %v4450
      %v4483 = vunpack.c.l.b16 %v4451
      %v4484 = vpack.c.b16 %v4469, %v4468
      %v4485 = vpack.c.b16 %v4471, %v4470
      %v4486 = vpack.c.b16 %v4473, %v4472
      %v4487 = vpack.c.b16 %v4475, %v4474
      %v4488 = vpack.c.b16 %v4477, %v4476
      %v4489 = vpack.c.b16 %v4479, %v4478
      %v4490 = vpack.c.b16 %v4481, %v4480
      %v4491 = vpack.c.b16 %v4483, %v4482
      %4500 = vmatprep.subr.bf16.mxu0 0
      %4501 = vmatpush1.bf16.msra.mxu0 %v4491
      %4502 = vmatprep.subr.bf16.mxu0 0
      %4503 = vmatpush1.bf16.msra.mxu0 %v4490
      %4504 = vmatprep.subr.bf16.mxu0 0
      %4505 = vmatpush1.bf16.msra.mxu0 %v4489
      %4506 = vmatprep.subr.bf16.mxu0 0
      %4507 = vmatpush1.bf16.msra.mxu0 %v4488
      %4508 = vmatprep.subr.bf16.mxu0 0
      %4509 = vmatpush1.bf16.msra.mxu0 %v4487
      %4510 = vmatprep.subr.bf16.mxu0 0
      %4511 = vmatpush1.bf16.msra.mxu0 %v4486
      %4512 = vmatprep.subr.bf16.mxu0 0
      %4513 = vmatpush1.bf16.msra.mxu0 %v4485
      %4514 = vmatprep.subr.bf16.mxu0 0
      %4515 = vmatpush1.bf16.msra.mxu0 %v4484
      %4516 = vmatprep.subr.bf16.mxu0 0
      %4517 = vmatpush2.bf16.msra.mxu0 0
      %4518 = vmatprep.subr.bf16.mxu0 0
      %4519 = vmatpush2.bf16.msra.mxu0 0
      %4520 = vmatprep.subr.bf16.mxu0 0
      %4521 = vmatpush2.bf16.msra.mxu0 0
      %4522 = vmatprep.subr.bf16.mxu0 0
      %4523 = vmatpush2.bf16.msra.mxu0 0
      %4524 = vmatprep.subr.bf16.mxu0 0
      %4525 = vmatpush2.bf16.msra.mxu0 0
      %4526 = vmatprep.subr.bf16.mxu0 0
      %4527 = vmatpush2.bf16.msra.mxu0 0
      %4528 = vmatprep.subr.bf16.mxu0 0
      %4529 = vmatpush2.bf16.msra.mxu0 0
      %4530 = vmatprep.subr.bf16.mxu0 0
      %4531 = vmatpush2.bf16.msra.mxu0 0
      %4532 = vmatprep.mubr.bf16.mxu0 0
      %4533 = vmatmul.mubr.bf16.gmra.mxu0 %v4434
      %v4534 = vpop.f32.mrf.mxu0
      %v4535 = vadd.f32 0.0, %v4534
      %v4536 = vpop.f32.mrf.mxu0
      %v4537 = vpop.f32.mrf.mxu0
      %v4538 = vpop.f32.mrf.mxu0
      %4539 = vdwg.mxu0
      %v4540 = vadd.f32 %v4391, %v4535
      %s4541 = scalar_lea.vmem %s3, 108
      %v4542 = vld [vmem:[%s4541] sm:$0xf]
      %4543 = vmatprep.subr.bf16.mxu0 0
      %4544 = vmatpush1.bf16.msra.mxu0 %v514
      %4545 = vmatprep.subr.bf16.mxu0 0
      %4546 = vmatpush1.bf16.msra.mxu0 %v513
      %4547 = vmatprep.subr.bf16.mxu0 0
      %4548 = vmatpush1.bf16.msra.mxu0 %v512
      %4549 = vmatprep.subr.bf16.mxu0 0
      %4550 = vmatpush1.bf16.msra.mxu0 %v511
      %4551 = vmatprep.subr.bf16.mxu0 0
      %4552 = vmatpush1.bf16.msra.mxu0 %v510
      %4553 = vmatprep.subr.bf16.mxu0 0
      %4554 = vmatpush1.bf16.msra.mxu0 %v509
      %4555 = vmatprep.subr.bf16.mxu0 0
      %4556 = vmatpush1.bf16.msra.mxu0 %v508
      %4557 = vmatprep.subr.bf16.mxu0 0
      %4558 = vmatpush1.bf16.msra.mxu0 %v507
      %4559 = vmatprep.subr.bf16.mxu0 0
      %4560 = vmatpush2.bf16.msra.mxu0 0
      %4561 = vmatprep.subr.bf16.mxu0 0
      %4562 = vmatpush2.bf16.msra.mxu0 0
      %4563 = vmatprep.subr.bf16.mxu0 0
      %4564 = vmatpush2.bf16.msra.mxu0 0
      %4565 = vmatprep.subr.bf16.mxu0 0
      %4566 = vmatpush2.bf16.msra.mxu0 0
      %4567 = vmatprep.subr.bf16.mxu0 0
      %4568 = vmatpush2.bf16.msra.mxu0 0
      %4569 = vmatprep.subr.bf16.mxu0 0
      %4570 = vmatpush2.bf16.msra.mxu0 0
      %4571 = vmatprep.subr.bf16.mxu0 0
      %4572 = vmatpush2.bf16.msra.mxu0 0
      %4573 = vmatprep.subr.bf16.mxu0 0
      %4574 = vmatpush2.bf16.msra.mxu0 0
      %4575 = vmatprep.mubr.bf16.mxu0 0
      %4576 = vmatmul.mubr.bf16.gmra.mxu0 %v4542
      %v4577 = vpop.f32.mrf.mxu0
      %v4578 = vadd.f32 0.0, %v4577
      %v4579 = vpop.f32.mrf.mxu0
      %v4580 = vpop.f32.mrf.mxu0
      %v4581 = vpop.f32.mrf.mxu0
      %4582 = vdwg.mxu0
      %v4583 = vpack.c.bf16 %v4578, %v4578
      %s4584 = scalar_lea.vmem %s4, 1728
      %v4585 = vld [vmem:[%s4584] sm:$0xf]
      %v4586 = vld [vmem:[%s4584 + $0x4] sm:$0xf]
      %v4587 = vld [vmem:[%s4584 + $0x8] sm:$0xf]
      %v4588 = vld [vmem:[%s4584 + $0xc] sm:$0xf]
      %v4589 = vld [vmem:[%s4584 + $0x10] sm:$0xf]
      %v4590 = vld [vmem:[%s4584 + $0x14] sm:$0xf]
      %v4591 = vld [vmem:[%s4584 + $0x18] sm:$0xf]
      %v4592 = vld [vmem:[%s4584 + $0x1c] sm:$0xf]
      %v4593 = vld [vmem:[%s4584 + $0x20] sm:$0xf]
      %v4594 = vld [vmem:[%s4584 + $0x24] sm:$0xf]
      %v4595 = vld [vmem:[%s4584 + $0x28] sm:$0xf]
      %v4596 = vld [vmem:[%s4584 + $0x2c] sm:$0xf]
      %v4597 = vld [vmem:[%s4584 + $0x30] sm:$0xf]
      %v4598 = vld [vmem:[%s4584 + $0x34] sm:$0xf]
      %v4599 = vld [vmem:[%s4584 + $0x38] sm:$0xf]
      %v4600 = vld [vmem:[%s4584 + $0x3c] sm:$0xf]
      %v4617 = vunpack.c.l.b16 %v4585
      %v4618 = vunpack.c.l.b16 %v4586
      %v4619 = vunpack.c.l.b16 %v4587
      %v4620 = vunpack.c.l.b16 %v4588
      %v4621 = vunpack.c.l.b16 %v4589
      %v4622 = vunpack.c.l.b16 %v4590
      %v4623 = vunpack.c.l.b16 %v4591
      %v4624 = vunpack.c.l.b16 %v4592
      %v4625 = vunpack.c.l.b16 %v4593
      %v4626 = vunpack.c.l.b16 %v4594
      %v4627 = vunpack.c.l.b16 %v4595
      %v4628 = vunpack.c.l.b16 %v4596
      %v4629 = vunpack.c.l.b16 %v4597
      %v4630 = vunpack.c.l.b16 %v4598
      %v4631 = vunpack.c.l.b16 %v4599
      %v4632 = vunpack.c.l.b16 %v4600
      %v4633 = vpack.c.b16 %v4618, %v4617
      %v4634 = vpack.c.b16 %v4620, %v4619
      %v4635 = vpack.c.b16 %v4622, %v4621
      %v4636 = vpack.c.b16 %v4624, %v4623
      %v4637 = vpack.c.b16 %v4626, %v4625
      %v4638 = vpack.c.b16 %v4628, %v4627
      %v4639 = vpack.c.b16 %v4630, %v4629
      %v4640 = vpack.c.b16 %v4632, %v4631
      %4649 = vmatprep.subr.bf16.mxu0 0
      %4650 = vmatpush1.bf16.msra.mxu0 %v4640
      %4651 = vmatprep.subr.bf16.mxu0 0
      %4652 = vmatpush1.bf16.msra.mxu0 %v4639
      %4653 = vmatprep.subr.bf16.mxu0 0
      %4654 = vmatpush1.bf16.msra.mxu0 %v4638
      %4655 = vmatprep.subr.bf16.mxu0 0
      %4656 = vmatpush1.bf16.msra.mxu0 %v4637
      %4657 = vmatprep.subr.bf16.mxu0 0
      %4658 = vmatpush1.bf16.msra.mxu0 %v4636
      %4659 = vmatprep.subr.bf16.mxu0 0
      %4660 = vmatpush1.bf16.msra.mxu0 %v4635
      %4661 = vmatprep.subr.bf16.mxu0 0
      %4662 = vmatpush1.bf16.msra.mxu0 %v4634
      %4663 = vmatprep.subr.bf16.mxu0 0
      %4664 = vmatpush1.bf16.msra.mxu0 %v4633
      %4665 = vmatprep.subr.bf16.mxu0 0
      %4666 = vmatpush2.bf16.msra.mxu0 0
      %4667 = vmatprep.subr.bf16.mxu0 0
      %4668 = vmatpush2.bf16.msra.mxu0 0
      %4669 = vmatprep.subr.bf16.mxu0 0
      %4670 = vmatpush2.bf16.msra.mxu0 0
      %4671 = vmatprep.subr.bf16.mxu0 0
      %4672 = vmatpush2.bf16.msra.mxu0 0
      %4673 = vmatprep.subr.bf16.mxu0 0
      %4674 = vmatpush2.bf16.msra.mxu0 0
      %4675 = vmatprep.subr.bf16.mxu0 0
      %4676 = vmatpush2.bf16.msra.mxu0 0
      %4677 = vmatprep.subr.bf16.mxu0 0
      %4678 = vmatpush2.bf16.msra.mxu0 0
      %4679 = vmatprep.subr.bf16.mxu0 0
      %4680 = vmatpush2.bf16.msra.mxu0 0
      %4681 = vmatprep.mubr.bf16.mxu0 0
      %4682 = vmatmul.mubr.bf16.gmra.mxu0 %v4583
      %v4683 = vpop.f32.mrf.mxu0
      %v4684 = vadd.f32 0.0, %v4683
      %v4685 = vpop.f32.mrf.mxu0
      %v4686 = vpop.f32.mrf.mxu0
      %v4687 = vpop.f32.mrf.mxu0
      %4688 = vdwg.mxu0
      %v4689 = vadd.f32 %v4540, %v4684
      %s4690 = scalar_lea.vmem %s3, 112
      %v4691 = vld [vmem:[%s4690] sm:$0xf]
      %4692 = vmatprep.subr.bf16.mxu0 0
      %4693 = vmatpush1.bf16.msra.mxu0 %v514
      %4694 = vmatprep.subr.bf16.mxu0 0
      %4695 = vmatpush1.bf16.msra.mxu0 %v513
      %4696 = vmatprep.subr.bf16.mxu0 0
      %4697 = vmatpush1.bf16.msra.mxu0 %v512
      %4698 = vmatprep.subr.bf16.mxu0 0
      %4699 = vmatpush1.bf16.msra.mxu0 %v511
      %4700 = vmatprep.subr.bf16.mxu0 0
      %4701 = vmatpush1.bf16.msra.mxu0 %v510
      %4702 = vmatprep.subr.bf16.mxu0 0
      %4703 = vmatpush1.bf16.msra.mxu0 %v509
      %4704 = vmatprep.subr.bf16.mxu0 0
      %4705 = vmatpush1.bf16.msra.mxu0 %v508
      %4706 = vmatprep.subr.bf16.mxu0 0
      %4707 = vmatpush1.bf16.msra.mxu0 %v507
      %4708 = vmatprep.subr.bf16.mxu0 0
      %4709 = vmatpush2.bf16.msra.mxu0 0
      %4710 = vmatprep.subr.bf16.mxu0 0
      %4711 = vmatpush2.bf16.msra.mxu0 0
      %4712 = vmatprep.subr.bf16.mxu0 0
      %4713 = vmatpush2.bf16.msra.mxu0 0
      %4714 = vmatprep.subr.bf16.mxu0 0
      %4715 = vmatpush2.bf16.msra.mxu0 0
      %4716 = vmatprep.subr.bf16.mxu0 0
      %4717 = vmatpush2.bf16.msra.mxu0 0
      %4718 = vmatprep.subr.bf16.mxu0 0
      %4719 = vmatpush2.bf16.msra.mxu0 0
      %4720 = vmatprep.subr.bf16.mxu0 0
      %4721 = vmatpush2.bf16.msra.mxu0 0
      %4722 = vmatprep.subr.bf16.mxu0 0
      %4723 = vmatpush2.bf16.msra.mxu0 0
      %4724 = vmatprep.mubr.bf16.mxu0 0
      %4725 = vmatmul.mubr.bf16.gmra.mxu0 %v4691
      %v4726 = vpop.f32.mrf.mxu0
      %v4727 = vadd.f32 0.0, %v4726
      %v4728 = vpop.f32.mrf.mxu0
      %v4729 = vpop.f32.mrf.mxu0
      %v4730 = vpop.f32.mrf.mxu0
      %4731 = vdwg.mxu0
      %v4732 = vpack.c.bf16 %v4727, %v4727
      %s4733 = scalar_lea.vmem %s4, 1792
      %v4734 = vld [vmem:[%s4733] sm:$0xf]
      %v4735 = vld [vmem:[%s4733 + $0x4] sm:$0xf]
      %v4736 = vld [vmem:[%s4733 + $0x8] sm:$0xf]
      %v4737 = vld [vmem:[%s4733 + $0xc] sm:$0xf]
      %v4738 = vld [vmem:[%s4733 + $0x10] sm:$0xf]
      %v4739 = vld [vmem:[%s4733 + $0x14] sm:$0xf]
      %v4740 = vld [vmem:[%s4733 + $0x18] sm:$0xf]
      %v4741 = vld [vmem:[%s4733 + $0x1c] sm:$0xf]
      %v4742 = vld [vmem:[%s4733 + $0x20] sm:$0xf]
      %v4743 = vld [vmem:[%s4733 + $0x24] sm:$0xf]
      %v4744 = vld [vmem:[%s4733 + $0x28] sm:$0xf]
      %v4745 = vld [vmem:[%s4733 + $0x2c] sm:$0xf]
      %v4746 = vld [vmem:[%s4733 + $0x30] sm:$0xf]
      %v4747 = vld [vmem:[%s4733 + $0x34] sm:$0xf]
      %v4748 = vld [vmem:[%s4733 + $0x38] sm:$0xf]
      %v4749 = vld [vmem:[%s4733 + $0x3c] sm:$0xf]
      %v4766 = vunpack.c.l.b16 %v4734
      %v4767 = vunpack.c.l.b16 %v4735
      %v4768 = vunpack.c.l.b16 %v4736
      %v4769 = vunpack.c.l.b16 %v4737
      %v4770 = vunpack.c.l.b16 %v4738
      %v4771 = vunpack.c.l.b16 %v4739
      %v4772 = vunpack.c.l.b16 %v4740
      %v4773 = vunpack.c.l.b16 %v4741
      %v4774 = vunpack.c.l.b16 %v4742
      %v4775 = vunpack.c.l.b16 %v4743
      %v4776 = vunpack.c.l.b16 %v4744
      %v4777 = vunpack.c.l.b16 %v4745
      %v4778 = vunpack.c.l.b16 %v4746
      %v4779 = vunpack.c.l.b16 %v4747
      %v4780 = vunpack.c.l.b16 %v4748
      %v4781 = vunpack.c.l.b16 %v4749
      %v4782 = vpack.c.b16 %v4767, %v4766
      %v4783 = vpack.c.b16 %v4769, %v4768
      %v4784 = vpack.c.b16 %v4771, %v4770
      %v4785 = vpack.c.b16 %v4773, %v4772
      %v4786 = vpack.c.b16 %v4775, %v4774
      %v4787 = vpack.c.b16 %v4777, %v4776
      %v4788 = vpack.c.b16 %v4779, %v4778
      %v4789 = vpack.c.b16 %v4781, %v4780
      %4798 = vmatprep.subr.bf16.mxu0 0
      %4799 = vmatpush1.bf16.msra.mxu0 %v4789
      %4800 = vmatprep.subr.bf16.mxu0 0
      %4801 = vmatpush1.bf16.msra.mxu0 %v4788
      %4802 = vmatprep.subr.bf16.mxu0 0
      %4803 = vmatpush1.bf16.msra.mxu0 %v4787
      %4804 = vmatprep.subr.bf16.mxu0 0
      %4805 = vmatpush1.bf16.msra.mxu0 %v4786
      %4806 = vmatprep.subr.bf16.mxu0 0
      %4807 = vmatpush1.bf16.msra.mxu0 %v4785
      %4808 = vmatprep.subr.bf16.mxu0 0
      %4809 = vmatpush1.bf16.msra.mxu0 %v4784
      %4810 = vmatprep.subr.bf16.mxu0 0
      %4811 = vmatpush1.bf16.msra.mxu0 %v4783
      %4812 = vmatprep.subr.bf16.mxu0 0
      %4813 = vmatpush1.bf16.msra.mxu0 %v4782
      %4814 = vmatprep.subr.bf16.mxu0 0
      %4815 = vmatpush2.bf16.msra.mxu0 0
      %4816 = vmatprep.subr.bf16.mxu0 0
      %4817 = vmatpush2.bf16.msra.mxu0 0
      %4818 = vmatprep.subr.bf16.mxu0 0
      %4819 = vmatpush2.bf16.msra.mxu0 0
      %4820 = vmatprep.subr.bf16.mxu0 0
      %4821 = vmatpush2.bf16.msra.mxu0 0
      %4822 = vmatprep.subr.bf16.mxu0 0
      %4823 = vmatpush2.bf16.msra.mxu0 0
      %4824 = vmatprep.subr.bf16.mxu0 0
      %4825 = vmatpush2.bf16.msra.mxu0 0
      %4826 = vmatprep.subr.bf16.mxu0 0
      %4827 = vmatpush2.bf16.msra.mxu0 0
      %4828 = vmatprep.subr.bf16.mxu0 0
      %4829 = vmatpush2.bf16.msra.mxu0 0
      %4830 = vmatprep.mubr.bf16.mxu0 0
      %4831 = vmatmul.mubr.bf16.gmra.mxu0 %v4732
      %v4832 = vpop.f32.mrf.mxu0
      %v4833 = vadd.f32 0.0, %v4832
      %v4834 = vpop.f32.mrf.mxu0
      %v4835 = vpop.f32.mrf.mxu0
      %v4836 = vpop.f32.mrf.mxu0
      %4837 = vdwg.mxu0
      %v4838 = vadd.f32 %v4689, %v4833
      %s4839 = scalar_lea.vmem %s3, 116
      %v4840 = vld [vmem:[%s4839] sm:$0xf]
      %4841 = vmatprep.subr.bf16.mxu0 0
      %4842 = vmatpush1.bf16.msra.mxu0 %v514
      %4843 = vmatprep.subr.bf16.mxu0 0
      %4844 = vmatpush1.bf16.msra.mxu0 %v513
      %4845 = vmatprep.subr.bf16.mxu0 0
      %4846 = vmatpush1.bf16.msra.mxu0 %v512
      %4847 = vmatprep.subr.bf16.mxu0 0
      %4848 = vmatpush1.bf16.msra.mxu0 %v511
      %4849 = vmatprep.subr.bf16.mxu0 0
      %4850 = vmatpush1.bf16.msra.mxu0 %v510
      %4851 = vmatprep.subr.bf16.mxu0 0
      %4852 = vmatpush1.bf16.msra.mxu0 %v509
      %4853 = vmatprep.subr.bf16.mxu0 0
      %4854 = vmatpush1.bf16.msra.mxu0 %v508
      %4855 = vmatprep.subr.bf16.mxu0 0
      %4856 = vmatpush1.bf16.msra.mxu0 %v507
      %4857 = vmatprep.subr.bf16.mxu0 0
      %4858 = vmatpush2.bf16.msra.mxu0 0
      %4859 = vmatprep.subr.bf16.mxu0 0
      %4860 = vmatpush2.bf16.msra.mxu0 0
      %4861 = vmatprep.subr.bf16.mxu0 0
      %4862 = vmatpush2.bf16.msra.mxu0 0
      %4863 = vmatprep.subr.bf16.mxu0 0
      %4864 = vmatpush2.bf16.msra.mxu0 0
      %4865 = vmatprep.subr.bf16.mxu0 0
      %4866 = vmatpush2.bf16.msra.mxu0 0
      %4867 = vmatprep.subr.bf16.mxu0 0
      %4868 = vmatpush2.bf16.msra.mxu0 0
      %4869 = vmatprep.subr.bf16.mxu0 0
      %4870 = vmatpush2.bf16.msra.mxu0 0
      %4871 = vmatprep.subr.bf16.mxu0 0
      %4872 = vmatpush2.bf16.msra.mxu0 0
      %4873 = vmatprep.mubr.bf16.mxu0 0
      %4874 = vmatmul.mubr.bf16.gmra.mxu0 %v4840
      %v4875 = vpop.f32.mrf.mxu0
      %v4876 = vadd.f32 0.0, %v4875
      %v4877 = vpop.f32.mrf.mxu0
      %v4878 = vpop.f32.mrf.mxu0
      %v4879 = vpop.f32.mrf.mxu0
      %4880 = vdwg.mxu0
      %v4881 = vpack.c.bf16 %v4876, %v4876
      %s4882 = scalar_lea.vmem %s4, 1856
      %v4883 = vld [vmem:[%s4882] sm:$0xf]
      %v4884 = vld [vmem:[%s4882 + $0x4] sm:$0xf]
      %v4885 = vld [vmem:[%s4882 + $0x8] sm:$0xf]
      %v4886 = vld [vmem:[%s4882 + $0xc] sm:$0xf]
      %v4887 = vld [vmem:[%s4882 + $0x10] sm:$0xf]
      %v4888 = vld [vmem:[%s4882 + $0x14] sm:$0xf]
      %v4889 = vld [vmem:[%s4882 + $0x18] sm:$0xf]
      %v4890 = vld [vmem:[%s4882 + $0x1c] sm:$0xf]
      %v4891 = vld [vmem:[%s4882 + $0x20] sm:$0xf]
      %v4892 = vld [vmem:[%s4882 + $0x24] sm:$0xf]
      %v4893 = vld [vmem:[%s4882 + $0x28] sm:$0xf]
      %v4894 = vld [vmem:[%s4882 + $0x2c] sm:$0xf]
      %v4895 = vld [vmem:[%s4882 + $0x30] sm:$0xf]
      %v4896 = vld [vmem:[%s4882 + $0x34] sm:$0xf]
      %v4897 = vld [vmem:[%s4882 + $0x38] sm:$0xf]
      %v4898 = vld [vmem:[%s4882 + $0x3c] sm:$0xf]
      %v4915 = vunpack.c.l.b16 %v4883
      %v4916 = vunpack.c.l.b16 %v4884
      %v4917 = vunpack.c.l.b16 %v4885
      %v4918 = vunpack.c.l.b16 %v4886
      %v4919 = vunpack.c.l.b16 %v4887
      %v4920 = vunpack.c.l.b16 %v4888
      %v4921 = vunpack.c.l.b16 %v4889
      %v4922 = vunpack.c.l.b16 %v4890
      %v4923 = vunpack.c.l.b16 %v4891
      %v4924 = vunpack.c.l.b16 %v4892
      %v4925 = vunpack.c.l.b16 %v4893
      %v4926 = vunpack.c.l.b16 %v4894
      %v4927 = vunpack.c.l.b16 %v4895
      %v4928 = vunpack.c.l.b16 %v4896
      %v4929 = vunpack.c.l.b16 %v4897
      %v4930 = vunpack.c.l.b16 %v4898
      %v4931 = vpack.c.b16 %v4916, %v4915
      %v4932 = vpack.c.b16 %v4918, %v4917
      %v4933 = vpack.c.b16 %v4920, %v4919
      %v4934 = vpack.c.b16 %v4922, %v4921
      %v4935 = vpack.c.b16 %v4924, %v4923
      %v4936 = vpack.c.b16 %v4926, %v4925
      %v4937 = vpack.c.b16 %v4928, %v4927
      %v4938 = vpack.c.b16 %v4930, %v4929
      %4947 = vmatprep.subr.bf16.mxu0 0
      %4948 = vmatpush1.bf16.msra.mxu0 %v4938
      %4949 = vmatprep.subr.bf16.mxu0 0
      %4950 = vmatpush1.bf16.msra.mxu0 %v4937
      %4951 = vmatprep.subr.bf16.mxu0 0
      %4952 = vmatpush1.bf16.msra.mxu0 %v4936
      %4953 = vmatprep.subr.bf16.mxu0 0
      %4954 = vmatpush1.bf16.msra.mxu0 %v4935
      %4955 = vmatprep.subr.bf16.mxu0 0
      %4956 = vmatpush1.bf16.msra.mxu0 %v4934
      %4957 = vmatprep.subr.bf16.mxu0 0
      %4958 = vmatpush1.bf16.msra.mxu0 %v4933
      %4959 = vmatprep.subr.bf16.mxu0 0
      %4960 = vmatpush1.bf16.msra.mxu0 %v4932
      %4961 = vmatprep.subr.bf16.mxu0 0
      %4962 = vmatpush1.bf16.msra.mxu0 %v4931
      %4963 = vmatprep.subr.bf16.mxu0 0
      %4964 = vmatpush2.bf16.msra.mxu0 0
      %4965 = vmatprep.subr.bf16.mxu0 0
      %4966 = vmatpush2.bf16.msra.mxu0 0
      %4967 = vmatprep.subr.bf16.mxu0 0
      %4968 = vmatpush2.bf16.msra.mxu0 0
      %4969 = vmatprep.subr.bf16.mxu0 0
      %4970 = vmatpush2.bf16.msra.mxu0 0
      %4971 = vmatprep.subr.bf16.mxu0 0
      %4972 = vmatpush2.bf16.msra.mxu0 0
      %4973 = vmatprep.subr.bf16.mxu0 0
      %4974 = vmatpush2.bf16.msra.mxu0 0
      %4975 = vmatprep.subr.bf16.mxu0 0
      %4976 = vmatpush2.bf16.msra.mxu0 0
      %4977 = vmatprep.subr.bf16.mxu0 0
      %4978 = vmatpush2.bf16.msra.mxu0 0
      %4979 = vmatprep.mubr.bf16.mxu0 0
      %4980 = vmatmul.mubr.bf16.gmra.mxu0 %v4881
      %v4981 = vpop.f32.mrf.mxu0
      %v4982 = vadd.f32 0.0, %v4981
      %v4983 = vpop.f32.mrf.mxu0
      %v4984 = vpop.f32.mrf.mxu0
      %v4985 = vpop.f32.mrf.mxu0
      %4986 = vdwg.mxu0
      %v4987 = vadd.f32 %v4838, %v4982
      %s4988 = scalar_lea.vmem %s3, 120
      %v4989 = vld [vmem:[%s4988] sm:$0xf]
      %4990 = vmatprep.subr.bf16.mxu0 0
      %4991 = vmatpush1.bf16.msra.mxu0 %v514
      %4992 = vmatprep.subr.bf16.mxu0 0
      %4993 = vmatpush1.bf16.msra.mxu0 %v513
      %4994 = vmatprep.subr.bf16.mxu0 0
      %4995 = vmatpush1.bf16.msra.mxu0 %v512
      %4996 = vmatprep.subr.bf16.mxu0 0
      %4997 = vmatpush1.bf16.msra.mxu0 %v511
      %4998 = vmatprep.subr.bf16.mxu0 0
      %4999 = vmatpush1.bf16.msra.mxu0 %v510
      %5000 = vmatprep.subr.bf16.mxu0 0
      %5001 = vmatpush1.bf16.msra.mxu0 %v509
      %5002 = vmatprep.subr.bf16.mxu0 0
      %5003 = vmatpush1.bf16.msra.mxu0 %v508
      %5004 = vmatprep.subr.bf16.mxu0 0
      %5005 = vmatpush1.bf16.msra.mxu0 %v507
      %5006 = vmatprep.subr.bf16.mxu0 0
      %5007 = vmatpush2.bf16.msra.mxu0 0
      %5008 = vmatprep.subr.bf16.mxu0 0
      %5009 = vmatpush2.bf16.msra.mxu0 0
      %5010 = vmatprep.subr.bf16.mxu0 0
      %5011 = vmatpush2.bf16.msra.mxu0 0
      %5012 = vmatprep.subr.bf16.mxu0 0
      %5013 = vmatpush2.bf16.msra.mxu0 0
      %5014 = vmatprep.subr.bf16.mxu0 0
      %5015 = vmatpush2.bf16.msra.mxu0 0
      %5016 = vmatprep.subr.bf16.mxu0 0
      %5017 = vmatpush2.bf16.msra.mxu0 0
      %5018 = vmatprep.subr.bf16.mxu0 0
      %5019 = vmatpush2.bf16.msra.mxu0 0
      %5020 = vmatprep.subr.bf16.mxu0 0
      %5021 = vmatpush2.bf16.msra.mxu0 0
      %5022 = vmatprep.mubr.bf16.mxu0 0
      %5023 = vmatmul.mubr.bf16.gmra.mxu0 %v4989
      %v5024 = vpop.f32.mrf.mxu0
      %v5025 = vadd.f32 0.0, %v5024
      %v5026 = vpop.f32.mrf.mxu0
      %v5027 = vpop.f32.mrf.mxu0
      %v5028 = vpop.f32.mrf.mxu0
      %5029 = vdwg.mxu0
      %v5030 = vpack.c.bf16 %v5025, %v5025
      %s5031 = scalar_lea.vmem %s4, 1920
      %v5032 = vld [vmem:[%s5031] sm:$0xf]
      %v5033 = vld [vmem:[%s5031 + $0x4] sm:$0xf]
      %v5034 = vld [vmem:[%s5031 + $0x8] sm:$0xf]
      %v5035 = vld [vmem:[%s5031 + $0xc] sm:$0xf]
      %v5036 = vld [vmem:[%s5031 + $0x10] sm:$0xf]
      %v5037 = vld [vmem:[%s5031 + $0x14] sm:$0xf]
      %v5038 = vld [vmem:[%s5031 + $0x18] sm:$0xf]
      %v5039 = vld [vmem:[%s5031 + $0x1c] sm:$0xf]
      %v5040 = vld [vmem:[%s5031 + $0x20] sm:$0xf]
      %v5041 = vld [vmem:[%s5031 + $0x24] sm:$0xf]
      %v5042 = vld [vmem:[%s5031 + $0x28] sm:$0xf]
      %v5043 = vld [vmem:[%s5031 + $0x2c] sm:$0xf]
      %v5044 = vld [vmem:[%s5031 + $0x30] sm:$0xf]
      %v5045 = vld [vmem:[%s5031 + $0x34] sm:$0xf]
      %v5046 = vld [vmem:[%s5031 + $0x38] sm:$0xf]
      %v5047 = vld [vmem:[%s5031 + $0x3c] sm:$0xf]
      %v5064 = vunpack.c.l.b16 %v5032
      %v5065 = vunpack.c.l.b16 %v5033
      %v5066 = vunpack.c.l.b16 %v5034
      %v5067 = vunpack.c.l.b16 %v5035
      %v5068 = vunpack.c.l.b16 %v5036
      %v5069 = vunpack.c.l.b16 %v5037
      %v5070 = vunpack.c.l.b16 %v5038
      %v5071 = vunpack.c.l.b16 %v5039
      %v5072 = vunpack.c.l.b16 %v5040
      %v5073 = vunpack.c.l.b16 %v5041
      %v5074 = vunpack.c.l.b16 %v5042
      %v5075 = vunpack.c.l.b16 %v5043
      %v5076 = vunpack.c.l.b16 %v5044
      %v5077 = vunpack.c.l.b16 %v5045
      %v5078 = vunpack.c.l.b16 %v5046
      %v5079 = vunpack.c.l.b16 %v5047
      %v5080 = vpack.c.b16 %v5065, %v5064
      %v5081 = vpack.c.b16 %v5067, %v5066
      %v5082 = vpack.c.b16 %v5069, %v5068
      %v5083 = vpack.c.b16 %v5071, %v5070
      %v5084 = vpack.c.b16 %v5073, %v5072
      %v5085 = vpack.c.b16 %v5075, %v5074
      %v5086 = vpack.c.b16 %v5077, %v5076
      %v5087 = vpack.c.b16 %v5079, %v5078
      %5096 = vmatprep.subr.bf16.mxu0 0
      %5097 = vmatpush1.bf16.msra.mxu0 %v5087
      %5098 = vmatprep.subr.bf16.mxu0 0
      %5099 = vmatpush1.bf16.msra.mxu0 %v5086
      %5100 = vmatprep.subr.bf16.mxu0 0
      %5101 = vmatpush1.bf16.msra.mxu0 %v5085
      %5102 = vmatprep.subr.bf16.mxu0 0
      %5103 = vmatpush1.bf16.msra.mxu0 %v5084
      %5104 = vmatprep.subr.bf16.mxu0 0
      %5105 = vmatpush1.bf16.msra.mxu0 %v5083
      %5106 = vmatprep.subr.bf16.mxu0 0
      %5107 = vmatpush1.bf16.msra.mxu0 %v5082
      %5108 = vmatprep.subr.bf16.mxu0 0
      %5109 = vmatpush1.bf16.msra.mxu0 %v5081
      %5110 = vmatprep.subr.bf16.mxu0 0
      %5111 = vmatpush1.bf16.msra.mxu0 %v5080
      %5112 = vmatprep.subr.bf16.mxu0 0
      %5113 = vmatpush2.bf16.msra.mxu0 0
      %5114 = vmatprep.subr.bf16.mxu0 0
      %5115 = vmatpush2.bf16.msra.mxu0 0
      %5116 = vmatprep.subr.bf16.mxu0 0
      %5117 = vmatpush2.bf16.msra.mxu0 0
      %5118 = vmatprep.subr.bf16.mxu0 0
      %5119 = vmatpush2.bf16.msra.mxu0 0
      %5120 = vmatprep.subr.bf16.mxu0 0
      %5121 = vmatpush2.bf16.msra.mxu0 0
      %5122 = vmatprep.subr.bf16.mxu0 0
      %5123 = vmatpush2.bf16.msra.mxu0 0
      %5124 = vmatprep.subr.bf16.mxu0 0
      %5125 = vmatpush2.bf16.msra.mxu0 0
      %5126 = vmatprep.subr.bf16.mxu0 0
      %5127 = vmatpush2.bf16.msra.mxu0 0
      %5128 = vmatprep.mubr.bf16.mxu0 0
      %5129 = vmatmul.mubr.bf16.gmra.mxu0 %v5030
      %v5130 = vpop.f32.mrf.mxu0
      %v5131 = vadd.f32 0.0, %v5130
      %v5132 = vpop.f32.mrf.mxu0
      %v5133 = vpop.f32.mrf.mxu0
      %v5134 = vpop.f32.mrf.mxu0
      %5135 = vdwg.mxu0
      %v5136 = vadd.f32 %v4987, %v5131
      %s5137 = scalar_lea.vmem %s3, 124
      %v5138 = vld [vmem:[%s5137] sm:$0xf]
      %5139 = vmatprep.subr.bf16.mxu0 0
      %5140 = vmatpush1.bf16.msra.mxu0 %v514
      %5141 = vmatprep.subr.bf16.mxu0 0
      %5142 = vmatpush1.bf16.msra.mxu0 %v513
      %5143 = vmatprep.subr.bf16.mxu0 0
      %5144 = vmatpush1.bf16.msra.mxu0 %v512
      %5145 = vmatprep.subr.bf16.mxu0 0
      %5146 = vmatpush1.bf16.msra.mxu0 %v511
      %5147 = vmatprep.subr.bf16.mxu0 0
      %5148 = vmatpush1.bf16.msra.mxu0 %v510
      %5149 = vmatprep.subr.bf16.mxu0 0
      %5150 = vmatpush1.bf16.msra.mxu0 %v509
      %5151 = vmatprep.subr.bf16.mxu0 0
      %5152 = vmatpush1.bf16.msra.mxu0 %v508
      %5153 = vmatprep.subr.bf16.mxu0 0
      %5154 = vmatpush1.bf16.msra.mxu0 %v507
      %5155 = vmatprep.subr.bf16.mxu0 0
      %5156 = vmatpush2.bf16.msra.mxu0 0
      %5157 = vmatprep.subr.bf16.mxu0 0
      %5158 = vmatpush2.bf16.msra.mxu0 0
      %5159 = vmatprep.subr.bf16.mxu0 0
      %5160 = vmatpush2.bf16.msra.mxu0 0
      %5161 = vmatprep.subr.bf16.mxu0 0
      %5162 = vmatpush2.bf16.msra.mxu0 0
      %5163 = vmatprep.subr.bf16.mxu0 0
      %5164 = vmatpush2.bf16.msra.mxu0 0
      %5165 = vmatprep.subr.bf16.mxu0 0
      %5166 = vmatpush2.bf16.msra.mxu0 0
      %5167 = vmatprep.subr.bf16.mxu0 0
      %5168 = vmatpush2.bf16.msra.mxu0 0
      %5169 = vmatprep.subr.bf16.mxu0 0
      %5170 = vmatpush2.bf16.msra.mxu0 0
      %5171 = vmatprep.mubr.bf16.mxu0 0
      %5172 = vmatmul.mubr.bf16.gmra.mxu0 %v5138
      %v5173 = vpop.f32.mrf.mxu0
      %v5174 = vadd.f32 0.0, %v5173
      %v5175 = vpop.f32.mrf.mxu0
      %v5176 = vpop.f32.mrf.mxu0
      %v5177 = vpop.f32.mrf.mxu0
      %5178 = vdwg.mxu0
      %v5179 = vpack.c.bf16 %v5174, %v5174
      %s5180 = scalar_lea.vmem %s4, 1984
      %v5181 = vld [vmem:[%s5180] sm:$0xf]
      %v5182 = vld [vmem:[%s5180 + $0x4] sm:$0xf]
      %v5183 = vld [vmem:[%s5180 + $0x8] sm:$0xf]
      %v5184 = vld [vmem:[%s5180 + $0xc] sm:$0xf]
      %v5185 = vld [vmem:[%s5180 + $0x10] sm:$0xf]
      %v5186 = vld [vmem:[%s5180 + $0x14] sm:$0xf]
      %v5187 = vld [vmem:[%s5180 + $0x18] sm:$0xf]
      %v5188 = vld [vmem:[%s5180 + $0x1c] sm:$0xf]
      %v5189 = vld [vmem:[%s5180 + $0x20] sm:$0xf]
      %v5190 = vld [vmem:[%s5180 + $0x24] sm:$0xf]
      %v5191 = vld [vmem:[%s5180 + $0x28] sm:$0xf]
      %v5192 = vld [vmem:[%s5180 + $0x2c] sm:$0xf]
      %v5193 = vld [vmem:[%s5180 + $0x30] sm:$0xf]
      %v5194 = vld [vmem:[%s5180 + $0x34] sm:$0xf]
      %v5195 = vld [vmem:[%s5180 + $0x38] sm:$0xf]
      %v5196 = vld [vmem:[%s5180 + $0x3c] sm:$0xf]
      %v5213 = vunpack.c.l.b16 %v5181
      %v5214 = vunpack.c.l.b16 %v5182
      %v5215 = vunpack.c.l.b16 %v5183
      %v5216 = vunpack.c.l.b16 %v5184
      %v5217 = vunpack.c.l.b16 %v5185
      %v5218 = vunpack.c.l.b16 %v5186
      %v5219 = vunpack.c.l.b16 %v5187
      %v5220 = vunpack.c.l.b16 %v5188
      %v5221 = vunpack.c.l.b16 %v5189
      %v5222 = vunpack.c.l.b16 %v5190
      %v5223 = vunpack.c.l.b16 %v5191
      %v5224 = vunpack.c.l.b16 %v5192
      %v5225 = vunpack.c.l.b16 %v5193
      %v5226 = vunpack.c.l.b16 %v5194
      %v5227 = vunpack.c.l.b16 %v5195
      %v5228 = vunpack.c.l.b16 %v5196
      %v5229 = vpack.c.b16 %v5214, %v5213
      %v5230 = vpack.c.b16 %v5216, %v5215
      %v5231 = vpack.c.b16 %v5218, %v5217
      %v5232 = vpack.c.b16 %v5220, %v5219
      %v5233 = vpack.c.b16 %v5222, %v5221
      %v5234 = vpack.c.b16 %v5224, %v5223
      %v5235 = vpack.c.b16 %v5226, %v5225
      %v5236 = vpack.c.b16 %v5228, %v5227
      %5245 = vmatprep.subr.bf16.mxu0 0
      %5246 = vmatpush1.bf16.msra.mxu0 %v5236
      %5247 = vmatprep.subr.bf16.mxu0 0
      %5248 = vmatpush1.bf16.msra.mxu0 %v5235
      %5249 = vmatprep.subr.bf16.mxu0 0
      %5250 = vmatpush1.bf16.msra.mxu0 %v5234
      %5251 = vmatprep.subr.bf16.mxu0 0
      %5252 = vmatpush1.bf16.msra.mxu0 %v5233
      %5253 = vmatprep.subr.bf16.mxu0 0
      %5254 = vmatpush1.bf16.msra.mxu0 %v5232
      %5255 = vmatprep.subr.bf16.mxu0 0
      %5256 = vmatpush1.bf16.msra.mxu0 %v5231
      %5257 = vmatprep.subr.bf16.mxu0 0
      %5258 = vmatpush1.bf16.msra.mxu0 %v5230
      %5259 = vmatprep.subr.bf16.mxu0 0
      %5260 = vmatpush1.bf16.msra.mxu0 %v5229
      %5261 = vmatprep.subr.bf16.mxu0 0
      %5262 = vmatpush2.bf16.msra.mxu0 0
      %5263 = vmatprep.subr.bf16.mxu0 0
      %5264 = vmatpush2.bf16.msra.mxu0 0
      %5265 = vmatprep.subr.bf16.mxu0 0
      %5266 = vmatpush2.bf16.msra.mxu0 0
      %5267 = vmatprep.subr.bf16.mxu0 0
      %5268 = vmatpush2.bf16.msra.mxu0 0
      %5269 = vmatprep.subr.bf16.mxu0 0
      %5270 = vmatpush2.bf16.msra.mxu0 0
      %5271 = vmatprep.subr.bf16.mxu0 0
      %5272 = vmatpush2.bf16.msra.mxu0 0
      %5273 = vmatprep.subr.bf16.mxu0 0
      %5274 = vmatpush2.bf16.msra.mxu0 0
      %5275 = vmatprep.subr.bf16.mxu0 0
      %5276 = vmatpush2.bf16.msra.mxu0 0
      %5277 = vmatprep.mubr.bf16.mxu0 0
      %5278 = vmatmul.mubr.bf16.gmra.mxu0 %v5179
      %v5279 = vpop.f32.mrf.mxu0
      %v5280 = vadd.f32 0.0, %v5279
      %v5281 = vpop.f32.mrf.mxu0
      %v5282 = vpop.f32.mrf.mxu0
      %v5283 = vpop.f32.mrf.mxu0
      %5284 = vdwg.mxu0
      %v5285 = vadd.f32 %v5136, %v5280
      %s5286 = scalar_lea.vmem %s3, 128
      %v5287 = vld [vmem:[%s5286] sm:$0xf]
      %5288 = vmatprep.subr.bf16.mxu0 0
      %5289 = vmatpush1.bf16.msra.mxu0 %v514
      %5290 = vmatprep.subr.bf16.mxu0 0
      %5291 = vmatpush1.bf16.msra.mxu0 %v513
      %5292 = vmatprep.subr.bf16.mxu0 0
      %5293 = vmatpush1.bf16.msra.mxu0 %v512
      %5294 = vmatprep.subr.bf16.mxu0 0
      %5295 = vmatpush1.bf16.msra.mxu0 %v511
      %5296 = vmatprep.subr.bf16.mxu0 0
      %5297 = vmatpush1.bf16.msra.mxu0 %v510
      %5298 = vmatprep.subr.bf16.mxu0 0
      %5299 = vmatpush1.bf16.msra.mxu0 %v509
      %5300 = vmatprep.subr.bf16.mxu0 0
      %5301 = vmatpush1.bf16.msra.mxu0 %v508
      %5302 = vmatprep.subr.bf16.mxu0 0
      %5303 = vmatpush1.bf16.msra.mxu0 %v507
      %5304 = vmatprep.subr.bf16.mxu0 0
      %5305 = vmatpush2.bf16.msra.mxu0 0
      %5306 = vmatprep.subr.bf16.mxu0 0
      %5307 = vmatpush2.bf16.msra.mxu0 0
      %5308 = vmatprep.subr.bf16.mxu0 0
      %5309 = vmatpush2.bf16.msra.mxu0 0
      %5310 = vmatprep.subr.bf16.mxu0 0
      %5311 = vmatpush2.bf16.msra.mxu0 0
      %5312 = vmatprep.subr.bf16.mxu0 0
      %5313 = vmatpush2.bf16.msra.mxu0 0
      %5314 = vmatprep.subr.bf16.mxu0 0
      %5315 = vmatpush2.bf16.msra.mxu0 0
      %5316 = vmatprep.subr.bf16.mxu0 0
      %5317 = vmatpush2.bf16.msra.mxu0 0
      %5318 = vmatprep.subr.bf16.mxu0 0
      %5319 = vmatpush2.bf16.msra.mxu0 0
      %5320 = vmatprep.mubr.bf16.mxu0 0
      %5321 = vmatmul.mubr.bf16.gmra.mxu0 %v5287
      %v5322 = vpop.f32.mrf.mxu0
      %v5323 = vadd.f32 0.0, %v5322
      %v5324 = vpop.f32.mrf.mxu0
      %v5325 = vpop.f32.mrf.mxu0
      %v5326 = vpop.f32.mrf.mxu0
      %5327 = vdwg.mxu0
      %v5328 = vpack.c.bf16 %v5323, %v5323
      %s5329 = scalar_lea.vmem %s4, 2048
      %v5330 = vld [vmem:[%s5329] sm:$0xf]
      %v5331 = vld [vmem:[%s5329 + $0x4] sm:$0xf]
      %v5332 = vld [vmem:[%s5329 + $0x8] sm:$0xf]
      %v5333 = vld [vmem:[%s5329 + $0xc] sm:$0xf]
      %v5334 = vld [vmem:[%s5329 + $0x10] sm:$0xf]
      %v5335 = vld [vmem:[%s5329 + $0x14] sm:$0xf]
      %v5336 = vld [vmem:[%s5329 + $0x18] sm:$0xf]
      %v5337 = vld [vmem:[%s5329 + $0x1c] sm:$0xf]
      %v5338 = vld [vmem:[%s5329 + $0x20] sm:$0xf]
      %v5339 = vld [vmem:[%s5329 + $0x24] sm:$0xf]
      %v5340 = vld [vmem:[%s5329 + $0x28] sm:$0xf]
      %v5341 = vld [vmem:[%s5329 + $0x2c] sm:$0xf]
      %v5342 = vld [vmem:[%s5329 + $0x30] sm:$0xf]
      %v5343 = vld [vmem:[%s5329 + $0x34] sm:$0xf]
      %v5344 = vld [vmem:[%s5329 + $0x38] sm:$0xf]
      %v5345 = vld [vmem:[%s5329 + $0x3c] sm:$0xf]
      %v5362 = vunpack.c.l.b16 %v5330
      %v5363 = vunpack.c.l.b16 %v5331
      %v5364 = vunpack.c.l.b16 %v5332
      %v5365 = vunpack.c.l.b16 %v5333
      %v5366 = vunpack.c.l.b16 %v5334
      %v5367 = vunpack.c.l.b16 %v5335
      %v5368 = vunpack.c.l.b16 %v5336
      %v5369 = vunpack.c.l.b16 %v5337
      %v5370 = vunpack.c.l.b16 %v5338
      %v5371 = vunpack.c.l.b16 %v5339
      %v5372 = vunpack.c.l.b16 %v5340
      %v5373 = vunpack.c.l.b16 %v5341
      %v5374 = vunpack.c.l.b16 %v5342
      %v5375 = vunpack.c.l.b16 %v5343
      %v5376 = vunpack.c.l.b16 %v5344
      %v5377 = vunpack.c.l.b16 %v5345
      %v5378 = vpack.c.b16 %v5363, %v5362
      %v5379 = vpack.c.b16 %v5365, %v5364
      %v5380 = vpack.c.b16 %v5367, %v5366
      %v5381 = vpack.c.b16 %v5369, %v5368
      %v5382 = vpack.c.b16 %v5371, %v5370
      %v5383 = vpack.c.b16 %v5373, %v5372
      %v5384 = vpack.c.b16 %v5375, %v5374
      %v5385 = vpack.c.b16 %v5377, %v5376
      %5394 = vmatprep.subr.bf16.mxu0 0
      %5395 = vmatpush1.bf16.msra.mxu0 %v5385
      %5396 = vmatprep.subr.bf16.mxu0 0
      %5397 = vmatpush1.bf16.msra.mxu0 %v5384
      %5398 = vmatprep.subr.bf16.mxu0 0
      %5399 = vmatpush1.bf16.msra.mxu0 %v5383
      %5400 = vmatprep.subr.bf16.mxu0 0
      %5401 = vmatpush1.bf16.msra.mxu0 %v5382
      %5402 = vmatprep.subr.bf16.mxu0 0
      %5403 = vmatpush1.bf16.msra.mxu0 %v5381
      %5404 = vmatprep.subr.bf16.mxu0 0
      %5405 = vmatpush1.bf16.msra.mxu0 %v5380
      %5406 = vmatprep.subr.bf16.mxu0 0
      %5407 = vmatpush1.bf16.msra.mxu0 %v5379
      %5408 = vmatprep.subr.bf16.mxu0 0
      %5409 = vmatpush1.bf16.msra.mxu0 %v5378
      %5410 = vmatprep.subr.bf16.mxu0 0
      %5411 = vmatpush2.bf16.msra.mxu0 0
      %5412 = vmatprep.subr.bf16.mxu0 0
      %5413 = vmatpush2.bf16.msra.mxu0 0
      %5414 = vmatprep.subr.bf16.mxu0 0
      %5415 = vmatpush2.bf16.msra.mxu0 0
      %5416 = vmatprep.subr.bf16.mxu0 0
      %5417 = vmatpush2.bf16.msra.mxu0 0
      %5418 = vmatprep.subr.bf16.mxu0 0
      %5419 = vmatpush2.bf16.msra.mxu0 0
      %5420 = vmatprep.subr.bf16.mxu0 0
      %5421 = vmatpush2.bf16.msra.mxu0 0
      %5422 = vmatprep.subr.bf16.mxu0 0
      %5423 = vmatpush2.bf16.msra.mxu0 0
      %5424 = vmatprep.subr.bf16.mxu0 0
      %5425 = vmatpush2.bf16.msra.mxu0 0
      %5426 = vmatprep.mubr.bf16.mxu0 0
      %5427 = vmatmul.mubr.bf16.gmra.mxu0 %v5328
      %v5428 = vpop.f32.mrf.mxu0
      %v5429 = vadd.f32 0.0, %v5428
      %v5430 = vpop.f32.mrf.mxu0
      %v5431 = vpop.f32.mrf.mxu0
      %v5432 = vpop.f32.mrf.mxu0
      %5433 = vdwg.mxu0
      %v5434 = vadd.f32 %v5285, %v5429
      %s5435 = scalar_lea.vmem %s3, 132
      %v5436 = vld [vmem:[%s5435] sm:$0xf]
      %5437 = vmatprep.subr.bf16.mxu0 0
      %5438 = vmatpush1.bf16.msra.mxu0 %v514
      %5439 = vmatprep.subr.bf16.mxu0 0
      %5440 = vmatpush1.bf16.msra.mxu0 %v513
      %5441 = vmatprep.subr.bf16.mxu0 0
      %5442 = vmatpush1.bf16.msra.mxu0 %v512
      %5443 = vmatprep.subr.bf16.mxu0 0
      %5444 = vmatpush1.bf16.msra.mxu0 %v511
      %5445 = vmatprep.subr.bf16.mxu0 0
      %5446 = vmatpush1.bf16.msra.mxu0 %v510
      %5447 = vmatprep.subr.bf16.mxu0 0
      %5448 = vmatpush1.bf16.msra.mxu0 %v509
      %5449 = vmatprep.subr.bf16.mxu0 0
      %5450 = vmatpush1.bf16.msra.mxu0 %v508
      %5451 = vmatprep.subr.bf16.mxu0 0
      %5452 = vmatpush1.bf16.msra.mxu0 %v507
      %5453 = vmatprep.subr.bf16.mxu0 0
      %5454 = vmatpush2.bf16.msra.mxu0 0
      %5455 = vmatprep.subr.bf16.mxu0 0
      %5456 = vmatpush2.bf16.msra.mxu0 0
      %5457 = vmatprep.subr.bf16.mxu0 0
      %5458 = vmatpush2.bf16.msra.mxu0 0
      %5459 = vmatprep.subr.bf16.mxu0 0
      %5460 = vmatpush2.bf16.msra.mxu0 0
      %5461 = vmatprep.subr.bf16.mxu0 0
      %5462 = vmatpush2.bf16.msra.mxu0 0
      %5463 = vmatprep.subr.bf16.mxu0 0
      %5464 = vmatpush2.bf16.msra.mxu0 0
      %5465 = vmatprep.subr.bf16.mxu0 0
      %5466 = vmatpush2.bf16.msra.mxu0 0
      %5467 = vmatprep.subr.bf16.mxu0 0
      %5468 = vmatpush2.bf16.msra.mxu0 0
      %5469 = vmatprep.mubr.bf16.mxu0 0
      %5470 = vmatmul.mubr.bf16.gmra.mxu0 %v5436
      %v5471 = vpop.f32.mrf.mxu0
      %v5472 = vadd.f32 0.0, %v5471
      %v5473 = vpop.f32.mrf.mxu0
      %v5474 = vpop.f32.mrf.mxu0
      %v5475 = vpop.f32.mrf.mxu0
      %5476 = vdwg.mxu0
      %v5477 = vpack.c.bf16 %v5472, %v5472
      %s5478 = scalar_lea.vmem %s4, 2112
      %v5479 = vld [vmem:[%s5478] sm:$0xf]
      %v5480 = vld [vmem:[%s5478 + $0x4] sm:$0xf]
      %v5481 = vld [vmem:[%s5478 + $0x8] sm:$0xf]
      %v5482 = vld [vmem:[%s5478 + $0xc] sm:$0xf]
      %v5483 = vld [vmem:[%s5478 + $0x10] sm:$0xf]
      %v5484 = vld [vmem:[%s5478 + $0x14] sm:$0xf]
      %v5485 = vld [vmem:[%s5478 + $0x18] sm:$0xf]
      %v5486 = vld [vmem:[%s5478 + $0x1c] sm:$0xf]
      %v5487 = vld [vmem:[%s5478 + $0x20] sm:$0xf]
      %v5488 = vld [vmem:[%s5478 + $0x24] sm:$0xf]
      %v5489 = vld [vmem:[%s5478 + $0x28] sm:$0xf]
      %v5490 = vld [vmem:[%s5478 + $0x2c] sm:$0xf]
      %v5491 = vld [vmem:[%s5478 + $0x30] sm:$0xf]
      %v5492 = vld [vmem:[%s5478 + $0x34] sm:$0xf]
      %v5493 = vld [vmem:[%s5478 + $0x38] sm:$0xf]
      %v5494 = vld [vmem:[%s5478 + $0x3c] sm:$0xf]
      %v5511 = vunpack.c.l.b16 %v5479
      %v5512 = vunpack.c.l.b16 %v5480
      %v5513 = vunpack.c.l.b16 %v5481
      %v5514 = vunpack.c.l.b16 %v5482
      %v5515 = vunpack.c.l.b16 %v5483
      %v5516 = vunpack.c.l.b16 %v5484
      %v5517 = vunpack.c.l.b16 %v5485
      %v5518 = vunpack.c.l.b16 %v5486
      %v5519 = vunpack.c.l.b16 %v5487
      %v5520 = vunpack.c.l.b16 %v5488
      %v5521 = vunpack.c.l.b16 %v5489
      %v5522 = vunpack.c.l.b16 %v5490
      %v5523 = vunpack.c.l.b16 %v5491
      %v5524 = vunpack.c.l.b16 %v5492
      %v5525 = vunpack.c.l.b16 %v5493
      %v5526 = vunpack.c.l.b16 %v5494
      %v5527 = vpack.c.b16 %v5512, %v5511
      %v5528 = vpack.c.b16 %v5514, %v5513
      %v5529 = vpack.c.b16 %v5516, %v5515
      %v5530 = vpack.c.b16 %v5518, %v5517
      %v5531 = vpack.c.b16 %v5520, %v5519
      %v5532 = vpack.c.b16 %v5522, %v5521
      %v5533 = vpack.c.b16 %v5524, %v5523
      %v5534 = vpack.c.b16 %v5526, %v5525
      %5543 = vmatprep.subr.bf16.mxu0 0
      %5544 = vmatpush1.bf16.msra.mxu0 %v5534
      %5545 = vmatprep.subr.bf16.mxu0 0
      %5546 = vmatpush1.bf16.msra.mxu0 %v5533
      %5547 = vmatprep.subr.bf16.mxu0 0
      %5548 = vmatpush1.bf16.msra.mxu0 %v5532
      %5549 = vmatprep.subr.bf16.mxu0 0
      %5550 = vmatpush1.bf16.msra.mxu0 %v5531
      %5551 = vmatprep.subr.bf16.mxu0 0
      %5552 = vmatpush1.bf16.msra.mxu0 %v5530
      %5553 = vmatprep.subr.bf16.mxu0 0
      %5554 = vmatpush1.bf16.msra.mxu0 %v5529
      %5555 = vmatprep.subr.bf16.mxu0 0
      %5556 = vmatpush1.bf16.msra.mxu0 %v5528
      %5557 = vmatprep.subr.bf16.mxu0 0
      %5558 = vmatpush1.bf16.msra.mxu0 %v5527
      %5559 = vmatprep.subr.bf16.mxu0 0
      %5560 = vmatpush2.bf16.msra.mxu0 0
      %5561 = vmatprep.subr.bf16.mxu0 0
      %5562 = vmatpush2.bf16.msra.mxu0 0
      %5563 = vmatprep.subr.bf16.mxu0 0
      %5564 = vmatpush2.bf16.msra.mxu0 0
      %5565 = vmatprep.subr.bf16.mxu0 0
      %5566 = vmatpush2.bf16.msra.mxu0 0
      %5567 = vmatprep.subr.bf16.mxu0 0
      %5568 = vmatpush2.bf16.msra.mxu0 0
      %5569 = vmatprep.subr.bf16.mxu0 0
      %5570 = vmatpush2.bf16.msra.mxu0 0
      %5571 = vmatprep.subr.bf16.mxu0 0
      %5572 = vmatpush2.bf16.msra.mxu0 0
      %5573 = vmatprep.subr.bf16.mxu0 0
      %5574 = vmatpush2.bf16.msra.mxu0 0
      %5575 = vmatprep.mubr.bf16.mxu0 0
      %5576 = vmatmul.mubr.bf16.gmra.mxu0 %v5477
      %v5577 = vpop.f32.mrf.mxu0
      %v5578 = vadd.f32 0.0, %v5577
      %v5579 = vpop.f32.mrf.mxu0
      %v5580 = vpop.f32.mrf.mxu0
      %v5581 = vpop.f32.mrf.mxu0
      %5582 = vdwg.mxu0
      %v5583 = vadd.f32 %v5434, %v5578
      %s5584 = scalar_lea.vmem %s3, 136
      %v5585 = vld [vmem:[%s5584] sm:$0xf]
      %5586 = vmatprep.subr.bf16.mxu0 0
      %5587 = vmatpush1.bf16.msra.mxu0 %v514
      %5588 = vmatprep.subr.bf16.mxu0 0
      %5589 = vmatpush1.bf16.msra.mxu0 %v513
      %5590 = vmatprep.subr.bf16.mxu0 0
      %5591 = vmatpush1.bf16.msra.mxu0 %v512
      %5592 = vmatprep.subr.bf16.mxu0 0
      %5593 = vmatpush1.bf16.msra.mxu0 %v511
      %5594 = vmatprep.subr.bf16.mxu0 0
      %5595 = vmatpush1.bf16.msra.mxu0 %v510
      %5596 = vmatprep.subr.bf16.mxu0 0
      %5597 = vmatpush1.bf16.msra.mxu0 %v509
      %5598 = vmatprep.subr.bf16.mxu0 0
      %5599 = vmatpush1.bf16.msra.mxu0 %v508
      %5600 = vmatprep.subr.bf16.mxu0 0
      %5601 = vmatpush1.bf16.msra.mxu0 %v507
      %5602 = vmatprep.subr.bf16.mxu0 0
      %5603 = vmatpush2.bf16.msra.mxu0 0
      %5604 = vmatprep.subr.bf16.mxu0 0
      %5605 = vmatpush2.bf16.msra.mxu0 0
      %5606 = vmatprep.subr.bf16.mxu0 0
      %5607 = vmatpush2.bf16.msra.mxu0 0
      %5608 = vmatprep.subr.bf16.mxu0 0
      %5609 = vmatpush2.bf16.msra.mxu0 0
      %5610 = vmatprep.subr.bf16.mxu0 0
      %5611 = vmatpush2.bf16.msra.mxu0 0
      %5612 = vmatprep.subr.bf16.mxu0 0
      %5613 = vmatpush2.bf16.msra.mxu0 0
      %5614 = vmatprep.subr.bf16.mxu0 0
      %5615 = vmatpush2.bf16.msra.mxu0 0
      %5616 = vmatprep.subr.bf16.mxu0 0
      %5617 = vmatpush2.bf16.msra.mxu0 0
      %5618 = vmatprep.mubr.bf16.mxu0 0
      %5619 = vmatmul.mubr.bf16.gmra.mxu0 %v5585
      %v5620 = vpop.f32.mrf.mxu0
      %v5621 = vadd.f32 0.0, %v5620
      %v5622 = vpop.f32.mrf.mxu0
      %v5623 = vpop.f32.mrf.mxu0
      %v5624 = vpop.f32.mrf.mxu0
      %5625 = vdwg.mxu0
      %v5626 = vpack.c.bf16 %v5621, %v5621
      %s5627 = scalar_lea.vmem %s4, 2176
      %v5628 = vld [vmem:[%s5627] sm:$0xf]
      %v5629 = vld [vmem:[%s5627 + $0x4] sm:$0xf]
      %v5630 = vld [vmem:[%s5627 + $0x8] sm:$0xf]
      %v5631 = vld [vmem:[%s5627 + $0xc] sm:$0xf]
      %v5632 = vld [vmem:[%s5627 + $0x10] sm:$0xf]
      %v5633 = vld [vmem:[%s5627 + $0x14] sm:$0xf]
      %v5634 = vld [vmem:[%s5627 + $0x18] sm:$0xf]
      %v5635 = vld [vmem:[%s5627 + $0x1c] sm:$0xf]
      %v5636 = vld [vmem:[%s5627 + $0x20] sm:$0xf]
      %v5637 = vld [vmem:[%s5627 + $0x24] sm:$0xf]
      %v5638 = vld [vmem:[%s5627 + $0x28] sm:$0xf]
      %v5639 = vld [vmem:[%s5627 + $0x2c] sm:$0xf]
      %v5640 = vld [vmem:[%s5627 + $0x30] sm:$0xf]
      %v5641 = vld [vmem:[%s5627 + $0x34] sm:$0xf]
      %v5642 = vld [vmem:[%s5627 + $0x38] sm:$0xf]
      %v5643 = vld [vmem:[%s5627 + $0x3c] sm:$0xf]
      %v5660 = vunpack.c.l.b16 %v5628
      %v5661 = vunpack.c.l.b16 %v5629
      %v5662 = vunpack.c.l.b16 %v5630
      %v5663 = vunpack.c.l.b16 %v5631
      %v5664 = vunpack.c.l.b16 %v5632
      %v5665 = vunpack.c.l.b16 %v5633
      %v5666 = vunpack.c.l.b16 %v5634
      %v5667 = vunpack.c.l.b16 %v5635
      %v5668 = vunpack.c.l.b16 %v5636
      %v5669 = vunpack.c.l.b16 %v5637
      %v5670 = vunpack.c.l.b16 %v5638
      %v5671 = vunpack.c.l.b16 %v5639
      %v5672 = vunpack.c.l.b16 %v5640
      %v5673 = vunpack.c.l.b16 %v5641
      %v5674 = vunpack.c.l.b16 %v5642
      %v5675 = vunpack.c.l.b16 %v5643
      %v5676 = vpack.c.b16 %v5661, %v5660
      %v5677 = vpack.c.b16 %v5663, %v5662
      %v5678 = vpack.c.b16 %v5665, %v5664
      %v5679 = vpack.c.b16 %v5667, %v5666
      %v5680 = vpack.c.b16 %v5669, %v5668
      %v5681 = vpack.c.b16 %v5671, %v5670
      %v5682 = vpack.c.b16 %v5673, %v5672
      %v5683 = vpack.c.b16 %v5675, %v5674
      %5692 = vmatprep.subr.bf16.mxu0 0
      %5693 = vmatpush1.bf16.msra.mxu0 %v5683
      %5694 = vmatprep.subr.bf16.mxu0 0
      %5695 = vmatpush1.bf16.msra.mxu0 %v5682
      %5696 = vmatprep.subr.bf16.mxu0 0
      %5697 = vmatpush1.bf16.msra.mxu0 %v5681
      %5698 = vmatprep.subr.bf16.mxu0 0
      %5699 = vmatpush1.bf16.msra.mxu0 %v5680
      %5700 = vmatprep.subr.bf16.mxu0 0
      %5701 = vmatpush1.bf16.msra.mxu0 %v5679
      %5702 = vmatprep.subr.bf16.mxu0 0
      %5703 = vmatpush1.bf16.msra.mxu0 %v5678
      %5704 = vmatprep.subr.bf16.mxu0 0
      %5705 = vmatpush1.bf16.msra.mxu0 %v5677
      %5706 = vmatprep.subr.bf16.mxu0 0
      %5707 = vmatpush1.bf16.msra.mxu0 %v5676
      %5708 = vmatprep.subr.bf16.mxu0 0
      %5709 = vmatpush2.bf16.msra.mxu0 0
      %5710 = vmatprep.subr.bf16.mxu0 0
      %5711 = vmatpush2.bf16.msra.mxu0 0
      %5712 = vmatprep.subr.bf16.mxu0 0
      %5713 = vmatpush2.bf16.msra.mxu0 0
      %5714 = vmatprep.subr.bf16.mxu0 0
      %5715 = vmatpush2.bf16.msra.mxu0 0
      %5716 = vmatprep.subr.bf16.mxu0 0
      %5717 = vmatpush2.bf16.msra.mxu0 0
      %5718 = vmatprep.subr.bf16.mxu0 0
      %5719 = vmatpush2.bf16.msra.mxu0 0
      %5720 = vmatprep.subr.bf16.mxu0 0
      %5721 = vmatpush2.bf16.msra.mxu0 0
      %5722 = vmatprep.subr.bf16.mxu0 0
      %5723 = vmatpush2.bf16.msra.mxu0 0
      %5724 = vmatprep.mubr.bf16.mxu0 0
      %5725 = vmatmul.mubr.bf16.gmra.mxu0 %v5626
      %v5726 = vpop.f32.mrf.mxu0
      %v5727 = vadd.f32 0.0, %v5726
      %v5728 = vpop.f32.mrf.mxu0
      %v5729 = vpop.f32.mrf.mxu0
      %v5730 = vpop.f32.mrf.mxu0
      %5731 = vdwg.mxu0
      %v5732 = vadd.f32 %v5583, %v5727
      %s5733 = scalar_lea.vmem %s3, 140
      %v5734 = vld [vmem:[%s5733] sm:$0xf]
      %5735 = vmatprep.subr.bf16.mxu0 0
      %5736 = vmatpush1.bf16.msra.mxu0 %v514
      %5737 = vmatprep.subr.bf16.mxu0 0
      %5738 = vmatpush1.bf16.msra.mxu0 %v513
      %5739 = vmatprep.subr.bf16.mxu0 0
      %5740 = vmatpush1.bf16.msra.mxu0 %v512
      %5741 = vmatprep.subr.bf16.mxu0 0
      %5742 = vmatpush1.bf16.msra.mxu0 %v511
      %5743 = vmatprep.subr.bf16.mxu0 0
      %5744 = vmatpush1.bf16.msra.mxu0 %v510
      %5745 = vmatprep.subr.bf16.mxu0 0
      %5746 = vmatpush1.bf16.msra.mxu0 %v509
      %5747 = vmatprep.subr.bf16.mxu0 0
      %5748 = vmatpush1.bf16.msra.mxu0 %v508
      %5749 = vmatprep.subr.bf16.mxu0 0
      %5750 = vmatpush1.bf16.msra.mxu0 %v507
      %5751 = vmatprep.subr.bf16.mxu0 0
      %5752 = vmatpush2.bf16.msra.mxu0 0
      %5753 = vmatprep.subr.bf16.mxu0 0
      %5754 = vmatpush2.bf16.msra.mxu0 0
      %5755 = vmatprep.subr.bf16.mxu0 0
      %5756 = vmatpush2.bf16.msra.mxu0 0
      %5757 = vmatprep.subr.bf16.mxu0 0
      %5758 = vmatpush2.bf16.msra.mxu0 0
      %5759 = vmatprep.subr.bf16.mxu0 0
      %5760 = vmatpush2.bf16.msra.mxu0 0
      %5761 = vmatprep.subr.bf16.mxu0 0
      %5762 = vmatpush2.bf16.msra.mxu0 0
      %5763 = vmatprep.subr.bf16.mxu0 0
      %5764 = vmatpush2.bf16.msra.mxu0 0
      %5765 = vmatprep.subr.bf16.mxu0 0
      %5766 = vmatpush2.bf16.msra.mxu0 0
      %5767 = vmatprep.mubr.bf16.mxu0 0
      %5768 = vmatmul.mubr.bf16.gmra.mxu0 %v5734
      %v5769 = vpop.f32.mrf.mxu0
      %v5770 = vadd.f32 0.0, %v5769
      %v5771 = vpop.f32.mrf.mxu0
      %v5772 = vpop.f32.mrf.mxu0
      %v5773 = vpop.f32.mrf.mxu0
      %5774 = vdwg.mxu0
      %v5775 = vpack.c.bf16 %v5770, %v5770
      %s5776 = scalar_lea.vmem %s4, 2240
      %v5777 = vld [vmem:[%s5776] sm:$0xf]
      %v5778 = vld [vmem:[%s5776 + $0x4] sm:$0xf]
      %v5779 = vld [vmem:[%s5776 + $0x8] sm:$0xf]
      %v5780 = vld [vmem:[%s5776 + $0xc] sm:$0xf]
      %v5781 = vld [vmem:[%s5776 + $0x10] sm:$0xf]
      %v5782 = vld [vmem:[%s5776 + $0x14] sm:$0xf]
      %v5783 = vld [vmem:[%s5776 + $0x18] sm:$0xf]
      %v5784 = vld [vmem:[%s5776 + $0x1c] sm:$0xf]
      %v5785 = vld [vmem:[%s5776 + $0x20] sm:$0xf]
      %v5786 = vld [vmem:[%s5776 + $0x24] sm:$0xf]
      %v5787 = vld [vmem:[%s5776 + $0x28] sm:$0xf]
      %v5788 = vld [vmem:[%s5776 + $0x2c] sm:$0xf]
      %v5789 = vld [vmem:[%s5776 + $0x30] sm:$0xf]
      %v5790 = vld [vmem:[%s5776 + $0x34] sm:$0xf]
      %v5791 = vld [vmem:[%s5776 + $0x38] sm:$0xf]
      %v5792 = vld [vmem:[%s5776 + $0x3c] sm:$0xf]
      %v5809 = vunpack.c.l.b16 %v5777
      %v5810 = vunpack.c.l.b16 %v5778
      %v5811 = vunpack.c.l.b16 %v5779
      %v5812 = vunpack.c.l.b16 %v5780
      %v5813 = vunpack.c.l.b16 %v5781
      %v5814 = vunpack.c.l.b16 %v5782
      %v5815 = vunpack.c.l.b16 %v5783
      %v5816 = vunpack.c.l.b16 %v5784
      %v5817 = vunpack.c.l.b16 %v5785
      %v5818 = vunpack.c.l.b16 %v5786
      %v5819 = vunpack.c.l.b16 %v5787
      %v5820 = vunpack.c.l.b16 %v5788
      %v5821 = vunpack.c.l.b16 %v5789
      %v5822 = vunpack.c.l.b16 %v5790
      %v5823 = vunpack.c.l.b16 %v5791
      %v5824 = vunpack.c.l.b16 %v5792
      %v5825 = vpack.c.b16 %v5810, %v5809
      %v5826 = vpack.c.b16 %v5812, %v5811
      %v5827 = vpack.c.b16 %v5814, %v5813
      %v5828 = vpack.c.b16 %v5816, %v5815
      %v5829 = vpack.c.b16 %v5818, %v5817
      %v5830 = vpack.c.b16 %v5820, %v5819
      %v5831 = vpack.c.b16 %v5822, %v5821
      %v5832 = vpack.c.b16 %v5824, %v5823
      %5841 = vmatprep.subr.bf16.mxu0 0
      %5842 = vmatpush1.bf16.msra.mxu0 %v5832
      %5843 = vmatprep.subr.bf16.mxu0 0
      %5844 = vmatpush1.bf16.msra.mxu0 %v5831
      %5845 = vmatprep.subr.bf16.mxu0 0
      %5846 = vmatpush1.bf16.msra.mxu0 %v5830
      %5847 = vmatprep.subr.bf16.mxu0 0
      %5848 = vmatpush1.bf16.msra.mxu0 %v5829
      %5849 = vmatprep.subr.bf16.mxu0 0
      %5850 = vmatpush1.bf16.msra.mxu0 %v5828
      %5851 = vmatprep.subr.bf16.mxu0 0
      %5852 = vmatpush1.bf16.msra.mxu0 %v5827
      %5853 = vmatprep.subr.bf16.mxu0 0
      %5854 = vmatpush1.bf16.msra.mxu0 %v5826
      %5855 = vmatprep.subr.bf16.mxu0 0
      %5856 = vmatpush1.bf16.msra.mxu0 %v5825
      %5857 = vmatprep.subr.bf16.mxu0 0
      %5858 = vmatpush2.bf16.msra.mxu0 0
      %5859 = vmatprep.subr.bf16.mxu0 0
      %5860 = vmatpush2.bf16.msra.mxu0 0
      %5861 = vmatprep.subr.bf16.mxu0 0
      %5862 = vmatpush2.bf16.msra.mxu0 0
      %5863 = vmatprep.subr.bf16.mxu0 0
      %5864 = vmatpush2.bf16.msra.mxu0 0
      %5865 = vmatprep.subr.bf16.mxu0 0
      %5866 = vmatpush2.bf16.msra.mxu0 0
      %5867 = vmatprep.subr.bf16.mxu0 0
      %5868 = vmatpush2.bf16.msra.mxu0 0
      %5869 = vmatprep.subr.bf16.mxu0 0
      %5870 = vmatpush2.bf16.msra.mxu0 0
      %5871 = vmatprep.subr.bf16.mxu0 0
      %5872 = vmatpush2.bf16.msra.mxu0 0
      %5873 = vmatprep.mubr.bf16.mxu0 0
      %5874 = vmatmul.mubr.bf16.gmra.mxu0 %v5775
      %v5875 = vpop.f32.mrf.mxu0
      %v5876 = vadd.f32 0.0, %v5875
      %v5877 = vpop.f32.mrf.mxu0
      %v5878 = vpop.f32.mrf.mxu0
      %v5879 = vpop.f32.mrf.mxu0
      %5880 = vdwg.mxu0
      %v5881 = vadd.f32 %v5732, %v5876
      %s5882 = scalar_lea.vmem %s3, 144
      %v5883 = vld [vmem:[%s5882] sm:$0xf]
      %5884 = vmatprep.subr.bf16.mxu0 0
      %5885 = vmatpush1.bf16.msra.mxu0 %v514
      %5886 = vmatprep.subr.bf16.mxu0 0
      %5887 = vmatpush1.bf16.msra.mxu0 %v513
      %5888 = vmatprep.subr.bf16.mxu0 0
      %5889 = vmatpush1.bf16.msra.mxu0 %v512
      %5890 = vmatprep.subr.bf16.mxu0 0
      %5891 = vmatpush1.bf16.msra.mxu0 %v511
      %5892 = vmatprep.subr.bf16.mxu0 0
      %5893 = vmatpush1.bf16.msra.mxu0 %v510
      %5894 = vmatprep.subr.bf16.mxu0 0
      %5895 = vmatpush1.bf16.msra.mxu0 %v509
      %5896 = vmatprep.subr.bf16.mxu0 0
      %5897 = vmatpush1.bf16.msra.mxu0 %v508
      %5898 = vmatprep.subr.bf16.mxu0 0
      %5899 = vmatpush1.bf16.msra.mxu0 %v507
      %5900 = vmatprep.subr.bf16.mxu0 0
      %5901 = vmatpush2.bf16.msra.mxu0 0
      %5902 = vmatprep.subr.bf16.mxu0 0
      %5903 = vmatpush2.bf16.msra.mxu0 0
      %5904 = vmatprep.subr.bf16.mxu0 0
      %5905 = vmatpush2.bf16.msra.mxu0 0
      %5906 = vmatprep.subr.bf16.mxu0 0
      %5907 = vmatpush2.bf16.msra.mxu0 0
      %5908 = vmatprep.subr.bf16.mxu0 0
      %5909 = vmatpush2.bf16.msra.mxu0 0
      %5910 = vmatprep.subr.bf16.mxu0 0
      %5911 = vmatpush2.bf16.msra.mxu0 0
      %5912 = vmatprep.subr.bf16.mxu0 0
      %5913 = vmatpush2.bf16.msra.mxu0 0
      %5914 = vmatprep.subr.bf16.mxu0 0
      %5915 = vmatpush2.bf16.msra.mxu0 0
      %5916 = vmatprep.mubr.bf16.mxu0 0
      %5917 = vmatmul.mubr.bf16.gmra.mxu0 %v5883
      %v5918 = vpop.f32.mrf.mxu0
      %v5919 = vadd.f32 0.0, %v5918
      %v5920 = vpop.f32.mrf.mxu0
      %v5921 = vpop.f32.mrf.mxu0
      %v5922 = vpop.f32.mrf.mxu0
      %5923 = vdwg.mxu0
      %v5924 = vpack.c.bf16 %v5919, %v5919
      %s5925 = scalar_lea.vmem %s4, 2304
      %v5926 = vld [vmem:[%s5925] sm:$0xf]
      %v5927 = vld [vmem:[%s5925 + $0x4] sm:$0xf]
      %v5928 = vld [vmem:[%s5925 + $0x8] sm:$0xf]
      %v5929 = vld [vmem:[%s5925 + $0xc] sm:$0xf]
      %v5930 = vld [vmem:[%s5925 + $0x10] sm:$0xf]
      %v5931 = vld [vmem:[%s5925 + $0x14] sm:$0xf]
      %v5932 = vld [vmem:[%s5925 + $0x18] sm:$0xf]
      %v5933 = vld [vmem:[%s5925 + $0x1c] sm:$0xf]
      %v5934 = vld [vmem:[%s5925 + $0x20] sm:$0xf]
      %v5935 = vld [vmem:[%s5925 + $0x24] sm:$0xf]
      %v5936 = vld [vmem:[%s5925 + $0x28] sm:$0xf]
      %v5937 = vld [vmem:[%s5925 + $0x2c] sm:$0xf]
      %v5938 = vld [vmem:[%s5925 + $0x30] sm:$0xf]
      %v5939 = vld [vmem:[%s5925 + $0x34] sm:$0xf]
      %v5940 = vld [vmem:[%s5925 + $0x38] sm:$0xf]
      %v5941 = vld [vmem:[%s5925 + $0x3c] sm:$0xf]
      %v5958 = vunpack.c.l.b16 %v5926
      %v5959 = vunpack.c.l.b16 %v5927
      %v5960 = vunpack.c.l.b16 %v5928
      %v5961 = vunpack.c.l.b16 %v5929
      %v5962 = vunpack.c.l.b16 %v5930
      %v5963 = vunpack.c.l.b16 %v5931
      %v5964 = vunpack.c.l.b16 %v5932
      %v5965 = vunpack.c.l.b16 %v5933
      %v5966 = vunpack.c.l.b16 %v5934
      %v5967 = vunpack.c.l.b16 %v5935
      %v5968 = vunpack.c.l.b16 %v5936
      %v5969 = vunpack.c.l.b16 %v5937
      %v5970 = vunpack.c.l.b16 %v5938
      %v5971 = vunpack.c.l.b16 %v5939
      %v5972 = vunpack.c.l.b16 %v5940
      %v5973 = vunpack.c.l.b16 %v5941
      %v5974 = vpack.c.b16 %v5959, %v5958
      %v5975 = vpack.c.b16 %v5961, %v5960
      %v5976 = vpack.c.b16 %v5963, %v5962
      %v5977 = vpack.c.b16 %v5965, %v5964
      %v5978 = vpack.c.b16 %v5967, %v5966
      %v5979 = vpack.c.b16 %v5969, %v5968
      %v5980 = vpack.c.b16 %v5971, %v5970
      %v5981 = vpack.c.b16 %v5973, %v5972
      %5990 = vmatprep.subr.bf16.mxu0 0
      %5991 = vmatpush1.bf16.msra.mxu0 %v5981
      %5992 = vmatprep.subr.bf16.mxu0 0
      %5993 = vmatpush1.bf16.msra.mxu0 %v5980
      %5994 = vmatprep.subr.bf16.mxu0 0
      %5995 = vmatpush1.bf16.msra.mxu0 %v5979
      %5996 = vmatprep.subr.bf16.mxu0 0
      %5997 = vmatpush1.bf16.msra.mxu0 %v5978
      %5998 = vmatprep.subr.bf16.mxu0 0
      %5999 = vmatpush1.bf16.msra.mxu0 %v5977
      %6000 = vmatprep.subr.bf16.mxu0 0
      %6001 = vmatpush1.bf16.msra.mxu0 %v5976
      %6002 = vmatprep.subr.bf16.mxu0 0
      %6003 = vmatpush1.bf16.msra.mxu0 %v5975
      %6004 = vmatprep.subr.bf16.mxu0 0
      %6005 = vmatpush1.bf16.msra.mxu0 %v5974
      %6006 = vmatprep.subr.bf16.mxu0 0
      %6007 = vmatpush2.bf16.msra.mxu0 0
      %6008 = vmatprep.subr.bf16.mxu0 0
      %6009 = vmatpush2.bf16.msra.mxu0 0
      %6010 = vmatprep.subr.bf16.mxu0 0
      %6011 = vmatpush2.bf16.msra.mxu0 0
      %6012 = vmatprep.subr.bf16.mxu0 0
      %6013 = vmatpush2.bf16.msra.mxu0 0
      %6014 = vmatprep.subr.bf16.mxu0 0
      %6015 = vmatpush2.bf16.msra.mxu0 0
      %6016 = vmatprep.subr.bf16.mxu0 0
      %6017 = vmatpush2.bf16.msra.mxu0 0
      %6018 = vmatprep.subr.bf16.mxu0 0
      %6019 = vmatpush2.bf16.msra.mxu0 0
      %6020 = vmatprep.subr.bf16.mxu0 0
      %6021 = vmatpush2.bf16.msra.mxu0 0
      %6022 = vmatprep.mubr.bf16.mxu0 0
      %6023 = vmatmul.mubr.bf16.gmra.mxu0 %v5924
      %v6024 = vpop.f32.mrf.mxu0
      %v6025 = vadd.f32 0.0, %v6024
      %v6026 = vpop.f32.mrf.mxu0
      %v6027 = vpop.f32.mrf.mxu0
      %v6028 = vpop.f32.mrf.mxu0
      %6029 = vdwg.mxu0
      %v6030 = vadd.f32 %v5881, %v6025
      %s6031 = scalar_lea.vmem %s3, 148
      %v6032 = vld [vmem:[%s6031] sm:$0xf]
      %6033 = vmatprep.subr.bf16.mxu0 0
      %6034 = vmatpush1.bf16.msra.mxu0 %v514
      %6035 = vmatprep.subr.bf16.mxu0 0
      %6036 = vmatpush1.bf16.msra.mxu0 %v513
      %6037 = vmatprep.subr.bf16.mxu0 0
      %6038 = vmatpush1.bf16.msra.mxu0 %v512
      %6039 = vmatprep.subr.bf16.mxu0 0
      %6040 = vmatpush1.bf16.msra.mxu0 %v511
      %6041 = vmatprep.subr.bf16.mxu0 0
      %6042 = vmatpush1.bf16.msra.mxu0 %v510
      %6043 = vmatprep.subr.bf16.mxu0 0
      %6044 = vmatpush1.bf16.msra.mxu0 %v509
      %6045 = vmatprep.subr.bf16.mxu0 0
      %6046 = vmatpush1.bf16.msra.mxu0 %v508
      %6047 = vmatprep.subr.bf16.mxu0 0
      %6048 = vmatpush1.bf16.msra.mxu0 %v507
      %6049 = vmatprep.subr.bf16.mxu0 0
      %6050 = vmatpush2.bf16.msra.mxu0 0
      %6051 = vmatprep.subr.bf16.mxu0 0
      %6052 = vmatpush2.bf16.msra.mxu0 0
      %6053 = vmatprep.subr.bf16.mxu0 0
      %6054 = vmatpush2.bf16.msra.mxu0 0
      %6055 = vmatprep.subr.bf16.mxu0 0
      %6056 = vmatpush2.bf16.msra.mxu0 0
      %6057 = vmatprep.subr.bf16.mxu0 0
      %6058 = vmatpush2.bf16.msra.mxu0 0
      %6059 = vmatprep.subr.bf16.mxu0 0
      %6060 = vmatpush2.bf16.msra.mxu0 0
      %6061 = vmatprep.subr.bf16.mxu0 0
      %6062 = vmatpush2.bf16.msra.mxu0 0
      %6063 = vmatprep.subr.bf16.mxu0 0
      %6064 = vmatpush2.bf16.msra.mxu0 0
      %6065 = vmatprep.mubr.bf16.mxu0 0
      %6066 = vmatmul.mubr.bf16.gmra.mxu0 %v6032
      %v6067 = vpop.f32.mrf.mxu0
      %v6068 = vadd.f32 0.0, %v6067
      %v6069 = vpop.f32.mrf.mxu0
      %v6070 = vpop.f32.mrf.mxu0
      %v6071 = vpop.f32.mrf.mxu0
      %6072 = vdwg.mxu0
      %v6073 = vpack.c.bf16 %v6068, %v6068
      %s6074 = scalar_lea.vmem %s4, 2368
      %v6075 = vld [vmem:[%s6074] sm:$0xf]
      %v6076 = vld [vmem:[%s6074 + $0x4] sm:$0xf]
      %v6077 = vld [vmem:[%s6074 + $0x8] sm:$0xf]
      %v6078 = vld [vmem:[%s6074 + $0xc] sm:$0xf]
      %v6079 = vld [vmem:[%s6074 + $0x10] sm:$0xf]
      %v6080 = vld [vmem:[%s6074 + $0x14] sm:$0xf]
      %v6081 = vld [vmem:[%s6074 + $0x18] sm:$0xf]
      %v6082 = vld [vmem:[%s6074 + $0x1c] sm:$0xf]
      %v6083 = vld [vmem:[%s6074 + $0x20] sm:$0xf]
      %v6084 = vld [vmem:[%s6074 + $0x24] sm:$0xf]
      %v6085 = vld [vmem:[%s6074 + $0x28] sm:$0xf]
      %v6086 = vld [vmem:[%s6074 + $0x2c] sm:$0xf]
      %v6087 = vld [vmem:[%s6074 + $0x30] sm:$0xf]
      %v6088 = vld [vmem:[%s6074 + $0x34] sm:$0xf]
      %v6089 = vld [vmem:[%s6074 + $0x38] sm:$0xf]
      %v6090 = vld [vmem:[%s6074 + $0x3c] sm:$0xf]
      %v6107 = vunpack.c.l.b16 %v6075
      %v6108 = vunpack.c.l.b16 %v6076
      %v6109 = vunpack.c.l.b16 %v6077
      %v6110 = vunpack.c.l.b16 %v6078
      %v6111 = vunpack.c.l.b16 %v6079
      %v6112 = vunpack.c.l.b16 %v6080
      %v6113 = vunpack.c.l.b16 %v6081
      %v6114 = vunpack.c.l.b16 %v6082
      %v6115 = vunpack.c.l.b16 %v6083
      %v6116 = vunpack.c.l.b16 %v6084
      %v6117 = vunpack.c.l.b16 %v6085
      %v6118 = vunpack.c.l.b16 %v6086
      %v6119 = vunpack.c.l.b16 %v6087
      %v6120 = vunpack.c.l.b16 %v6088
      %v6121 = vunpack.c.l.b16 %v6089
      %v6122 = vunpack.c.l.b16 %v6090
      %v6123 = vpack.c.b16 %v6108, %v6107
      %v6124 = vpack.c.b16 %v6110, %v6109
      %v6125 = vpack.c.b16 %v6112, %v6111
      %v6126 = vpack.c.b16 %v6114, %v6113
      %v6127 = vpack.c.b16 %v6116, %v6115
      %v6128 = vpack.c.b16 %v6118, %v6117
      %v6129 = vpack.c.b16 %v6120, %v6119
      %v6130 = vpack.c.b16 %v6122, %v6121
      %6139 = vmatprep.subr.bf16.mxu0 0
      %6140 = vmatpush1.bf16.msra.mxu0 %v6130
      %6141 = vmatprep.subr.bf16.mxu0 0
      %6142 = vmatpush1.bf16.msra.mxu0 %v6129
      %6143 = vmatprep.subr.bf16.mxu0 0
      %6144 = vmatpush1.bf16.msra.mxu0 %v6128
      %6145 = vmatprep.subr.bf16.mxu0 0
      %6146 = vmatpush1.bf16.msra.mxu0 %v6127
      %6147 = vmatprep.subr.bf16.mxu0 0
      %6148 = vmatpush1.bf16.msra.mxu0 %v6126
      %6149 = vmatprep.subr.bf16.mxu0 0
      %6150 = vmatpush1.bf16.msra.mxu0 %v6125
      %6151 = vmatprep.subr.bf16.mxu0 0
      %6152 = vmatpush1.bf16.msra.mxu0 %v6124
      %6153 = vmatprep.subr.bf16.mxu0 0
      %6154 = vmatpush1.bf16.msra.mxu0 %v6123
      %6155 = vmatprep.subr.bf16.mxu0 0
      %6156 = vmatpush2.bf16.msra.mxu0 0
      %6157 = vmatprep.subr.bf16.mxu0 0
      %6158 = vmatpush2.bf16.msra.mxu0 0
      %6159 = vmatprep.subr.bf16.mxu0 0
      %6160 = vmatpush2.bf16.msra.mxu0 0
      %6161 = vmatprep.subr.bf16.mxu0 0
      %6162 = vmatpush2.bf16.msra.mxu0 0
      %6163 = vmatprep.subr.bf16.mxu0 0
      %6164 = vmatpush2.bf16.msra.mxu0 0
      %6165 = vmatprep.subr.bf16.mxu0 0
      %6166 = vmatpush2.bf16.msra.mxu0 0
      %6167 = vmatprep.subr.bf16.mxu0 0
      %6168 = vmatpush2.bf16.msra.mxu0 0
      %6169 = vmatprep.subr.bf16.mxu0 0
      %6170 = vmatpush2.bf16.msra.mxu0 0
      %6171 = vmatprep.mubr.bf16.mxu0 0
      %6172 = vmatmul.mubr.bf16.gmra.mxu0 %v6073
      %v6173 = vpop.f32.mrf.mxu0
      %v6174 = vadd.f32 0.0, %v6173
      %v6175 = vpop.f32.mrf.mxu0
      %v6176 = vpop.f32.mrf.mxu0
      %v6177 = vpop.f32.mrf.mxu0
      %6178 = vdwg.mxu0
      %v6179 = vadd.f32 %v6030, %v6174
      %s6180 = scalar_lea.vmem %s3, 152
      %v6181 = vld [vmem:[%s6180] sm:$0xf]
      %6182 = vmatprep.subr.bf16.mxu0 0
      %6183 = vmatpush1.bf16.msra.mxu0 %v514
      %6184 = vmatprep.subr.bf16.mxu0 0
      %6185 = vmatpush1.bf16.msra.mxu0 %v513
      %6186 = vmatprep.subr.bf16.mxu0 0
      %6187 = vmatpush1.bf16.msra.mxu0 %v512
      %6188 = vmatprep.subr.bf16.mxu0 0
      %6189 = vmatpush1.bf16.msra.mxu0 %v511
      %6190 = vmatprep.subr.bf16.mxu0 0
      %6191 = vmatpush1.bf16.msra.mxu0 %v510
      %6192 = vmatprep.subr.bf16.mxu0 0
      %6193 = vmatpush1.bf16.msra.mxu0 %v509
      %6194 = vmatprep.subr.bf16.mxu0 0
      %6195 = vmatpush1.bf16.msra.mxu0 %v508
      %6196 = vmatprep.subr.bf16.mxu0 0
      %6197 = vmatpush1.bf16.msra.mxu0 %v507
      %6198 = vmatprep.subr.bf16.mxu0 0
      %6199 = vmatpush2.bf16.msra.mxu0 0
      %6200 = vmatprep.subr.bf16.mxu0 0
      %6201 = vmatpush2.bf16.msra.mxu0 0
      %6202 = vmatprep.subr.bf16.mxu0 0
      %6203 = vmatpush2.bf16.msra.mxu0 0
      %6204 = vmatprep.subr.bf16.mxu0 0
      %6205 = vmatpush2.bf16.msra.mxu0 0
      %6206 = vmatprep.subr.bf16.mxu0 0
      %6207 = vmatpush2.bf16.msra.mxu0 0
      %6208 = vmatprep.subr.bf16.mxu0 0
      %6209 = vmatpush2.bf16.msra.mxu0 0
      %6210 = vmatprep.subr.bf16.mxu0 0
      %6211 = vmatpush2.bf16.msra.mxu0 0
      %6212 = vmatprep.subr.bf16.mxu0 0
      %6213 = vmatpush2.bf16.msra.mxu0 0
      %6214 = vmatprep.mubr.bf16.mxu0 0
      %6215 = vmatmul.mubr.bf16.gmra.mxu0 %v6181
      %v6216 = vpop.f32.mrf.mxu0
      %v6217 = vadd.f32 0.0, %v6216
      %v6218 = vpop.f32.mrf.mxu0
      %v6219 = vpop.f32.mrf.mxu0
      %v6220 = vpop.f32.mrf.mxu0
      %6221 = vdwg.mxu0
      %v6222 = vpack.c.bf16 %v6217, %v6217
      %s6223 = scalar_lea.vmem %s4, 2432
      %v6224 = vld [vmem:[%s6223] sm:$0xf]
      %v6225 = vld [vmem:[%s6223 + $0x4] sm:$0xf]
      %v6226 = vld [vmem:[%s6223 + $0x8] sm:$0xf]
      %v6227 = vld [vmem:[%s6223 + $0xc] sm:$0xf]
      %v6228 = vld [vmem:[%s6223 + $0x10] sm:$0xf]
      %v6229 = vld [vmem:[%s6223 + $0x14] sm:$0xf]
      %v6230 = vld [vmem:[%s6223 + $0x18] sm:$0xf]
      %v6231 = vld [vmem:[%s6223 + $0x1c] sm:$0xf]
      %v6232 = vld [vmem:[%s6223 + $0x20] sm:$0xf]
      %v6233 = vld [vmem:[%s6223 + $0x24] sm:$0xf]
      %v6234 = vld [vmem:[%s6223 + $0x28] sm:$0xf]
      %v6235 = vld [vmem:[%s6223 + $0x2c] sm:$0xf]
      %v6236 = vld [vmem:[%s6223 + $0x30] sm:$0xf]
      %v6237 = vld [vmem:[%s6223 + $0x34] sm:$0xf]
      %v6238 = vld [vmem:[%s6223 + $0x38] sm:$0xf]
      %v6239 = vld [vmem:[%s6223 + $0x3c] sm:$0xf]
      %v6256 = vunpack.c.l.b16 %v6224
      %v6257 = vunpack.c.l.b16 %v6225
      %v6258 = vunpack.c.l.b16 %v6226
      %v6259 = vunpack.c.l.b16 %v6227
      %v6260 = vunpack.c.l.b16 %v6228
      %v6261 = vunpack.c.l.b16 %v6229
      %v6262 = vunpack.c.l.b16 %v6230
      %v6263 = vunpack.c.l.b16 %v6231
      %v6264 = vunpack.c.l.b16 %v6232
      %v6265 = vunpack.c.l.b16 %v6233
      %v6266 = vunpack.c.l.b16 %v6234
      %v6267 = vunpack.c.l.b16 %v6235
      %v6268 = vunpack.c.l.b16 %v6236
      %v6269 = vunpack.c.l.b16 %v6237
      %v6270 = vunpack.c.l.b16 %v6238
      %v6271 = vunpack.c.l.b16 %v6239
      %v6272 = vpack.c.b16 %v6257, %v6256
      %v6273 = vpack.c.b16 %v6259, %v6258
      %v6274 = vpack.c.b16 %v6261, %v6260
      %v6275 = vpack.c.b16 %v6263, %v6262
      %v6276 = vpack.c.b16 %v6265, %v6264
      %v6277 = vpack.c.b16 %v6267, %v6266
      %v6278 = vpack.c.b16 %v6269, %v6268
      %v6279 = vpack.c.b16 %v6271, %v6270
      %6288 = vmatprep.subr.bf16.mxu0 0
      %6289 = vmatpush1.bf16.msra.mxu0 %v6279
      %6290 = vmatprep.subr.bf16.mxu0 0
      %6291 = vmatpush1.bf16.msra.mxu0 %v6278
      %6292 = vmatprep.subr.bf16.mxu0 0
      %6293 = vmatpush1.bf16.msra.mxu0 %v6277
      %6294 = vmatprep.subr.bf16.mxu0 0
      %6295 = vmatpush1.bf16.msra.mxu0 %v6276
      %6296 = vmatprep.subr.bf16.mxu0 0
      %6297 = vmatpush1.bf16.msra.mxu0 %v6275
      %6298 = vmatprep.subr.bf16.mxu0 0
      %6299 = vmatpush1.bf16.msra.mxu0 %v6274
      %6300 = vmatprep.subr.bf16.mxu0 0
      %6301 = vmatpush1.bf16.msra.mxu0 %v6273
      %6302 = vmatprep.subr.bf16.mxu0 0
      %6303 = vmatpush1.bf16.msra.mxu0 %v6272
      %6304 = vmatprep.subr.bf16.mxu0 0
      %6305 = vmatpush2.bf16.msra.mxu0 0
      %6306 = vmatprep.subr.bf16.mxu0 0
      %6307 = vmatpush2.bf16.msra.mxu0 0
      %6308 = vmatprep.subr.bf16.mxu0 0
      %6309 = vmatpush2.bf16.msra.mxu0 0
      %6310 = vmatprep.subr.bf16.mxu0 0
      %6311 = vmatpush2.bf16.msra.mxu0 0
      %6312 = vmatprep.subr.bf16.mxu0 0
      %6313 = vmatpush2.bf16.msra.mxu0 0
      %6314 = vmatprep.subr.bf16.mxu0 0
      %6315 = vmatpush2.bf16.msra.mxu0 0
      %6316 = vmatprep.subr.bf16.mxu0 0
      %6317 = vmatpush2.bf16.msra.mxu0 0
      %6318 = vmatprep.subr.bf16.mxu0 0
      %6319 = vmatpush2.bf16.msra.mxu0 0
      %6320 = vmatprep.mubr.bf16.mxu0 0
      %6321 = vmatmul.mubr.bf16.gmra.mxu0 %v6222
      %v6322 = vpop.f32.mrf.mxu0
      %v6323 = vadd.f32 0.0, %v6322
      %v6324 = vpop.f32.mrf.mxu0
      %v6325 = vpop.f32.mrf.mxu0
      %v6326 = vpop.f32.mrf.mxu0
      %6327 = vdwg.mxu0
      %v6328 = vadd.f32 %v6179, %v6323
      %s6329 = scalar_lea.vmem %s3, 156
      %v6330 = vld [vmem:[%s6329] sm:$0xf]
      %6331 = vmatprep.subr.bf16.mxu0 0
      %6332 = vmatpush1.bf16.msra.mxu0 %v514
      %6333 = vmatprep.subr.bf16.mxu0 0
      %6334 = vmatpush1.bf16.msra.mxu0 %v513
      %6335 = vmatprep.subr.bf16.mxu0 0
      %6336 = vmatpush1.bf16.msra.mxu0 %v512
      %6337 = vmatprep.subr.bf16.mxu0 0
      %6338 = vmatpush1.bf16.msra.mxu0 %v511
      %6339 = vmatprep.subr.bf16.mxu0 0
      %6340 = vmatpush1.bf16.msra.mxu0 %v510
      %6341 = vmatprep.subr.bf16.mxu0 0
      %6342 = vmatpush1.bf16.msra.mxu0 %v509
      %6343 = vmatprep.subr.bf16.mxu0 0
      %6344 = vmatpush1.bf16.msra.mxu0 %v508
      %6345 = vmatprep.subr.bf16.mxu0 0
      %6346 = vmatpush1.bf16.msra.mxu0 %v507
      %6347 = vmatprep.subr.bf16.mxu0 0
      %6348 = vmatpush2.bf16.msra.mxu0 0
      %6349 = vmatprep.subr.bf16.mxu0 0
      %6350 = vmatpush2.bf16.msra.mxu0 0
      %6351 = vmatprep.subr.bf16.mxu0 0
      %6352 = vmatpush2.bf16.msra.mxu0 0
      %6353 = vmatprep.subr.bf16.mxu0 0
      %6354 = vmatpush2.bf16.msra.mxu0 0
      %6355 = vmatprep.subr.bf16.mxu0 0
      %6356 = vmatpush2.bf16.msra.mxu0 0
      %6357 = vmatprep.subr.bf16.mxu0 0
      %6358 = vmatpush2.bf16.msra.mxu0 0
      %6359 = vmatprep.subr.bf16.mxu0 0
      %6360 = vmatpush2.bf16.msra.mxu0 0
      %6361 = vmatprep.subr.bf16.mxu0 0
      %6362 = vmatpush2.bf16.msra.mxu0 0
      %6363 = vmatprep.mubr.bf16.mxu0 0
      %6364 = vmatmul.mubr.bf16.gmra.mxu0 %v6330
      %v6365 = vpop.f32.mrf.mxu0
      %v6366 = vadd.f32 0.0, %v6365
      %v6367 = vpop.f32.mrf.mxu0
      %v6368 = vpop.f32.mrf.mxu0
      %v6369 = vpop.f32.mrf.mxu0
      %6370 = vdwg.mxu0
      %v6371 = vpack.c.bf16 %v6366, %v6366
      %s6372 = scalar_lea.vmem %s4, 2496
      %v6373 = vld [vmem:[%s6372] sm:$0xf]
      %v6374 = vld [vmem:[%s6372 + $0x4] sm:$0xf]
      %v6375 = vld [vmem:[%s6372 + $0x8] sm:$0xf]
      %v6376 = vld [vmem:[%s6372 + $0xc] sm:$0xf]
      %v6377 = vld [vmem:[%s6372 + $0x10] sm:$0xf]
      %v6378 = vld [vmem:[%s6372 + $0x14] sm:$0xf]
      %v6379 = vld [vmem:[%s6372 + $0x18] sm:$0xf]
      %v6380 = vld [vmem:[%s6372 + $0x1c] sm:$0xf]
      %v6381 = vld [vmem:[%s6372 + $0x20] sm:$0xf]
      %v6382 = vld [vmem:[%s6372 + $0x24] sm:$0xf]
      %v6383 = vld [vmem:[%s6372 + $0x28] sm:$0xf]
      %v6384 = vld [vmem:[%s6372 + $0x2c] sm:$0xf]
      %v6385 = vld [vmem:[%s6372 + $0x30] sm:$0xf]
      %v6386 = vld [vmem:[%s6372 + $0x34] sm:$0xf]
      %v6387 = vld [vmem:[%s6372 + $0x38] sm:$0xf]
      %v6388 = vld [vmem:[%s6372 + $0x3c] sm:$0xf]
      %v6405 = vunpack.c.l.b16 %v6373
      %v6406 = vunpack.c.l.b16 %v6374
      %v6407 = vunpack.c.l.b16 %v6375
      %v6408 = vunpack.c.l.b16 %v6376
      %v6409 = vunpack.c.l.b16 %v6377
      %v6410 = vunpack.c.l.b16 %v6378
      %v6411 = vunpack.c.l.b16 %v6379
      %v6412 = vunpack.c.l.b16 %v6380
      %v6413 = vunpack.c.l.b16 %v6381
      %v6414 = vunpack.c.l.b16 %v6382
      %v6415 = vunpack.c.l.b16 %v6383
      %v6416 = vunpack.c.l.b16 %v6384
      %v6417 = vunpack.c.l.b16 %v6385
      %v6418 = vunpack.c.l.b16 %v6386
      %v6419 = vunpack.c.l.b16 %v6387
      %v6420 = vunpack.c.l.b16 %v6388
      %v6421 = vpack.c.b16 %v6406, %v6405
      %v6422 = vpack.c.b16 %v6408, %v6407
      %v6423 = vpack.c.b16 %v6410, %v6409
      %v6424 = vpack.c.b16 %v6412, %v6411
      %v6425 = vpack.c.b16 %v6414, %v6413
      %v6426 = vpack.c.b16 %v6416, %v6415
      %v6427 = vpack.c.b16 %v6418, %v6417
      %v6428 = vpack.c.b16 %v6420, %v6419
      %6437 = vmatprep.subr.bf16.mxu0 0
      %6438 = vmatpush1.bf16.msra.mxu0 %v6428
      %6439 = vmatprep.subr.bf16.mxu0 0
      %6440 = vmatpush1.bf16.msra.mxu0 %v6427
      %6441 = vmatprep.subr.bf16.mxu0 0
      %6442 = vmatpush1.bf16.msra.mxu0 %v6426
      %6443 = vmatprep.subr.bf16.mxu0 0
      %6444 = vmatpush1.bf16.msra.mxu0 %v6425
      %6445 = vmatprep.subr.bf16.mxu0 0
      %6446 = vmatpush1.bf16.msra.mxu0 %v6424
      %6447 = vmatprep.subr.bf16.mxu0 0
      %6448 = vmatpush1.bf16.msra.mxu0 %v6423
      %6449 = vmatprep.subr.bf16.mxu0 0
      %6450 = vmatpush1.bf16.msra.mxu0 %v6422
      %6451 = vmatprep.subr.bf16.mxu0 0
      %6452 = vmatpush1.bf16.msra.mxu0 %v6421
      %6453 = vmatprep.subr.bf16.mxu0 0
      %6454 = vmatpush2.bf16.msra.mxu0 0
      %6455 = vmatprep.subr.bf16.mxu0 0
      %6456 = vmatpush2.bf16.msra.mxu0 0
      %6457 = vmatprep.subr.bf16.mxu0 0
      %6458 = vmatpush2.bf16.msra.mxu0 0
      %6459 = vmatprep.subr.bf16.mxu0 0
      %6460 = vmatpush2.bf16.msra.mxu0 0
      %6461 = vmatprep.subr.bf16.mxu0 0
      %6462 = vmatpush2.bf16.msra.mxu0 0
      %6463 = vmatprep.subr.bf16.mxu0 0
      %6464 = vmatpush2.bf16.msra.mxu0 0
      %6465 = vmatprep.subr.bf16.mxu0 0
      %6466 = vmatpush2.bf16.msra.mxu0 0
      %6467 = vmatprep.subr.bf16.mxu0 0
      %6468 = vmatpush2.bf16.msra.mxu0 0
      %6469 = vmatprep.mubr.bf16.mxu0 0
      %6470 = vmatmul.mubr.bf16.gmra.mxu0 %v6371
      %v6471 = vpop.f32.mrf.mxu0
      %v6472 = vadd.f32 0.0, %v6471
      %v6473 = vpop.f32.mrf.mxu0
      %v6474 = vpop.f32.mrf.mxu0
      %v6475 = vpop.f32.mrf.mxu0
      %6476 = vdwg.mxu0
      %v6477 = vadd.f32 %v6328, %v6472
      %s6478 = scalar_lea.vmem %s3, 160
      %v6479 = vld [vmem:[%s6478] sm:$0xf]
      %6480 = vmatprep.subr.bf16.mxu0 0
      %6481 = vmatpush1.bf16.msra.mxu0 %v514
      %6482 = vmatprep.subr.bf16.mxu0 0
      %6483 = vmatpush1.bf16.msra.mxu0 %v513
      %6484 = vmatprep.subr.bf16.mxu0 0
      %6485 = vmatpush1.bf16.msra.mxu0 %v512
      %6486 = vmatprep.subr.bf16.mxu0 0
      %6487 = vmatpush1.bf16.msra.mxu0 %v511
      %6488 = vmatprep.subr.bf16.mxu0 0
      %6489 = vmatpush1.bf16.msra.mxu0 %v510
      %6490 = vmatprep.subr.bf16.mxu0 0
      %6491 = vmatpush1.bf16.msra.mxu0 %v509
      %6492 = vmatprep.subr.bf16.mxu0 0
      %6493 = vmatpush1.bf16.msra.mxu0 %v508
      %6494 = vmatprep.subr.bf16.mxu0 0
      %6495 = vmatpush1.bf16.msra.mxu0 %v507
      %6496 = vmatprep.subr.bf16.mxu0 0
      %6497 = vmatpush2.bf16.msra.mxu0 0
      %6498 = vmatprep.subr.bf16.mxu0 0
      %6499 = vmatpush2.bf16.msra.mxu0 0
      %6500 = vmatprep.subr.bf16.mxu0 0
      %6501 = vmatpush2.bf16.msra.mxu0 0
      %6502 = vmatprep.subr.bf16.mxu0 0
      %6503 = vmatpush2.bf16.msra.mxu0 0
      %6504 = vmatprep.subr.bf16.mxu0 0
      %6505 = vmatpush2.bf16.msra.mxu0 0
      %6506 = vmatprep.subr.bf16.mxu0 0
      %6507 = vmatpush2.bf16.msra.mxu0 0
      %6508 = vmatprep.subr.bf16.mxu0 0
      %6509 = vmatpush2.bf16.msra.mxu0 0
      %6510 = vmatprep.subr.bf16.mxu0 0
      %6511 = vmatpush2.bf16.msra.mxu0 0
      %6512 = vmatprep.mubr.bf16.mxu0 0
      %6513 = vmatmul.mubr.bf16.gmra.mxu0 %v6479
      %v6514 = vpop.f32.mrf.mxu0
      %v6515 = vadd.f32 0.0, %v6514
      %v6516 = vpop.f32.mrf.mxu0
      %v6517 = vpop.f32.mrf.mxu0
      %v6518 = vpop.f32.mrf.mxu0
      %6519 = vdwg.mxu0
      %v6520 = vpack.c.bf16 %v6515, %v6515
      %s6521 = scalar_lea.vmem %s4, 2560
      %v6522 = vld [vmem:[%s6521] sm:$0xf]
      %v6523 = vld [vmem:[%s6521 + $0x4] sm:$0xf]
      %v6524 = vld [vmem:[%s6521 + $0x8] sm:$0xf]
      %v6525 = vld [vmem:[%s6521 + $0xc] sm:$0xf]
      %v6526 = vld [vmem:[%s6521 + $0x10] sm:$0xf]
      %v6527 = vld [vmem:[%s6521 + $0x14] sm:$0xf]
      %v6528 = vld [vmem:[%s6521 + $0x18] sm:$0xf]
      %v6529 = vld [vmem:[%s6521 + $0x1c] sm:$0xf]
      %v6530 = vld [vmem:[%s6521 + $0x20] sm:$0xf]
      %v6531 = vld [vmem:[%s6521 + $0x24] sm:$0xf]
      %v6532 = vld [vmem:[%s6521 + $0x28] sm:$0xf]
      %v6533 = vld [vmem:[%s6521 + $0x2c] sm:$0xf]
      %v6534 = vld [vmem:[%s6521 + $0x30] sm:$0xf]
      %v6535 = vld [vmem:[%s6521 + $0x34] sm:$0xf]
      %v6536 = vld [vmem:[%s6521 + $0x38] sm:$0xf]
      %v6537 = vld [vmem:[%s6521 + $0x3c] sm:$0xf]
      %v6554 = vunpack.c.l.b16 %v6522
      %v6555 = vunpack.c.l.b16 %v6523
      %v6556 = vunpack.c.l.b16 %v6524
      %v6557 = vunpack.c.l.b16 %v6525
      %v6558 = vunpack.c.l.b16 %v6526
      %v6559 = vunpack.c.l.b16 %v6527
      %v6560 = vunpack.c.l.b16 %v6528
      %v6561 = vunpack.c.l.b16 %v6529
      %v6562 = vunpack.c.l.b16 %v6530
      %v6563 = vunpack.c.l.b16 %v6531
      %v6564 = vunpack.c.l.b16 %v6532
      %v6565 = vunpack.c.l.b16 %v6533
      %v6566 = vunpack.c.l.b16 %v6534
      %v6567 = vunpack.c.l.b16 %v6535
      %v6568 = vunpack.c.l.b16 %v6536
      %v6569 = vunpack.c.l.b16 %v6537
      %v6570 = vpack.c.b16 %v6555, %v6554
      %v6571 = vpack.c.b16 %v6557, %v6556
      %v6572 = vpack.c.b16 %v6559, %v6558
      %v6573 = vpack.c.b16 %v6561, %v6560
      %v6574 = vpack.c.b16 %v6563, %v6562
      %v6575 = vpack.c.b16 %v6565, %v6564
      %v6576 = vpack.c.b16 %v6567, %v6566
      %v6577 = vpack.c.b16 %v6569, %v6568
      %6586 = vmatprep.subr.bf16.mxu0 0
      %6587 = vmatpush1.bf16.msra.mxu0 %v6577
      %6588 = vmatprep.subr.bf16.mxu0 0
      %6589 = vmatpush1.bf16.msra.mxu0 %v6576
      %6590 = vmatprep.subr.bf16.mxu0 0
      %6591 = vmatpush1.bf16.msra.mxu0 %v6575
      %6592 = vmatprep.subr.bf16.mxu0 0
      %6593 = vmatpush1.bf16.msra.mxu0 %v6574
      %6594 = vmatprep.subr.bf16.mxu0 0
      %6595 = vmatpush1.bf16.msra.mxu0 %v6573
      %6596 = vmatprep.subr.bf16.mxu0 0
      %6597 = vmatpush1.bf16.msra.mxu0 %v6572
      %6598 = vmatprep.subr.bf16.mxu0 0
      %6599 = vmatpush1.bf16.msra.mxu0 %v6571
      %6600 = vmatprep.subr.bf16.mxu0 0
      %6601 = vmatpush1.bf16.msra.mxu0 %v6570
      %6602 = vmatprep.subr.bf16.mxu0 0
      %6603 = vmatpush2.bf16.msra.mxu0 0
      %6604 = vmatprep.subr.bf16.mxu0 0
      %6605 = vmatpush2.bf16.msra.mxu0 0
      %6606 = vmatprep.subr.bf16.mxu0 0
      %6607 = vmatpush2.bf16.msra.mxu0 0
      %6608 = vmatprep.subr.bf16.mxu0 0
      %6609 = vmatpush2.bf16.msra.mxu0 0
      %6610 = vmatprep.subr.bf16.mxu0 0
      %6611 = vmatpush2.bf16.msra.mxu0 0
      %6612 = vmatprep.subr.bf16.mxu0 0
      %6613 = vmatpush2.bf16.msra.mxu0 0
      %6614 = vmatprep.subr.bf16.mxu0 0
      %6615 = vmatpush2.bf16.msra.mxu0 0
      %6616 = vmatprep.subr.bf16.mxu0 0
      %6617 = vmatpush2.bf16.msra.mxu0 0
      %6618 = vmatprep.mubr.bf16.mxu0 0
      %6619 = vmatmul.mubr.bf16.gmra.mxu0 %v6520
      %v6620 = vpop.f32.mrf.mxu0
      %v6621 = vadd.f32 0.0, %v6620
      %v6622 = vpop.f32.mrf.mxu0
      %v6623 = vpop.f32.mrf.mxu0
      %v6624 = vpop.f32.mrf.mxu0
      %6625 = vdwg.mxu0
      %v6626 = vadd.f32 %v6477, %v6621
      %s6627 = scalar_lea.vmem %s3, 164
      %v6628 = vld [vmem:[%s6627] sm:$0xf]
      %6629 = vmatprep.subr.bf16.mxu0 0
      %6630 = vmatpush1.bf16.msra.mxu0 %v514
      %6631 = vmatprep.subr.bf16.mxu0 0
      %6632 = vmatpush1.bf16.msra.mxu0 %v513
      %6633 = vmatprep.subr.bf16.mxu0 0
      %6634 = vmatpush1.bf16.msra.mxu0 %v512
      %6635 = vmatprep.subr.bf16.mxu0 0
      %6636 = vmatpush1.bf16.msra.mxu0 %v511
      %6637 = vmatprep.subr.bf16.mxu0 0
      %6638 = vmatpush1.bf16.msra.mxu0 %v510
      %6639 = vmatprep.subr.bf16.mxu0 0
      %6640 = vmatpush1.bf16.msra.mxu0 %v509
      %6641 = vmatprep.subr.bf16.mxu0 0
      %6642 = vmatpush1.bf16.msra.mxu0 %v508
      %6643 = vmatprep.subr.bf16.mxu0 0
      %6644 = vmatpush1.bf16.msra.mxu0 %v507
      %6645 = vmatprep.subr.bf16.mxu0 0
      %6646 = vmatpush2.bf16.msra.mxu0 0
      %6647 = vmatprep.subr.bf16.mxu0 0
      %6648 = vmatpush2.bf16.msra.mxu0 0
      %6649 = vmatprep.subr.bf16.mxu0 0
      %6650 = vmatpush2.bf16.msra.mxu0 0
      %6651 = vmatprep.subr.bf16.mxu0 0
      %6652 = vmatpush2.bf16.msra.mxu0 0
      %6653 = vmatprep.subr.bf16.mxu0 0
      %6654 = vmatpush2.bf16.msra.mxu0 0
      %6655 = vmatprep.subr.bf16.mxu0 0
      %6656 = vmatpush2.bf16.msra.mxu0 0
      %6657 = vmatprep.subr.bf16.mxu0 0
      %6658 = vmatpush2.bf16.msra.mxu0 0
      %6659 = vmatprep.subr.bf16.mxu0 0
      %6660 = vmatpush2.bf16.msra.mxu0 0
      %6661 = vmatprep.mubr.bf16.mxu0 0
      %6662 = vmatmul.mubr.bf16.gmra.mxu0 %v6628
      %v6663 = vpop.f32.mrf.mxu0
      %v6664 = vadd.f32 0.0, %v6663
      %v6665 = vpop.f32.mrf.mxu0
      %v6666 = vpop.f32.mrf.mxu0
      %v6667 = vpop.f32.mrf.mxu0
      %6668 = vdwg.mxu0
      %v6669 = vpack.c.bf16 %v6664, %v6664
      %s6670 = scalar_lea.vmem %s4, 2624
      %v6671 = vld [vmem:[%s6670] sm:$0xf]
      %v6672 = vld [vmem:[%s6670 + $0x4] sm:$0xf]
      %v6673 = vld [vmem:[%s6670 + $0x8] sm:$0xf]
      %v6674 = vld [vmem:[%s6670 + $0xc] sm:$0xf]
      %v6675 = vld [vmem:[%s6670 + $0x10] sm:$0xf]
      %v6676 = vld [vmem:[%s6670 + $0x14] sm:$0xf]
      %v6677 = vld [vmem:[%s6670 + $0x18] sm:$0xf]
      %v6678 = vld [vmem:[%s6670 + $0x1c] sm:$0xf]
      %v6679 = vld [vmem:[%s6670 + $0x20] sm:$0xf]
      %v6680 = vld [vmem:[%s6670 + $0x24] sm:$0xf]
      %v6681 = vld [vmem:[%s6670 + $0x28] sm:$0xf]
      %v6682 = vld [vmem:[%s6670 + $0x2c] sm:$0xf]
      %v6683 = vld [vmem:[%s6670 + $0x30] sm:$0xf]
      %v6684 = vld [vmem:[%s6670 + $0x34] sm:$0xf]
      %v6685 = vld [vmem:[%s6670 + $0x38] sm:$0xf]
      %v6686 = vld [vmem:[%s6670 + $0x3c] sm:$0xf]
      %v6703 = vunpack.c.l.b16 %v6671
      %v6704 = vunpack.c.l.b16 %v6672
      %v6705 = vunpack.c.l.b16 %v6673
      %v6706 = vunpack.c.l.b16 %v6674
      %v6707 = vunpack.c.l.b16 %v6675
      %v6708 = vunpack.c.l.b16 %v6676
      %v6709 = vunpack.c.l.b16 %v6677
      %v6710 = vunpack.c.l.b16 %v6678
      %v6711 = vunpack.c.l.b16 %v6679
      %v6712 = vunpack.c.l.b16 %v6680
      %v6713 = vunpack.c.l.b16 %v6681
      %v6714 = vunpack.c.l.b16 %v6682
      %v6715 = vunpack.c.l.b16 %v6683
      %v6716 = vunpack.c.l.b16 %v6684
      %v6717 = vunpack.c.l.b16 %v6685
      %v6718 = vunpack.c.l.b16 %v6686
      %v6719 = vpack.c.b16 %v6704, %v6703
      %v6720 = vpack.c.b16 %v6706, %v6705
      %v6721 = vpack.c.b16 %v6708, %v6707
      %v6722 = vpack.c.b16 %v6710, %v6709
      %v6723 = vpack.c.b16 %v6712, %v6711
      %v6724 = vpack.c.b16 %v6714, %v6713
      %v6725 = vpack.c.b16 %v6716, %v6715
      %v6726 = vpack.c.b16 %v6718, %v6717
      %6735 = vmatprep.subr.bf16.mxu0 0
      %6736 = vmatpush1.bf16.msra.mxu0 %v6726
      %6737 = vmatprep.subr.bf16.mxu0 0
      %6738 = vmatpush1.bf16.msra.mxu0 %v6725
      %6739 = vmatprep.subr.bf16.mxu0 0
      %6740 = vmatpush1.bf16.msra.mxu0 %v6724
      %6741 = vmatprep.subr.bf16.mxu0 0
      %6742 = vmatpush1.bf16.msra.mxu0 %v6723
      %6743 = vmatprep.subr.bf16.mxu0 0
      %6744 = vmatpush1.bf16.msra.mxu0 %v6722
      %6745 = vmatprep.subr.bf16.mxu0 0
      %6746 = vmatpush1.bf16.msra.mxu0 %v6721
      %6747 = vmatprep.subr.bf16.mxu0 0
      %6748 = vmatpush1.bf16.msra.mxu0 %v6720
      %6749 = vmatprep.subr.bf16.mxu0 0
      %6750 = vmatpush1.bf16.msra.mxu0 %v6719
      %6751 = vmatprep.subr.bf16.mxu0 0
      %6752 = vmatpush2.bf16.msra.mxu0 0
      %6753 = vmatprep.subr.bf16.mxu0 0
      %6754 = vmatpush2.bf16.msra.mxu0 0
      %6755 = vmatprep.subr.bf16.mxu0 0
      %6756 = vmatpush2.bf16.msra.mxu0 0
      %6757 = vmatprep.subr.bf16.mxu0 0
      %6758 = vmatpush2.bf16.msra.mxu0 0
      %6759 = vmatprep.subr.bf16.mxu0 0
      %6760 = vmatpush2.bf16.msra.mxu0 0
      %6761 = vmatprep.subr.bf16.mxu0 0
      %6762 = vmatpush2.bf16.msra.mxu0 0
      %6763 = vmatprep.subr.bf16.mxu0 0
      %6764 = vmatpush2.bf16.msra.mxu0 0
      %6765 = vmatprep.subr.bf16.mxu0 0
      %6766 = vmatpush2.bf16.msra.mxu0 0
      %6767 = vmatprep.mubr.bf16.mxu0 0
      %6768 = vmatmul.mubr.bf16.gmra.mxu0 %v6669
      %v6769 = vpop.f32.mrf.mxu0
      %v6770 = vadd.f32 0.0, %v6769
      %v6771 = vpop.f32.mrf.mxu0
      %v6772 = vpop.f32.mrf.mxu0
      %v6773 = vpop.f32.mrf.mxu0
      %6774 = vdwg.mxu0
      %v6775 = vadd.f32 %v6626, %v6770
      %s6776 = scalar_lea.vmem %s3, 168
      %v6777 = vld [vmem:[%s6776] sm:$0xf]
      %6778 = vmatprep.subr.bf16.mxu0 0
      %6779 = vmatpush1.bf16.msra.mxu0 %v514
      %6780 = vmatprep.subr.bf16.mxu0 0
      %6781 = vmatpush1.bf16.msra.mxu0 %v513
      %6782 = vmatprep.subr.bf16.mxu0 0
      %6783 = vmatpush1.bf16.msra.mxu0 %v512
      %6784 = vmatprep.subr.bf16.mxu0 0
      %6785 = vmatpush1.bf16.msra.mxu0 %v511
      %6786 = vmatprep.subr.bf16.mxu0 0
      %6787 = vmatpush1.bf16.msra.mxu0 %v510
      %6788 = vmatprep.subr.bf16.mxu0 0
      %6789 = vmatpush1.bf16.msra.mxu0 %v509
      %6790 = vmatprep.subr.bf16.mxu0 0
      %6791 = vmatpush1.bf16.msra.mxu0 %v508
      %6792 = vmatprep.subr.bf16.mxu0 0
      %6793 = vmatpush1.bf16.msra.mxu0 %v507
      %6794 = vmatprep.subr.bf16.mxu0 0
      %6795 = vmatpush2.bf16.msra.mxu0 0
      %6796 = vmatprep.subr.bf16.mxu0 0
      %6797 = vmatpush2.bf16.msra.mxu0 0
      %6798 = vmatprep.subr.bf16.mxu0 0
      %6799 = vmatpush2.bf16.msra.mxu0 0
      %6800 = vmatprep.subr.bf16.mxu0 0
      %6801 = vmatpush2.bf16.msra.mxu0 0
      %6802 = vmatprep.subr.bf16.mxu0 0
      %6803 = vmatpush2.bf16.msra.mxu0 0
      %6804 = vmatprep.subr.bf16.mxu0 0
      %6805 = vmatpush2.bf16.msra.mxu0 0
      %6806 = vmatprep.subr.bf16.mxu0 0
      %6807 = vmatpush2.bf16.msra.mxu0 0
      %6808 = vmatprep.subr.bf16.mxu0 0
      %6809 = vmatpush2.bf16.msra.mxu0 0
      %6810 = vmatprep.mubr.bf16.mxu0 0
      %6811 = vmatmul.mubr.bf16.gmra.mxu0 %v6777
      %v6812 = vpop.f32.mrf.mxu0
      %v6813 = vadd.f32 0.0, %v6812
      %v6814 = vpop.f32.mrf.mxu0
      %v6815 = vpop.f32.mrf.mxu0
      %v6816 = vpop.f32.mrf.mxu0
      %6817 = vdwg.mxu0
      %v6818 = vpack.c.bf16 %v6813, %v6813
      %s6819 = scalar_lea.vmem %s4, 2688
      %v6820 = vld [vmem:[%s6819] sm:$0xf]
      %v6821 = vld [vmem:[%s6819 + $0x4] sm:$0xf]
      %v6822 = vld [vmem:[%s6819 + $0x8] sm:$0xf]
      %v6823 = vld [vmem:[%s6819 + $0xc] sm:$0xf]
      %v6824 = vld [vmem:[%s6819 + $0x10] sm:$0xf]
      %v6825 = vld [vmem:[%s6819 + $0x14] sm:$0xf]
      %v6826 = vld [vmem:[%s6819 + $0x18] sm:$0xf]
      %v6827 = vld [vmem:[%s6819 + $0x1c] sm:$0xf]
      %v6828 = vld [vmem:[%s6819 + $0x20] sm:$0xf]
      %v6829 = vld [vmem:[%s6819 + $0x24] sm:$0xf]
      %v6830 = vld [vmem:[%s6819 + $0x28] sm:$0xf]
      %v6831 = vld [vmem:[%s6819 + $0x2c] sm:$0xf]
      %v6832 = vld [vmem:[%s6819 + $0x30] sm:$0xf]
      %v6833 = vld [vmem:[%s6819 + $0x34] sm:$0xf]
      %v6834 = vld [vmem:[%s6819 + $0x38] sm:$0xf]
      %v6835 = vld [vmem:[%s6819 + $0x3c] sm:$0xf]
      %v6852 = vunpack.c.l.b16 %v6820
      %v6853 = vunpack.c.l.b16 %v6821
      %v6854 = vunpack.c.l.b16 %v6822
      %v6855 = vunpack.c.l.b16 %v6823
      %v6856 = vunpack.c.l.b16 %v6824
      %v6857 = vunpack.c.l.b16 %v6825
      %v6858 = vunpack.c.l.b16 %v6826
      %v6859 = vunpack.c.l.b16 %v6827
      %v6860 = vunpack.c.l.b16 %v6828
      %v6861 = vunpack.c.l.b16 %v6829
      %v6862 = vunpack.c.l.b16 %v6830
      %v6863 = vunpack.c.l.b16 %v6831
      %v6864 = vunpack.c.l.b16 %v6832
      %v6865 = vunpack.c.l.b16 %v6833
      %v6866 = vunpack.c.l.b16 %v6834
      %v6867 = vunpack.c.l.b16 %v6835
      %v6868 = vpack.c.b16 %v6853, %v6852
      %v6869 = vpack.c.b16 %v6855, %v6854
      %v6870 = vpack.c.b16 %v6857, %v6856
      %v6871 = vpack.c.b16 %v6859, %v6858
      %v6872 = vpack.c.b16 %v6861, %v6860
      %v6873 = vpack.c.b16 %v6863, %v6862
      %v6874 = vpack.c.b16 %v6865, %v6864
      %v6875 = vpack.c.b16 %v6867, %v6866
      %6884 = vmatprep.subr.bf16.mxu0 0
      %6885 = vmatpush1.bf16.msra.mxu0 %v6875
      %6886 = vmatprep.subr.bf16.mxu0 0
      %6887 = vmatpush1.bf16.msra.mxu0 %v6874
      %6888 = vmatprep.subr.bf16.mxu0 0
      %6889 = vmatpush1.bf16.msra.mxu0 %v6873
      %6890 = vmatprep.subr.bf16.mxu0 0
      %6891 = vmatpush1.bf16.msra.mxu0 %v6872
      %6892 = vmatprep.subr.bf16.mxu0 0
      %6893 = vmatpush1.bf16.msra.mxu0 %v6871
      %6894 = vmatprep.subr.bf16.mxu0 0
      %6895 = vmatpush1.bf16.msra.mxu0 %v6870
      %6896 = vmatprep.subr.bf16.mxu0 0
      %6897 = vmatpush1.bf16.msra.mxu0 %v6869
      %6898 = vmatprep.subr.bf16.mxu0 0
      %6899 = vmatpush1.bf16.msra.mxu0 %v6868
      %6900 = vmatprep.subr.bf16.mxu0 0
      %6901 = vmatpush2.bf16.msra.mxu0 0
      %6902 = vmatprep.subr.bf16.mxu0 0
      %6903 = vmatpush2.bf16.msra.mxu0 0
      %6904 = vmatprep.subr.bf16.mxu0 0
      %6905 = vmatpush2.bf16.msra.mxu0 0
      %6906 = vmatprep.subr.bf16.mxu0 0
      %6907 = vmatpush2.bf16.msra.mxu0 0
      %6908 = vmatprep.subr.bf16.mxu0 0
      %6909 = vmatpush2.bf16.msra.mxu0 0
      %6910 = vmatprep.subr.bf16.mxu0 0
      %6911 = vmatpush2.bf16.msra.mxu0 0
      %6912 = vmatprep.subr.bf16.mxu0 0
      %6913 = vmatpush2.bf16.msra.mxu0 0
      %6914 = vmatprep.subr.bf16.mxu0 0
      %6915 = vmatpush2.bf16.msra.mxu0 0
      %6916 = vmatprep.mubr.bf16.mxu0 0
      %6917 = vmatmul.mubr.bf16.gmra.mxu0 %v6818
      %v6918 = vpop.f32.mrf.mxu0
      %v6919 = vadd.f32 0.0, %v6918
      %v6920 = vpop.f32.mrf.mxu0
      %v6921 = vpop.f32.mrf.mxu0
      %v6922 = vpop.f32.mrf.mxu0
      %6923 = vdwg.mxu0
      %v6924 = vadd.f32 %v6775, %v6919
      %s6925 = scalar_lea.vmem %s3, 172
      %v6926 = vld [vmem:[%s6925] sm:$0xf]
      %6927 = vmatprep.subr.bf16.mxu0 0
      %6928 = vmatpush1.bf16.msra.mxu0 %v514
      %6929 = vmatprep.subr.bf16.mxu0 0
      %6930 = vmatpush1.bf16.msra.mxu0 %v513
      %6931 = vmatprep.subr.bf16.mxu0 0
      %6932 = vmatpush1.bf16.msra.mxu0 %v512
      %6933 = vmatprep.subr.bf16.mxu0 0
      %6934 = vmatpush1.bf16.msra.mxu0 %v511
      %6935 = vmatprep.subr.bf16.mxu0 0
      %6936 = vmatpush1.bf16.msra.mxu0 %v510
      %6937 = vmatprep.subr.bf16.mxu0 0
      %6938 = vmatpush1.bf16.msra.mxu0 %v509
      %6939 = vmatprep.subr.bf16.mxu0 0
      %6940 = vmatpush1.bf16.msra.mxu0 %v508
      %6941 = vmatprep.subr.bf16.mxu0 0
      %6942 = vmatpush1.bf16.msra.mxu0 %v507
      %6943 = vmatprep.subr.bf16.mxu0 0
      %6944 = vmatpush2.bf16.msra.mxu0 0
      %6945 = vmatprep.subr.bf16.mxu0 0
      %6946 = vmatpush2.bf16.msra.mxu0 0
      %6947 = vmatprep.subr.bf16.mxu0 0
      %6948 = vmatpush2.bf16.msra.mxu0 0
      %6949 = vmatprep.subr.bf16.mxu0 0
      %6950 = vmatpush2.bf16.msra.mxu0 0
      %6951 = vmatprep.subr.bf16.mxu0 0
      %6952 = vmatpush2.bf16.msra.mxu0 0
      %6953 = vmatprep.subr.bf16.mxu0 0
      %6954 = vmatpush2.bf16.msra.mxu0 0
      %6955 = vmatprep.subr.bf16.mxu0 0
      %6956 = vmatpush2.bf16.msra.mxu0 0
      %6957 = vmatprep.subr.bf16.mxu0 0
      %6958 = vmatpush2.bf16.msra.mxu0 0
      %6959 = vmatprep.mubr.bf16.mxu0 0
      %6960 = vmatmul.mubr.bf16.gmra.mxu0 %v6926
      %v6961 = vpop.f32.mrf.mxu0
      %v6962 = vadd.f32 0.0, %v6961
      %v6963 = vpop.f32.mrf.mxu0
      %v6964 = vpop.f32.mrf.mxu0
      %v6965 = vpop.f32.mrf.mxu0
      %6966 = vdwg.mxu0
      %v6967 = vpack.c.bf16 %v6962, %v6962
      %s6968 = scalar_lea.vmem %s4, 2752
      %v6969 = vld [vmem:[%s6968] sm:$0xf]
      %v6970 = vld [vmem:[%s6968 + $0x4] sm:$0xf]
      %v6971 = vld [vmem:[%s6968 + $0x8] sm:$0xf]
      %v6972 = vld [vmem:[%s6968 + $0xc] sm:$0xf]
      %v6973 = vld [vmem:[%s6968 + $0x10] sm:$0xf]
      %v6974 = vld [vmem:[%s6968 + $0x14] sm:$0xf]
      %v6975 = vld [vmem:[%s6968 + $0x18] sm:$0xf]
      %v6976 = vld [vmem:[%s6968 + $0x1c] sm:$0xf]
      %v6977 = vld [vmem:[%s6968 + $0x20] sm:$0xf]
      %v6978 = vld [vmem:[%s6968 + $0x24] sm:$0xf]
      %v6979 = vld [vmem:[%s6968 + $0x28] sm:$0xf]
      %v6980 = vld [vmem:[%s6968 + $0x2c] sm:$0xf]
      %v6981 = vld [vmem:[%s6968 + $0x30] sm:$0xf]
      %v6982 = vld [vmem:[%s6968 + $0x34] sm:$0xf]
      %v6983 = vld [vmem:[%s6968 + $0x38] sm:$0xf]
      %v6984 = vld [vmem:[%s6968 + $0x3c] sm:$0xf]
      %v7001 = vunpack.c.l.b16 %v6969
      %v7002 = vunpack.c.l.b16 %v6970
      %v7003 = vunpack.c.l.b16 %v6971
      %v7004 = vunpack.c.l.b16 %v6972
      %v7005 = vunpack.c.l.b16 %v6973
      %v7006 = vunpack.c.l.b16 %v6974
      %v7007 = vunpack.c.l.b16 %v6975
      %v7008 = vunpack.c.l.b16 %v6976
      %v7009 = vunpack.c.l.b16 %v6977
      %v7010 = vunpack.c.l.b16 %v6978
      %v7011 = vunpack.c.l.b16 %v6979
      %v7012 = vunpack.c.l.b16 %v6980
      %v7013 = vunpack.c.l.b16 %v6981
      %v7014 = vunpack.c.l.b16 %v6982
      %v7015 = vunpack.c.l.b16 %v6983
      %v7016 = vunpack.c.l.b16 %v6984
      %v7017 = vpack.c.b16 %v7002, %v7001
      %v7018 = vpack.c.b16 %v7004, %v7003
      %v7019 = vpack.c.b16 %v7006, %v7005
      %v7020 = vpack.c.b16 %v7008, %v7007
      %v7021 = vpack.c.b16 %v7010, %v7009
      %v7022 = vpack.c.b16 %v7012, %v7011
      %v7023 = vpack.c.b16 %v7014, %v7013
      %v7024 = vpack.c.b16 %v7016, %v7015
      %7033 = vmatprep.subr.bf16.mxu0 0
      %7034 = vmatpush1.bf16.msra.mxu0 %v7024
      %7035 = vmatprep.subr.bf16.mxu0 0
      %7036 = vmatpush1.bf16.msra.mxu0 %v7023
      %7037 = vmatprep.subr.bf16.mxu0 0
      %7038 = vmatpush1.bf16.msra.mxu0 %v7022
      %7039 = vmatprep.subr.bf16.mxu0 0
      %7040 = vmatpush1.bf16.msra.mxu0 %v7021
      %7041 = vmatprep.subr.bf16.mxu0 0
      %7042 = vmatpush1.bf16.msra.mxu0 %v7020
      %7043 = vmatprep.subr.bf16.mxu0 0
      %7044 = vmatpush1.bf16.msra.mxu0 %v7019
      %7045 = vmatprep.subr.bf16.mxu0 0
      %7046 = vmatpush1.bf16.msra.mxu0 %v7018
      %7047 = vmatprep.subr.bf16.mxu0 0
      %7048 = vmatpush1.bf16.msra.mxu0 %v7017
      %7049 = vmatprep.subr.bf16.mxu0 0
      %7050 = vmatpush2.bf16.msra.mxu0 0
      %7051 = vmatprep.subr.bf16.mxu0 0
      %7052 = vmatpush2.bf16.msra.mxu0 0
      %7053 = vmatprep.subr.bf16.mxu0 0
      %7054 = vmatpush2.bf16.msra.mxu0 0
      %7055 = vmatprep.subr.bf16.mxu0 0
      %7056 = vmatpush2.bf16.msra.mxu0 0
      %7057 = vmatprep.subr.bf16.mxu0 0
      %7058 = vmatpush2.bf16.msra.mxu0 0
      %7059 = vmatprep.subr.bf16.mxu0 0
      %7060 = vmatpush2.bf16.msra.mxu0 0
      %7061 = vmatprep.subr.bf16.mxu0 0
      %7062 = vmatpush2.bf16.msra.mxu0 0
      %7063 = vmatprep.subr.bf16.mxu0 0
      %7064 = vmatpush2.bf16.msra.mxu0 0
      %7065 = vmatprep.mubr.bf16.mxu0 0
      %7066 = vmatmul.mubr.bf16.gmra.mxu0 %v6967
      %v7067 = vpop.f32.mrf.mxu0
      %v7068 = vadd.f32 0.0, %v7067
      %v7069 = vpop.f32.mrf.mxu0
      %v7070 = vpop.f32.mrf.mxu0
      %v7071 = vpop.f32.mrf.mxu0
      %7072 = vdwg.mxu0
      %v7073 = vadd.f32 %v6924, %v7068
      %s7074 = scalar_lea.vmem %s3, 176
      %v7075 = vld [vmem:[%s7074] sm:$0xf]
      %7076 = vmatprep.subr.bf16.mxu0 0
      %7077 = vmatpush1.bf16.msra.mxu0 %v514
      %7078 = vmatprep.subr.bf16.mxu0 0
      %7079 = vmatpush1.bf16.msra.mxu0 %v513
      %7080 = vmatprep.subr.bf16.mxu0 0
      %7081 = vmatpush1.bf16.msra.mxu0 %v512
      %7082 = vmatprep.subr.bf16.mxu0 0
      %7083 = vmatpush1.bf16.msra.mxu0 %v511
      %7084 = vmatprep.subr.bf16.mxu0 0
      %7085 = vmatpush1.bf16.msra.mxu0 %v510
      %7086 = vmatprep.subr.bf16.mxu0 0
      %7087 = vmatpush1.bf16.msra.mxu0 %v509
      %7088 = vmatprep.subr.bf16.mxu0 0
      %7089 = vmatpush1.bf16.msra.mxu0 %v508
      %7090 = vmatprep.subr.bf16.mxu0 0
      %7091 = vmatpush1.bf16.msra.mxu0 %v507
      %7092 = vmatprep.subr.bf16.mxu0 0
      %7093 = vmatpush2.bf16.msra.mxu0 0
      %7094 = vmatprep.subr.bf16.mxu0 0
      %7095 = vmatpush2.bf16.msra.mxu0 0
      %7096 = vmatprep.subr.bf16.mxu0 0
      %7097 = vmatpush2.bf16.msra.mxu0 0
      %7098 = vmatprep.subr.bf16.mxu0 0
      %7099 = vmatpush2.bf16.msra.mxu0 0
      %7100 = vmatprep.subr.bf16.mxu0 0
      %7101 = vmatpush2.bf16.msra.mxu0 0
      %7102 = vmatprep.subr.bf16.mxu0 0
      %7103 = vmatpush2.bf16.msra.mxu0 0
      %7104 = vmatprep.subr.bf16.mxu0 0
      %7105 = vmatpush2.bf16.msra.mxu0 0
      %7106 = vmatprep.subr.bf16.mxu0 0
      %7107 = vmatpush2.bf16.msra.mxu0 0
      %7108 = vmatprep.mubr.bf16.mxu0 0
      %7109 = vmatmul.mubr.bf16.gmra.mxu0 %v7075
      %v7110 = vpop.f32.mrf.mxu0
      %v7111 = vadd.f32 0.0, %v7110
      %v7112 = vpop.f32.mrf.mxu0
      %v7113 = vpop.f32.mrf.mxu0
      %v7114 = vpop.f32.mrf.mxu0
      %7115 = vdwg.mxu0
      %v7116 = vpack.c.bf16 %v7111, %v7111
      %s7117 = scalar_lea.vmem %s4, 2816
      %v7118 = vld [vmem:[%s7117] sm:$0xf]
      %v7119 = vld [vmem:[%s7117 + $0x4] sm:$0xf]
      %v7120 = vld [vmem:[%s7117 + $0x8] sm:$0xf]
      %v7121 = vld [vmem:[%s7117 + $0xc] sm:$0xf]
      %v7122 = vld [vmem:[%s7117 + $0x10] sm:$0xf]
      %v7123 = vld [vmem:[%s7117 + $0x14] sm:$0xf]
      %v7124 = vld [vmem:[%s7117 + $0x18] sm:$0xf]
      %v7125 = vld [vmem:[%s7117 + $0x1c] sm:$0xf]
      %v7126 = vld [vmem:[%s7117 + $0x20] sm:$0xf]
      %v7127 = vld [vmem:[%s7117 + $0x24] sm:$0xf]
      %v7128 = vld [vmem:[%s7117 + $0x28] sm:$0xf]
      %v7129 = vld [vmem:[%s7117 + $0x2c] sm:$0xf]
      %v7130 = vld [vmem:[%s7117 + $0x30] sm:$0xf]
      %v7131 = vld [vmem:[%s7117 + $0x34] sm:$0xf]
      %v7132 = vld [vmem:[%s7117 + $0x38] sm:$0xf]
      %v7133 = vld [vmem:[%s7117 + $0x3c] sm:$0xf]
      %v7150 = vunpack.c.l.b16 %v7118
      %v7151 = vunpack.c.l.b16 %v7119
      %v7152 = vunpack.c.l.b16 %v7120
      %v7153 = vunpack.c.l.b16 %v7121
      %v7154 = vunpack.c.l.b16 %v7122
      %v7155 = vunpack.c.l.b16 %v7123
      %v7156 = vunpack.c.l.b16 %v7124
      %v7157 = vunpack.c.l.b16 %v7125
      %v7158 = vunpack.c.l.b16 %v7126
      %v7159 = vunpack.c.l.b16 %v7127
      %v7160 = vunpack.c.l.b16 %v7128
      %v7161 = vunpack.c.l.b16 %v7129
      %v7162 = vunpack.c.l.b16 %v7130
      %v7163 = vunpack.c.l.b16 %v7131
      %v7164 = vunpack.c.l.b16 %v7132
      %v7165 = vunpack.c.l.b16 %v7133
      %v7166 = vpack.c.b16 %v7151, %v7150
      %v7167 = vpack.c.b16 %v7153, %v7152
      %v7168 = vpack.c.b16 %v7155, %v7154
      %v7169 = vpack.c.b16 %v7157, %v7156
      %v7170 = vpack.c.b16 %v7159, %v7158
      %v7171 = vpack.c.b16 %v7161, %v7160
      %v7172 = vpack.c.b16 %v7163, %v7162
      %v7173 = vpack.c.b16 %v7165, %v7164
      %7182 = vmatprep.subr.bf16.mxu0 0
      %7183 = vmatpush1.bf16.msra.mxu0 %v7173
      %7184 = vmatprep.subr.bf16.mxu0 0
      %7185 = vmatpush1.bf16.msra.mxu0 %v7172
      %7186 = vmatprep.subr.bf16.mxu0 0
      %7187 = vmatpush1.bf16.msra.mxu0 %v7171
      %7188 = vmatprep.subr.bf16.mxu0 0
      %7189 = vmatpush1.bf16.msra.mxu0 %v7170
      %7190 = vmatprep.subr.bf16.mxu0 0
      %7191 = vmatpush1.bf16.msra.mxu0 %v7169
      %7192 = vmatprep.subr.bf16.mxu0 0
      %7193 = vmatpush1.bf16.msra.mxu0 %v7168
      %7194 = vmatprep.subr.bf16.mxu0 0
      %7195 = vmatpush1.bf16.msra.mxu0 %v7167
      %7196 = vmatprep.subr.bf16.mxu0 0
      %7197 = vmatpush1.bf16.msra.mxu0 %v7166
      %7198 = vmatprep.subr.bf16.mxu0 0
      %7199 = vmatpush2.bf16.msra.mxu0 0
      %7200 = vmatprep.subr.bf16.mxu0 0
      %7201 = vmatpush2.bf16.msra.mxu0 0
      %7202 = vmatprep.subr.bf16.mxu0 0
      %7203 = vmatpush2.bf16.msra.mxu0 0
      %7204 = vmatprep.subr.bf16.mxu0 0
      %7205 = vmatpush2.bf16.msra.mxu0 0
      %7206 = vmatprep.subr.bf16.mxu0 0
      %7207 = vmatpush2.bf16.msra.mxu0 0
      %7208 = vmatprep.subr.bf16.mxu0 0
      %7209 = vmatpush2.bf16.msra.mxu0 0
      %7210 = vmatprep.subr.bf16.mxu0 0
      %7211 = vmatpush2.bf16.msra.mxu0 0
      %7212 = vmatprep.subr.bf16.mxu0 0
      %7213 = vmatpush2.bf16.msra.mxu0 0
      %7214 = vmatprep.mubr.bf16.mxu0 0
      %7215 = vmatmul.mubr.bf16.gmra.mxu0 %v7116
      %v7216 = vpop.f32.mrf.mxu0
      %v7217 = vadd.f32 0.0, %v7216
      %v7218 = vpop.f32.mrf.mxu0
      %v7219 = vpop.f32.mrf.mxu0
      %v7220 = vpop.f32.mrf.mxu0
      %7221 = vdwg.mxu0
      %v7222 = vadd.f32 %v7073, %v7217
      %s7223 = scalar_lea.vmem %s3, 180
      %v7224 = vld [vmem:[%s7223] sm:$0xf]
      %7225 = vmatprep.subr.bf16.mxu0 0
      %7226 = vmatpush1.bf16.msra.mxu0 %v514
      %7227 = vmatprep.subr.bf16.mxu0 0
      %7228 = vmatpush1.bf16.msra.mxu0 %v513
      %7229 = vmatprep.subr.bf16.mxu0 0
      %7230 = vmatpush1.bf16.msra.mxu0 %v512
      %7231 = vmatprep.subr.bf16.mxu0 0
      %7232 = vmatpush1.bf16.msra.mxu0 %v511
      %7233 = vmatprep.subr.bf16.mxu0 0
      %7234 = vmatpush1.bf16.msra.mxu0 %v510
      %7235 = vmatprep.subr.bf16.mxu0 0
      %7236 = vmatpush1.bf16.msra.mxu0 %v509
      %7237 = vmatprep.subr.bf16.mxu0 0
      %7238 = vmatpush1.bf16.msra.mxu0 %v508
      %7239 = vmatprep.subr.bf16.mxu0 0
      %7240 = vmatpush1.bf16.msra.mxu0 %v507
      %7241 = vmatprep.subr.bf16.mxu0 0
      %7242 = vmatpush2.bf16.msra.mxu0 0
      %7243 = vmatprep.subr.bf16.mxu0 0
      %7244 = vmatpush2.bf16.msra.mxu0 0
      %7245 = vmatprep.subr.bf16.mxu0 0
      %7246 = vmatpush2.bf16.msra.mxu0 0
      %7247 = vmatprep.subr.bf16.mxu0 0
      %7248 = vmatpush2.bf16.msra.mxu0 0
      %7249 = vmatprep.subr.bf16.mxu0 0
      %7250 = vmatpush2.bf16.msra.mxu0 0
      %7251 = vmatprep.subr.bf16.mxu0 0
      %7252 = vmatpush2.bf16.msra.mxu0 0
      %7253 = vmatprep.subr.bf16.mxu0 0
      %7254 = vmatpush2.bf16.msra.mxu0 0
      %7255 = vmatprep.subr.bf16.mxu0 0
      %7256 = vmatpush2.bf16.msra.mxu0 0
      %7257 = vmatprep.mubr.bf16.mxu0 0
      %7258 = vmatmul.mubr.bf16.gmra.mxu0 %v7224
      %v7259 = vpop.f32.mrf.mxu0
      %v7260 = vadd.f32 0.0, %v7259
      %v7261 = vpop.f32.mrf.mxu0
      %v7262 = vpop.f32.mrf.mxu0
      %v7263 = vpop.f32.mrf.mxu0
      %7264 = vdwg.mxu0
      %v7265 = vpack.c.bf16 %v7260, %v7260
      %s7266 = scalar_lea.vmem %s4, 2880
      %v7267 = vld [vmem:[%s7266] sm:$0xf]
      %v7268 = vld [vmem:[%s7266 + $0x4] sm:$0xf]
      %v7269 = vld [vmem:[%s7266 + $0x8] sm:$0xf]
      %v7270 = vld [vmem:[%s7266 + $0xc] sm:$0xf]
      %v7271 = vld [vmem:[%s7266 + $0x10] sm:$0xf]
      %v7272 = vld [vmem:[%s7266 + $0x14] sm:$0xf]
      %v7273 = vld [vmem:[%s7266 + $0x18] sm:$0xf]
      %v7274 = vld [vmem:[%s7266 + $0x1c] sm:$0xf]
      %v7275 = vld [vmem:[%s7266 + $0x20] sm:$0xf]
      %v7276 = vld [vmem:[%s7266 + $0x24] sm:$0xf]
      %v7277 = vld [vmem:[%s7266 + $0x28] sm:$0xf]
      %v7278 = vld [vmem:[%s7266 + $0x2c] sm:$0xf]
      %v7279 = vld [vmem:[%s7266 + $0x30] sm:$0xf]
      %v7280 = vld [vmem:[%s7266 + $0x34] sm:$0xf]
      %v7281 = vld [vmem:[%s7266 + $0x38] sm:$0xf]
      %v7282 = vld [vmem:[%s7266 + $0x3c] sm:$0xf]
      %v7299 = vunpack.c.l.b16 %v7267
      %v7300 = vunpack.c.l.b16 %v7268
      %v7301 = vunpack.c.l.b16 %v7269
      %v7302 = vunpack.c.l.b16 %v7270
      %v7303 = vunpack.c.l.b16 %v7271
      %v7304 = vunpack.c.l.b16 %v7272
      %v7305 = vunpack.c.l.b16 %v7273
      %v7306 = vunpack.c.l.b16 %v7274
      %v7307 = vunpack.c.l.b16 %v7275
      %v7308 = vunpack.c.l.b16 %v7276
      %v7309 = vunpack.c.l.b16 %v7277
      %v7310 = vunpack.c.l.b16 %v7278
      %v7311 = vunpack.c.l.b16 %v7279
      %v7312 = vunpack.c.l.b16 %v7280
      %v7313 = vunpack.c.l.b16 %v7281
      %v7314 = vunpack.c.l.b16 %v7282
      %v7315 = vpack.c.b16 %v7300, %v7299
      %v7316 = vpack.c.b16 %v7302, %v7301
      %v7317 = vpack.c.b16 %v7304, %v7303
      %v7318 = vpack.c.b16 %v7306, %v7305
      %v7319 = vpack.c.b16 %v7308, %v7307
      %v7320 = vpack.c.b16 %v7310, %v7309
      %v7321 = vpack.c.b16 %v7312, %v7311
      %v7322 = vpack.c.b16 %v7314, %v7313
      %7331 = vmatprep.subr.bf16.mxu0 0
      %7332 = vmatpush1.bf16.msra.mxu0 %v7322
      %7333 = vmatprep.subr.bf16.mxu0 0
      %7334 = vmatpush1.bf16.msra.mxu0 %v7321
      %7335 = vmatprep.subr.bf16.mxu0 0
      %7336 = vmatpush1.bf16.msra.mxu0 %v7320
      %7337 = vmatprep.subr.bf16.mxu0 0
      %7338 = vmatpush1.bf16.msra.mxu0 %v7319
      %7339 = vmatprep.subr.bf16.mxu0 0
      %7340 = vmatpush1.bf16.msra.mxu0 %v7318
      %7341 = vmatprep.subr.bf16.mxu0 0
      %7342 = vmatpush1.bf16.msra.mxu0 %v7317
      %7343 = vmatprep.subr.bf16.mxu0 0
      %7344 = vmatpush1.bf16.msra.mxu0 %v7316
      %7345 = vmatprep.subr.bf16.mxu0 0
      %7346 = vmatpush1.bf16.msra.mxu0 %v7315
      %7347 = vmatprep.subr.bf16.mxu0 0
      %7348 = vmatpush2.bf16.msra.mxu0 0
      %7349 = vmatprep.subr.bf16.mxu0 0
      %7350 = vmatpush2.bf16.msra.mxu0 0
      %7351 = vmatprep.subr.bf16.mxu0 0
      %7352 = vmatpush2.bf16.msra.mxu0 0
      %7353 = vmatprep.subr.bf16.mxu0 0
      %7354 = vmatpush2.bf16.msra.mxu0 0
      %7355 = vmatprep.subr.bf16.mxu0 0
      %7356 = vmatpush2.bf16.msra.mxu0 0
      %7357 = vmatprep.subr.bf16.mxu0 0
      %7358 = vmatpush2.bf16.msra.mxu0 0
      %7359 = vmatprep.subr.bf16.mxu0 0
      %7360 = vmatpush2.bf16.msra.mxu0 0
      %7361 = vmatprep.subr.bf16.mxu0 0
      %7362 = vmatpush2.bf16.msra.mxu0 0
      %7363 = vmatprep.mubr.bf16.mxu0 0
      %7364 = vmatmul.mubr.bf16.gmra.mxu0 %v7265
      %v7365 = vpop.f32.mrf.mxu0
      %v7366 = vadd.f32 0.0, %v7365
      %v7367 = vpop.f32.mrf.mxu0
      %v7368 = vpop.f32.mrf.mxu0
      %v7369 = vpop.f32.mrf.mxu0
      %7370 = vdwg.mxu0
      %v7371 = vadd.f32 %v7222, %v7366
      %s7372 = scalar_lea.vmem %s3, 184
      %v7373 = vld [vmem:[%s7372] sm:$0xf]
      %7374 = vmatprep.subr.bf16.mxu0 0
      %7375 = vmatpush1.bf16.msra.mxu0 %v514
      %7376 = vmatprep.subr.bf16.mxu0 0
      %7377 = vmatpush1.bf16.msra.mxu0 %v513
      %7378 = vmatprep.subr.bf16.mxu0 0
      %7379 = vmatpush1.bf16.msra.mxu0 %v512
      %7380 = vmatprep.subr.bf16.mxu0 0
      %7381 = vmatpush1.bf16.msra.mxu0 %v511
      %7382 = vmatprep.subr.bf16.mxu0 0
      %7383 = vmatpush1.bf16.msra.mxu0 %v510
      %7384 = vmatprep.subr.bf16.mxu0 0
      %7385 = vmatpush1.bf16.msra.mxu0 %v509
      %7386 = vmatprep.subr.bf16.mxu0 0
      %7387 = vmatpush1.bf16.msra.mxu0 %v508
      %7388 = vmatprep.subr.bf16.mxu0 0
      %7389 = vmatpush1.bf16.msra.mxu0 %v507
      %7390 = vmatprep.subr.bf16.mxu0 0
      %7391 = vmatpush2.bf16.msra.mxu0 0
      %7392 = vmatprep.subr.bf16.mxu0 0
      %7393 = vmatpush2.bf16.msra.mxu0 0
      %7394 = vmatprep.subr.bf16.mxu0 0
      %7395 = vmatpush2.bf16.msra.mxu0 0
      %7396 = vmatprep.subr.bf16.mxu0 0
      %7397 = vmatpush2.bf16.msra.mxu0 0
      %7398 = vmatprep.subr.bf16.mxu0 0
      %7399 = vmatpush2.bf16.msra.mxu0 0
      %7400 = vmatprep.subr.bf16.mxu0 0
      %7401 = vmatpush2.bf16.msra.mxu0 0
      %7402 = vmatprep.subr.bf16.mxu0 0
      %7403 = vmatpush2.bf16.msra.mxu0 0
      %7404 = vmatprep.subr.bf16.mxu0 0
      %7405 = vmatpush2.bf16.msra.mxu0 0
      %7406 = vmatprep.mubr.bf16.mxu0 0
      %7407 = vmatmul.mubr.bf16.gmra.mxu0 %v7373
      %v7408 = vpop.f32.mrf.mxu0
      %v7409 = vadd.f32 0.0, %v7408
      %v7410 = vpop.f32.mrf.mxu0
      %v7411 = vpop.f32.mrf.mxu0
      %v7412 = vpop.f32.mrf.mxu0
      %7413 = vdwg.mxu0
      %v7414 = vpack.c.bf16 %v7409, %v7409
      %s7415 = scalar_lea.vmem %s4, 2944
      %v7416 = vld [vmem:[%s7415] sm:$0xf]
      %v7417 = vld [vmem:[%s7415 + $0x4] sm:$0xf]
      %v7418 = vld [vmem:[%s7415 + $0x8] sm:$0xf]
      %v7419 = vld [vmem:[%s7415 + $0xc] sm:$0xf]
      %v7420 = vld [vmem:[%s7415 + $0x10] sm:$0xf]
      %v7421 = vld [vmem:[%s7415 + $0x14] sm:$0xf]
      %v7422 = vld [vmem:[%s7415 + $0x18] sm:$0xf]
      %v7423 = vld [vmem:[%s7415 + $0x1c] sm:$0xf]
      %v7424 = vld [vmem:[%s7415 + $0x20] sm:$0xf]
      %v7425 = vld [vmem:[%s7415 + $0x24] sm:$0xf]
      %v7426 = vld [vmem:[%s7415 + $0x28] sm:$0xf]
      %v7427 = vld [vmem:[%s7415 + $0x2c] sm:$0xf]
      %v7428 = vld [vmem:[%s7415 + $0x30] sm:$0xf]
      %v7429 = vld [vmem:[%s7415 + $0x34] sm:$0xf]
      %v7430 = vld [vmem:[%s7415 + $0x38] sm:$0xf]
      %v7431 = vld [vmem:[%s7415 + $0x3c] sm:$0xf]
      %v7448 = vunpack.c.l.b16 %v7416
      %v7449 = vunpack.c.l.b16 %v7417
      %v7450 = vunpack.c.l.b16 %v7418
      %v7451 = vunpack.c.l.b16 %v7419
      %v7452 = vunpack.c.l.b16 %v7420
      %v7453 = vunpack.c.l.b16 %v7421
      %v7454 = vunpack.c.l.b16 %v7422
      %v7455 = vunpack.c.l.b16 %v7423
      %v7456 = vunpack.c.l.b16 %v7424
      %v7457 = vunpack.c.l.b16 %v7425
      %v7458 = vunpack.c.l.b16 %v7426
      %v7459 = vunpack.c.l.b16 %v7427
      %v7460 = vunpack.c.l.b16 %v7428
      %v7461 = vunpack.c.l.b16 %v7429
      %v7462 = vunpack.c.l.b16 %v7430
      %v7463 = vunpack.c.l.b16 %v7431
      %v7464 = vpack.c.b16 %v7449, %v7448
      %v7465 = vpack.c.b16 %v7451, %v7450
      %v7466 = vpack.c.b16 %v7453, %v7452
      %v7467 = vpack.c.b16 %v7455, %v7454
      %v7468 = vpack.c.b16 %v7457, %v7456
      %v7469 = vpack.c.b16 %v7459, %v7458
      %v7470 = vpack.c.b16 %v7461, %v7460
      %v7471 = vpack.c.b16 %v7463, %v7462
      %7480 = vmatprep.subr.bf16.mxu0 0
      %7481 = vmatpush1.bf16.msra.mxu0 %v7471
      %7482 = vmatprep.subr.bf16.mxu0 0
      %7483 = vmatpush1.bf16.msra.mxu0 %v7470
      %7484 = vmatprep.subr.bf16.mxu0 0
      %7485 = vmatpush1.bf16.msra.mxu0 %v7469
      %7486 = vmatprep.subr.bf16.mxu0 0
      %7487 = vmatpush1.bf16.msra.mxu0 %v7468
      %7488 = vmatprep.subr.bf16.mxu0 0
      %7489 = vmatpush1.bf16.msra.mxu0 %v7467
      %7490 = vmatprep.subr.bf16.mxu0 0
      %7491 = vmatpush1.bf16.msra.mxu0 %v7466
      %7492 = vmatprep.subr.bf16.mxu0 0
      %7493 = vmatpush1.bf16.msra.mxu0 %v7465
      %7494 = vmatprep.subr.bf16.mxu0 0
      %7495 = vmatpush1.bf16.msra.mxu0 %v7464
      %7496 = vmatprep.subr.bf16.mxu0 0
      %7497 = vmatpush2.bf16.msra.mxu0 0
      %7498 = vmatprep.subr.bf16.mxu0 0
      %7499 = vmatpush2.bf16.msra.mxu0 0
      %7500 = vmatprep.subr.bf16.mxu0 0
      %7501 = vmatpush2.bf16.msra.mxu0 0
      %7502 = vmatprep.subr.bf16.mxu0 0
      %7503 = vmatpush2.bf16.msra.mxu0 0
      %7504 = vmatprep.subr.bf16.mxu0 0
      %7505 = vmatpush2.bf16.msra.mxu0 0
      %7506 = vmatprep.subr.bf16.mxu0 0
      %7507 = vmatpush2.bf16.msra.mxu0 0
      %7508 = vmatprep.subr.bf16.mxu0 0
      %7509 = vmatpush2.bf16.msra.mxu0 0
      %7510 = vmatprep.subr.bf16.mxu0 0
      %7511 = vmatpush2.bf16.msra.mxu0 0
      %7512 = vmatprep.mubr.bf16.mxu0 0
      %7513 = vmatmul.mubr.bf16.gmra.mxu0 %v7414
      %v7514 = vpop.f32.mrf.mxu0
      %v7515 = vadd.f32 0.0, %v7514
      %v7516 = vpop.f32.mrf.mxu0
      %v7517 = vpop.f32.mrf.mxu0
      %v7518 = vpop.f32.mrf.mxu0
      %7519 = vdwg.mxu0
      %v7520 = vadd.f32 %v7371, %v7515
      %s7521 = scalar_lea.vmem %s3, 188
      %v7522 = vld [vmem:[%s7521] sm:$0xf]
      %7523 = vmatprep.subr.bf16.mxu0 0
      %7524 = vmatpush1.bf16.msra.mxu0 %v514
      %7525 = vmatprep.subr.bf16.mxu0 0
      %7526 = vmatpush1.bf16.msra.mxu0 %v513
      %7527 = vmatprep.subr.bf16.mxu0 0
      %7528 = vmatpush1.bf16.msra.mxu0 %v512
      %7529 = vmatprep.subr.bf16.mxu0 0
      %7530 = vmatpush1.bf16.msra.mxu0 %v511
      %7531 = vmatprep.subr.bf16.mxu0 0
      %7532 = vmatpush1.bf16.msra.mxu0 %v510
      %7533 = vmatprep.subr.bf16.mxu0 0
      %7534 = vmatpush1.bf16.msra.mxu0 %v509
      %7535 = vmatprep.subr.bf16.mxu0 0
      %7536 = vmatpush1.bf16.msra.mxu0 %v508
      %7537 = vmatprep.subr.bf16.mxu0 0
      %7538 = vmatpush1.bf16.msra.mxu0 %v507
      %7539 = vmatprep.subr.bf16.mxu0 0
      %7540 = vmatpush2.bf16.msra.mxu0 0
      %7541 = vmatprep.subr.bf16.mxu0 0
      %7542 = vmatpush2.bf16.msra.mxu0 0
      %7543 = vmatprep.subr.bf16.mxu0 0
      %7544 = vmatpush2.bf16.msra.mxu0 0
      %7545 = vmatprep.subr.bf16.mxu0 0
      %7546 = vmatpush2.bf16.msra.mxu0 0
      %7547 = vmatprep.subr.bf16.mxu0 0
      %7548 = vmatpush2.bf16.msra.mxu0 0
      %7549 = vmatprep.subr.bf16.mxu0 0
      %7550 = vmatpush2.bf16.msra.mxu0 0
      %7551 = vmatprep.subr.bf16.mxu0 0
      %7552 = vmatpush2.bf16.msra.mxu0 0
      %7553 = vmatprep.subr.bf16.mxu0 0
      %7554 = vmatpush2.bf16.msra.mxu0 0
      %7555 = vmatprep.mubr.bf16.mxu0 0
      %7556 = vmatmul.mubr.bf16.gmra.mxu0 %v7522
      %v7557 = vpop.f32.mrf.mxu0
      %v7558 = vadd.f32 0.0, %v7557
      %v7559 = vpop.f32.mrf.mxu0
      %v7560 = vpop.f32.mrf.mxu0
      %v7561 = vpop.f32.mrf.mxu0
      %7562 = vdwg.mxu0
      %v7563 = vpack.c.bf16 %v7558, %v7558
      %s7564 = scalar_lea.vmem %s4, 3008
      %v7565 = vld [vmem:[%s7564] sm:$0xf]
      %v7566 = vld [vmem:[%s7564 + $0x4] sm:$0xf]
      %v7567 = vld [vmem:[%s7564 + $0x8] sm:$0xf]
      %v7568 = vld [vmem:[%s7564 + $0xc] sm:$0xf]
      %v7569 = vld [vmem:[%s7564 + $0x10] sm:$0xf]
      %v7570 = vld [vmem:[%s7564 + $0x14] sm:$0xf]
      %v7571 = vld [vmem:[%s7564 + $0x18] sm:$0xf]
      %v7572 = vld [vmem:[%s7564 + $0x1c] sm:$0xf]
      %v7573 = vld [vmem:[%s7564 + $0x20] sm:$0xf]
      %v7574 = vld [vmem:[%s7564 + $0x24] sm:$0xf]
      %v7575 = vld [vmem:[%s7564 + $0x28] sm:$0xf]
      %v7576 = vld [vmem:[%s7564 + $0x2c] sm:$0xf]
      %v7577 = vld [vmem:[%s7564 + $0x30] sm:$0xf]
      %v7578 = vld [vmem:[%s7564 + $0x34] sm:$0xf]
      %v7579 = vld [vmem:[%s7564 + $0x38] sm:$0xf]
      %v7580 = vld [vmem:[%s7564 + $0x3c] sm:$0xf]
      %v7597 = vunpack.c.l.b16 %v7565
      %v7598 = vunpack.c.l.b16 %v7566
      %v7599 = vunpack.c.l.b16 %v7567
      %v7600 = vunpack.c.l.b16 %v7568
      %v7601 = vunpack.c.l.b16 %v7569
      %v7602 = vunpack.c.l.b16 %v7570
      %v7603 = vunpack.c.l.b16 %v7571
      %v7604 = vunpack.c.l.b16 %v7572
      %v7605 = vunpack.c.l.b16 %v7573
      %v7606 = vunpack.c.l.b16 %v7574
      %v7607 = vunpack.c.l.b16 %v7575
      %v7608 = vunpack.c.l.b16 %v7576
      %v7609 = vunpack.c.l.b16 %v7577
      %v7610 = vunpack.c.l.b16 %v7578
      %v7611 = vunpack.c.l.b16 %v7579
      %v7612 = vunpack.c.l.b16 %v7580
      %v7613 = vpack.c.b16 %v7598, %v7597
      %v7614 = vpack.c.b16 %v7600, %v7599
      %v7615 = vpack.c.b16 %v7602, %v7601
      %v7616 = vpack.c.b16 %v7604, %v7603
      %v7617 = vpack.c.b16 %v7606, %v7605
      %v7618 = vpack.c.b16 %v7608, %v7607
      %v7619 = vpack.c.b16 %v7610, %v7609
      %v7620 = vpack.c.b16 %v7612, %v7611
      %7629 = vmatprep.subr.bf16.mxu0 0
      %7630 = vmatpush1.bf16.msra.mxu0 %v7620
      %7631 = vmatprep.subr.bf16.mxu0 0
      %7632 = vmatpush1.bf16.msra.mxu0 %v7619
      %7633 = vmatprep.subr.bf16.mxu0 0
      %7634 = vmatpush1.bf16.msra.mxu0 %v7618
      %7635 = vmatprep.subr.bf16.mxu0 0
      %7636 = vmatpush1.bf16.msra.mxu0 %v7617
      %7637 = vmatprep.subr.bf16.mxu0 0
      %7638 = vmatpush1.bf16.msra.mxu0 %v7616
      %7639 = vmatprep.subr.bf16.mxu0 0
      %7640 = vmatpush1.bf16.msra.mxu0 %v7615
      %7641 = vmatprep.subr.bf16.mxu0 0
      %7642 = vmatpush1.bf16.msra.mxu0 %v7614
      %7643 = vmatprep.subr.bf16.mxu0 0
      %7644 = vmatpush1.bf16.msra.mxu0 %v7613
      %7645 = vmatprep.subr.bf16.mxu0 0
      %7646 = vmatpush2.bf16.msra.mxu0 0
      %7647 = vmatprep.subr.bf16.mxu0 0
      %7648 = vmatpush2.bf16.msra.mxu0 0
      %7649 = vmatprep.subr.bf16.mxu0 0
      %7650 = vmatpush2.bf16.msra.mxu0 0
      %7651 = vmatprep.subr.bf16.mxu0 0
      %7652 = vmatpush2.bf16.msra.mxu0 0
      %7653 = vmatprep.subr.bf16.mxu0 0
      %7654 = vmatpush2.bf16.msra.mxu0 0
      %7655 = vmatprep.subr.bf16.mxu0 0
      %7656 = vmatpush2.bf16.msra.mxu0 0
      %7657 = vmatprep.subr.bf16.mxu0 0
      %7658 = vmatpush2.bf16.msra.mxu0 0
      %7659 = vmatprep.subr.bf16.mxu0 0
      %7660 = vmatpush2.bf16.msra.mxu0 0
      %7661 = vmatprep.mubr.bf16.mxu0 0
      %7662 = vmatmul.mubr.bf16.gmra.mxu0 %v7563
      %v7663 = vpop.f32.mrf.mxu0
      %v7664 = vadd.f32 0.0, %v7663
      %v7665 = vpop.f32.mrf.mxu0
      %v7666 = vpop.f32.mrf.mxu0
      %v7667 = vpop.f32.mrf.mxu0
      %7668 = vdwg.mxu0
      %v7669 = vadd.f32 %v7520, %v7664
      %s7670 = scalar_lea.vmem %s3, 192
      %v7671 = vld [vmem:[%s7670] sm:$0xf]
      %7672 = vmatprep.subr.bf16.mxu0 0
      %7673 = vmatpush1.bf16.msra.mxu0 %v514
      %7674 = vmatprep.subr.bf16.mxu0 0
      %7675 = vmatpush1.bf16.msra.mxu0 %v513
      %7676 = vmatprep.subr.bf16.mxu0 0
      %7677 = vmatpush1.bf16.msra.mxu0 %v512
      %7678 = vmatprep.subr.bf16.mxu0 0
      %7679 = vmatpush1.bf16.msra.mxu0 %v511
      %7680 = vmatprep.subr.bf16.mxu0 0
      %7681 = vmatpush1.bf16.msra.mxu0 %v510
      %7682 = vmatprep.subr.bf16.mxu0 0
      %7683 = vmatpush1.bf16.msra.mxu0 %v509
      %7684 = vmatprep.subr.bf16.mxu0 0
      %7685 = vmatpush1.bf16.msra.mxu0 %v508
      %7686 = vmatprep.subr.bf16.mxu0 0
      %7687 = vmatpush1.bf16.msra.mxu0 %v507
      %7688 = vmatprep.subr.bf16.mxu0 0
      %7689 = vmatpush2.bf16.msra.mxu0 0
      %7690 = vmatprep.subr.bf16.mxu0 0
      %7691 = vmatpush2.bf16.msra.mxu0 0
      %7692 = vmatprep.subr.bf16.mxu0 0
      %7693 = vmatpush2.bf16.msra.mxu0 0
      %7694 = vmatprep.subr.bf16.mxu0 0
      %7695 = vmatpush2.bf16.msra.mxu0 0
      %7696 = vmatprep.subr.bf16.mxu0 0
      %7697 = vmatpush2.bf16.msra.mxu0 0
      %7698 = vmatprep.subr.bf16.mxu0 0
      %7699 = vmatpush2.bf16.msra.mxu0 0
      %7700 = vmatprep.subr.bf16.mxu0 0
      %7701 = vmatpush2.bf16.msra.mxu0 0
      %7702 = vmatprep.subr.bf16.mxu0 0
      %7703 = vmatpush2.bf16.msra.mxu0 0
      %7704 = vmatprep.mubr.bf16.mxu0 0
      %7705 = vmatmul.mubr.bf16.gmra.mxu0 %v7671
      %v7706 = vpop.f32.mrf.mxu0
      %v7707 = vadd.f32 0.0, %v7706
      %v7708 = vpop.f32.mrf.mxu0
      %v7709 = vpop.f32.mrf.mxu0
      %v7710 = vpop.f32.mrf.mxu0
      %7711 = vdwg.mxu0
      %v7712 = vpack.c.bf16 %v7707, %v7707
      %s7713 = scalar_lea.vmem %s4, 3072
      %v7714 = vld [vmem:[%s7713] sm:$0xf]
      %v7715 = vld [vmem:[%s7713 + $0x4] sm:$0xf]
      %v7716 = vld [vmem:[%s7713 + $0x8] sm:$0xf]
      %v7717 = vld [vmem:[%s7713 + $0xc] sm:$0xf]
      %v7718 = vld [vmem:[%s7713 + $0x10] sm:$0xf]
      %v7719 = vld [vmem:[%s7713 + $0x14] sm:$0xf]
      %v7720 = vld [vmem:[%s7713 + $0x18] sm:$0xf]
      %v7721 = vld [vmem:[%s7713 + $0x1c] sm:$0xf]
      %v7722 = vld [vmem:[%s7713 + $0x20] sm:$0xf]
      %v7723 = vld [vmem:[%s7713 + $0x24] sm:$0xf]
      %v7724 = vld [vmem:[%s7713 + $0x28] sm:$0xf]
      %v7725 = vld [vmem:[%s7713 + $0x2c] sm:$0xf]
      %v7726 = vld [vmem:[%s7713 + $0x30] sm:$0xf]
      %v7727 = vld [vmem:[%s7713 + $0x34] sm:$0xf]
      %v7728 = vld [vmem:[%s7713 + $0x38] sm:$0xf]
      %v7729 = vld [vmem:[%s7713 + $0x3c] sm:$0xf]
      %v7746 = vunpack.c.l.b16 %v7714
      %v7747 = vunpack.c.l.b16 %v7715
      %v7748 = vunpack.c.l.b16 %v7716
      %v7749 = vunpack.c.l.b16 %v7717
      %v7750 = vunpack.c.l.b16 %v7718
      %v7751 = vunpack.c.l.b16 %v7719
      %v7752 = vunpack.c.l.b16 %v7720
      %v7753 = vunpack.c.l.b16 %v7721
      %v7754 = vunpack.c.l.b16 %v7722
      %v7755 = vunpack.c.l.b16 %v7723
      %v7756 = vunpack.c.l.b16 %v7724
      %v7757 = vunpack.c.l.b16 %v7725
      %v7758 = vunpack.c.l.b16 %v7726
      %v7759 = vunpack.c.l.b16 %v7727
      %v7760 = vunpack.c.l.b16 %v7728
      %v7761 = vunpack.c.l.b16 %v7729
      %v7762 = vpack.c.b16 %v7747, %v7746
      %v7763 = vpack.c.b16 %v7749, %v7748
      %v7764 = vpack.c.b16 %v7751, %v7750
      %v7765 = vpack.c.b16 %v7753, %v7752
      %v7766 = vpack.c.b16 %v7755, %v7754
      %v7767 = vpack.c.b16 %v7757, %v7756
      %v7768 = vpack.c.b16 %v7759, %v7758
      %v7769 = vpack.c.b16 %v7761, %v7760
      %7778 = vmatprep.subr.bf16.mxu0 0
      %7779 = vmatpush1.bf16.msra.mxu0 %v7769
      %7780 = vmatprep.subr.bf16.mxu0 0
      %7781 = vmatpush1.bf16.msra.mxu0 %v7768
      %7782 = vmatprep.subr.bf16.mxu0 0
      %7783 = vmatpush1.bf16.msra.mxu0 %v7767
      %7784 = vmatprep.subr.bf16.mxu0 0
      %7785 = vmatpush1.bf16.msra.mxu0 %v7766
      %7786 = vmatprep.subr.bf16.mxu0 0
      %7787 = vmatpush1.bf16.msra.mxu0 %v7765
      %7788 = vmatprep.subr.bf16.mxu0 0
      %7789 = vmatpush1.bf16.msra.mxu0 %v7764
      %7790 = vmatprep.subr.bf16.mxu0 0
      %7791 = vmatpush1.bf16.msra.mxu0 %v7763
      %7792 = vmatprep.subr.bf16.mxu0 0
      %7793 = vmatpush1.bf16.msra.mxu0 %v7762
      %7794 = vmatprep.subr.bf16.mxu0 0
      %7795 = vmatpush2.bf16.msra.mxu0 0
      %7796 = vmatprep.subr.bf16.mxu0 0
      %7797 = vmatpush2.bf16.msra.mxu0 0
      %7798 = vmatprep.subr.bf16.mxu0 0
      %7799 = vmatpush2.bf16.msra.mxu0 0
      %7800 = vmatprep.subr.bf16.mxu0 0
      %7801 = vmatpush2.bf16.msra.mxu0 0
      %7802 = vmatprep.subr.bf16.mxu0 0
      %7803 = vmatpush2.bf16.msra.mxu0 0
      %7804 = vmatprep.subr.bf16.mxu0 0
      %7805 = vmatpush2.bf16.msra.mxu0 0
      %7806 = vmatprep.subr.bf16.mxu0 0
      %7807 = vmatpush2.bf16.msra.mxu0 0
      %7808 = vmatprep.subr.bf16.mxu0 0
      %7809 = vmatpush2.bf16.msra.mxu0 0
      %7810 = vmatprep.mubr.bf16.mxu0 0
      %7811 = vmatmul.mubr.bf16.gmra.mxu0 %v7712
      %v7812 = vpop.f32.mrf.mxu0
      %v7813 = vadd.f32 0.0, %v7812
      %v7814 = vpop.f32.mrf.mxu0
      %v7815 = vpop.f32.mrf.mxu0
      %v7816 = vpop.f32.mrf.mxu0
      %7817 = vdwg.mxu0
      %v7818 = vadd.f32 %v7669, %v7813
      %v7819 = vld [vmem:[%s5] sm:$0x1]
      %v7821 = vlaneseq
      %v7822 = vshrl.u32 %v7821, 7
      %v7823 = vsub.s32 0, %v7822
      %v7824 = vrot.slane %v7819, %v7823
      %v7826 = vadd.f32 %v7818, %v7824
      %v7827 = vmax.f32 %v7826, 0.0
      %7828 = vst [vmem:[#allocation3] sm:$0xff] %v7827
    $region29: #{large_kernel_downsample_net.1} parent=1 // pred_fallthru
      _
    // Predicated region
    $region30: #{large_kernel_downsample_net.1} parent=1 // pred_check
      _
    $region31: #{large_kernel_downsample_net.1} parent=1 // pred_check_branch
      %7830 = sbr.rel (0) target = $region33
    $region32: #{large_kernel_downsample_net.1} parent=1 // pred_region
      %s7832 = ssub.s32 128, 128
      %7833 = vsyncadd [#allocation4], %s7832
      %s7835 = sshll.u32 [#allocation3], 4
      %s7836 = int_to_ptr.vmem [resolvable:$true] %s7835
      %7838 = dma.vmem_to_hbm [thread:$0]  %s7836, 128, %s6, [#allocation4]
    $region33: #{large_kernel_downsample_net.1} parent=1 // pred_fallthru
      _
    // Predicated region
    $region34: #{large_kernel_downsample_net.1} parent=1 // pred_check
      _
    $region35: #{large_kernel_downsample_net.1} parent=1 // pred_check_branch
      %7840 = sbr.rel (0) target = $region37
    $region36: #{large_kernel_downsample_net.1} parent=1 // pred_region
      %7841 = dma.done [#allocation4], 128
    $region37: #{large_kernel_downsample_net.1} parent=1 // pred_fallthru
      _
    %7842 = vsyncpa [#allocation4], 1

</llo_original>
